<compile_context>
chip_gen: v5e
topology: v5e:2x2
jax: 0.10.0
libtpu: 0.0.40
codegen_flags: <defaults>
</compile_context>

<pallas_src>
import jax
import jax.numpy as jnp
from jax.experimental import pallas as pl
from jax.experimental.pallas import tpu as pltpu

BN_EPS = 1e-5
LANE = 128


def _round_up(x, m):
    return (x + m - 1) // m * m


# ---------------------------------------------------------------------------
# Pass A: conv1 (9 shifted matmuls from the padded input) + partial BN stats
# ---------------------------------------------------------------------------
def _conv_stats_kernel(xp_ref, w_ref, y_ref, sum_ref, sq_ref):
    nb, h, w, cp = y_ref.shape
    cin = xp_ref.shape[-1]
    m = nb * h * w

    acc = jnp.zeros((m, cp), jnp.float32)
    for ky in range(3):
        for kx in range(3):
            patch = xp_ref[:, ky:ky + h, kx:kx + w, :].reshape(m, cin)
            acc = acc + jnp.dot(patch, w_ref[3 * ky + kx],
                                preferred_element_type=jnp.float32)

    y_ref[...] = acc.reshape(nb, h, w, cp).astype(y_ref.dtype)
    sum_ref[...] = jnp.sum(acc, axis=0, keepdims=True).reshape(1, 1, cp)
    sq_ref[...] = jnp.sum(acc * acc, axis=0, keepdims=True).reshape(1, 1, cp)


# ---------------------------------------------------------------------------
# Pass B: bn1 + relu (into a zero-halo VMEM buffer) -> conv2 + partial stats
# ---------------------------------------------------------------------------
def _bn_relu_conv_stats_kernel(y1_ref, w_ref, scale_ref, shift_ref,
                               y2_ref, sum_ref, sq_ref, hbuf):
    nb, h, w, cp = y1_ref.shape
    m = nb * h * w

    # BN1 + ReLU in f32, written into the interior of a zeroed halo buffer so
    # conv2's zero padding is applied to the *post-BN/ReLU* activation.
    hbuf[...] = jnp.zeros(hbuf.shape, hbuf.dtype)
    act = y1_ref[...].astype(jnp.float32) * scale_ref[...] + shift_ref[...]
    act = jnp.maximum(act, 0.0)
    hbuf[:, 1:h + 1, 1:w + 1, :] = act.astype(hbuf.dtype)

    # conv2 as 9 shifted matmuls from the halo buffer (bf16 MXU, f32 acc).
    acc = jnp.zeros((m, cp), jnp.float32)
    for ky in range(3):
        for kx in range(3):
            patch = hbuf[:, ky:ky + h, kx:kx + w, :].reshape(m, cp)
            acc = acc + jnp.dot(patch, w_ref[3 * ky + kx],
                                preferred_element_type=jnp.float32)

    y2_ref[...] = acc.reshape(nb, h, w, cp).astype(y2_ref.dtype)
    sum_ref[...] = jnp.sum(acc, axis=0, keepdims=True).reshape(1, 1, cp)
    sq_ref[...] = jnp.sum(acc * acc, axis=0, keepdims=True).reshape(1, 1, cp)


# ---------------------------------------------------------------------------
# Pass C: bn2 + residual add + relu (pointwise)
# ---------------------------------------------------------------------------
def _bn_residual_relu_kernel(y2_ref, scale_ref, shift_ref, res_ref, o_ref):
    y = y2_ref[...].astype(jnp.float32) * scale_ref[...] + shift_ref[...]
    y = y + res_ref[...].astype(jnp.float32)
    o_ref[...] = jnp.maximum(y, 0.0).astype(o_ref.dtype)


# ---------------------------------------------------------------------------
# Wrapper-side glue
# ---------------------------------------------------------------------------
def _bn_scale_shift(sum_parts, sq_parts, count, gamma, beta, cp):
    """Global BN stats from per-tile partial sums -> fused scale/shift (f32)."""
    cout = gamma.shape[0]
    s = jnp.sum(sum_parts[:, 0, :], axis=0)
    q = jnp.sum(sq_parts[:, 0, :], axis=0)
    mean = s / count
    var = jnp.maximum(q / count - mean * mean, 0.0)
    g = jnp.pad(gamma.astype(jnp.float32), (0, cp - cout))
    b = jnp.pad(beta.astype(jnp.float32), (0, cp - cout))
    scale = g * jax.lax.rsqrt(var + BN_EPS)
    shift = b - mean * scale
    return scale.reshape(1, cp), shift.reshape(1, cp)


def basic_block_meta_forward(x_nchw, params, *, batch_tile=1):
    """Pallas implementation of BasicBlockMeta.forward (stride=1, no downsample)."""
    w1, g1, b1, w2, g2, b2 = params
    n, cin, h, w = x_nchw.shape
    cout = w1.shape[0]
    assert cin == cout, "downsample=None requires inplanes == planes"
    assert n % batch_tile == 0
    nb = batch_tile
    n_tiles = n // nb
    cp = _round_up(cout, LANE)           # lane-dense channel dim

    # TODO(synk): NCHW<->NHWC transposes, the halo pad and the tiny global
    # BN-stat finalize remain plain-JAX glue around the Pallas hot path.
    x_nhwc = jnp.transpose(x_nchw, (0, 2, 3, 1))
    xp = jnp.pad(x_nhwc, ((0, 0), (1, 1), (1, 1), (0, 0))).astype(jnp.bfloat16)

    # torch conv weight (Cout, Cin, 3, 3) -> (ky, kx, Cin, Cout) -> (9, K, Cp)
    w1_r = jnp.transpose(w1, (2, 3, 1, 0)).reshape(9, cin, cout)
    w1_p = jnp.pad(w1_r, ((0, 0), (0, 0), (0, cp - cout))).astype(jnp.bfloat16)
    w2_r = jnp.transpose(w2, (2, 3, 1, 0)).reshape(9, cout, cout)
    w2_p = jnp.pad(w2_r, ((0, 0), (0, cp - cout), (0, cp - cout))).astype(jnp.bfloat16)

    count = float(n * h * w)
    cparams = pltpu.CompilerParams(
        dimension_semantics=("parallel",),          # v7x: shard grid over 2 TCs
        vmem_limit_bytes=48 * 1024 * 1024,          # raised, but < v7x 64 MiB
    )
    tile_map = lambda i: (i, 0, 0, 0)
    stat_map = lambda i: (i, 0, 0)
    full3_map = lambda i: (0, 0, 0)                 # weights stay resident
    vec_map = lambda i: (0, 0)

    # ---- Pass A: conv1 + partial stats -------------------------------------
    y1, s1, q1 = pl.pallas_call(
        _conv_stats_kernel,
        grid=(n_tiles,),
        in_specs=[
            pl.BlockSpec((nb, h + 2, w + 2, cin), tile_map),
            pl.BlockSpec((9, cin, cp), full3_map),
        ],
        out_specs=[
            pl.BlockSpec((nb, h, w, cp), tile_map),
            pl.BlockSpec((1, 1, cp), stat_map),
            pl.BlockSpec((1, 1, cp), stat_map),
        ],
        out_shape=[
            jax.ShapeDtypeStruct((n, h, w, cp), jnp.bfloat16),
            jax.ShapeDtypeStruct((n_tiles, 1, cp), jnp.float32),
            jax.ShapeDtypeStruct((n_tiles, 1, cp), jnp.float32),
        ],
        compiler_params=cparams,
    )(xp, w1_p)

    scale1, shift1 = _bn_scale_shift(s1, q1, count, g1, b1, cp)

    # ---- Pass B: bn1 + relu -> conv2 + partial stats ------------------------
    y2, s2, q2 = pl.pallas_call(
        _bn_relu_conv_stats_kernel,
        grid=(n_tiles,),
        in_specs=[
            pl.BlockSpec((nb, h, w, cp), tile_map),
            pl.BlockSpec((9, cp, cp), full3_map),
            pl.BlockSpec((1, cp), vec_map),
            pl.BlockSpec((1, cp), vec_map),
        ],
        out_specs=[
            pl.BlockSpec((nb, h, w, cp), tile_map),
            pl.BlockSpec((1, 1, cp), stat_map),
            pl.BlockSpec((1, 1, cp), stat_map),
        ],
        out_shape=[
            jax.ShapeDtypeStruct((n, h, w, cp), jnp.bfloat16),
            jax.ShapeDtypeStruct((n_tiles, 1, cp), jnp.float32),
            jax.ShapeDtypeStruct((n_tiles, 1, cp), jnp.float32),
        ],
        scratch_shapes=[pltpu.VMEM((nb, h + 2, w + 2, cp), jnp.bfloat16)],
        compiler_params=cparams,
    )(y1, w2_p, scale1, shift1)

    scale2, shift2 = _bn_scale_shift(s2, q2, count, g2, b2, cp)

    # ---- Pass C: bn2 + residual + relu --------------------------------------
    res = jnp.pad(x_nhwc, ((0, 0), (0, 0), (0, 0), (0, cp - cin))).astype(jnp.bfloat16)
    out_p = pl.pallas_call(
        _bn_residual_relu_kernel,
        grid=(n_tiles,),
        in_specs=[
            pl.BlockSpec((nb, h, w, cp), tile_map),
            pl.BlockSpec((1, cp), vec_map),
            pl.BlockSpec((1, cp), vec_map),
            pl.BlockSpec((nb, h, w, cp), tile_map),
        ],
        out_specs=pl.BlockSpec((nb, h, w, cp), tile_map),
        out_shape=jax.ShapeDtypeStruct((n, h, w, cp), jnp.float32),
        compiler_params=cparams,
    )(y2, scale2, shift2, res)

    out = out_p[..., :cout].astype(x_nchw.dtype)
    return jnp.transpose(out, (0, 3, 1, 2))        # back to NCHW


# ---------------------------------------------------------------------------
# Pure-JAX reference (matches PyTorch semantics) for a sanity check
# ---------------------------------------------------------------------------
def reference_forward(x_nchw, params):
    w1, g1, b1, w2, g2, b2 = params

    def conv(x, w):
        return jax.lax.conv_general_dilated(
            x, w, window_strides=(1, 1), padding=((1, 1), (1, 1)),
            dimension_numbers=("NCHW", "OIHW", "NCHW"))

    def bn(x, g, b):
        mean = jnp.mean(x, axis=(0, 2, 3), keepdims=True)
        var = jnp.mean(jnp.square(x - mean), axis=(0, 2, 3), keepdims=True)
        return ((x - mean) * jax.lax.rsqrt(var + BN_EPS)
                * g.reshape(1, -1, 1, 1) + b.reshape(1, -1, 1, 1))

    out = jax.nn.relu(bn(conv(x_nchw, w1), g1, b1))
    out = bn(conv(out, w2), g2, b2) + x_nchw
    return jax.nn.relu(out)


# ---------------------------------------------------------------------------
if __name__ == "__main__":
    key = jax.random.PRNGKey(0)
    N, C, H, W = 2, 8, 16, 16          # inplanes == planes == 8, stride = 1
    ks = jax.random.split(key, 7)

    x = jax.random.normal(ks[0], (N, C, H, W), jnp.float32)

    fan_in = C * 3 * 3
    scale = (2.0 / fan_in) ** 0.5      # kaiming-style deterministic init
    w1 = jax.random.normal(ks[1], (C, C, 3, 3), jnp.float32) * scale
    w2 = jax.random.normal(ks[2], (C, C, 3, 3), jnp.float32) * scale
    g1 = 1.0 + 0.1 * jax.random.normal(ks[3], (C,), jnp.float32)
    b1 = 0.1 * jax.random.normal(ks[4], (C,), jnp.float32)
    g2 = 1.0 + 0.1 * jax.random.normal(ks[5], (C,), jnp.float32)
    b2 = 0.1 * jax.random.normal(ks[6], (C,), jnp.float32)
    params = (w1, g1, b1, w2, g2, b2)

    fwd = jax.jit(basic_block_meta_forward)
    out = jax.block_until_ready(fwd(x, params))
    ref = jax.block_until_ready(reference_forward(x, params))

    assert out.shape == x.shape, (out.shape, x.shape)
    if not jnp.allclose(out, ref, atol=5e-2, rtol=5e-2):
        max_err = float(jnp.max(jnp.abs(out - ref)))
        raise AssertionError(f"Pallas result differs from reference, max_err={max_err}")

    print("KERNEL_OK")
</pallas_src>

<mosaic_0001>
module attributes {stable_mosaic.version = 11 : i64} {
  func.func @_conv_stats_kernel(%arg0: i32, %arg1: memref<1x18x18x8xbf16, #tpu.memory_space<vmem>>, %arg2: memref<9x8x128xbf16, #tpu.memory_space<vmem>>, %arg3: memref<1x16x16x128xbf16, #tpu.memory_space<vmem>>, %arg4: memref<1x1x128xf32, #tpu.memory_space<vmem>>, %arg5: memref<1x1x128xf32, #tpu.memory_space<vmem>>) attributes {dimension_semantics = [#tpu.dimension_semantics<parallel>], iteration_bounds = array<i64: 2>, scalar_prefetch = 0 : i64, scratch_operands = 0 : i64, tpu.core_type = #tpu.core_type<tc>, window_params = [{transform_indices = @transform_0, window_bounds = array<i64: 1, 18, 18, 8>}, {pipeline_mode = #tpu.pipeline_mode<synchronous>, transform_indices = @transform_1, window_bounds = array<i64: 9, 8, 128>}, {transform_indices = @transform_2, window_bounds = array<i64: 1, 16, 16, 128>}, {transform_indices = @transform_3, window_bounds = array<i64: 1, 1, 128>}, {transform_indices = @transform_4, window_bounds = array<i64: 1, 1, 128>}]} {
    %cst = arith.constant 0.000000e+00 : f32
    %0 = vector.broadcast %cst : f32 to vector<256x128xf32>
    %c0 = arith.constant 0 : index
    %c0_0 = arith.constant 0 : index
    %c0_1 = arith.constant 0 : index
    %c0_2 = arith.constant 0 : index
    %1 = vector.load %arg1[%c0, %c0_0, %c0_1, %c0_2] : memref<1x18x18x8xbf16, #tpu.memory_space<vmem>>, vector<1x16x16x8xbf16>
    %2 = vector.shape_cast %1 : vector<1x16x16x8xbf16> to vector<256x8xbf16>
    %c0_3 = arith.constant 0 : index
    %c0_4 = arith.constant 0 : index
    %c0_5 = arith.constant 0 : index
    %3 = vector.load %arg2[%c0_3, %c0_4, %c0_5] : memref<9x8x128xbf16, #tpu.memory_space<vmem>>, vector<1x8x128xbf16>
    %4 = vector.shape_cast %3 : vector<1x8x128xbf16> to vector<8x128xbf16>
    %cst_6 = arith.constant dense<0.000000e+00> : vector<256x128xf32>
    %5 = tpu.matmul %2, %4, %cst_6 {dimension_numbers = #tpu.dot_dimension_numbers<[1], [0], [0], [1], [0, 0, 1, 1], [], []>} : vector<256x8xbf16>, vector<8x128xbf16>, vector<256x128xf32> -> vector<256x128xf32>
    %6 = arith.addf %0, %5 : vector<256x128xf32>
    %c0_7 = arith.constant 0 : index
    %c0_8 = arith.constant 0 : index
    %c1 = arith.constant 1 : index
    %c0_9 = arith.constant 0 : index
    %7 = vector.load %arg1[%c0_7, %c0_8, %c1, %c0_9] : memref<1x18x18x8xbf16, #tpu.memory_space<vmem>>, vector<1x16x16x8xbf16>
    %8 = vector.shape_cast %7 : vector<1x16x16x8xbf16> to vector<256x8xbf16>
    %c1_10 = arith.constant 1 : index
    %c0_11 = arith.constant 0 : index
    %c0_12 = arith.constant 0 : index
    %9 = vector.load %arg2[%c1_10, %c0_11, %c0_12] : memref<9x8x128xbf16, #tpu.memory_space<vmem>>, vector<1x8x128xbf16>
    %10 = vector.shape_cast %9 : vector<1x8x128xbf16> to vector<8x128xbf16>
    %cst_13 = arith.constant dense<0.000000e+00> : vector<256x128xf32>
    %11 = tpu.matmul %8, %10, %cst_13 {dimension_numbers = #tpu.dot_dimension_numbers<[1], [0], [0], [1], [0, 0, 1, 1], [], []>} : vector<256x8xbf16>, vector<8x128xbf16>, vector<256x128xf32> -> vector<256x128xf32>
    %12 = arith.addf %6, %11 : vector<256x128xf32>
    %c0_14 = arith.constant 0 : index
    %c0_15 = arith.constant 0 : index
    %c2 = arith.constant 2 : index
    %c0_16 = arith.constant 0 : index
    %13 = vector.load %arg1[%c0_14, %c0_15, %c2, %c0_16] : memref<1x18x18x8xbf16, #tpu.memory_space<vmem>>, vector<1x16x16x8xbf16>
    %14 = vector.shape_cast %13 : vector<1x16x16x8xbf16> to vector<256x8xbf16>
    %c2_17 = arith.constant 2 : index
    %c0_18 = arith.constant 0 : index
    %c0_19 = arith.constant 0 : index
    %15 = vector.load %arg2[%c2_17, %c0_18, %c0_19] : memref<9x8x128xbf16, #tpu.memory_space<vmem>>, vector<1x8x128xbf16>
    %16 = vector.shape_cast %15 : vector<1x8x128xbf16> to vector<8x128xbf16>
    %cst_20 = arith.constant dense<0.000000e+00> : vector<256x128xf32>
    %17 = tpu.matmul %14, %16, %cst_20 {dimension_numbers = #tpu.dot_dimension_numbers<[1], [0], [0], [1], [0, 0, 1, 1], [], []>} : vector<256x8xbf16>, vector<8x128xbf16>, vector<256x128xf32> -> vector<256x128xf32>
    %18 = arith.addf %12, %17 : vector<256x128xf32>
    %c0_21 = arith.constant 0 : index
    %c1_22 = arith.constant 1 : index
    %c0_23 = arith.constant 0 : index
    %c0_24 = arith.constant 0 : index
    %19 = vector.load %arg1[%c0_21, %c1_22, %c0_23, %c0_24] : memref<1x18x18x8xbf16, #tpu.memory_space<vmem>>, vector<1x16x16x8xbf16>
    %20 = vector.shape_cast %19 : vector<1x16x16x8xbf16> to vector<256x8xbf16>
    %c3 = arith.constant 3 : index
    %c0_25 = arith.constant 0 : index
    %c0_26 = arith.constant 0 : index
    %21 = vector.load %arg2[%c3, %c0_25, %c0_26] : memref<9x8x128xbf16, #tpu.memory_space<vmem>>, vector<1x8x128xbf16>
    %22 = vector.shape_cast %21 : vector<1x8x128xbf16> to vector<8x128xbf16>
    %cst_27 = arith.constant dense<0.000000e+00> : vector<256x128xf32>
    %23 = tpu.matmul %20, %22, %cst_27 {dimension_numbers = #tpu.dot_dimension_numbers<[1], [0], [0], [1], [0, 0, 1, 1], [], []>} : vector<256x8xbf16>, vector<8x128xbf16>, vector<256x128xf32> -> vector<256x128xf32>
    %24 = arith.addf %18, %23 : vector<256x128xf32>
    %c0_28 = arith.constant 0 : index
    %c1_29 = arith.constant 1 : index
    %c1_30 = arith.constant 1 : index
    %c0_31 = arith.constant 0 : index
    %25 = vector.load %arg1[%c0_28, %c1_29, %c1_30, %c0_31] : memref<1x18x18x8xbf16, #tpu.memory_space<vmem>>, vector<1x16x16x8xbf16>
    %26 = vector.shape_cast %25 : vector<1x16x16x8xbf16> to vector<256x8xbf16>
    %c4 = arith.constant 4 : index
    %c0_32 = arith.constant 0 : index
    %c0_33 = arith.constant 0 : index
    %27 = vector.load %arg2[%c4, %c0_32, %c0_33] : memref<9x8x128xbf16, #tpu.memory_space<vmem>>, vector<1x8x128xbf16>
    %28 = vector.shape_cast %27 : vector<1x8x128xbf16> to vector<8x128xbf16>
    %cst_34 = arith.constant dense<0.000000e+00> : vector<256x128xf32>
    %29 = tpu.matmul %26, %28, %cst_34 {dimension_numbers = #tpu.dot_dimension_numbers<[1], [0], [0], [1], [0, 0, 1, 1], [], []>} : vector<256x8xbf16>, vector<8x128xbf16>, vector<256x128xf32> -> vector<256x128xf32>
    %30 = arith.addf %24, %29 : vector<256x128xf32>
    %c0_35 = arith.constant 0 : index
    %c1_36 = arith.constant 1 : index
    %c2_37 = arith.constant 2 : index
    %c0_38 = arith.constant 0 : index
    %31 = vector.load %arg1[%c0_35, %c1_36, %c2_37, %c0_38] : memref<1x18x18x8xbf16, #tpu.memory_space<vmem>>, vector<1x16x16x8xbf16>
    %32 = vector.shape_cast %31 : vector<1x16x16x8xbf16> to vector<256x8xbf16>
    %c5 = arith.constant 5 : index
    %c0_39 = arith.constant 0 : index
    %c0_40 = arith.constant 0 : index
    %33 = vector.load %arg2[%c5, %c0_39, %c0_40] : memref<9x8x128xbf16, #tpu.memory_space<vmem>>, vector<1x8x128xbf16>
    %34 = vector.shape_cast %33 : vector<1x8x128xbf16> to vector<8x128xbf16>
    %cst_41 = arith.constant dense<0.000000e+00> : vector<256x128xf32>
    %35 = tpu.matmul %32, %34, %cst_41 {dimension_numbers = #tpu.dot_dimension_numbers<[1], [0], [0], [1], [0, 0, 1, 1], [], []>} : vector<256x8xbf16>, vector<8x128xbf16>, vector<256x128xf32> -> vector<256x128xf32>
    %36 = arith.addf %30, %35 : vector<256x128xf32>
    %c0_42 = arith.constant 0 : index
    %c2_43 = arith.constant 2 : index
    %c0_44 = arith.constant 0 : index
    %c0_45 = arith.constant 0 : index
    %37 = vector.load %arg1[%c0_42, %c2_43, %c0_44, %c0_45] : memref<1x18x18x8xbf16, #tpu.memory_space<vmem>>, vector<1x16x16x8xbf16>
    %38 = vector.shape_cast %37 : vector<1x16x16x8xbf16> to vector<256x8xbf16>
    %c6 = arith.constant 6 : index
    %c0_46 = arith.constant 0 : index
    %c0_47 = arith.constant 0 : index
    %39 = vector.load %arg2[%c6, %c0_46, %c0_47] : memref<9x8x128xbf16, #tpu.memory_space<vmem>>, vector<1x8x128xbf16>
    %40 = vector.shape_cast %39 : vector<1x8x128xbf16> to vector<8x128xbf16>
    %cst_48 = arith.constant dense<0.000000e+00> : vector<256x128xf32>
    %41 = tpu.matmul %38, %40, %cst_48 {dimension_numbers = #tpu.dot_dimension_numbers<[1], [0], [0], [1], [0, 0, 1, 1], [], []>} : vector<256x8xbf16>, vector<8x128xbf16>, vector<256x128xf32> -> vector<256x128xf32>
    %42 = arith.addf %36, %41 : vector<256x128xf32>
    %c0_49 = arith.constant 0 : index
    %c2_50 = arith.constant 2 : index
    %c1_51 = arith.constant 1 : index
    %c0_52 = arith.constant 0 : index
    %43 = vector.load %arg1[%c0_49, %c2_50, %c1_51, %c0_52] : memref<1x18x18x8xbf16, #tpu.memory_space<vmem>>, vector<1x16x16x8xbf16>
    %44 = vector.shape_cast %43 : vector<1x16x16x8xbf16> to vector<256x8xbf16>
    %c7 = arith.constant 7 : index
    %c0_53 = arith.constant 0 : index
    %c0_54 = arith.constant 0 : index
    %45 = vector.load %arg2[%c7, %c0_53, %c0_54] : memref<9x8x128xbf16, #tpu.memory_space<vmem>>, vector<1x8x128xbf16>
    %46 = vector.shape_cast %45 : vector<1x8x128xbf16> to vector<8x128xbf16>
    %cst_55 = arith.constant dense<0.000000e+00> : vector<256x128xf32>
    %47 = tpu.matmul %44, %46, %cst_55 {dimension_numbers = #tpu.dot_dimension_numbers<[1], [0], [0], [1], [0, 0, 1, 1], [], []>} : vector<256x8xbf16>, vector<8x128xbf16>, vector<256x128xf32> -> vector<256x128xf32>
    %48 = arith.addf %42, %47 : vector<256x128xf32>
    %c0_56 = arith.constant 0 : index
    %c2_57 = arith.constant 2 : index
    %c2_58 = arith.constant 2 : index
    %c0_59 = arith.constant 0 : index
    %49 = vector.load %arg1[%c0_56, %c2_57, %c2_58, %c0_59] : memref<1x18x18x8xbf16, #tpu.memory_space<vmem>>, vector<1x16x16x8xbf16>
    %50 = vector.shape_cast %49 : vector<1x16x16x8xbf16> to vector<256x8xbf16>
    %c8 = arith.constant 8 : index
    %c0_60 = arith.constant 0 : index
    %c0_61 = arith.constant 0 : index
    %51 = vector.load %arg2[%c8, %c0_60, %c0_61] : memref<9x8x128xbf16, #tpu.memory_space<vmem>>, vector<1x8x128xbf16>
    %52 = vector.shape_cast %51 : vector<1x8x128xbf16> to vector<8x128xbf16>
    %cst_62 = arith.constant dense<0.000000e+00> : vector<256x128xf32>
    %53 = tpu.matmul %50, %52, %cst_62 {dimension_numbers = #tpu.dot_dimension_numbers<[1], [0], [0], [1], [0, 0, 1, 1], [], []>} : vector<256x8xbf16>, vector<8x128xbf16>, vector<256x128xf32> -> vector<256x128xf32>
    %54 = arith.addf %48, %53 : vector<256x128xf32>
    %55 = vector.shape_cast %54 : vector<256x128xf32> to vector<1x16x16x128xf32>
    %56 = arith.truncf %55 : vector<1x16x16x128xf32> to vector<1x16x16x128xbf16>
    %c0_63 = arith.constant 0 : index
    %c0_64 = arith.constant 0 : index
    %c0_65 = arith.constant 0 : index
    %c0_66 = arith.constant 0 : index
    %57 = vector.load %arg3[%c0_63, %c0_64, %c0_65, %c0_66] : memref<1x16x16x128xbf16, #tpu.memory_space<vmem>>, vector<1x16x16x128xbf16>
    tpu.vector_store %arg3[%c0_63, %c0_64, %c0_65, %c0_66], %56 {strides = array<i32>} : memref<1x16x16x128xbf16, #tpu.memory_space<vmem>>, vector<1x16x16x128xbf16>,
    %cst_67 = arith.constant dense<0.000000e+00> : vector<128xf32>
    %58 = vector.multi_reduction <add>, %54, %cst_67 [0] : vector<256x128xf32> to vector<128xf32>
    %59 = vector.shape_cast %58 : vector<128xf32> to vector<1x128xf32>
    %60 = vector.shape_cast %59 : vector<1x128xf32> to vector<1x1x128xf32>
    %c0_68 = arith.constant 0 : index
    %c0_69 = arith.constant 0 : index
    %c0_70 = arith.constant 0 : index
    %61 = vector.load %arg4[%c0_68, %c0_69, %c0_70] : memref<1x1x128xf32, #tpu.memory_space<vmem>>, vector<1x1x128xf32>
    tpu.vector_store %arg4[%c0_68, %c0_69, %c0_70], %60 {strides = array<i32>} : memref<1x1x128xf32, #tpu.memory_space<vmem>>, vector<1x1x128xf32>,
    %62 = arith.mulf %54, %54 : vector<256x128xf32>
    %cst_71 = arith.constant dense<0.000000e+00> : vector<128xf32>
    %63 = vector.multi_reduction <add>, %62, %cst_71 [0] : vector<256x128xf32> to vector<128xf32>
    %64 = vector.shape_cast %63 : vector<128xf32> to vector<1x128xf32>
    %65 = vector.shape_cast %64 : vector<1x128xf32> to vector<1x1x128xf32>
    %c0_72 = arith.constant 0 : index
    %c0_73 = arith.constant 0 : index
    %c0_74 = arith.constant 0 : index
    %66 = vector.load %arg5[%c0_72, %c0_73, %c0_74] : memref<1x1x128xf32, #tpu.memory_space<vmem>>, vector<1x1x128xf32>
    tpu.vector_store %arg5[%c0_72, %c0_73, %c0_74], %65 {strides = array<i32>} : memref<1x1x128xf32, #tpu.memory_space<vmem>>, vector<1x1x128xf32>,
    return
  }
  func.func @transform_0(%arg0: i32) -> (i32, i32, i32, i32) {
    %c0_i32 = arith.constant 0 : i32
    %c0_i32_0 = arith.constant 0 : i32
    %c0_i32_1 = arith.constant 0 : i32
    %c0_i32_2 = arith.constant 0 : i32
    return %arg0, %c0_i32, %c0_i32_0, %c0_i32_1 : i32, i32, i32, i32
  }
  func.func @transform_1(%arg0: i32) -> (i32, i32, i32) {
    %c0_i32 = arith.constant 0 : i32
    %c0_i32_0 = arith.constant 0 : i32
    %c0_i32_1 = arith.constant 0 : i32
    %c0_i32_2 = arith.constant 0 : i32
    return %c0_i32, %c0_i32_0, %c0_i32_1 : i32, i32, i32
  }
  func.func @transform_2(%arg0: i32) -> (i32, i32, i32, i32) {
    %c0_i32 = arith.constant 0 : i32
    %c0_i32_0 = arith.constant 0 : i32
    %c0_i32_1 = arith.constant 0 : i32
    %c0_i32_2 = arith.constant 0 : i32
    return %arg0, %c0_i32, %c0_i32_0, %c0_i32_1 : i32, i32, i32, i32
  }
  func.func @transform_3(%arg0: i32) -> (i32, i32, i32) {
    %c0_i32 = arith.constant 0 : i32
    %c0_i32_0 = arith.constant 0 : i32
    %c0_i32_1 = arith.constant 0 : i32
    return %arg0, %c0_i32, %c0_i32_0 : i32, i32, i32
  }
  func.func @transform_4(%arg0: i32) -> (i32, i32, i32) {
    %c0_i32 = arith.constant 0 : i32
    %c0_i32_0 = arith.constant 0 : i32
    %c0_i32_1 = arith.constant 0 : i32
    return %arg0, %c0_i32, %c0_i32_0 : i32, i32, i32
  }
}

module attributes {stable_mosaic.version = 11 : i64} {
  func.func @_bn_relu_conv_stats_kernel(%arg0: i32, %arg1: memref<1x16x16x128xbf16, #tpu.memory_space<vmem>>, %arg2: memref<9x128x128xbf16, #tpu.memory_space<vmem>>, %arg3: memref<1x128xf32, #tpu.memory_space<vmem>>, %arg4: memref<1x128xf32, #tpu.memory_space<vmem>>, %arg5: memref<1x16x16x128xbf16, #tpu.memory_space<vmem>>, %arg6: memref<1x1x128xf32, #tpu.memory_space<vmem>>, %arg7: memref<1x1x128xf32, #tpu.memory_space<vmem>>, %arg8: memref<1x18x18x128xbf16, #tpu.memory_space<vmem>>) attributes {dimension_semantics = [#tpu.dimension_semantics<parallel>], iteration_bounds = array<i64: 2>, scalar_prefetch = 0 : i64, scratch_operands = 1 : i64, tpu.core_type = #tpu.core_type<tc>, window_params = [{transform_indices = @transform_0, window_bounds = array<i64: 1, 16, 16, 128>}, {pipeline_mode = #tpu.pipeline_mode<synchronous>, transform_indices = @transform_1, window_bounds = array<i64: 9, 128, 128>}, {pipeline_mode = #tpu.pipeline_mode<synchronous>, transform_indices = @transform_2, window_bounds = array<i64: 1, 128>}, {pipeline_mode = #tpu.pipeline_mode<synchronous>, transform_indices = @transform_3, window_bounds = array<i64: 1, 128>}, {transform_indices = @transform_4, window_bounds = array<i64: 1, 16, 16, 128>}, {transform_indices = @transform_5, window_bounds = array<i64: 1, 1, 128>}, {transform_indices = @transform_6, window_bounds = array<i64: 1, 1, 128>}]} {
    %cst = arith.constant 0.000000e+00 : bf16
    %0 = vector.broadcast %cst : bf16 to vector<1x18x18x128xbf16>
    %c0 = arith.constant 0 : index
    %c0_0 = arith.constant 0 : index
    %c0_1 = arith.constant 0 : index
    %c0_2 = arith.constant 0 : index
    %1 = vector.load %arg8[%c0, %c0_0, %c0_1, %c0_2] : memref<1x18x18x128xbf16, #tpu.memory_space<vmem>>, vector<1x18x18x128xbf16>
    tpu.vector_store %arg8[%c0, %c0_0, %c0_1, %c0_2], %0 {strides = array<i32>} : memref<1x18x18x128xbf16, #tpu.memory_space<vmem>>, vector<1x18x18x128xbf16>,
    %c0_3 = arith.constant 0 : index
    %c0_4 = arith.constant 0 : index
    %c0_5 = arith.constant 0 : index
    %c0_6 = arith.constant 0 : index
    %2 = vector.load %arg1[%c0_3, %c0_4, %c0_5, %c0_6] : memref<1x16x16x128xbf16, #tpu.memory_space<vmem>>, vector<1x16x16x128xbf16>
    %3 = arith.extf %2 : vector<1x16x16x128xbf16> to vector<1x16x16x128xf32>
    %c0_7 = arith.constant 0 : index
    %c0_8 = arith.constant 0 : index
    %4 = vector.load %arg3[%c0_7, %c0_8] : memref<1x128xf32, #tpu.memory_space<vmem>>, vector<1x128xf32>
    %5 = vector.shape_cast %4 : vector<1x128xf32> to vector<1x1x1x128xf32>
    %6 = vector.broadcast %5 : vector<1x1x1x128xf32> to vector<1x16x16x128xf32>
    %7 = arith.mulf %3, %6 : vector<1x16x16x128xf32>
    %c0_9 = arith.constant 0 : index
    %c0_10 = arith.constant 0 : index
    %8 = vector.load %arg4[%c0_9, %c0_10] : memref<1x128xf32, #tpu.memory_space<vmem>>, vector<1x128xf32>
    %9 = vector.shape_cast %8 : vector<1x128xf32> to vector<1x1x1x128xf32>
    %10 = vector.broadcast %9 : vector<1x1x1x128xf32> to vector<1x16x16x128xf32>
    %11 = arith.addf %7, %10 : vector<1x16x16x128xf32>
    %cst_11 = arith.constant 0.000000e+00 : f32
    %12 = vector.broadcast %cst_11 : f32 to vector<1x16x16x128xf32>
    %13 = arith.maximumf %11, %12 : vector<1x16x16x128xf32>
    %14 = arith.truncf %13 : vector<1x16x16x128xf32> to vector<1x16x16x128xbf16>
    %c0_12 = arith.constant 0 : index
    %c1 = arith.constant 1 : index
    %c1_13 = arith.constant 1 : index
    %c0_14 = arith.constant 0 : index
    %15 = vector.load %arg8[%c0_12, %c1, %c1_13, %c0_14] : memref<1x18x18x128xbf16, #tpu.memory_space<vmem>>, vector<1x16x16x128xbf16>
    tpu.vector_store %arg8[%c0_12, %c1, %c1_13, %c0_14], %14 {strides = array<i32>} : memref<1x18x18x128xbf16, #tpu.memory_space<vmem>>, vector<1x16x16x128xbf16>,
    %cst_15 = arith.constant 0.000000e+00 : f32
    %16 = vector.broadcast %cst_15 : f32 to vector<256x128xf32>
    %c0_16 = arith.constant 0 : index
    %c0_17 = arith.constant 0 : index
    %c0_18 = arith.constant 0 : index
    %c0_19 = arith.constant 0 : index
    %17 = vector.load %arg8[%c0_16, %c0_17, %c0_18, %c0_19] : memref<1x18x18x128xbf16, #tpu.memory_space<vmem>>, vector<1x16x16x128xbf16>
    %18 = vector.shape_cast %17 : vector<1x16x16x128xbf16> to vector<256x128xbf16>
    %c0_20 = arith.constant 0 : index
    %c0_21 = arith.constant 0 : index
    %c0_22 = arith.constant 0 : index
    %19 = vector.load %arg2[%c0_20, %c0_21, %c0_22] : memref<9x128x128xbf16, #tpu.memory_space<vmem>>, vector<1x128x128xbf16>
    %20 = vector.shape_cast %19 : vector<1x128x128xbf16> to vector<128x128xbf16>
    %cst_23 = arith.constant dense<0.000000e+00> : vector<256x128xf32>
    %21 = tpu.matmul %18, %20, %cst_23 {dimension_numbers = #tpu.dot_dimension_numbers<[1], [0], [0], [1], [0, 0, 1, 1], [], []>} : vector<256x128xbf16>, vector<128x128xbf16>, vector<256x128xf32> -> vector<256x128xf32>
    %22 = arith.addf %16, %21 : vector<256x128xf32>
    %c0_24 = arith.constant 0 : index
    %c0_25 = arith.constant 0 : index
    %c1_26 = arith.constant 1 : index
    %c0_27 = arith.constant 0 : index
    %23 = vector.load %arg8[%c0_24, %c0_25, %c1_26, %c0_27] : memref<1x18x18x128xbf16, #tpu.memory_space<vmem>>, vector<1x16x16x128xbf16>
    %24 = vector.shape_cast %23 : vector<1x16x16x128xbf16> to vector<256x128xbf16>
    %c1_28 = arith.constant 1 : index
    %c0_29 = arith.constant 0 : index
    %c0_30 = arith.constant 0 : index
    %25 = vector.load %arg2[%c1_28, %c0_29, %c0_30] : memref<9x128x128xbf16, #tpu.memory_space<vmem>>, vector<1x128x128xbf16>
    %26 = vector.shape_cast %25 : vector<1x128x128xbf16> to vector<128x128xbf16>
    %cst_31 = arith.constant dense<0.000000e+00> : vector<256x128xf32>
    %27 = tpu.matmul %24, %26, %cst_31 {dimension_numbers = #tpu.dot_dimension_numbers<[1], [0], [0], [1], [0, 0, 1, 1], [], []>} : vector<256x128xbf16>, vector<128x128xbf16>, vector<256x128xf32> -> vector<256x128xf32>
    %28 = arith.addf %22, %27 : vector<256x128xf32>
    %c0_32 = arith.constant 0 : index
    %c0_33 = arith.constant 0 : index
    %c2 = arith.constant 2 : index
    %c0_34 = arith.constant 0 : index
    %29 = vector.load %arg8[%c0_32, %c0_33, %c2, %c0_34] : memref<1x18x18x128xbf16, #tpu.memory_space<vmem>>, vector<1x16x16x128xbf16>
    %30 = vector.shape_cast %29 : vector<1x16x16x128xbf16> to vector<256x128xbf16>
    %c2_35 = arith.constant 2 : index
    %c0_36 = arith.constant 0 : index
    %c0_37 = arith.constant 0 : index
    %31 = vector.load %arg2[%c2_35, %c0_36, %c0_37] : memref<9x128x128xbf16, #tpu.memory_space<vmem>>, vector<1x128x128xbf16>
    %32 = vector.shape_cast %31 : vector<1x128x128xbf16> to vector<128x128xbf16>
    %cst_38 = arith.constant dense<0.000000e+00> : vector<256x128xf32>
    %33 = tpu.matmul %30, %32, %cst_38 {dimension_numbers = #tpu.dot_dimension_numbers<[1], [0], [0], [1], [0, 0, 1, 1], [], []>} : vector<256x128xbf16>, vector<128x128xbf16>, vector<256x128xf32> -> vector<256x128xf32>
    %34 = arith.addf %28, %33 : vector<256x128xf32>
    %c0_39 = arith.constant 0 : index
    %c1_40 = arith.constant 1 : index
    %c0_41 = arith.constant 0 : index
    %c0_42 = arith.constant 0 : index
    %35 = vector.load %arg8[%c0_39, %c1_40, %c0_41, %c0_42] : memref<1x18x18x128xbf16, #tpu.memory_space<vmem>>, vector<1x16x16x128xbf16>
    %36 = vector.shape_cast %35 : vector<1x16x16x128xbf16> to vector<256x128xbf16>
    %c3 = arith.constant 3 : index
    %c0_43 = arith.constant 0 : index
    %c0_44 = arith.constant 0 : index
    %37 = vector.load %arg2[%c3, %c0_43, %c0_44] : memref<9x128x128xbf16, #tpu.memory_space<vmem>>, vector<1x128x128xbf16>
    %38 = vector.shape_cast %37 : vector<1x128x128xbf16> to vector<128x128xbf16>
    %cst_45 = arith.constant dense<0.000000e+00> : vector<256x128xf32>
    %39 = tpu.matmul %36, %38, %cst_45 {dimension_numbers = #tpu.dot_dimension_numbers<[1], [0], [0], [1], [0, 0, 1, 1], [], []>} : vector<256x128xbf16>, vector<128x128xbf16>, vector<256x128xf32> -> vector<256x128xf32>
    %40 = arith.addf %34, %39 : vector<256x128xf32>
    %c0_46 = arith.constant 0 : index
    %c1_47 = arith.constant 1 : index
    %c1_48 = arith.constant 1 : index
    %c0_49 = arith.constant 0 : index
    %41 = vector.load %arg8[%c0_46, %c1_47, %c1_48, %c0_49] : memref<1x18x18x128xbf16, #tpu.memory_space<vmem>>, vector<1x16x16x128xbf16>
    %42 = vector.shape_cast %41 : vector<1x16x16x128xbf16> to vector<256x128xbf16>
    %c4 = arith.constant 4 : index
    %c0_50 = arith.constant 0 : index
    %c0_51 = arith.constant 0 : index
    %43 = vector.load %arg2[%c4, %c0_50, %c0_51] : memref<9x128x128xbf16, #tpu.memory_space<vmem>>, vector<1x128x128xbf16>
    %44 = vector.shape_cast %43 : vector<1x128x128xbf16> to vector<128x128xbf16>
    %cst_52 = arith.constant dense<0.000000e+00> : vector<256x128xf32>
    %45 = tpu.matmul %42, %44, %cst_52 {dimension_numbers = #tpu.dot_dimension_numbers<[1], [0], [0], [1], [0, 0, 1, 1], [], []>} : vector<256x128xbf16>, vector<128x128xbf16>, vector<256x128xf32> -> vector<256x128xf32>
    %46 = arith.addf %40, %45 : vector<256x128xf32>
    %c0_53 = arith.constant 0 : index
    %c1_54 = arith.constant 1 : index
    %c2_55 = arith.constant 2 : index
    %c0_56 = arith.constant 0 : index
    %47 = vector.load %arg8[%c0_53, %c1_54, %c2_55, %c0_56] : memref<1x18x18x128xbf16, #tpu.memory_space<vmem>>, vector<1x16x16x128xbf16>
    %48 = vector.shape_cast %47 : vector<1x16x16x128xbf16> to vector<256x128xbf16>
    %c5 = arith.constant 5 : index
    %c0_57 = arith.constant 0 : index
    %c0_58 = arith.constant 0 : index
    %49 = vector.load %arg2[%c5, %c0_57, %c0_58] : memref<9x128x128xbf16, #tpu.memory_space<vmem>>, vector<1x128x128xbf16>
    %50 = vector.shape_cast %49 : vector<1x128x128xbf16> to vector<128x128xbf16>
    %cst_59 = arith.constant dense<0.000000e+00> : vector<256x128xf32>
    %51 = tpu.matmul %48, %50, %cst_59 {dimension_numbers = #tpu.dot_dimension_numbers<[1], [0], [0], [1], [0, 0, 1, 1], [], []>} : vector<256x128xbf16>, vector<128x128xbf16>, vector<256x128xf32> -> vector<256x128xf32>
    %52 = arith.addf %46, %51 : vector<256x128xf32>
    %c0_60 = arith.constant 0 : index
    %c2_61 = arith.constant 2 : index
    %c0_62 = arith.constant 0 : index
    %c0_63 = arith.constant 0 : index
    %53 = vector.load %arg8[%c0_60, %c2_61, %c0_62, %c0_63] : memref<1x18x18x128xbf16, #tpu.memory_space<vmem>>, vector<1x16x16x128xbf16>
    %54 = vector.shape_cast %53 : vector<1x16x16x128xbf16> to vector<256x128xbf16>
    %c6 = arith.constant 6 : index
    %c0_64 = arith.constant 0 : index
    %c0_65 = arith.constant 0 : index
    %55 = vector.load %arg2[%c6, %c0_64, %c0_65] : memref<9x128x128xbf16, #tpu.memory_space<vmem>>, vector<1x128x128xbf16>
    %56 = vector.shape_cast %55 : vector<1x128x128xbf16> to vector<128x128xbf16>
    %cst_66 = arith.constant dense<0.000000e+00> : vector<256x128xf32>
    %57 = tpu.matmul %54, %56, %cst_66 {dimension_numbers = #tpu.dot_dimension_numbers<[1], [0], [0], [1], [0, 0, 1, 1], [], []>} : vector<256x128xbf16>, vector<128x128xbf16>, vector<256x128xf32> -> vector<256x128xf32>
    %58 = arith.addf %52, %57 : vector<256x128xf32>
    %c0_67 = arith.constant 0 : index
    %c2_68 = arith.constant 2 : index
    %c1_69 = arith.constant 1 : index
    %c0_70 = arith.constant 0 : index
    %59 = vector.load %arg8[%c0_67, %c2_68, %c1_69, %c0_70] : memref<1x18x18x128xbf16, #tpu.memory_space<vmem>>, vector<1x16x16x128xbf16>
    %60 = vector.shape_cast %59 : vector<1x16x16x128xbf16> to vector<256x128xbf16>
    %c7 = arith.constant 7 : index
    %c0_71 = arith.constant 0 : index
    %c0_72 = arith.constant 0 : index
    %61 = vector.load %arg2[%c7, %c0_71, %c0_72] : memref<9x128x128xbf16, #tpu.memory_space<vmem>>, vector<1x128x128xbf16>
    %62 = vector.shape_cast %61 : vector<1x128x128xbf16> to vector<128x128xbf16>
    %cst_73 = arith.constant dense<0.000000e+00> : vector<256x128xf32>
    %63 = tpu.matmul %60, %62, %cst_73 {dimension_numbers = #tpu.dot_dimension_numbers<[1], [0], [0], [1], [0, 0, 1, 1], [], []>} : vector<256x128xbf16>, vector<128x128xbf16>, vector<256x128xf32> -> vector<256x128xf32>
    %64 = arith.addf %58, %63 : vector<256x128xf32>
    %c0_74 = arith.constant 0 : index
    %c2_75 = arith.constant 2 : index
    %c2_76 = arith.constant 2 : index
    %c0_77 = arith.constant 0 : index
    %65 = vector.load %arg8[%c0_74, %c2_75, %c2_76, %c0_77] : memref<1x18x18x128xbf16, #tpu.memory_space<vmem>>, vector<1x16x16x128xbf16>
    %66 = vector.shape_cast %65 : vector<1x16x16x128xbf16> to vector<256x128xbf16>
    %c8 = arith.constant 8 : index
    %c0_78 = arith.constant 0 : index
    %c0_79 = arith.constant 0 : index
    %67 = vector.load %arg2[%c8, %c0_78, %c0_79] : memref<9x128x128xbf16, #tpu.memory_space<vmem>>, vector<1x128x128xbf16>
    %68 = vector.shape_cast %67 : vector<1x128x128xbf16> to vector<128x128xbf16>
    %cst_80 = arith.constant dense<0.000000e+00> : vector<256x128xf32>
    %69 = tpu.matmul %66, %68, %cst_80 {dimension_numbers = #tpu.dot_dimension_numbers<[1], [0], [0], [1], [0, 0, 1, 1], [], []>} : vector<256x128xbf16>, vector<128x128xbf16>, vector<256x128xf32> -> vector<256x128xf32>
    %70 = arith.addf %64, %69 : vector<256x128xf32>
    %71 = vector.shape_cast %70 : vector<256x128xf32> to vector<1x16x16x128xf32>
    %72 = arith.truncf %71 : vector<1x16x16x128xf32> to vector<1x16x16x128xbf16>
    %c0_81 = arith.constant 0 : index
    %c0_82 = arith.constant 0 : index
    %c0_83 = arith.constant 0 : index
    %c0_84 = arith.constant 0 : index
    %73 = vector.load %arg5[%c0_81, %c0_82, %c0_83, %c0_84] : memref<1x16x16x128xbf16, #tpu.memory_space<vmem>>, vector<1x16x16x128xbf16>
    tpu.vector_store %arg5[%c0_81, %c0_82, %c0_83, %c0_84], %72 {strides = array<i32>} : memref<1x16x16x128xbf16, #tpu.memory_space<vmem>>, vector<1x16x16x128xbf16>,
    %cst_85 = arith.constant dense<0.000000e+00> : vector<128xf32>
    %74 = vector.multi_reduction <add>, %70, %cst_85 [0] : vector<256x128xf32> to vector<128xf32>
    %75 = vector.shape_cast %74 : vector<128xf32> to vector<1x128xf32>
    %76 = vector.shape_cast %75 : vector<1x128xf32> to vector<1x1x128xf32>
    %c0_86 = arith.constant 0 : index
    %c0_87 = arith.constant 0 : index
    %c0_88 = arith.constant 0 : index
    %77 = vector.load %arg6[%c0_86, %c0_87, %c0_88] : memref<1x1x128xf32, #tpu.memory_space<vmem>>, vector<1x1x128xf32>
    tpu.vector_store %arg6[%c0_86, %c0_87, %c0_88], %76 {strides = array<i32>} : memref<1x1x128xf32, #tpu.memory_space<vmem>>, vector<1x1x128xf32>,
    %78 = arith.mulf %70, %70 : vector<256x128xf32>
    %cst_89 = arith.constant dense<0.000000e+00> : vector<128xf32>
    %79 = vector.multi_reduction <add>, %78, %cst_89 [0] : vector<256x128xf32> to vector<128xf32>
    %80 = vector.shape_cast %79 : vector<128xf32> to vector<1x128xf32>
    %81 = vector.shape_cast %80 : vector<1x128xf32> to vector<1x1x128xf32>
    %c0_90 = arith.constant 0 : index
    %c0_91 = arith.constant 0 : index
    %c0_92 = arith.constant 0 : index
    %82 = vector.load %arg7[%c0_90, %c0_91, %c0_92] : memref<1x1x128xf32, #tpu.memory_space<vmem>>, vector<1x1x128xf32>
    tpu.vector_store %arg7[%c0_90, %c0_91, %c0_92], %81 {strides = array<i32>} : memref<1x1x128xf32, #tpu.memory_space<vmem>>, vector<1x1x128xf32>,
    return
  }
  func.func @transform_0(%arg0: i32) -> (i32, i32, i32, i32) {
    %c0_i32 = arith.constant 0 : i32
    %c0_i32_0 = arith.constant 0 : i32
    %c0_i32_1 = arith.constant 0 : i32
    %c0_i32_2 = arith.constant 0 : i32
    return %arg0, %c0_i32, %c0_i32_0, %c0_i32_1 : i32, i32, i32, i32
  }
  func.func @transform_1(%arg0: i32) -> (i32, i32, i32) {
    %c0_i32 = arith.constant 0 : i32
    %c0_i32_0 = arith.constant 0 : i32
    %c0_i32_1 = arith.constant 0 : i32
    %c0_i32_2 = arith.constant 0 : i32
    return %c0_i32, %c0_i32_0, %c0_i32_1 : i32, i32, i32
  }
  func.func @transform_2(%arg0: i32) -> (i32, i32) {
    %c0_i32 = arith.constant 0 : i32
    %c0_i32_0 = arith.constant 0 : i32
    %c0_i32_1 = arith.constant 0 : i32
    return %c0_i32, %c0_i32_0 : i32, i32
  }
  func.func @transform_3(%arg0: i32) -> (i32, i32) {
    %c0_i32 = arith.constant 0 : i32
    %c0_i32_0 = arith.constant 0 : i32
    %c0_i32_1 = arith.constant 0 : i32
    return %c0_i32, %c0_i32_0 : i32, i32
  }
  func.func @transform_4(%arg0: i32) -> (i32, i32, i32, i32) {
    %c0_i32 = arith.constant 0 : i32
    %c0_i32_0 = arith.constant 0 : i32
    %c0_i32_1 = arith.constant 0 : i32
    %c0_i32_2 = arith.constant 0 : i32
    return %arg0, %c0_i32, %c0_i32_0, %c0_i32_1 : i32, i32, i32, i32
  }
  func.func @transform_5(%arg0: i32) -> (i32, i32, i32) {
    %c0_i32 = arith.constant 0 : i32
    %c0_i32_0 = arith.constant 0 : i32
    %c0_i32_1 = arith.constant 0 : i32
    return %arg0, %c0_i32, %c0_i32_0 : i32, i32, i32
  }
  func.func @transform_6(%arg0: i32) -> (i32, i32, i32) {
    %c0_i32 = arith.constant 0 : i32
    %c0_i32_0 = arith.constant 0 : i32
    %c0_i32_1 = arith.constant 0 : i32
    return %arg0, %c0_i32, %c0_i32_0 : i32, i32, i32
  }
}

module attributes {stable_mosaic.version = 11 : i64} {
  func.func @_bn_residual_relu_kernel(%arg0: i32, %arg1: memref<1x16x16x128xbf16, #tpu.memory_space<vmem>>, %arg2: memref<1x128xf32, #tpu.memory_space<vmem>>, %arg3: memref<1x128xf32, #tpu.memory_space<vmem>>, %arg4: memref<1x16x16x128xbf16, #tpu.memory_space<vmem>>, %arg5: memref<1x16x16x128xf32, #tpu.memory_space<vmem>>) attributes {dimension_semantics = [#tpu.dimension_semantics<parallel>], iteration_bounds = array<i64: 2>, scalar_prefetch = 0 : i64, scratch_operands = 0 : i64, tpu.core_type = #tpu.core_type<tc>, window_params = [{transform_indices = @transform_0, window_bounds = array<i64: 1, 16, 16, 128>}, {pipeline_mode = #tpu.pipeline_mode<synchronous>, transform_indices = @transform_1, window_bounds = array<i64: 1, 128>}, {pipeline_mode = #tpu.pipeline_mode<synchronous>, transform_indices = @transform_2, window_bounds = array<i64: 1, 128>}, {transform_indices = @transform_3, window_bounds = array<i64: 1, 16, 16, 128>}, {transform_indices = @transform_4, window_bounds = array<i64: 1, 16, 16, 128>}]} {
    %c0 = arith.constant 0 : index
    %c0_0 = arith.constant 0 : index
    %c0_1 = arith.constant 0 : index
    %c0_2 = arith.constant 0 : index
    %0 = vector.load %arg1[%c0, %c0_0, %c0_1, %c0_2] : memref<1x16x16x128xbf16, #tpu.memory_space<vmem>>, vector<1x16x16x128xbf16>
    %1 = arith.extf %0 : vector<1x16x16x128xbf16> to vector<1x16x16x128xf32>
    %c0_3 = arith.constant 0 : index
    %c0_4 = arith.constant 0 : index
    %2 = vector.load %arg2[%c0_3, %c0_4] : memref<1x128xf32, #tpu.memory_space<vmem>>, vector<1x128xf32>
    %3 = vector.shape_cast %2 : vector<1x128xf32> to vector<1x1x1x128xf32>
    %4 = vector.broadcast %3 : vector<1x1x1x128xf32> to vector<1x16x16x128xf32>
    %5 = arith.mulf %1, %4 : vector<1x16x16x128xf32>
    %c0_5 = arith.constant 0 : index
    %c0_6 = arith.constant 0 : index
    %6 = vector.load %arg3[%c0_5, %c0_6] : memref<1x128xf32, #tpu.memory_space<vmem>>, vector<1x128xf32>
    %7 = vector.shape_cast %6 : vector<1x128xf32> to vector<1x1x1x128xf32>
    %8 = vector.broadcast %7 : vector<1x1x1x128xf32> to vector<1x16x16x128xf32>
    %9 = arith.addf %5, %8 : vector<1x16x16x128xf32>
    %c0_7 = arith.constant 0 : index
    %c0_8 = arith.constant 0 : index
    %c0_9 = arith.constant 0 : index
    %c0_10 = arith.constant 0 : index
    %10 = vector.load %arg4[%c0_7, %c0_8, %c0_9, %c0_10] : memref<1x16x16x128xbf16, #tpu.memory_space<vmem>>, vector<1x16x16x128xbf16>
    %11 = arith.extf %10 : vector<1x16x16x128xbf16> to vector<1x16x16x128xf32>
    %12 = arith.addf %9, %11 : vector<1x16x16x128xf32>
    %cst = arith.constant 0.000000e+00 : f32
    %13 = vector.broadcast %cst : f32 to vector<1x16x16x128xf32>
    %14 = arith.maximumf %12, %13 : vector<1x16x16x128xf32>
    %c0_11 = arith.constant 0 : index
    %c0_12 = arith.constant 0 : index
    %c0_13 = arith.constant 0 : index
    %c0_14 = arith.constant 0 : index
    %15 = vector.load %arg5[%c0_11, %c0_12, %c0_13, %c0_14] : memref<1x16x16x128xf32, #tpu.memory_space<vmem>>, vector<1x16x16x128xf32>
    tpu.vector_store %arg5[%c0_11, %c0_12, %c0_13, %c0_14], %14 {strides = array<i32>} : memref<1x16x16x128xf32, #tpu.memory_space<vmem>>, vector<1x16x16x128xf32>,
    return
  }
  func.func @transform_0(%arg0: i32) -> (i32, i32, i32, i32) {
    %c0_i32 = arith.constant 0 : i32
    %c0_i32_0 = arith.constant 0 : i32
    %c0_i32_1 = arith.constant 0 : i32
    %c0_i32_2 = arith.constant 0 : i32
    return %arg0, %c0_i32, %c0_i32_0, %c0_i32_1 : i32, i32, i32, i32
  }
  func.func @transform_1(%arg0: i32) -> (i32, i32) {
    %c0_i32 = arith.constant 0 : i32
    %c0_i32_0 = arith.constant 0 : i32
    %c0_i32_1 = arith.constant 0 : i32
    return %c0_i32, %c0_i32_0 : i32, i32
  }
  func.func @transform_2(%arg0: i32) -> (i32, i32) {
    %c0_i32 = arith.constant 0 : i32
    %c0_i32_0 = arith.constant 0 : i32
    %c0_i32_1 = arith.constant 0 : i32
    return %c0_i32, %c0_i32_0 : i32, i32
  }
  func.func @transform_3(%arg0: i32) -> (i32, i32, i32, i32) {
    %c0_i32 = arith.constant 0 : i32
    %c0_i32_0 = arith.constant 0 : i32
    %c0_i32_1 = arith.constant 0 : i32
    %c0_i32_2 = arith.constant 0 : i32
    return %arg0, %c0_i32, %c0_i32_0, %c0_i32_1 : i32, i32, i32, i32
  }
  func.func @transform_4(%arg0: i32) -> (i32, i32, i32, i32) {
    %c0_i32 = arith.constant 0 : i32
    %c0_i32_0 = arith.constant 0 : i32
    %c0_i32_1 = arith.constant 0 : i32
    %c0_i32_2 = arith.constant 0 : i32
    return %arg0, %c0_i32, %c0_i32_0, %c0_i32_1 : i32, i32, i32, i32
  }
}

</mosaic_0001>

<llo_original>
// kernel: basic_block_meta_forward.5
$region0: #{basic_block_meta_forward.5}
  #allocation0 [shape = 'u32[]', space=smem, size = 0x4, offset = 0x4, fixed_abs, tag = 'smem constant byte address 0x4 - core index']
  #allocation1 [shape = 'u32[72,128]{1,0:T(1,128)}', space=vmem, size = 0x9000, scoped, tag = 'internal scratch']
  %s0 = inlined_call_operand.vmem [shape: bf16[2,16,16,128], index: 0, kind: input, shape index: {}]
  %s1 = inlined_call_operand.vmem [shape: f32[1,128], index: 1, kind: input, shape index: {}]
  %s2 = inlined_call_operand.vmem [shape: f32[1,128], index: 2, kind: input, shape index: {}]
  %s3 = inlined_call_operand.vmem [shape: bf16[2,16,16,128], index: 3, kind: input, shape index: {}]
  %s4 = inlined_call_operand.vmem [shape: f32[2,16,16,128], index: 4, kind: output, shape index: {}]
  %s5 = sld [smem:[#allocation0]]
  $region49: #{basic_block_meta_forward.5} parent=0
    _
  %s7 = ssub.s32 1, %s5
  %s8 = scalar_select 0, %s7, %s5
  loop: start=0, step=1, limit=4
  $region2: #{basic_block_meta_forward.5} parent=0 // loop_pre_header
    _
  $region3: #{basic_block_meta_forward.5} parent=0 // loop_header
    %s10 = sphi 0, %s14
    %p11 = scmp.ge.s32.totalorder %s10, 4
    %s20 = sphi 0, %s22
    %s23 = sphi 0, %s20
    %s24 = sphi 0, %s23
    %s40 = sphi 0, %s24
    %s44 = sphi 0, %s44
    %s46 = sphi 0, %s44
    %s47 = sphi 0, %s46
    %s61 = sphi 0, %s47
    %s65 = sphi 0, %s65
    %s67 = sphi 0, %s65
    %s68 = sphi 0, %s67
    %s82 = sphi 0, %s68
    %s88 = sphi 0, %s90
    %s91 = sphi 0, %s88
    %s92 = sphi 0, %s91
    %s108 = sphi 0, %s92
    %s114 = sphi 0, %s116
    %s117 = sphi 0, %s114
    %s118 = sphi 0, %s117
    %s134 = sphi 0, %s118
  $region4: #{basic_block_meta_forward.5} parent=0 // loop_header_branch
    %13 = sbr.rel (%p11) target = $region8
  $region5: #{basic_block_meta_forward.5} parent=0 // loop_body
    %s15 = ssub.s32 %s10, 1
    %s16 = ssub.s32 %s10, 2
    %s17 = sadd.s32 %s10, 1
    %s18 = ssub.s32 %s10, %s17
    %p19 = scmp.eq.s32.totalorder %s18, 0
    %s21 = sadd.s32 %s20, 1
    %s22 = scalar_select %p19, %s20, %s21
    %p25 = pneg %p19
    %p26 = scmp.eq.s32.totalorder %s10, 1
    %p27 = por %p25, %p26
    %p28 = scmp.ne.s32.totalorder %s20, %s23
    %p29 = scmp.eq.s32.totalorder %s10, 0
    %p30 = por %p28, %p29
    %p31 = scmp.ne.s32.totalorder %s20, %s23
    %p32 = scmp.eq.s32.totalorder %s15, 1
    %p33 = por %p31, %p32
    %p34 = scmp.ne.s32.totalorder %s23, %s24
    %p35 = scmp.eq.s32.totalorder %s15, 0
    %p36 = por %p34, %p35
    %p37 = scmp.ne.s32.totalorder %s23, %s24
    %p38 = scmp.eq.s32.totalorder %s16, 1
    %p39 = por %p37, %p38
    %p41 = scmp.ne.s32.totalorder %s24, %s40
    %p42 = scmp.eq.s32.totalorder %s16, 0
    %p43 = por %p41, %p42
    %s45 = sadd.s32 %s44, 1
    %p48 = scmp.eq.s32.totalorder %s10, 1
    %p49 = scmp.ne.s32.totalorder %s44, %s46
    %p50 = scmp.eq.s32.totalorder %s10, 0
    %p51 = por %p49, %p50
    %p52 = scmp.ne.s32.totalorder %s44, %s46
    %p53 = scmp.eq.s32.totalorder %s15, 1
    %p54 = por %p52, %p53
    %p55 = scmp.ne.s32.totalorder %s46, %s47
    %p56 = scmp.eq.s32.totalorder %s15, 0
    %p57 = por %p55, %p56
    %p58 = scmp.ne.s32.totalorder %s46, %s47
    %p59 = scmp.eq.s32.totalorder %s16, 1
    %p60 = por %p58, %p59
    %p62 = scmp.ne.s32.totalorder %s47, %s61
    %p63 = scmp.eq.s32.totalorder %s16, 0
    %p64 = por %p62, %p63
    %s66 = sadd.s32 %s65, 1
    %p69 = scmp.eq.s32.totalorder %s10, 1
    %p70 = scmp.ne.s32.totalorder %s65, %s67
    %p71 = scmp.eq.s32.totalorder %s10, 0
    %p72 = por %p70, %p71
    %p73 = scmp.ne.s32.totalorder %s65, %s67
    %p74 = scmp.eq.s32.totalorder %s15, 1
    %p75 = por %p73, %p74
    %p76 = scmp.ne.s32.totalorder %s67, %s68
    %p77 = scmp.eq.s32.totalorder %s15, 0
    %p78 = por %p76, %p77
    %p79 = scmp.ne.s32.totalorder %s67, %s68
    %p80 = scmp.eq.s32.totalorder %s16, 1
    %p81 = por %p79, %p80
    %p83 = scmp.ne.s32.totalorder %s68, %s82
    %p84 = scmp.eq.s32.totalorder %s16, 0
    %p85 = por %p83, %p84
    %s86 = ssub.s32 %s10, %s17
    %p87 = scmp.eq.s32.totalorder %s86, 0
    %s89 = sadd.s32 %s88, 1
    %s90 = scalar_select %p87, %s88, %s89
    %p93 = pneg %p87
    %p94 = scmp.eq.s32.totalorder %s10, 1
    %p95 = por %p93, %p94
    %p96 = scmp.ne.s32.totalorder %s88, %s91
    %p97 = scmp.eq.s32.totalorder %s10, 0
    %p98 = por %p96, %p97
    %p99 = scmp.ne.s32.totalorder %s88, %s91
    %p100 = scmp.eq.s32.totalorder %s15, 1
    %p101 = por %p99, %p100
    %p102 = scmp.ne.s32.totalorder %s91, %s92
    %p103 = scmp.eq.s32.totalorder %s15, 0
    %p104 = por %p102, %p103
    %p105 = scmp.ne.s32.totalorder %s91, %s92
    %p106 = scmp.eq.s32.totalorder %s16, 1
    %p107 = por %p105, %p106
    %p109 = scmp.ne.s32.totalorder %s92, %s108
    %p110 = scmp.eq.s32.totalorder %s16, 0
    %p111 = por %p109, %p110
    %s112 = ssub.s32 %s10, %s17
    %p113 = scmp.eq.s32.totalorder %s112, 0
    %s115 = sadd.s32 %s114, 1
    %s116 = scalar_select %p113, %s114, %s115
    %p119 = pneg %p113
    %p120 = scmp.eq.s32.totalorder %s10, 1
    %p121 = por %p119, %p120
    %p122 = scmp.ne.s32.totalorder %s114, %s117
    %p123 = scmp.eq.s32.totalorder %s10, 0
    %p124 = por %p122, %p123
    %p125 = scmp.ne.s32.totalorder %s114, %s117
    %p126 = scmp.eq.s32.totalorder %s15, 1
    %p127 = por %p125, %p126
    %p128 = scmp.ne.s32.totalorder %s117, %s118
    %p129 = scmp.eq.s32.totalorder %s15, 0
    %p130 = por %p128, %p129
    %p131 = scmp.ne.s32.totalorder %s117, %s118
    %p132 = scmp.eq.s32.totalorder %s16, 1
    %p133 = por %p131, %p132
    %p135 = scmp.ne.s32.totalorder %s118, %s134
    %p136 = scmp.eq.s32.totalorder %s16, 0
    %p137 = por %p135, %p136
    %p138 = scmp.le.s32.totalorder 1, %s10
    %p139 = scmp.lt.s32.totalorder %s10, 3
    %p140 = pnand %p138, %p139
    %p141 = pneg %p140
    // Predicated region
    $region9: #{basic_block_meta_forward.5} parent=5 // pred_check
      _
    $region10: #{basic_block_meta_forward.5} parent=5 // pred_check_branch
      %143 = sbr.rel (%p140) target = $region12
    $region11: #{basic_block_meta_forward.5} parent=5 // pred_region
      %s144 = ssub.s32 %s10, 1
      // Predicated region
      $region13: #{basic_block_meta_forward.5} parent=11 // pred_check
        %p145 = pneg %p57
      $region14: #{basic_block_meta_forward.5} parent=11 // pred_check_branch
        %147 = sbr.rel (%p145) target = $region16
      $region15: #{basic_block_meta_forward.5} parent=11 // pred_region
        _
      $region16: #{basic_block_meta_forward.5} parent=11 // pred_fallthru
        _
      // Predicated region
      $region17: #{basic_block_meta_forward.5} parent=11 // pred_check
        %p148 = pneg %p78
      $region18: #{basic_block_meta_forward.5} parent=11 // pred_check_branch
        %150 = sbr.rel (%p148) target = $region20
      $region19: #{basic_block_meta_forward.5} parent=11 // pred_region
        _
      $region20: #{basic_block_meta_forward.5} parent=11 // pred_fallthru
        _
    $region12: #{basic_block_meta_forward.5} parent=5 // pred_fallthru
      _
    %p151 = scmp.lt.s32.totalorder %s10, 2
    // Predicated region
    $region21: #{basic_block_meta_forward.5} parent=5 // pred_check
      %p152 = pneg %p151
    $region22: #{basic_block_meta_forward.5} parent=5 // pred_check_branch
      %154 = sbr.rel (%p152) target = $region24
    $region23: #{basic_block_meta_forward.5} parent=5 // pred_region
      // Predicated region
      $region25: #{basic_block_meta_forward.5} parent=23 // pred_check
        %p155 = pneg %p30
      $region26: #{basic_block_meta_forward.5} parent=23 // pred_check_branch
        %157 = sbr.rel (%p155) target = $region28
      $region27: #{basic_block_meta_forward.5} parent=23 // pred_region
        %p158 = scmp.lt.s32.totalorder %s10, 1
        %s159 = scalar_select %p158, %s10, 1
        %s160 = smul.addr %s159, 32
        %s161 = smul.addr %s160, 4
        %s162 = scalar_lea.vmem %s0, %s161
      $region28: #{basic_block_meta_forward.5} parent=23 // pred_fallthru
        _
      // Predicated region
      $region29: #{basic_block_meta_forward.5} parent=23 // pred_check
        %p163 = pneg %p98
      $region30: #{basic_block_meta_forward.5} parent=23 // pred_check_branch
        %165 = sbr.rel (%p163) target = $region32
      $region31: #{basic_block_meta_forward.5} parent=23 // pred_region
        %p166 = scmp.lt.s32.totalorder %s10, 1
        %s167 = scalar_select %p166, %s10, 1
        %s168 = smul.addr %s167, 32
        %s169 = smul.addr %s168, 4
        %s170 = scalar_lea.vmem %s3, %s169
      $region32: #{basic_block_meta_forward.5} parent=23 // pred_fallthru
        _
    $region24: #{basic_block_meta_forward.5} parent=5 // pred_fallthru
      _
    %p171 = scmp.le.s32.totalorder 1, %s10
    %p172 = scmp.lt.s32.totalorder %s10, 3
    %p173 = pnand %p171, %p172
    %p174 = pneg %p173
    // Predicated region
    $region33: #{basic_block_meta_forward.5} parent=5 // pred_check
      _
    $region34: #{basic_block_meta_forward.5} parent=5 // pred_check_branch
      %176 = sbr.rel (%p173) target = $region36
    $region35: #{basic_block_meta_forward.5} parent=5 // pred_region
      %s177 = ssub.s32 %s10, 1
      %p178 = scmp.lt.s32.totalorder %s15, 1
      %s179 = scalar_select %p178, %s15, 1
      %s180 = smul.addr %s179, 32
      %s181 = smul.addr %s180, 4
      %s182 = scalar_lea.vmem %s0, %s181
      %p183 = pneg %p36
      %p184 = pneg %p33
      %p185 = pneg %p57
      %p186 = pneg %p54
      %p187 = pneg %p78
      %p188 = pneg %p75
      %p189 = scmp.lt.s32.totalorder %s15, 1
      %s190 = scalar_select %p189, %s15, 1
      %s191 = smul.addr %s190, 32
      %s192 = smul.addr %s191, 4
      %s193 = scalar_lea.vmem %s3, %s192
      %p194 = pneg %p104
      %p195 = pneg %p101
      %p196 = pneg %p130
      %p197 = pneg %p127
      %p198 = scmp.lt.s32.totalorder %s15, 1
      %s199 = scalar_select %p198, %s15, 1
      %s200 = smul.addr %s199, 32
      %s201 = smul.addr %s200, 8
      %s202 = scalar_lea.vmem %s4, %s201
      %p203 = scmp.lt.s32.totalorder %s15, 1
      %s204 = scalar_select %p203, %s15, 1
      %s205 = smul.addr %s204, 32
      %s206 = smul.addr %s205, 4
      %s207 = scalar_lea.vmem %s0, %s206
      %p208 = scmp.lt.s32.totalorder %s15, 1
      %s209 = scalar_select %p208, %s15, 1
      %s210 = smul.addr %s209, 32
      %s211 = smul.addr %s210, 4
      %s212 = scalar_lea.vmem %s3, %s211
      %p213 = scmp.lt.s32.totalorder %s15, 1
      %s214 = scalar_select %p213, %s15, 1
      %s215 = smul.addr %s214, 32
      %s216 = smul.addr %s215, 8
      %s217 = scalar_lea.vmem %s4, %s216
      %v218 = vld [vmem:[%s207] sm:$0xf]
      %v219 = vld [vmem:[%s207 + $0x4] sm:$0xf]
      %v220 = vld [vmem:[%s207 + $0x8] sm:$0xf]
      %v221 = vld [vmem:[%s207 + $0xc] sm:$0xf]
      %v222 = vld [vmem:[%s207 + $0x10] sm:$0xf]
      %v223 = vld [vmem:[%s207 + $0x14] sm:$0xf]
      %v224 = vld [vmem:[%s207 + $0x18] sm:$0xf]
      %v225 = vld [vmem:[%s207 + $0x1c] sm:$0xf]
      %v226 = vld [vmem:[%s207 + $0x20] sm:$0xf]
      %v227 = vld [vmem:[%s207 + $0x24] sm:$0xf]
      %v228 = vld [vmem:[%s207 + $0x28] sm:$0xf]
      %v229 = vld [vmem:[%s207 + $0x2c] sm:$0xf]
      %v230 = vld [vmem:[%s207 + $0x30] sm:$0xf]
      %v231 = vld [vmem:[%s207 + $0x34] sm:$0xf]
      %v232 = vld [vmem:[%s207 + $0x38] sm:$0xf]
      %v233 = vld [vmem:[%s207 + $0x3c] sm:$0xf]
      %v234 = vld [vmem:[%s207 + $0x40] sm:$0xf]
      %v235 = vld [vmem:[%s207 + $0x44] sm:$0xf]
      %v236 = vld [vmem:[%s207 + $0x48] sm:$0xf]
      %v237 = vld [vmem:[%s207 + $0x4c] sm:$0xf]
      %v238 = vld [vmem:[%s207 + $0x50] sm:$0xf]
      %v239 = vld [vmem:[%s207 + $0x54] sm:$0xf]
      %v240 = vld [vmem:[%s207 + $0x58] sm:$0xf]
      %v241 = vld [vmem:[%s207 + $0x5c] sm:$0xf]
      %v242 = vld [vmem:[%s207 + $0x60] sm:$0xf]
      %v243 = vld [vmem:[%s207 + $0x64] sm:$0xf]
      %v244 = vld [vmem:[%s207 + $0x68] sm:$0xf]
      %v245 = vld [vmem:[%s207 + $0x6c] sm:$0xf]
      %v246 = vld [vmem:[%s207 + $0x70] sm:$0xf]
      %v247 = vld [vmem:[%s207 + $0x74] sm:$0xf]
      %v248 = vld [vmem:[%s207 + $0x78] sm:$0xf]
      %v249 = vld [vmem:[%s207 + $0x7c] sm:$0xf]
      %v250 = vunpack.c.l.bf16 %v218
      %v251 = vunpack.c.l.bf16 %v219
      %v252 = vunpack.c.l.bf16 %v220
      %v253 = vunpack.c.l.bf16 %v221
      %v254 = vunpack.c.l.bf16 %v222
      %v255 = vunpack.c.l.bf16 %v223
      %v256 = vunpack.c.l.bf16 %v224
      %v257 = vunpack.c.l.bf16 %v225
      %v258 = vunpack.c.l.bf16 %v226
      %v259 = vunpack.c.l.bf16 %v227
      %v260 = vunpack.c.l.bf16 %v228
      %v261 = vunpack.c.l.bf16 %v229
      %v262 = vunpack.c.l.bf16 %v230
      %v263 = vunpack.c.l.bf16 %v231
      %v264 = vunpack.c.l.bf16 %v232
      %v265 = vunpack.c.l.bf16 %v233
      %v266 = vunpack.c.l.bf16 %v234
      %v267 = vunpack.c.l.bf16 %v235
      %v268 = vunpack.c.l.bf16 %v236
      %v269 = vunpack.c.l.bf16 %v237
      %v270 = vunpack.c.l.bf16 %v238
      %v271 = vunpack.c.l.bf16 %v239
      %v272 = vunpack.c.l.bf16 %v240
      %v273 = vunpack.c.l.bf16 %v241
      %v274 = vunpack.c.l.bf16 %v242
      %v275 = vunpack.c.l.bf16 %v243
      %v276 = vunpack.c.l.bf16 %v244
      %v277 = vunpack.c.l.bf16 %v245
      %v278 = vunpack.c.l.bf16 %v246
      %v279 = vunpack.c.l.bf16 %v247
      %v280 = vunpack.c.l.bf16 %v248
      %v281 = vunpack.c.l.bf16 %v249
      %v282 = vld [vmem:[%s1] sm:$0x1]
      %v284 = vperm.slane %v282, 0
      %v286 = vmul.f32 %v250, %v284
      %v287 = vmul.f32 %v251, %v284
      %v288 = vmul.f32 %v252, %v284
      %v289 = vmul.f32 %v253, %v284
      %v290 = vmul.f32 %v254, %v284
      %v291 = vmul.f32 %v255, %v284
      %v292 = vmul.f32 %v256, %v284
      %v293 = vmul.f32 %v257, %v284
      %v294 = vmul.f32 %v258, %v284
      %v295 = vmul.f32 %v259, %v284
      %v296 = vmul.f32 %v260, %v284
      %v297 = vmul.f32 %v261, %v284
      %v298 = vmul.f32 %v262, %v284
      %v299 = vmul.f32 %v263, %v284
      %v300 = vmul.f32 %v264, %v284
      %v301 = vmul.f32 %v265, %v284
      %v302 = vmul.f32 %v266, %v284
      %v303 = vmul.f32 %v267, %v284
      %v304 = vmul.f32 %v268, %v284
      %v305 = vmul.f32 %v269, %v284
      %v306 = vmul.f32 %v270, %v284
      %v307 = vmul.f32 %v271, %v284
      %v308 = vmul.f32 %v272, %v284
      %v309 = vmul.f32 %v273, %v284
      %v310 = vmul.f32 %v274, %v284
      %v311 = vmul.f32 %v275, %v284
      %v312 = vmul.f32 %v276, %v284
      %v313 = vmul.f32 %v277, %v284
      %v314 = vmul.f32 %v278, %v284
      %v315 = vmul.f32 %v279, %v284
      %v316 = vmul.f32 %v280, %v284
      %v317 = vmul.f32 %v281, %v284
      %v318 = vld [vmem:[%s2] sm:$0x1]
      %v320 = vperm.slane %v318, 0
      %v322 = vadd.f32 %v286, %v320
      %v323 = vadd.f32 %v287, %v320
      %v324 = vadd.f32 %v288, %v320
      %v325 = vadd.f32 %v289, %v320
      %v326 = vadd.f32 %v290, %v320
      %v327 = vadd.f32 %v291, %v320
      %v328 = vadd.f32 %v292, %v320
      %v329 = vadd.f32 %v293, %v320
      %v330 = vadd.f32 %v294, %v320
      %v331 = vadd.f32 %v295, %v320
      %v332 = vadd.f32 %v296, %v320
      %v333 = vadd.f32 %v297, %v320
      %v334 = vadd.f32 %v298, %v320
      %v335 = vadd.f32 %v299, %v320
      %v336 = vadd.f32 %v300, %v320
      %v337 = vadd.f32 %v301, %v320
      %v338 = vadd.f32 %v302, %v320
      %v339 = vadd.f32 %v303, %v320
      %v340 = vadd.f32 %v304, %v320
      %v341 = vadd.f32 %v305, %v320
      %v342 = vadd.f32 %v306, %v320
      %v343 = vadd.f32 %v307, %v320
      %v344 = vadd.f32 %v308, %v320
      %v345 = vadd.f32 %v309, %v320
      %v346 = vadd.f32 %v310, %v320
      %v347 = vadd.f32 %v311, %v320
      %v348 = vadd.f32 %v312, %v320
      %v349 = vadd.f32 %v313, %v320
      %v350 = vadd.f32 %v314, %v320
      %v351 = vadd.f32 %v315, %v320
      %v352 = vadd.f32 %v316, %v320
      %v353 = vadd.f32 %v317, %v320
      %v354 = vld [vmem:[%s212] sm:$0xf]
      %v355 = vld [vmem:[%s212 + $0x4] sm:$0xf]
      %v356 = vld [vmem:[%s212 + $0x8] sm:$0xf]
      %v357 = vld [vmem:[%s212 + $0xc] sm:$0xf]
      %v358 = vld [vmem:[%s212 + $0x10] sm:$0xf]
      %v359 = vld [vmem:[%s212 + $0x14] sm:$0xf]
      %v360 = vld [vmem:[%s212 + $0x18] sm:$0xf]
      %v361 = vld [vmem:[%s212 + $0x1c] sm:$0xf]
      %v362 = vld [vmem:[%s212 + $0x20] sm:$0xf]
      %v363 = vld [vmem:[%s212 + $0x24] sm:$0xf]
      %v364 = vld [vmem:[%s212 + $0x28] sm:$0xf]
      %v365 = vld [vmem:[%s212 + $0x2c] sm:$0xf]
      %v366 = vld [vmem:[%s212 + $0x30] sm:$0xf]
      %v367 = vld [vmem:[%s212 + $0x34] sm:$0xf]
      %v368 = vld [vmem:[%s212 + $0x38] sm:$0xf]
      %v369 = vld [vmem:[%s212 + $0x3c] sm:$0xf]
      %v370 = vld [vmem:[%s212 + $0x40] sm:$0xf]
      %v371 = vld [vmem:[%s212 + $0x44] sm:$0xf]
      %v372 = vld [vmem:[%s212 + $0x48] sm:$0xf]
      %v373 = vld [vmem:[%s212 + $0x4c] sm:$0xf]
      %v374 = vld [vmem:[%s212 + $0x50] sm:$0xf]
      %v375 = vld [vmem:[%s212 + $0x54] sm:$0xf]
      %v376 = vld [vmem:[%s212 + $0x58] sm:$0xf]
      %v377 = vld [vmem:[%s212 + $0x5c] sm:$0xf]
      %v378 = vld [vmem:[%s212 + $0x60] sm:$0xf]
      %v379 = vld [vmem:[%s212 + $0x64] sm:$0xf]
      %v380 = vld [vmem:[%s212 + $0x68] sm:$0xf]
      %v381 = vld [vmem:[%s212 + $0x6c] sm:$0xf]
      %v382 = vld [vmem:[%s212 + $0x70] sm:$0xf]
      %v383 = vld [vmem:[%s212 + $0x74] sm:$0xf]
      %v384 = vld [vmem:[%s212 + $0x78] sm:$0xf]
      %v385 = vld [vmem:[%s212 + $0x7c] sm:$0xf]
      %v386 = vunpack.c.l.bf16 %v354
      %v387 = vunpack.c.l.bf16 %v355
      %v388 = vunpack.c.l.bf16 %v356
      %v389 = vunpack.c.l.bf16 %v357
      %v390 = vunpack.c.l.bf16 %v358
      %v391 = vunpack.c.l.bf16 %v359
      %v392 = vunpack.c.l.bf16 %v360
      %v393 = vunpack.c.l.bf16 %v361
      %v394 = vunpack.c.l.bf16 %v362
      %v395 = vunpack.c.l.bf16 %v363
      %v396 = vunpack.c.l.bf16 %v364
      %v397 = vunpack.c.l.bf16 %v365
      %v398 = vunpack.c.l.bf16 %v366
      %v399 = vunpack.c.l.bf16 %v367
      %v400 = vunpack.c.l.bf16 %v368
      %v401 = vunpack.c.l.bf16 %v369
      %v402 = vunpack.c.l.bf16 %v370
      %v403 = vunpack.c.l.bf16 %v371
      %v404 = vunpack.c.l.bf16 %v372
      %v405 = vunpack.c.l.bf16 %v373
      %v406 = vunpack.c.l.bf16 %v374
      %v407 = vunpack.c.l.bf16 %v375
      %v408 = vunpack.c.l.bf16 %v376
      %v409 = vunpack.c.l.bf16 %v377
      %v410 = vunpack.c.l.bf16 %v378
      %v411 = vunpack.c.l.bf16 %v379
      %v412 = vunpack.c.l.bf16 %v380
      %v413 = vunpack.c.l.bf16 %v381
      %v414 = vunpack.c.l.bf16 %v382
      %v415 = vunpack.c.l.bf16 %v383
      %v416 = vunpack.c.l.bf16 %v384
      %v417 = vunpack.c.l.bf16 %v385
      %v418 = vadd.f32 %v322, %v386
      %v419 = vadd.f32 %v323, %v387
      %v420 = vadd.f32 %v324, %v388
      %v421 = vadd.f32 %v325, %v389
      %v422 = vadd.f32 %v326, %v390
      %v423 = vadd.f32 %v327, %v391
      %v424 = vadd.f32 %v328, %v392
      %v425 = vadd.f32 %v329, %v393
      %v426 = vadd.f32 %v330, %v394
      %v427 = vadd.f32 %v331, %v395
      %v428 = vadd.f32 %v332, %v396
      %v429 = vadd.f32 %v333, %v397
      %v430 = vadd.f32 %v334, %v398
      %v431 = vadd.f32 %v335, %v399
      %v432 = vadd.f32 %v336, %v400
      %v433 = vadd.f32 %v337, %v401
      %v434 = vadd.f32 %v338, %v402
      %v435 = vadd.f32 %v339, %v403
      %v436 = vadd.f32 %v340, %v404
      %v437 = vadd.f32 %v341, %v405
      %v438 = vadd.f32 %v342, %v406
      %v439 = vadd.f32 %v343, %v407
      %v440 = vadd.f32 %v344, %v408
      %v441 = vadd.f32 %v345, %v409
      %v442 = vadd.f32 %v346, %v410
      %v443 = vadd.f32 %v347, %v411
      %v444 = vadd.f32 %v348, %v412
      %v445 = vadd.f32 %v349, %v413
      %v446 = vadd.f32 %v350, %v414
      %v447 = vadd.f32 %v351, %v415
      %v448 = vadd.f32 %v352, %v416
      %v449 = vadd.f32 %v353, %v417
      %v450 = vmax.f32 %v418, 0.0
      %v451 = vmax.f32 %v419, 0.0
      %v452 = vmax.f32 %v420, 0.0
      %v453 = vmax.f32 %v421, 0.0
      %v454 = vmax.f32 %v422, 0.0
      %v455 = vmax.f32 %v423, 0.0
      %v456 = vmax.f32 %v424, 0.0
      %v457 = vmax.f32 %v425, 0.0
      %v458 = vmax.f32 %v426, 0.0
      %v459 = vmax.f32 %v427, 0.0
      %v460 = vmax.f32 %v428, 0.0
      %v461 = vmax.f32 %v429, 0.0
      %v462 = vmax.f32 %v430, 0.0
      %v463 = vmax.f32 %v431, 0.0
      %v464 = vmax.f32 %v432, 0.0
      %v465 = vmax.f32 %v433, 0.0
      %v466 = vmax.f32 %v434, 0.0
      %v467 = vmax.f32 %v435, 0.0
      %v468 = vmax.f32 %v436, 0.0
      %v469 = vmax.f32 %v437, 0.0
      %v470 = vmax.f32 %v438, 0.0
      %v471 = vmax.f32 %v439, 0.0
      %v472 = vmax.f32 %v440, 0.0
      %v473 = vmax.f32 %v441, 0.0
      %v474 = vmax.f32 %v442, 0.0
      %v475 = vmax.f32 %v443, 0.0
      %v476 = vmax.f32 %v444, 0.0
      %v477 = vmax.f32 %v445, 0.0
      %v478 = vmax.f32 %v446, 0.0
      %v479 = vmax.f32 %v447, 0.0
      %v480 = vmax.f32 %v448, 0.0
      %v481 = vmax.f32 %v449, 0.0
      %482 = vst [vmem:[%s217] sm:$0xff] %v450
      %483 = vst [vmem:[%s217 + $0x8] sm:$0xff] %v451
      %484 = vst [vmem:[%s217 + $0x10] sm:$0xff] %v452
      %485 = vst [vmem:[%s217 + $0x18] sm:$0xff] %v453
      %486 = vst [vmem:[%s217 + $0x20] sm:$0xff] %v454
      %487 = vst [vmem:[%s217 + $0x28] sm:$0xff] %v455
      %488 = vst [vmem:[%s217 + $0x30] sm:$0xff] %v456
      %489 = vst [vmem:[%s217 + $0x38] sm:$0xff] %v457
      %490 = vst [vmem:[%s217 + $0x40] sm:$0xff] %v458
      %491 = vst [vmem:[%s217 + $0x48] sm:$0xff] %v459
      %492 = vst [vmem:[%s217 + $0x50] sm:$0xff] %v460
      %493 = vst [vmem:[%s217 + $0x58] sm:$0xff] %v461
      %494 = vst [vmem:[%s217 + $0x60] sm:$0xff] %v462
      %495 = vst [vmem:[%s217 + $0x68] sm:$0xff] %v463
      %496 = vst [vmem:[%s217 + $0x70] sm:$0xff] %v464
      %497 = vst [vmem:[%s217 + $0x78] sm:$0xff] %v465
      %498 = vst [vmem:[%s217 + $0x80] sm:$0xff] %v466
      %499 = vst [vmem:[%s217 + $0x88] sm:$0xff] %v467
      %500 = vst [vmem:[%s217 + $0x90] sm:$0xff] %v468
      %501 = vst [vmem:[%s217 + $0x98] sm:$0xff] %v469
      %502 = vst [vmem:[%s217 + $0xa0] sm:$0xff] %v470
      %503 = vst [vmem:[%s217 + $0xa8] sm:$0xff] %v471
      %504 = vst [vmem:[%s217 + $0xb0] sm:$0xff] %v472
      %505 = vst [vmem:[%s217 + $0xb8] sm:$0xff] %v473
      %506 = vst [vmem:[%s217 + $0xc0] sm:$0xff] %v474
      %507 = vst [vmem:[%s217 + $0xc8] sm:$0xff] %v475
      %508 = vst [vmem:[%s217 + $0xd0] sm:$0xff] %v476
      %509 = vst [vmem:[%s217 + $0xd8] sm:$0xff] %v477
      %510 = vst [vmem:[%s217 + $0xe0] sm:$0xff] %v478
      %511 = vst [vmem:[%s217 + $0xe8] sm:$0xff] %v479
      %512 = vst [vmem:[%s217 + $0xf0] sm:$0xff] %v480
      %513 = vst [vmem:[%s217 + $0xf8] sm:$0xff] %v481
      %p514 = scmp.lt.s32.totalorder %s15, 1
      %s515 = scalar_select %p514, %s15, 1
      %s516 = smul.addr %s515, 32
      %s517 = smul.addr %s516, 8
      %s518 = scalar_lea.vmem %s4, %s517
      // Predicated region
      $region37: #{basic_block_meta_forward.5} parent=35 // pred_check
        %p519 = pneg %p127
      $region38: #{basic_block_meta_forward.5} parent=35 // pred_check_branch
        %521 = sbr.rel (%p519) target = $region40
      $region39: #{basic_block_meta_forward.5} parent=35 // pred_region
        _
      $region40: #{basic_block_meta_forward.5} parent=35 // pred_fallthru
        _
    $region36: #{basic_block_meta_forward.5} parent=5 // pred_fallthru
      _
    %p522 = scmp.le.s32.totalorder 2, %s10
    // Predicated region
    $region41: #{basic_block_meta_forward.5} parent=5 // pred_check
      %p523 = pneg %p522
    $region42: #{basic_block_meta_forward.5} parent=5 // pred_check_branch
      %525 = sbr.rel (%p523) target = $region44
    $region43: #{basic_block_meta_forward.5} parent=5 // pred_region
      %s526 = ssub.s32 %s10, 2
      // Predicated region
      $region45: #{basic_block_meta_forward.5} parent=43 // pred_check
        %p527 = pneg %p133
      $region46: #{basic_block_meta_forward.5} parent=43 // pred_check_branch
        %529 = sbr.rel (%p527) target = $region48
      $region47: #{basic_block_meta_forward.5} parent=43 // pred_region
        %p530 = scmp.lt.s32.totalorder %s16, 1
        %s531 = scalar_select %p530, %s16, 1
        %s532 = smul.addr %s531, 32
        %s533 = smul.addr %s532, 8
        %s534 = scalar_lea.vmem %s4, %s533
      $region48: #{basic_block_meta_forward.5} parent=43 // pred_fallthru
        _
    $region44: #{basic_block_meta_forward.5} parent=5 // pred_fallthru
      _
  $region6: #{basic_block_meta_forward.5} parent=0 // loop_footer
    %s14 = sadd.s32 1, %s10
  $region7: #{basic_block_meta_forward.5} parent=0 // loop_footer_branch
    %9 = sbr.rel target = $region3
  $region8: #{basic_block_meta_forward.5} parent=0 // loop_exit
    _

// kernel: basic_block_meta_forward.4
$region0: #{basic_block_meta_forward.4}
  #allocation0 [shape = 'u32[]', space=smem, size = 0x4, offset = 0x4, fixed_abs, tag = 'smem constant byte address 0x4 - core index']
  #allocation1 [shape = 'u32[72,128]{1,0:T(1,128)}', space=vmem, size = 0x9000, scoped, tag = 'internal scratch']
  #allocation2 [shape = 'bf16[1,18,18,128]{3,2,1,0:T(8,128)(2,1)}', space=vmem, size = 0x1b000, scoped, tag = 'scratch operand']
  %s0 = inlined_call_operand.vmem [shape: bf16[2,16,16,128], index: 0, kind: input, shape index: {}]
  %s1 = inlined_call_operand.vmem [shape: bf16[9,128,128], index: 1, kind: input, shape index: {}]
  %s2 = inlined_call_operand.vmem [shape: f32[1,128], index: 2, kind: input, shape index: {}]
  %s3 = inlined_call_operand.vmem [shape: f32[1,128], index: 3, kind: input, shape index: {}]
  %s4 = inlined_call_operand.vmem [shape: bf16[2,16,16,128], index: 4, kind: output, shape index: {0}]
  %s5 = inlined_call_operand.vmem [shape: f32[2,1,128], index: 5, kind: output, shape index: {1}]
  %s6 = inlined_call_operand.vmem [shape: f32[2,1,128], index: 6, kind: output, shape index: {2}]
  %7 = xla_tuple %s4, %s5, %s6
  %s8 = sld [smem:[#allocation0]]
  $region65: #{basic_block_meta_forward.4} parent=0
    _
  %s10 = ssub.s32 1, %s8
  %s11 = scalar_select 0, %s10, %s8
  loop: start=0, step=1, limit=4
  $region2: #{basic_block_meta_forward.4} parent=0 // loop_pre_header
    _
  $region3: #{basic_block_meta_forward.4} parent=0 // loop_header
    %s13 = sphi 0, %s17
    %p14 = scmp.ge.s32.totalorder %s13, 4
    %s23 = sphi 0, %s25
    %s26 = sphi 0, %s23
    %s27 = sphi 0, %s26
    %s43 = sphi 0, %s27
    %s47 = sphi 0, %s47
    %s49 = sphi 0, %s47
    %s50 = sphi 0, %s49
    %s64 = sphi 0, %s50
    %s68 = sphi 0, %s68
    %s70 = sphi 0, %s68
    %s71 = sphi 0, %s70
    %s85 = sphi 0, %s71
    %s89 = sphi 0, %s89
    %s91 = sphi 0, %s89
    %s92 = sphi 0, %s91
    %s106 = sphi 0, %s92
    %s112 = sphi 0, %s114
    %s115 = sphi 0, %s112
    %s116 = sphi 0, %s115
    %s132 = sphi 0, %s116
    %s138 = sphi 0, %s140
    %s141 = sphi 0, %s138
    %s142 = sphi 0, %s141
    %s158 = sphi 0, %s142
    %s164 = sphi 0, %s166
    %s167 = sphi 0, %s164
    %s168 = sphi 0, %s167
    %s184 = sphi 0, %s168
  $region4: #{basic_block_meta_forward.4} parent=0 // loop_header_branch
    %16 = sbr.rel (%p14) target = $region8
  $region5: #{basic_block_meta_forward.4} parent=0 // loop_body
    %s18 = ssub.s32 %s13, 1
    %s19 = ssub.s32 %s13, 2
    %s20 = sadd.s32 %s13, 1
    %s21 = ssub.s32 %s13, %s20
    %p22 = scmp.eq.s32.totalorder %s21, 0
    %s24 = sadd.s32 %s23, 1
    %s25 = scalar_select %p22, %s23, %s24
    %p28 = pneg %p22
    %p29 = scmp.eq.s32.totalorder %s13, 1
    %p30 = por %p28, %p29
    %p31 = scmp.ne.s32.totalorder %s23, %s26
    %p32 = scmp.eq.s32.totalorder %s13, 0
    %p33 = por %p31, %p32
    %p34 = scmp.ne.s32.totalorder %s23, %s26
    %p35 = scmp.eq.s32.totalorder %s18, 1
    %p36 = por %p34, %p35
    %p37 = scmp.ne.s32.totalorder %s26, %s27
    %p38 = scmp.eq.s32.totalorder %s18, 0
    %p39 = por %p37, %p38
    %p40 = scmp.ne.s32.totalorder %s26, %s27
    %p41 = scmp.eq.s32.totalorder %s19, 1
    %p42 = por %p40, %p41
    %p44 = scmp.ne.s32.totalorder %s27, %s43
    %p45 = scmp.eq.s32.totalorder %s19, 0
    %p46 = por %p44, %p45
    %s48 = sadd.s32 %s47, 1
    %p51 = scmp.eq.s32.totalorder %s13, 1
    %p52 = scmp.ne.s32.totalorder %s47, %s49
    %p53 = scmp.eq.s32.totalorder %s13, 0
    %p54 = por %p52, %p53
    %p55 = scmp.ne.s32.totalorder %s47, %s49
    %p56 = scmp.eq.s32.totalorder %s18, 1
    %p57 = por %p55, %p56
    %p58 = scmp.ne.s32.totalorder %s49, %s50
    %p59 = scmp.eq.s32.totalorder %s18, 0
    %p60 = por %p58, %p59
    %p61 = scmp.ne.s32.totalorder %s49, %s50
    %p62 = scmp.eq.s32.totalorder %s19, 1
    %p63 = por %p61, %p62
    %p65 = scmp.ne.s32.totalorder %s50, %s64
    %p66 = scmp.eq.s32.totalorder %s19, 0
    %p67 = por %p65, %p66
    %s69 = sadd.s32 %s68, 1
    %p72 = scmp.eq.s32.totalorder %s13, 1
    %p73 = scmp.ne.s32.totalorder %s68, %s70
    %p74 = scmp.eq.s32.totalorder %s13, 0
    %p75 = por %p73, %p74
    %p76 = scmp.ne.s32.totalorder %s68, %s70
    %p77 = scmp.eq.s32.totalorder %s18, 1
    %p78 = por %p76, %p77
    %p79 = scmp.ne.s32.totalorder %s70, %s71
    %p80 = scmp.eq.s32.totalorder %s18, 0
    %p81 = por %p79, %p80
    %p82 = scmp.ne.s32.totalorder %s70, %s71
    %p83 = scmp.eq.s32.totalorder %s19, 1
    %p84 = por %p82, %p83
    %p86 = scmp.ne.s32.totalorder %s71, %s85
    %p87 = scmp.eq.s32.totalorder %s19, 0
    %p88 = por %p86, %p87
    %s90 = sadd.s32 %s89, 1
    %p93 = scmp.eq.s32.totalorder %s13, 1
    %p94 = scmp.ne.s32.totalorder %s89, %s91
    %p95 = scmp.eq.s32.totalorder %s13, 0
    %p96 = por %p94, %p95
    %p97 = scmp.ne.s32.totalorder %s89, %s91
    %p98 = scmp.eq.s32.totalorder %s18, 1
    %p99 = por %p97, %p98
    %p100 = scmp.ne.s32.totalorder %s91, %s92
    %p101 = scmp.eq.s32.totalorder %s18, 0
    %p102 = por %p100, %p101
    %p103 = scmp.ne.s32.totalorder %s91, %s92
    %p104 = scmp.eq.s32.totalorder %s19, 1
    %p105 = por %p103, %p104
    %p107 = scmp.ne.s32.totalorder %s92, %s106
    %p108 = scmp.eq.s32.totalorder %s19, 0
    %p109 = por %p107, %p108
    %s110 = ssub.s32 %s13, %s20
    %p111 = scmp.eq.s32.totalorder %s110, 0
    %s113 = sadd.s32 %s112, 1
    %s114 = scalar_select %p111, %s112, %s113
    %p117 = pneg %p111
    %p118 = scmp.eq.s32.totalorder %s13, 1
    %p119 = por %p117, %p118
    %p120 = scmp.ne.s32.totalorder %s112, %s115
    %p121 = scmp.eq.s32.totalorder %s13, 0
    %p122 = por %p120, %p121
    %p123 = scmp.ne.s32.totalorder %s112, %s115
    %p124 = scmp.eq.s32.totalorder %s18, 1
    %p125 = por %p123, %p124
    %p126 = scmp.ne.s32.totalorder %s115, %s116
    %p127 = scmp.eq.s32.totalorder %s18, 0
    %p128 = por %p126, %p127
    %p129 = scmp.ne.s32.totalorder %s115, %s116
    %p130 = scmp.eq.s32.totalorder %s19, 1
    %p131 = por %p129, %p130
    %p133 = scmp.ne.s32.totalorder %s116, %s132
    %p134 = scmp.eq.s32.totalorder %s19, 0
    %p135 = por %p133, %p134
    %s136 = ssub.s32 %s13, %s20
    %p137 = scmp.eq.s32.totalorder %s136, 0
    %s139 = sadd.s32 %s138, 1
    %s140 = scalar_select %p137, %s138, %s139
    %p143 = pneg %p137
    %p144 = scmp.eq.s32.totalorder %s13, 1
    %p145 = por %p143, %p144
    %p146 = scmp.ne.s32.totalorder %s138, %s141
    %p147 = scmp.eq.s32.totalorder %s13, 0
    %p148 = por %p146, %p147
    %p149 = scmp.ne.s32.totalorder %s138, %s141
    %p150 = scmp.eq.s32.totalorder %s18, 1
    %p151 = por %p149, %p150
    %p152 = scmp.ne.s32.totalorder %s141, %s142
    %p153 = scmp.eq.s32.totalorder %s18, 0
    %p154 = por %p152, %p153
    %p155 = scmp.ne.s32.totalorder %s141, %s142
    %p156 = scmp.eq.s32.totalorder %s19, 1
    %p157 = por %p155, %p156
    %p159 = scmp.ne.s32.totalorder %s142, %s158
    %p160 = scmp.eq.s32.totalorder %s19, 0
    %p161 = por %p159, %p160
    %s162 = ssub.s32 %s13, %s20
    %p163 = scmp.eq.s32.totalorder %s162, 0
    %s165 = sadd.s32 %s164, 1
    %s166 = scalar_select %p163, %s164, %s165
    %p169 = pneg %p163
    %p170 = scmp.eq.s32.totalorder %s13, 1
    %p171 = por %p169, %p170
    %p172 = scmp.ne.s32.totalorder %s164, %s167
    %p173 = scmp.eq.s32.totalorder %s13, 0
    %p174 = por %p172, %p173
    %p175 = scmp.ne.s32.totalorder %s164, %s167
    %p176 = scmp.eq.s32.totalorder %s18, 1
    %p177 = por %p175, %p176
    %p178 = scmp.ne.s32.totalorder %s167, %s168
    %p179 = scmp.eq.s32.totalorder %s18, 0
    %p180 = por %p178, %p179
    %p181 = scmp.ne.s32.totalorder %s167, %s168
    %p182 = scmp.eq.s32.totalorder %s19, 1
    %p183 = por %p181, %p182
    %p185 = scmp.ne.s32.totalorder %s168, %s184
    %p186 = scmp.eq.s32.totalorder %s19, 0
    %p187 = por %p185, %p186
    %p188 = scmp.le.s32.totalorder 1, %s13
    %p189 = scmp.lt.s32.totalorder %s13, 3
    %p190 = pnand %p188, %p189
    %p191 = pneg %p190
    // Predicated region
    $region9: #{basic_block_meta_forward.4} parent=5 // pred_check
      _
    $region10: #{basic_block_meta_forward.4} parent=5 // pred_check_branch
      %193 = sbr.rel (%p190) target = $region12
    $region11: #{basic_block_meta_forward.4} parent=5 // pred_region
      %s194 = ssub.s32 %s13, 1
      // Predicated region
      $region13: #{basic_block_meta_forward.4} parent=11 // pred_check
        %p195 = pneg %p60
      $region14: #{basic_block_meta_forward.4} parent=11 // pred_check_branch
        %197 = sbr.rel (%p195) target = $region16
      $region15: #{basic_block_meta_forward.4} parent=11 // pred_region
        _
      $region16: #{basic_block_meta_forward.4} parent=11 // pred_fallthru
        _
      // Predicated region
      $region17: #{basic_block_meta_forward.4} parent=11 // pred_check
        %p198 = pneg %p81
      $region18: #{basic_block_meta_forward.4} parent=11 // pred_check_branch
        %200 = sbr.rel (%p198) target = $region20
      $region19: #{basic_block_meta_forward.4} parent=11 // pred_region
        _
      $region20: #{basic_block_meta_forward.4} parent=11 // pred_fallthru
        _
      // Predicated region
      $region21: #{basic_block_meta_forward.4} parent=11 // pred_check
        %p201 = pneg %p102
      $region22: #{basic_block_meta_forward.4} parent=11 // pred_check_branch
        %203 = sbr.rel (%p201) target = $region24
      $region23: #{basic_block_meta_forward.4} parent=11 // pred_region
        _
      $region24: #{basic_block_meta_forward.4} parent=11 // pred_fallthru
        _
    $region12: #{basic_block_meta_forward.4} parent=5 // pred_fallthru
      _
    %p204 = scmp.lt.s32.totalorder %s13, 2
    // Predicated region
    $region25: #{basic_block_meta_forward.4} parent=5 // pred_check
      %p205 = pneg %p204
    $region26: #{basic_block_meta_forward.4} parent=5 // pred_check_branch
      %207 = sbr.rel (%p205) target = $region28
    $region27: #{basic_block_meta_forward.4} parent=5 // pred_region
      // Predicated region
      $region29: #{basic_block_meta_forward.4} parent=27 // pred_check
        %p208 = pneg %p33
      $region30: #{basic_block_meta_forward.4} parent=27 // pred_check_branch
        %210 = sbr.rel (%p208) target = $region32
      $region31: #{basic_block_meta_forward.4} parent=27 // pred_region
        %p211 = scmp.lt.s32.totalorder %s13, 1
        %s212 = scalar_select %p211, %s13, 1
        %s213 = smul.addr %s212, 32
        %s214 = smul.addr %s213, 4
        %s215 = scalar_lea.vmem %s0, %s214
      $region32: #{basic_block_meta_forward.4} parent=27 // pred_fallthru
        _
    $region28: #{basic_block_meta_forward.4} parent=5 // pred_fallthru
      _
    %p216 = scmp.le.s32.totalorder 1, %s13
    %p217 = scmp.lt.s32.totalorder %s13, 3
    %p218 = pnand %p216, %p217
    %p219 = pneg %p218
    // Predicated region
    $region33: #{basic_block_meta_forward.4} parent=5 // pred_check
      _
    $region34: #{basic_block_meta_forward.4} parent=5 // pred_check_branch
      %221 = sbr.rel (%p218) target = $region36
    $region35: #{basic_block_meta_forward.4} parent=5 // pred_region
      %s222 = ssub.s32 %s13, 1
      %p223 = scmp.lt.s32.totalorder %s18, 1
      %s224 = scalar_select %p223, %s18, 1
      %s225 = smul.addr %s224, 32
      %s226 = smul.addr %s225, 4
      %s227 = scalar_lea.vmem %s0, %s226
      %p228 = pneg %p39
      %p229 = pneg %p36
      %p230 = pneg %p60
      %p231 = pneg %p57
      %p232 = pneg %p81
      %p233 = pneg %p78
      %p234 = pneg %p102
      %p235 = pneg %p99
      %p236 = pneg %p128
      %p237 = pneg %p125
      %p238 = scmp.lt.s32.totalorder %s18, 1
      %s239 = scalar_select %p238, %s18, 1
      %s240 = smul.addr %s239, 32
      %s241 = smul.addr %s240, 4
      %s242 = scalar_lea.vmem %s4, %s241
      %p243 = pneg %p154
      %p244 = pneg %p151
      %p245 = scmp.lt.s32.totalorder %s18, 1
      %s246 = scalar_select %p245, %s18, 1
      %s247 = scalar_lea.vmem %s5, %s246
      %p248 = pneg %p180
      %p249 = pneg %p177
      %p250 = scmp.lt.s32.totalorder %s18, 1
      %s251 = scalar_select %p250, %s18, 1
      %s252 = scalar_lea.vmem %s6, %s251
      %p253 = scmp.lt.s32.totalorder %s18, 1
      %s254 = scalar_select %p253, %s18, 1
      %s255 = smul.addr %s254, 32
      %s256 = smul.addr %s255, 4
      %s257 = scalar_lea.vmem %s0, %s256
      %p258 = scmp.lt.s32.totalorder %s18, 1
      %s259 = scalar_select %p258, %s18, 1
      %s260 = smul.addr %s259, 32
      %s261 = smul.addr %s260, 4
      %s262 = scalar_lea.vmem %s4, %s261
      %p263 = scmp.lt.s32.totalorder %s18, 1
      %s264 = scalar_select %p263, %s18, 1
      %s265 = scalar_lea.vmem %s5, %s264
      %p266 = scmp.lt.s32.totalorder %s18, 1
      %s267 = scalar_select %p266, %s18, 1
      %s268 = scalar_lea.vmem %s6, %s267
      %270 = vst [vmem:[#allocation2] sm:$0xf] 0
      %271 = vst [vmem:[#allocation2 + $0x4] sm:$0xf] 0
      %272 = vst [vmem:[#allocation2 + $0x8] sm:$0x1] 0
      %273 = vst [vmem:[#allocation2 + $0xc] sm:$0xf] 0
      %274 = vst [vmem:[#allocation2 + $0x10] sm:$0xf] 0
      %275 = vst [vmem:[#allocation2 + $0x14] sm:$0x1] 0
      %276 = vst [vmem:[#allocation2 + $0x18] sm:$0xf] 0
      %277 = vst [vmem:[#allocation2 + $0x1c] sm:$0xf] 0
      %278 = vst [vmem:[#allocation2 + $0x20] sm:$0x1] 0
      %279 = vst [vmem:[#allocation2 + $0x24] sm:$0xf] 0
      %280 = vst [vmem:[#allocation2 + $0x28] sm:$0xf] 0
      %281 = vst [vmem:[#allocation2 + $0x2c] sm:$0x1] 0
      %282 = vst [vmem:[#allocation2 + $0x30] sm:$0xf] 0
      %283 = vst [vmem:[#allocation2 + $0x34] sm:$0xf] 0
      %284 = vst [vmem:[#allocation2 + $0x38] sm:$0x1] 0
      %285 = vst [vmem:[#allocation2 + $0x3c] sm:$0xf] 0
      %286 = vst [vmem:[#allocation2 + $0x40] sm:$0xf] 0
      %287 = vst [vmem:[#allocation2 + $0x44] sm:$0x1] 0
      %288 = vst [vmem:[#allocation2 + $0x48] sm:$0xf] 0
      %289 = vst [vmem:[#allocation2 + $0x4c] sm:$0xf] 0
      %290 = vst [vmem:[#allocation2 + $0x50] sm:$0x1] 0
      %291 = vst [vmem:[#allocation2 + $0x54] sm:$0xf] 0
      %292 = vst [vmem:[#allocation2 + $0x58] sm:$0xf] 0
      %293 = vst [vmem:[#allocation2 + $0x5c] sm:$0x1] 0
      %294 = vst [vmem:[#allocation2 + $0x60] sm:$0xf] 0
      %295 = vst [vmem:[#allocation2 + $0x64] sm:$0xf] 0
      %296 = vst [vmem:[#allocation2 + $0x68] sm:$0x1] 0
      %297 = vst [vmem:[#allocation2 + $0x6c] sm:$0xf] 0
      %298 = vst [vmem:[#allocation2 + $0x70] sm:$0xf] 0
      %299 = vst [vmem:[#allocation2 + $0x74] sm:$0x1] 0
      %300 = vst [vmem:[#allocation2 + $0x78] sm:$0xf] 0
      %301 = vst [vmem:[#allocation2 + $0x7c] sm:$0xf] 0
      %302 = vst [vmem:[#allocation2 + $0x80] sm:$0x1] 0
      %303 = vst [vmem:[#allocation2 + $0x84] sm:$0xf] 0
      %304 = vst [vmem:[#allocation2 + $0x88] sm:$0xf] 0
      %305 = vst [vmem:[#allocation2 + $0x8c] sm:$0x1] 0
      %306 = vst [vmem:[#allocation2 + $0x90] sm:$0xf] 0
      %307 = vst [vmem:[#allocation2 + $0x94] sm:$0xf] 0
      %308 = vst [vmem:[#allocation2 + $0x98] sm:$0x1] 0
      %309 = vst [vmem:[#allocation2 + $0x9c] sm:$0xf] 0
      %310 = vst [vmem:[#allocation2 + $0xa0] sm:$0xf] 0
      %311 = vst [vmem:[#allocation2 + $0xa4] sm:$0x1] 0
      %312 = vst [vmem:[#allocation2 + $0xa8] sm:$0xf] 0
      %313 = vst [vmem:[#allocation2 + $0xac] sm:$0xf] 0
      %314 = vst [vmem:[#allocation2 + $0xb0] sm:$0x1] 0
      %315 = vst [vmem:[#allocation2 + $0xb4] sm:$0xf] 0
      %316 = vst [vmem:[#allocation2 + $0xb8] sm:$0xf] 0
      %317 = vst [vmem:[#allocation2 + $0xbc] sm:$0x1] 0
      %318 = vst [vmem:[#allocation2 + $0xc0] sm:$0xf] 0
      %319 = vst [vmem:[#allocation2 + $0xc4] sm:$0xf] 0
      %320 = vst [vmem:[#allocation2 + $0xc8] sm:$0x1] 0
      %321 = vst [vmem:[#allocation2 + $0xcc] sm:$0xf] 0
      %322 = vst [vmem:[#allocation2 + $0xd0] sm:$0xf] 0
      %323 = vst [vmem:[#allocation2 + $0xd4] sm:$0x1] 0
      %v324 = vld [vmem:[%s257] sm:$0xf]
      %v325 = vld [vmem:[%s257 + $0x4] sm:$0xf]
      %v326 = vld [vmem:[%s257 + $0x8] sm:$0xf]
      %v327 = vld [vmem:[%s257 + $0xc] sm:$0xf]
      %v328 = vld [vmem:[%s257 + $0x10] sm:$0xf]
      %v329 = vld [vmem:[%s257 + $0x14] sm:$0xf]
      %v330 = vld [vmem:[%s257 + $0x18] sm:$0xf]
      %v331 = vld [vmem:[%s257 + $0x1c] sm:$0xf]
      %v332 = vld [vmem:[%s257 + $0x20] sm:$0xf]
      %v333 = vld [vmem:[%s257 + $0x24] sm:$0xf]
      %v334 = vld [vmem:[%s257 + $0x28] sm:$0xf]
      %v335 = vld [vmem:[%s257 + $0x2c] sm:$0xf]
      %v336 = vld [vmem:[%s257 + $0x30] sm:$0xf]
      %v337 = vld [vmem:[%s257 + $0x34] sm:$0xf]
      %v338 = vld [vmem:[%s257 + $0x38] sm:$0xf]
      %v339 = vld [vmem:[%s257 + $0x3c] sm:$0xf]
      %v340 = vld [vmem:[%s257 + $0x40] sm:$0xf]
      %v341 = vld [vmem:[%s257 + $0x44] sm:$0xf]
      %v342 = vld [vmem:[%s257 + $0x48] sm:$0xf]
      %v343 = vld [vmem:[%s257 + $0x4c] sm:$0xf]
      %v344 = vld [vmem:[%s257 + $0x50] sm:$0xf]
      %v345 = vld [vmem:[%s257 + $0x54] sm:$0xf]
      %v346 = vld [vmem:[%s257 + $0x58] sm:$0xf]
      %v347 = vld [vmem:[%s257 + $0x5c] sm:$0xf]
      %v348 = vld [vmem:[%s257 + $0x60] sm:$0xf]
      %v349 = vld [vmem:[%s257 + $0x64] sm:$0xf]
      %v350 = vld [vmem:[%s257 + $0x68] sm:$0xf]
      %v351 = vld [vmem:[%s257 + $0x6c] sm:$0xf]
      %v352 = vld [vmem:[%s257 + $0x70] sm:$0xf]
      %v353 = vld [vmem:[%s257 + $0x74] sm:$0xf]
      %v354 = vld [vmem:[%s257 + $0x78] sm:$0xf]
      %v355 = vld [vmem:[%s257 + $0x7c] sm:$0xf]
      %v356 = vunpack.c.l.bf16 %v324
      %v357 = vunpack.c.l.bf16 %v325
      %v358 = vunpack.c.l.bf16 %v326
      %v359 = vunpack.c.l.bf16 %v327
      %v360 = vunpack.c.l.bf16 %v328
      %v361 = vunpack.c.l.bf16 %v329
      %v362 = vunpack.c.l.bf16 %v330
      %v363 = vunpack.c.l.bf16 %v331
      %v364 = vunpack.c.l.bf16 %v332
      %v365 = vunpack.c.l.bf16 %v333
      %v366 = vunpack.c.l.bf16 %v334
      %v367 = vunpack.c.l.bf16 %v335
      %v368 = vunpack.c.l.bf16 %v336
      %v369 = vunpack.c.l.bf16 %v337
      %v370 = vunpack.c.l.bf16 %v338
      %v371 = vunpack.c.l.bf16 %v339
      %v372 = vunpack.c.l.bf16 %v340
      %v373 = vunpack.c.l.bf16 %v341
      %v374 = vunpack.c.l.bf16 %v342
      %v375 = vunpack.c.l.bf16 %v343
      %v376 = vunpack.c.l.bf16 %v344
      %v377 = vunpack.c.l.bf16 %v345
      %v378 = vunpack.c.l.bf16 %v346
      %v379 = vunpack.c.l.bf16 %v347
      %v380 = vunpack.c.l.bf16 %v348
      %v381 = vunpack.c.l.bf16 %v349
      %v382 = vunpack.c.l.bf16 %v350
      %v383 = vunpack.c.l.bf16 %v351
      %v384 = vunpack.c.l.bf16 %v352
      %v385 = vunpack.c.l.bf16 %v353
      %v386 = vunpack.c.l.bf16 %v354
      %v387 = vunpack.c.l.bf16 %v355
      %v388 = vld [vmem:[%s2] sm:$0x1]
      %v390 = vperm.slane %v388, 0
      %v392 = vmul.f32 %v356, %v390
      %v393 = vmul.f32 %v357, %v390
      %v394 = vmul.f32 %v358, %v390
      %v395 = vmul.f32 %v359, %v390
      %v396 = vmul.f32 %v360, %v390
      %v397 = vmul.f32 %v361, %v390
      %v398 = vmul.f32 %v362, %v390
      %v399 = vmul.f32 %v363, %v390
      %v400 = vmul.f32 %v364, %v390
      %v401 = vmul.f32 %v365, %v390
      %v402 = vmul.f32 %v366, %v390
      %v403 = vmul.f32 %v367, %v390
      %v404 = vmul.f32 %v368, %v390
      %v405 = vmul.f32 %v369, %v390
      %v406 = vmul.f32 %v370, %v390
      %v407 = vmul.f32 %v371, %v390
      %v408 = vmul.f32 %v372, %v390
      %v409 = vmul.f32 %v373, %v390
      %v410 = vmul.f32 %v374, %v390
      %v411 = vmul.f32 %v375, %v390
      %v412 = vmul.f32 %v376, %v390
      %v413 = vmul.f32 %v377, %v390
      %v414 = vmul.f32 %v378, %v390
      %v415 = vmul.f32 %v379, %v390
      %v416 = vmul.f32 %v380, %v390
      %v417 = vmul.f32 %v381, %v390
      %v418 = vmul.f32 %v382, %v390
      %v419 = vmul.f32 %v383, %v390
      %v420 = vmul.f32 %v384, %v390
      %v421 = vmul.f32 %v385, %v390
      %v422 = vmul.f32 %v386, %v390
      %v423 = vmul.f32 %v387, %v390
      %v424 = vld [vmem:[%s3] sm:$0x1]
      %v426 = vperm.slane %v424, 0
      %v428 = vadd.f32 %v392, %v426
      %v429 = vadd.f32 %v393, %v426
      %v430 = vadd.f32 %v394, %v426
      %v431 = vadd.f32 %v395, %v426
      %v432 = vadd.f32 %v396, %v426
      %v433 = vadd.f32 %v397, %v426
      %v434 = vadd.f32 %v398, %v426
      %v435 = vadd.f32 %v399, %v426
      %v436 = vadd.f32 %v400, %v426
      %v437 = vadd.f32 %v401, %v426
      %v438 = vadd.f32 %v402, %v426
      %v439 = vadd.f32 %v403, %v426
      %v440 = vadd.f32 %v404, %v426
      %v441 = vadd.f32 %v405, %v426
      %v442 = vadd.f32 %v406, %v426
      %v443 = vadd.f32 %v407, %v426
      %v444 = vadd.f32 %v408, %v426
      %v445 = vadd.f32 %v409, %v426
      %v446 = vadd.f32 %v410, %v426
      %v447 = vadd.f32 %v411, %v426
      %v448 = vadd.f32 %v412, %v426
      %v449 = vadd.f32 %v413, %v426
      %v450 = vadd.f32 %v414, %v426
      %v451 = vadd.f32 %v415, %v426
      %v452 = vadd.f32 %v416, %v426
      %v453 = vadd.f32 %v417, %v426
      %v454 = vadd.f32 %v418, %v426
      %v455 = vadd.f32 %v419, %v426
      %v456 = vadd.f32 %v420, %v426
      %v457 = vadd.f32 %v421, %v426
      %v458 = vadd.f32 %v422, %v426
      %v459 = vadd.f32 %v423, %v426
      %v460 = vmax.f32 %v428, 0.0
      %v461 = vmax.f32 %v429, 0.0
      %v462 = vmax.f32 %v430, 0.0
      %v463 = vmax.f32 %v431, 0.0
      %v464 = vmax.f32 %v432, 0.0
      %v465 = vmax.f32 %v433, 0.0
      %v466 = vmax.f32 %v434, 0.0
      %v467 = vmax.f32 %v435, 0.0
      %v468 = vmax.f32 %v436, 0.0
      %v469 = vmax.f32 %v437, 0.0
      %v470 = vmax.f32 %v438, 0.0
      %v471 = vmax.f32 %v439, 0.0
      %v472 = vmax.f32 %v440, 0.0
      %v473 = vmax.f32 %v441, 0.0
      %v474 = vmax.f32 %v442, 0.0
      %v475 = vmax.f32 %v443, 0.0
      %v476 = vmax.f32 %v444, 0.0
      %v477 = vmax.f32 %v445, 0.0
      %v478 = vmax.f32 %v446, 0.0
      %v479 = vmax.f32 %v447, 0.0
      %v480 = vmax.f32 %v448, 0.0
      %v481 = vmax.f32 %v449, 0.0
      %v482 = vmax.f32 %v450, 0.0
      %v483 = vmax.f32 %v451, 0.0
      %v484 = vmax.f32 %v452, 0.0
      %v485 = vmax.f32 %v453, 0.0
      %v486 = vmax.f32 %v454, 0.0
      %v487 = vmax.f32 %v455, 0.0
      %v488 = vmax.f32 %v456, 0.0
      %v489 = vmax.f32 %v457, 0.0
      %v490 = vmax.f32 %v458, 0.0
      %v491 = vmax.f32 %v459, 0.0
      %v492 = vpack.c.bf16 %v460, %v460
      %v493 = vpack.c.bf16 %v461, %v461
      %v494 = vpack.c.bf16 %v462, %v462
      %v495 = vpack.c.bf16 %v463, %v463
      %v496 = vpack.c.bf16 %v464, %v464
      %v497 = vpack.c.bf16 %v465, %v465
      %v498 = vpack.c.bf16 %v466, %v466
      %v499 = vpack.c.bf16 %v467, %v467
      %v500 = vpack.c.bf16 %v468, %v468
      %v501 = vpack.c.bf16 %v469, %v469
      %v502 = vpack.c.bf16 %v470, %v470
      %v503 = vpack.c.bf16 %v471, %v471
      %v504 = vpack.c.bf16 %v472, %v472
      %v505 = vpack.c.bf16 %v473, %v473
      %v506 = vpack.c.bf16 %v474, %v474
      %v507 = vpack.c.bf16 %v475, %v475
      %v508 = vpack.c.bf16 %v476, %v476
      %v509 = vpack.c.bf16 %v477, %v477
      %v510 = vpack.c.bf16 %v478, %v478
      %v511 = vpack.c.bf16 %v479, %v479
      %v512 = vpack.c.bf16 %v480, %v480
      %v513 = vpack.c.bf16 %v481, %v481
      %v514 = vpack.c.bf16 %v482, %v482
      %v515 = vpack.c.bf16 %v483, %v483
      %v516 = vpack.c.bf16 %v484, %v484
      %v517 = vpack.c.bf16 %v485, %v485
      %v518 = vpack.c.bf16 %v486, %v486
      %v519 = vpack.c.bf16 %v487, %v487
      %v520 = vpack.c.bf16 %v488, %v488
      %v521 = vpack.c.bf16 %v489, %v489
      %v522 = vpack.c.bf16 %v490, %v490
      %v523 = vpack.c.bf16 %v491, %v491
      %vm524 = vsmask.f32 256
      %vm525 = vsmask.f32 4368
      %vm526 = vmor %vm524, %vm525
      %v528 = vshrl.u32 %v492, 16
      %v530 = vrot.slane %v528, 7
      %v531 = vshll.u32 %v492, 16
      %v533 = vor.u32 %v530, %v531
      %v534 = vrot.slane %v530, 4
      %v536 = vshrl.u32 %v493, 16
      %v538 = vrot.slane %v536, 7
      %v539 = vshll.u32 %v493, 16
      %v541 = vor.u32 %v538, %v539
      %v542 = vsel %vm526, %v534, %v541
      %v543 = vrot.slane %v538, 4
      %v545 = vshrl.u32 %v494, 16
      %v547 = vrot.slane %v545, 7
      %v548 = vshll.u32 %v494, 16
      %v550 = vor.u32 %v547, %v548
      %v551 = vrot.slane %v547, 4
      %v553 = vshrl.u32 %v495, 16
      %v555 = vrot.slane %v553, 7
      %v556 = vshll.u32 %v495, 16
      %v558 = vor.u32 %v555, %v556
      %v559 = vsel %vm526, %v551, %v558
      %v560 = vrot.slane %v555, 4
      %v562 = vshrl.u32 %v496, 16
      %v564 = vrot.slane %v562, 7
      %v565 = vshll.u32 %v496, 16
      %v567 = vor.u32 %v564, %v565
      %v568 = vrot.slane %v564, 4
      %v570 = vshrl.u32 %v497, 16
      %v572 = vrot.slane %v570, 7
      %v573 = vshll.u32 %v497, 16
      %v575 = vor.u32 %v572, %v573
      %v576 = vsel %vm526, %v568, %v575
      %v577 = vrot.slane %v572, 4
      %v579 = vshrl.u32 %v498, 16
      %v581 = vrot.slane %v579, 7
      %v582 = vshll.u32 %v498, 16
      %v584 = vor.u32 %v581, %v582
      %v585 = vrot.slane %v581, 4
      %v587 = vshrl.u32 %v499, 16
      %v589 = vrot.slane %v587, 7
      %v590 = vshll.u32 %v499, 16
      %v592 = vor.u32 %v589, %v590
      %v593 = vsel %vm526, %v585, %v592
      %v594 = vrot.slane %v589, 4
      %v596 = vshrl.u32 %v500, 16
      %v598 = vrot.slane %v596, 7
      %v599 = vshll.u32 %v500, 16
      %v601 = vor.u32 %v598, %v599
      %v602 = vrot.slane %v598, 4
      %v604 = vshrl.u32 %v501, 16
      %v606 = vrot.slane %v604, 7
      %v607 = vshll.u32 %v501, 16
      %v609 = vor.u32 %v606, %v607
      %v610 = vsel %vm526, %v602, %v609
      %v611 = vrot.slane %v606, 4
      %v613 = vshrl.u32 %v502, 16
      %v615 = vrot.slane %v613, 7
      %v616 = vshll.u32 %v502, 16
      %v618 = vor.u32 %v615, %v616
      %v619 = vrot.slane %v615, 4
      %v621 = vshrl.u32 %v503, 16
      %v623 = vrot.slane %v621, 7
      %v624 = vshll.u32 %v503, 16
      %v626 = vor.u32 %v623, %v624
      %v627 = vsel %vm526, %v619, %v626
      %v628 = vrot.slane %v623, 4
      %v630 = vshrl.u32 %v504, 16
      %v632 = vrot.slane %v630, 7
      %v633 = vshll.u32 %v504, 16
      %v635 = vor.u32 %v632, %v633
      %v636 = vrot.slane %v632, 4
      %v638 = vshrl.u32 %v505, 16
      %v640 = vrot.slane %v638, 7
      %v641 = vshll.u32 %v505, 16
      %v643 = vor.u32 %v640, %v641
      %v644 = vsel %vm526, %v636, %v643
      %v645 = vrot.slane %v640, 4
      %v647 = vshrl.u32 %v506, 16
      %v649 = vrot.slane %v647, 7
      %v650 = vshll.u32 %v506, 16
      %v652 = vor.u32 %v649, %v650
      %v653 = vrot.slane %v649, 4
      %v655 = vshrl.u32 %v507, 16
      %v657 = vrot.slane %v655, 7
      %v658 = vshll.u32 %v507, 16
      %v660 = vor.u32 %v657, %v658
      %v661 = vsel %vm526, %v653, %v660
      %v662 = vrot.slane %v657, 4
      %v664 = vshrl.u32 %v508, 16
      %v666 = vrot.slane %v664, 7
      %v667 = vshll.u32 %v508, 16
      %v669 = vor.u32 %v666, %v667
      %v670 = vrot.slane %v666, 4
      %v672 = vshrl.u32 %v509, 16
      %v674 = vrot.slane %v672, 7
      %v675 = vshll.u32 %v509, 16
      %v677 = vor.u32 %v674, %v675
      %v678 = vsel %vm526, %v670, %v677
      %v679 = vrot.slane %v674, 4
      %v681 = vshrl.u32 %v510, 16
      %v683 = vrot.slane %v681, 7
      %v684 = vshll.u32 %v510, 16
      %v686 = vor.u32 %v683, %v684
      %v687 = vrot.slane %v683, 4
      %v689 = vshrl.u32 %v511, 16
      %v691 = vrot.slane %v689, 7
      %v692 = vshll.u32 %v511, 16
      %v694 = vor.u32 %v691, %v692
      %v695 = vsel %vm526, %v687, %v694
      %v696 = vrot.slane %v691, 4
      %v698 = vshrl.u32 %v512, 16
      %v700 = vrot.slane %v698, 7
      %v701 = vshll.u32 %v512, 16
      %v703 = vor.u32 %v700, %v701
      %v704 = vrot.slane %v700, 4
      %v706 = vshrl.u32 %v513, 16
      %v708 = vrot.slane %v706, 7
      %v709 = vshll.u32 %v513, 16
      %v711 = vor.u32 %v708, %v709
      %v712 = vsel %vm526, %v704, %v711
      %v713 = vrot.slane %v708, 4
      %v715 = vshrl.u32 %v514, 16
      %v717 = vrot.slane %v715, 7
      %v718 = vshll.u32 %v514, 16
      %v720 = vor.u32 %v717, %v718
      %v721 = vrot.slane %v717, 4
      %v723 = vshrl.u32 %v515, 16
      %v725 = vrot.slane %v723, 7
      %v726 = vshll.u32 %v515, 16
      %v728 = vor.u32 %v725, %v726
      %v729 = vsel %vm526, %v721, %v728
      %v730 = vrot.slane %v725, 4
      %v732 = vshrl.u32 %v516, 16
      %v734 = vrot.slane %v732, 7
      %v735 = vshll.u32 %v516, 16
      %v737 = vor.u32 %v734, %v735
      %v738 = vrot.slane %v734, 4
      %v740 = vshrl.u32 %v517, 16
      %v742 = vrot.slane %v740, 7
      %v743 = vshll.u32 %v517, 16
      %v745 = vor.u32 %v742, %v743
      %v746 = vsel %vm526, %v738, %v745
      %v747 = vrot.slane %v742, 4
      %v749 = vshrl.u32 %v518, 16
      %v751 = vrot.slane %v749, 7
      %v752 = vshll.u32 %v518, 16
      %v754 = vor.u32 %v751, %v752
      %v755 = vrot.slane %v751, 4
      %v757 = vshrl.u32 %v519, 16
      %v759 = vrot.slane %v757, 7
      %v760 = vshll.u32 %v519, 16
      %v762 = vor.u32 %v759, %v760
      %v763 = vsel %vm526, %v755, %v762
      %v764 = vrot.slane %v759, 4
      %v766 = vshrl.u32 %v520, 16
      %v768 = vrot.slane %v766, 7
      %v769 = vshll.u32 %v520, 16
      %v771 = vor.u32 %v768, %v769
      %v772 = vrot.slane %v768, 4
      %v774 = vshrl.u32 %v521, 16
      %v776 = vrot.slane %v774, 7
      %v777 = vshll.u32 %v521, 16
      %v779 = vor.u32 %v776, %v777
      %v780 = vsel %vm526, %v772, %v779
      %v781 = vrot.slane %v776, 4
      %v783 = vshrl.u32 %v522, 16
      %v785 = vrot.slane %v783, 7
      %v786 = vshll.u32 %v522, 16
      %v788 = vor.u32 %v785, %v786
      %v789 = vrot.slane %v785, 4
      %v791 = vshrl.u32 %v523, 16
      %v793 = vrot.slane %v791, 7
      %v794 = vshll.u32 %v523, 16
      %v796 = vor.u32 %v793, %v794
      %v797 = vsel %vm526, %v789, %v796
      %v798 = vrot.slane %v793, 4
      %s847 = scalar_lea.vmem [#allocation2], 12
      %vm848 = vcmask 1043456
      %vm849 = vsmask.f32 7938
      %vm850 = vmand %vm848, %vm849
      %v851 = vld [vmem:[%s847] sm:$0xf]
      %v852 = vsel %vm850, %v533, %v851
      %853 = vst [vmem:[%s847] sm:$0xf] %v852
      %854 = vst [vmem:[%s847 + $0x4] sm:$0xf] %v542
      %vm855 = vcmask 1040384
      %vm856 = vmand %vm855, %vm524
      %v857 = vld [vmem:[%s847 + $0x8] sm:$0x1]
      %v858 = vsel %vm856, %v543, %v857
      %859 = vst [vmem:[%s847 + $0x8] sm:$0x1] %v858
      %v860 = vld [vmem:[%s847 + $0xc] sm:$0xf]
      %v861 = vsel %vm850, %v550, %v860
      %862 = vst [vmem:[%s847 + $0xc] sm:$0xf] %v861
      %863 = vst [vmem:[%s847 + $0x10] sm:$0xf] %v559
      %v864 = vld [vmem:[%s847 + $0x14] sm:$0x1]
      %v865 = vsel %vm856, %v560, %v864
      %866 = vst [vmem:[%s847 + $0x14] sm:$0x1] %v865
      %v867 = vld [vmem:[%s847 + $0x18] sm:$0xf]
      %v868 = vsel %vm850, %v567, %v867
      %869 = vst [vmem:[%s847 + $0x18] sm:$0xf] %v868
      %870 = vst [vmem:[%s847 + $0x1c] sm:$0xf] %v576
      %v871 = vld [vmem:[%s847 + $0x20] sm:$0x1]
      %v872 = vsel %vm856, %v577, %v871
      %873 = vst [vmem:[%s847 + $0x20] sm:$0x1] %v872
      %v874 = vld [vmem:[%s847 + $0x24] sm:$0xf]
      %v875 = vsel %vm850, %v584, %v874
      %876 = vst [vmem:[%s847 + $0x24] sm:$0xf] %v875
      %877 = vst [vmem:[%s847 + $0x28] sm:$0xf] %v593
      %v878 = vld [vmem:[%s847 + $0x2c] sm:$0x1]
      %v879 = vsel %vm856, %v594, %v878
      %880 = vst [vmem:[%s847 + $0x2c] sm:$0x1] %v879
      %v881 = vld [vmem:[%s847 + $0x30] sm:$0xf]
      %v882 = vsel %vm850, %v601, %v881
      %883 = vst [vmem:[%s847 + $0x30] sm:$0xf] %v882
      %884 = vst [vmem:[%s847 + $0x34] sm:$0xf] %v610
      %v885 = vld [vmem:[%s847 + $0x38] sm:$0x1]
      %v886 = vsel %vm856, %v611, %v885
      %887 = vst [vmem:[%s847 + $0x38] sm:$0x1] %v886
      %v888 = vld [vmem:[%s847 + $0x3c] sm:$0xf]
      %v889 = vsel %vm850, %v618, %v888
      %890 = vst [vmem:[%s847 + $0x3c] sm:$0xf] %v889
      %891 = vst [vmem:[%s847 + $0x40] sm:$0xf] %v627
      %v892 = vld [vmem:[%s847 + $0x44] sm:$0x1]
      %v893 = vsel %vm856, %v628, %v892
      %894 = vst [vmem:[%s847 + $0x44] sm:$0x1] %v893
      %v895 = vld [vmem:[%s847 + $0x48] sm:$0xf]
      %v896 = vsel %vm850, %v635, %v895
      %897 = vst [vmem:[%s847 + $0x48] sm:$0xf] %v896
      %898 = vst [vmem:[%s847 + $0x4c] sm:$0xf] %v644
      %v899 = vld [vmem:[%s847 + $0x50] sm:$0x1]
      %v900 = vsel %vm856, %v645, %v899
      %901 = vst [vmem:[%s847 + $0x50] sm:$0x1] %v900
      %v902 = vld [vmem:[%s847 + $0x54] sm:$0xf]
      %v903 = vsel %vm850, %v652, %v902
      %904 = vst [vmem:[%s847 + $0x54] sm:$0xf] %v903
      %905 = vst [vmem:[%s847 + $0x58] sm:$0xf] %v661
      %v906 = vld [vmem:[%s847 + $0x5c] sm:$0x1]
      %v907 = vsel %vm856, %v662, %v906
      %908 = vst [vmem:[%s847 + $0x5c] sm:$0x1] %v907
      %v909 = vld [vmem:[%s847 + $0x60] sm:$0xf]
      %v910 = vsel %vm850, %v669, %v909
      %911 = vst [vmem:[%s847 + $0x60] sm:$0xf] %v910
      %912 = vst [vmem:[%s847 + $0x64] sm:$0xf] %v678
      %v913 = vld [vmem:[%s847 + $0x68] sm:$0x1]
      %v914 = vsel %vm856, %v679, %v913
      %915 = vst [vmem:[%s847 + $0x68] sm:$0x1] %v914
      %v916 = vld [vmem:[%s847 + $0x6c] sm:$0xf]
      %v917 = vsel %vm850, %v686, %v916
      %918 = vst [vmem:[%s847 + $0x6c] sm:$0xf] %v917
      %919 = vst [vmem:[%s847 + $0x70] sm:$0xf] %v695
      %v920 = vld [vmem:[%s847 + $0x74] sm:$0x1]
      %v921 = vsel %vm856, %v696, %v920
      %922 = vst [vmem:[%s847 + $0x74] sm:$0x1] %v921
      %v923 = vld [vmem:[%s847 + $0x78] sm:$0xf]
      %v924 = vsel %vm850, %v703, %v923
      %925 = vst [vmem:[%s847 + $0x78] sm:$0xf] %v924
      %926 = vst [vmem:[%s847 + $0x7c] sm:$0xf] %v712
      %v927 = vld [vmem:[%s847 + $0x80] sm:$0x1]
      %v928 = vsel %vm856, %v713, %v927
      %929 = vst [vmem:[%s847 + $0x80] sm:$0x1] %v928
      %v930 = vld [vmem:[%s847 + $0x84] sm:$0xf]
      %v931 = vsel %vm850, %v720, %v930
      %932 = vst [vmem:[%s847 + $0x84] sm:$0xf] %v931
      %933 = vst [vmem:[%s847 + $0x88] sm:$0xf] %v729
      %v934 = vld [vmem:[%s847 + $0x8c] sm:$0x1]
      %v935 = vsel %vm856, %v730, %v934
      %936 = vst [vmem:[%s847 + $0x8c] sm:$0x1] %v935
      %v937 = vld [vmem:[%s847 + $0x90] sm:$0xf]
      %v938 = vsel %vm850, %v737, %v937
      %939 = vst [vmem:[%s847 + $0x90] sm:$0xf] %v938
      %940 = vst [vmem:[%s847 + $0x94] sm:$0xf] %v746
      %v941 = vld [vmem:[%s847 + $0x98] sm:$0x1]
      %v942 = vsel %vm856, %v747, %v941
      %943 = vst [vmem:[%s847 + $0x98] sm:$0x1] %v942
      %v944 = vld [vmem:[%s847 + $0x9c] sm:$0xf]
      %v945 = vsel %vm850, %v754, %v944
      %946 = vst [vmem:[%s847 + $0x9c] sm:$0xf] %v945
      %947 = vst [vmem:[%s847 + $0xa0] sm:$0xf] %v763
      %v948 = vld [vmem:[%s847 + $0xa4] sm:$0x1]
      %v949 = vsel %vm856, %v764, %v948
      %950 = vst [vmem:[%s847 + $0xa4] sm:$0x1] %v949
      %v951 = vld [vmem:[%s847 + $0xa8] sm:$0xf]
      %v952 = vsel %vm850, %v771, %v951
      %953 = vst [vmem:[%s847 + $0xa8] sm:$0xf] %v952
      %954 = vst [vmem:[%s847 + $0xac] sm:$0xf] %v780
      %v955 = vld [vmem:[%s847 + $0xb0] sm:$0x1]
      %v956 = vsel %vm856, %v781, %v955
      %957 = vst [vmem:[%s847 + $0xb0] sm:$0x1] %v956
      %v958 = vld [vmem:[%s847 + $0xb4] sm:$0xf]
      %v959 = vsel %vm850, %v788, %v958
      %960 = vst [vmem:[%s847 + $0xb4] sm:$0xf] %v959
      %961 = vst [vmem:[%s847 + $0xb8] sm:$0xf] %v797
      %v962 = vld [vmem:[%s847 + $0xbc] sm:$0x1]
      %v963 = vsel %vm856, %v798, %v962
      %964 = vst [vmem:[%s847 + $0xbc] sm:$0x1] %v963
      %v965 = vld [vmem:[#allocation2] sm:$0xf]
      %v966 = vld [vmem:[#allocation2 + $0x4] sm:$0xf]
      %v967 = vld [vmem:[#allocation2 + $0xc] sm:$0xf]
      %v968 = vld [vmem:[#allocation2 + $0x10] sm:$0xf]
      %v969 = vld [vmem:[#allocation2 + $0x18] sm:$0xf]
      %v970 = vld [vmem:[#allocation2 + $0x1c] sm:$0xf]
      %v971 = vld [vmem:[#allocation2 + $0x24] sm:$0xf]
      %v972 = vld [vmem:[#allocation2 + $0x28] sm:$0xf]
      %v973 = vld [vmem:[#allocation2 + $0x30] sm:$0xf]
      %v974 = vld [vmem:[#allocation2 + $0x34] sm:$0xf]
      %v975 = vld [vmem:[#allocation2 + $0x3c] sm:$0xf]
      %v976 = vld [vmem:[#allocation2 + $0x40] sm:$0xf]
      %v977 = vld [vmem:[#allocation2 + $0x48] sm:$0xf]
      %v978 = vld [vmem:[#allocation2 + $0x4c] sm:$0xf]
      %v979 = vld [vmem:[#allocation2 + $0x54] sm:$0xf]
      %v980 = vld [vmem:[#allocation2 + $0x58] sm:$0xf]
      %v981 = vld [vmem:[#allocation2 + $0x60] sm:$0xf]
      %v982 = vld [vmem:[#allocation2 + $0x64] sm:$0xf]
      %v983 = vld [vmem:[#allocation2 + $0x6c] sm:$0xf]
      %v984 = vld [vmem:[#allocation2 + $0x70] sm:$0xf]
      %v985 = vld [vmem:[#allocation2 + $0x78] sm:$0xf]
      %v986 = vld [vmem:[#allocation2 + $0x7c] sm:$0xf]
      %v987 = vld [vmem:[#allocation2 + $0x84] sm:$0xf]
      %v988 = vld [vmem:[#allocation2 + $0x88] sm:$0xf]
      %v989 = vld [vmem:[#allocation2 + $0x90] sm:$0xf]
      %v990 = vld [vmem:[#allocation2 + $0x94] sm:$0xf]
      %v991 = vld [vmem:[#allocation2 + $0x9c] sm:$0xf]
      %v992 = vld [vmem:[#allocation2 + $0xa0] sm:$0xf]
      %v993 = vld [vmem:[#allocation2 + $0xa8] sm:$0xf]
      %v994 = vld [vmem:[#allocation2 + $0xac] sm:$0xf]
      %v995 = vld [vmem:[#allocation2 + $0xb4] sm:$0xf]
      %v996 = vld [vmem:[#allocation2 + $0xb8] sm:$0xf]
      %v997 = vld [vmem:[%s1] sm:$0xf]
      %v998 = vld [vmem:[%s1 + $0x4] sm:$0xf]
      %v999 = vld [vmem:[%s1 + $0x8] sm:$0xf]
      %v1000 = vld [vmem:[%s1 + $0xc] sm:$0xf]
      %v1001 = vld [vmem:[%s1 + $0x10] sm:$0xf]
      %v1002 = vld [vmem:[%s1 + $0x14] sm:$0xf]
      %v1003 = vld [vmem:[%s1 + $0x18] sm:$0xf]
      %v1004 = vld [vmem:[%s1 + $0x1c] sm:$0xf]
      %v1005 = vld [vmem:[%s1 + $0x20] sm:$0xf]
      %v1006 = vld [vmem:[%s1 + $0x24] sm:$0xf]
      %v1007 = vld [vmem:[%s1 + $0x28] sm:$0xf]
      %v1008 = vld [vmem:[%s1 + $0x2c] sm:$0xf]
      %v1009 = vld [vmem:[%s1 + $0x30] sm:$0xf]
      %v1010 = vld [vmem:[%s1 + $0x34] sm:$0xf]
      %v1011 = vld [vmem:[%s1 + $0x38] sm:$0xf]
      %v1012 = vld [vmem:[%s1 + $0x3c] sm:$0xf]
      %v1013 = vld [vmem:[#allocation2 + $0x8] sm:$0x1]
      %v1014 = vld [vmem:[#allocation2 + $0x14] sm:$0x1]
      %v1015 = vld [vmem:[#allocation2 + $0x20] sm:$0x1]
      %v1016 = vld [vmem:[#allocation2 + $0x2c] sm:$0x1]
      %v1017 = vld [vmem:[#allocation2 + $0x38] sm:$0x1]
      %v1018 = vld [vmem:[#allocation2 + $0x44] sm:$0x1]
      %v1019 = vld [vmem:[#allocation2 + $0x50] sm:$0x1]
      %v1020 = vld [vmem:[#allocation2 + $0x5c] sm:$0x1]
      %v1021 = vld [vmem:[#allocation2 + $0x68] sm:$0x1]
      %v1022 = vld [vmem:[#allocation2 + $0x74] sm:$0x1]
      %v1023 = vld [vmem:[#allocation2 + $0x80] sm:$0x1]
      %v1024 = vld [vmem:[#allocation2 + $0x8c] sm:$0x1]
      %v1025 = vld [vmem:[#allocation2 + $0x98] sm:$0x1]
      %v1026 = vld [vmem:[#allocation2 + $0xa4] sm:$0x1]
      %v1027 = vld [vmem:[#allocation2 + $0xb0] sm:$0x1]
      %v1028 = vld [vmem:[#allocation2 + $0xbc] sm:$0x1]
      %vm1029 = vsmask.f32 3328
      %vm1030 = vsmask.f32 7440
      %vm1031 = vmor %vm1029, %vm1030
      %v1033 = vshrl.u32 %v965, 16
      %v1035 = vrot.slane %v1033, 4
      %v1036 = vshll.u32 %v965, 16
      %v1038 = vrot.slane %v1036, 5
      %v1039 = vor.u32 %v1035, %v1038
      %v1040 = vrot.slane %v1039, 4
      %v1042 = vshll.u32 %v966, 16
      %v1044 = vrot.slane %v1042, 5
      %v1045 = vsel %vm1031, %v1040, %v1044
      %v1046 = vshrl.u32 %v966, 16
      %v1048 = vrot.slane %v1046, 4
      %v1049 = vor.u32 %v1048, %v1044
      %v1050 = vrot.slane %v1049, 4
      %v1052 = vshll.u32 %v1013, 16
      %v1054 = vrot.slane %v1052, 5
      %v1055 = vsel %vm1031, %v1050, %v1054
      %v1057 = vshrl.u32 %v967, 16
      %v1059 = vrot.slane %v1057, 4
      %v1060 = vshll.u32 %v967, 16
      %v1062 = vrot.slane %v1060, 5
      %v1063 = vor.u32 %v1059, %v1062
      %v1064 = vrot.slane %v1063, 4
      %v1066 = vshll.u32 %v968, 16
      %v1068 = vrot.slane %v1066, 5
      %v1069 = vsel %vm1031, %v1064, %v1068
      %v1070 = vshrl.u32 %v968, 16
      %v1072 = vrot.slane %v1070, 4
      %v1073 = vor.u32 %v1072, %v1068
      %v1074 = vrot.slane %v1073, 4
      %v1076 = vshll.u32 %v1014, 16
      %v1078 = vrot.slane %v1076, 5
      %v1079 = vsel %vm1031, %v1074, %v1078
      %v1081 = vshrl.u32 %v969, 16
      %v1083 = vrot.slane %v1081, 4
      %v1084 = vshll.u32 %v969, 16
      %v1086 = vrot.slane %v1084, 5
      %v1087 = vor.u32 %v1083, %v1086
      %v1088 = vrot.slane %v1087, 4
      %v1090 = vshll.u32 %v970, 16
      %v1092 = vrot.slane %v1090, 5
      %v1093 = vsel %vm1031, %v1088, %v1092
      %v1094 = vshrl.u32 %v970, 16
      %v1096 = vrot.slane %v1094, 4
      %v1097 = vor.u32 %v1096, %v1092
      %v1098 = vrot.slane %v1097, 4
      %v1100 = vshll.u32 %v1015, 16
      %v1102 = vrot.slane %v1100, 5
      %v1103 = vsel %vm1031, %v1098, %v1102
      %v1105 = vshrl.u32 %v971, 16
      %v1107 = vrot.slane %v1105, 4
      %v1108 = vshll.u32 %v971, 16
      %v1110 = vrot.slane %v1108, 5
      %v1111 = vor.u32 %v1107, %v1110
      %v1112 = vrot.slane %v1111, 4
      %v1114 = vshll.u32 %v972, 16
      %v1116 = vrot.slane %v1114, 5
      %v1117 = vsel %vm1031, %v1112, %v1116
      %v1118 = vshrl.u32 %v972, 16
      %v1120 = vrot.slane %v1118, 4
      %v1121 = vor.u32 %v1120, %v1116
      %v1122 = vrot.slane %v1121, 4
      %v1124 = vshll.u32 %v1016, 16
      %v1126 = vrot.slane %v1124, 5
      %v1127 = vsel %vm1031, %v1122, %v1126
      %v1129 = vshrl.u32 %v973, 16
      %v1131 = vrot.slane %v1129, 4
      %v1132 = vshll.u32 %v973, 16
      %v1134 = vrot.slane %v1132, 5
      %v1135 = vor.u32 %v1131, %v1134
      %v1136 = vrot.slane %v1135, 4
      %v1138 = vshll.u32 %v974, 16
      %v1140 = vrot.slane %v1138, 5
      %v1141 = vsel %vm1031, %v1136, %v1140
      %v1142 = vshrl.u32 %v974, 16
      %v1144 = vrot.slane %v1142, 4
      %v1145 = vor.u32 %v1144, %v1140
      %v1146 = vrot.slane %v1145, 4
      %v1148 = vshll.u32 %v1017, 16
      %v1150 = vrot.slane %v1148, 5
      %v1151 = vsel %vm1031, %v1146, %v1150
      %v1153 = vshrl.u32 %v975, 16
      %v1155 = vrot.slane %v1153, 4
      %v1156 = vshll.u32 %v975, 16
      %v1158 = vrot.slane %v1156, 5
      %v1159 = vor.u32 %v1155, %v1158
      %v1160 = vrot.slane %v1159, 4
      %v1162 = vshll.u32 %v976, 16
      %v1164 = vrot.slane %v1162, 5
      %v1165 = vsel %vm1031, %v1160, %v1164
      %v1166 = vshrl.u32 %v976, 16
      %v1168 = vrot.slane %v1166, 4
      %v1169 = vor.u32 %v1168, %v1164
      %v1170 = vrot.slane %v1169, 4
      %v1172 = vshll.u32 %v1018, 16
      %v1174 = vrot.slane %v1172, 5
      %v1175 = vsel %vm1031, %v1170, %v1174
      %v1177 = vshrl.u32 %v977, 16
      %v1179 = vrot.slane %v1177, 4
      %v1180 = vshll.u32 %v977, 16
      %v1182 = vrot.slane %v1180, 5
      %v1183 = vor.u32 %v1179, %v1182
      %v1184 = vrot.slane %v1183, 4
      %v1186 = vshll.u32 %v978, 16
      %v1188 = vrot.slane %v1186, 5
      %v1189 = vsel %vm1031, %v1184, %v1188
      %v1190 = vshrl.u32 %v978, 16
      %v1192 = vrot.slane %v1190, 4
      %v1193 = vor.u32 %v1192, %v1188
      %v1194 = vrot.slane %v1193, 4
      %v1196 = vshll.u32 %v1019, 16
      %v1198 = vrot.slane %v1196, 5
      %v1199 = vsel %vm1031, %v1194, %v1198
      %v1201 = vshrl.u32 %v979, 16
      %v1203 = vrot.slane %v1201, 4
      %v1204 = vshll.u32 %v979, 16
      %v1206 = vrot.slane %v1204, 5
      %v1207 = vor.u32 %v1203, %v1206
      %v1208 = vrot.slane %v1207, 4
      %v1210 = vshll.u32 %v980, 16
      %v1212 = vrot.slane %v1210, 5
      %v1213 = vsel %vm1031, %v1208, %v1212
      %v1214 = vshrl.u32 %v980, 16
      %v1216 = vrot.slane %v1214, 4
      %v1217 = vor.u32 %v1216, %v1212
      %v1218 = vrot.slane %v1217, 4
      %v1220 = vshll.u32 %v1020, 16
      %v1222 = vrot.slane %v1220, 5
      %v1223 = vsel %vm1031, %v1218, %v1222
      %v1225 = vshrl.u32 %v981, 16
      %v1227 = vrot.slane %v1225, 4
      %v1228 = vshll.u32 %v981, 16
      %v1230 = vrot.slane %v1228, 5
      %v1231 = vor.u32 %v1227, %v1230
      %v1232 = vrot.slane %v1231, 4
      %v1234 = vshll.u32 %v982, 16
      %v1236 = vrot.slane %v1234, 5
      %v1237 = vsel %vm1031, %v1232, %v1236
      %v1238 = vshrl.u32 %v982, 16
      %v1240 = vrot.slane %v1238, 4
      %v1241 = vor.u32 %v1240, %v1236
      %v1242 = vrot.slane %v1241, 4
      %v1244 = vshll.u32 %v1021, 16
      %v1246 = vrot.slane %v1244, 5
      %v1247 = vsel %vm1031, %v1242, %v1246
      %v1249 = vshrl.u32 %v983, 16
      %v1251 = vrot.slane %v1249, 4
      %v1252 = vshll.u32 %v983, 16
      %v1254 = vrot.slane %v1252, 5
      %v1255 = vor.u32 %v1251, %v1254
      %v1256 = vrot.slane %v1255, 4
      %v1258 = vshll.u32 %v984, 16
      %v1260 = vrot.slane %v1258, 5
      %v1261 = vsel %vm1031, %v1256, %v1260
      %v1262 = vshrl.u32 %v984, 16
      %v1264 = vrot.slane %v1262, 4
      %v1265 = vor.u32 %v1264, %v1260
      %v1266 = vrot.slane %v1265, 4
      %v1268 = vshll.u32 %v1022, 16
      %v1270 = vrot.slane %v1268, 5
      %v1271 = vsel %vm1031, %v1266, %v1270
      %v1273 = vshrl.u32 %v985, 16
      %v1275 = vrot.slane %v1273, 4
      %v1276 = vshll.u32 %v985, 16
      %v1278 = vrot.slane %v1276, 5
      %v1279 = vor.u32 %v1275, %v1278
      %v1280 = vrot.slane %v1279, 4
      %v1282 = vshll.u32 %v986, 16
      %v1284 = vrot.slane %v1282, 5
      %v1285 = vsel %vm1031, %v1280, %v1284
      %v1286 = vshrl.u32 %v986, 16
      %v1288 = vrot.slane %v1286, 4
      %v1289 = vor.u32 %v1288, %v1284
      %v1290 = vrot.slane %v1289, 4
      %v1292 = vshll.u32 %v1023, 16
      %v1294 = vrot.slane %v1292, 5
      %v1295 = vsel %vm1031, %v1290, %v1294
      %v1297 = vshrl.u32 %v987, 16
      %v1299 = vrot.slane %v1297, 4
      %v1300 = vshll.u32 %v987, 16
      %v1302 = vrot.slane %v1300, 5
      %v1303 = vor.u32 %v1299, %v1302
      %v1304 = vrot.slane %v1303, 4
      %v1306 = vshll.u32 %v988, 16
      %v1308 = vrot.slane %v1306, 5
      %v1309 = vsel %vm1031, %v1304, %v1308
      %v1310 = vshrl.u32 %v988, 16
      %v1312 = vrot.slane %v1310, 4
      %v1313 = vor.u32 %v1312, %v1308
      %v1314 = vrot.slane %v1313, 4
      %v1316 = vshll.u32 %v1024, 16
      %v1318 = vrot.slane %v1316, 5
      %v1319 = vsel %vm1031, %v1314, %v1318
      %v1321 = vshrl.u32 %v989, 16
      %v1323 = vrot.slane %v1321, 4
      %v1324 = vshll.u32 %v989, 16
      %v1326 = vrot.slane %v1324, 5
      %v1327 = vor.u32 %v1323, %v1326
      %v1328 = vrot.slane %v1327, 4
      %v1330 = vshll.u32 %v990, 16
      %v1332 = vrot.slane %v1330, 5
      %v1333 = vsel %vm1031, %v1328, %v1332
      %v1334 = vshrl.u32 %v990, 16
      %v1336 = vrot.slane %v1334, 4
      %v1337 = vor.u32 %v1336, %v1332
      %v1338 = vrot.slane %v1337, 4
      %v1340 = vshll.u32 %v1025, 16
      %v1342 = vrot.slane %v1340, 5
      %v1343 = vsel %vm1031, %v1338, %v1342
      %v1345 = vshrl.u32 %v991, 16
      %v1347 = vrot.slane %v1345, 4
      %v1348 = vshll.u32 %v991, 16
      %v1350 = vrot.slane %v1348, 5
      %v1351 = vor.u32 %v1347, %v1350
      %v1352 = vrot.slane %v1351, 4
      %v1354 = vshll.u32 %v992, 16
      %v1356 = vrot.slane %v1354, 5
      %v1357 = vsel %vm1031, %v1352, %v1356
      %v1358 = vshrl.u32 %v992, 16
      %v1360 = vrot.slane %v1358, 4
      %v1361 = vor.u32 %v1360, %v1356
      %v1362 = vrot.slane %v1361, 4
      %v1364 = vshll.u32 %v1026, 16
      %v1366 = vrot.slane %v1364, 5
      %v1367 = vsel %vm1031, %v1362, %v1366
      %v1369 = vshrl.u32 %v993, 16
      %v1371 = vrot.slane %v1369, 4
      %v1372 = vshll.u32 %v993, 16
      %v1374 = vrot.slane %v1372, 5
      %v1375 = vor.u32 %v1371, %v1374
      %v1376 = vrot.slane %v1375, 4
      %v1378 = vshll.u32 %v994, 16
      %v1380 = vrot.slane %v1378, 5
      %v1381 = vsel %vm1031, %v1376, %v1380
      %v1382 = vshrl.u32 %v994, 16
      %v1384 = vrot.slane %v1382, 4
      %v1385 = vor.u32 %v1384, %v1380
      %v1386 = vrot.slane %v1385, 4
      %v1388 = vshll.u32 %v1027, 16
      %v1390 = vrot.slane %v1388, 5
      %v1391 = vsel %vm1031, %v1386, %v1390
      %v1393 = vshrl.u32 %v995, 16
      %v1395 = vrot.slane %v1393, 4
      %v1396 = vshll.u32 %v995, 16
      %v1398 = vrot.slane %v1396, 5
      %v1399 = vor.u32 %v1395, %v1398
      %v1400 = vrot.slane %v1399, 4
      %v1402 = vshll.u32 %v996, 16
      %v1404 = vrot.slane %v1402, 5
      %v1405 = vsel %vm1031, %v1400, %v1404
      %v1406 = vshrl.u32 %v996, 16
      %v1408 = vrot.slane %v1406, 4
      %v1409 = vor.u32 %v1408, %v1404
      %v1410 = vrot.slane %v1409, 4
      %v1412 = vshll.u32 %v1028, 16
      %v1414 = vrot.slane %v1412, 5
      %v1415 = vsel %vm1031, %v1410, %v1414
      %s1416 = scalar_lea.vmem %s1, 64
      %v1417 = vld [vmem:[%s1416] sm:$0xf]
      %v1418 = vld [vmem:[%s1416 + $0x4] sm:$0xf]
      %v1419 = vld [vmem:[%s1416 + $0x8] sm:$0xf]
      %v1420 = vld [vmem:[%s1416 + $0xc] sm:$0xf]
      %v1421 = vld [vmem:[%s1416 + $0x10] sm:$0xf]
      %v1422 = vld [vmem:[%s1416 + $0x14] sm:$0xf]
      %v1423 = vld [vmem:[%s1416 + $0x18] sm:$0xf]
      %v1424 = vld [vmem:[%s1416 + $0x1c] sm:$0xf]
      %v1425 = vld [vmem:[%s1416 + $0x20] sm:$0xf]
      %v1426 = vld [vmem:[%s1416 + $0x24] sm:$0xf]
      %v1427 = vld [vmem:[%s1416 + $0x28] sm:$0xf]
      %v1428 = vld [vmem:[%s1416 + $0x2c] sm:$0xf]
      %v1429 = vld [vmem:[%s1416 + $0x30] sm:$0xf]
      %v1430 = vld [vmem:[%s1416 + $0x34] sm:$0xf]
      %v1431 = vld [vmem:[%s1416 + $0x38] sm:$0xf]
      %v1432 = vld [vmem:[%s1416 + $0x3c] sm:$0xf]
      %v1433 = vunpack.c.l.b16 %v1045
      %v1434 = vunpack.c.l.b16 %v1055
      %v1435 = vunpack.c.l.b16 %v1069
      %v1436 = vunpack.c.l.b16 %v1079
      %v1437 = vunpack.c.l.b16 %v1093
      %v1438 = vunpack.c.l.b16 %v1103
      %v1439 = vunpack.c.l.b16 %v1117
      %v1440 = vunpack.c.l.b16 %v1127
      %v1441 = vunpack.c.l.b16 %v1141
      %v1442 = vunpack.c.l.b16 %v1151
      %v1443 = vunpack.c.l.b16 %v1165
      %v1444 = vunpack.c.l.b16 %v1175
      %v1445 = vunpack.c.l.b16 %v1189
      %v1446 = vunpack.c.l.b16 %v1199
      %v1447 = vunpack.c.l.b16 %v1213
      %v1448 = vunpack.c.l.b16 %v1223
      %v1449 = vunpack.c.l.b16 %v1237
      %v1450 = vunpack.c.l.b16 %v1247
      %v1451 = vunpack.c.l.b16 %v1261
      %v1452 = vunpack.c.l.b16 %v1271
      %v1453 = vunpack.c.l.b16 %v1285
      %v1454 = vunpack.c.l.b16 %v1295
      %v1455 = vunpack.c.l.b16 %v1309
      %v1456 = vunpack.c.l.b16 %v1319
      %v1457 = vunpack.c.l.b16 %v1333
      %v1458 = vunpack.c.l.b16 %v1343
      %v1459 = vunpack.c.l.b16 %v1357
      %v1460 = vunpack.c.l.b16 %v1367
      %v1461 = vunpack.c.l.b16 %v1381
      %v1462 = vunpack.c.l.b16 %v1391
      %v1463 = vunpack.c.l.b16 %v1405
      %v1464 = vunpack.c.l.b16 %v1415
      %v1465 = vpack.c.b16 %v1434, %v1433
      %v1466 = vpack.c.b16 %v1436, %v1435
      %v1467 = vpack.c.b16 %v1438, %v1437
      %v1468 = vpack.c.b16 %v1440, %v1439
      %v1469 = vpack.c.b16 %v1442, %v1441
      %v1470 = vpack.c.b16 %v1444, %v1443
      %v1471 = vpack.c.b16 %v1446, %v1445
      %v1472 = vpack.c.b16 %v1448, %v1447
      %v1473 = vpack.c.b16 %v1450, %v1449
      %v1474 = vpack.c.b16 %v1452, %v1451
      %v1475 = vpack.c.b16 %v1454, %v1453
      %v1476 = vpack.c.b16 %v1456, %v1455
      %v1477 = vpack.c.b16 %v1458, %v1457
      %v1478 = vpack.c.b16 %v1460, %v1459
      %v1479 = vpack.c.b16 %v1462, %v1461
      %v1480 = vpack.c.b16 %v1464, %v1463
      %v1513 = vunpack.c.l.b16 %v1417
      %v1514 = vunpack.c.l.b16 %v1418
      %v1515 = vunpack.c.l.b16 %v1419
      %v1516 = vunpack.c.l.b16 %v1420
      %v1517 = vunpack.c.l.b16 %v1421
      %v1518 = vunpack.c.l.b16 %v1422
      %v1519 = vunpack.c.l.b16 %v1423
      %v1520 = vunpack.c.l.b16 %v1424
      %v1521 = vunpack.c.l.b16 %v1425
      %v1522 = vunpack.c.l.b16 %v1426
      %v1523 = vunpack.c.l.b16 %v1427
      %v1524 = vunpack.c.l.b16 %v1428
      %v1525 = vunpack.c.l.b16 %v1429
      %v1526 = vunpack.c.l.b16 %v1430
      %v1527 = vunpack.c.l.b16 %v1431
      %v1528 = vunpack.c.l.b16 %v1432
      %v1529 = vpack.c.b16 %v1514, %v1513
      %v1530 = vpack.c.b16 %v1516, %v1515
      %v1531 = vpack.c.b16 %v1518, %v1517
      %v1532 = vpack.c.b16 %v1520, %v1519
      %v1533 = vpack.c.b16 %v1522, %v1521
      %v1534 = vpack.c.b16 %v1524, %v1523
      %v1535 = vpack.c.b16 %v1526, %v1525
      %v1536 = vpack.c.b16 %v1528, %v1527
      %1545 = vmatpush.bf16.msra.mxu0 %v1536
      %1546 = vmatpush.bf16.msra.mxu0 %v1535
      %1547 = vmatpush.bf16.msra.mxu0 %v1534
      %1548 = vmatpush.bf16.msra.mxu0 %v1533
      %1549 = vmatpush.bf16.msra.mxu0 %v1532
      %1550 = vmatpush.bf16.msra.mxu0 %v1531
      %1551 = vmatpush.bf16.msra.mxu0 %v1530
      %1552 = vmatpush.bf16.msra.mxu0 %v1529
      %1553 = vmatmul.bf16.gmra.mxu0 %v1465
      %v1554 = vpop.f32.mrf.mxu0
      %v1555 = vadd.f32 0.0, %v1554
      %v1556 = vpop.f32.mrf.mxu0
      %v1557 = vadd.f32 0.0, %v1556
      %1558 = vmatmul.bf16.gmra.mxu0 %v1466
      %v1559 = vpop.f32.mrf.mxu0
      %v1560 = vadd.f32 0.0, %v1559
      %v1561 = vpop.f32.mrf.mxu0
      %v1562 = vadd.f32 0.0, %v1561
      %1563 = vmatmul.bf16.gmra.mxu0 %v1467
      %v1564 = vpop.f32.mrf.mxu0
      %v1565 = vadd.f32 0.0, %v1564
      %v1566 = vpop.f32.mrf.mxu0
      %v1567 = vadd.f32 0.0, %v1566
      %1568 = vmatmul.bf16.gmra.mxu0 %v1468
      %v1569 = vpop.f32.mrf.mxu0
      %v1570 = vadd.f32 0.0, %v1569
      %v1571 = vpop.f32.mrf.mxu0
      %v1572 = vadd.f32 0.0, %v1571
      %1573 = vmatmul.bf16.gmra.mxu0 %v1469
      %v1574 = vpop.f32.mrf.mxu0
      %v1575 = vadd.f32 0.0, %v1574
      %v1576 = vpop.f32.mrf.mxu0
      %v1577 = vadd.f32 0.0, %v1576
      %1578 = vmatmul.bf16.gmra.mxu0 %v1470
      %v1579 = vpop.f32.mrf.mxu0
      %v1580 = vadd.f32 0.0, %v1579
      %v1581 = vpop.f32.mrf.mxu0
      %v1582 = vadd.f32 0.0, %v1581
      %1583 = vmatmul.bf16.gmra.mxu0 %v1471
      %v1584 = vpop.f32.mrf.mxu0
      %v1585 = vadd.f32 0.0, %v1584
      %v1586 = vpop.f32.mrf.mxu0
      %v1587 = vadd.f32 0.0, %v1586
      %1588 = vmatmul.bf16.gmra.mxu0 %v1472
      %v1589 = vpop.f32.mrf.mxu0
      %v1590 = vadd.f32 0.0, %v1589
      %v1591 = vpop.f32.mrf.mxu0
      %v1592 = vadd.f32 0.0, %v1591
      %1593 = vmatmul.bf16.gmra.mxu0 %v1473
      %v1594 = vpop.f32.mrf.mxu0
      %v1595 = vadd.f32 0.0, %v1594
      %v1596 = vpop.f32.mrf.mxu0
      %v1597 = vadd.f32 0.0, %v1596
      %1598 = vmatmul.bf16.gmra.mxu0 %v1474
      %v1599 = vpop.f32.mrf.mxu0
      %v1600 = vadd.f32 0.0, %v1599
      %v1601 = vpop.f32.mrf.mxu0
      %v1602 = vadd.f32 0.0, %v1601
      %1603 = vmatmul.bf16.gmra.mxu0 %v1475
      %v1604 = vpop.f32.mrf.mxu0
      %v1605 = vadd.f32 0.0, %v1604
      %v1606 = vpop.f32.mrf.mxu0
      %v1607 = vadd.f32 0.0, %v1606
      %1608 = vmatmul.bf16.gmra.mxu0 %v1476
      %v1609 = vpop.f32.mrf.mxu0
      %v1610 = vadd.f32 0.0, %v1609
      %v1611 = vpop.f32.mrf.mxu0
      %v1612 = vadd.f32 0.0, %v1611
      %1613 = vmatmul.bf16.gmra.mxu0 %v1477
      %v1614 = vpop.f32.mrf.mxu0
      %v1615 = vadd.f32 0.0, %v1614
      %v1616 = vpop.f32.mrf.mxu0
      %v1617 = vadd.f32 0.0, %v1616
      %1618 = vmatmul.bf16.gmra.mxu0 %v1478
      %v1619 = vpop.f32.mrf.mxu0
      %v1620 = vadd.f32 0.0, %v1619
      %v1621 = vpop.f32.mrf.mxu0
      %v1622 = vadd.f32 0.0, %v1621
      %1623 = vmatmul.bf16.gmra.mxu0 %v1479
      %v1624 = vpop.f32.mrf.mxu0
      %v1625 = vadd.f32 0.0, %v1624
      %v1626 = vpop.f32.mrf.mxu0
      %v1627 = vadd.f32 0.0, %v1626
      %1628 = vmatmul.bf16.gmra.mxu0 %v1480
      %v1629 = vpop.f32.mrf.mxu0
      %v1630 = vadd.f32 0.0, %v1629
      %v1631 = vpop.f32.mrf.mxu0
      %v1632 = vadd.f32 0.0, %v1631
      %1633 = vdwg.mxu0
      %v1666 = vunpack.c.l.b16 %v965
      %v1667 = vunpack.c.l.b16 %v966
      %v1668 = vunpack.c.l.b16 %v967
      %v1669 = vunpack.c.l.b16 %v968
      %v1670 = vunpack.c.l.b16 %v969
      %v1671 = vunpack.c.l.b16 %v970
      %v1672 = vunpack.c.l.b16 %v971
      %v1673 = vunpack.c.l.b16 %v972
      %v1674 = vunpack.c.l.b16 %v973
      %v1675 = vunpack.c.l.b16 %v974
      %v1676 = vunpack.c.l.b16 %v975
      %v1677 = vunpack.c.l.b16 %v976
      %v1678 = vunpack.c.l.b16 %v977
      %v1679 = vunpack.c.l.b16 %v978
      %v1680 = vunpack.c.l.b16 %v979
      %v1681 = vunpack.c.l.b16 %v980
      %v1682 = vunpack.c.l.b16 %v981
      %v1683 = vunpack.c.l.b16 %v982
      %v1684 = vunpack.c.l.b16 %v983
      %v1685 = vunpack.c.l.b16 %v984
      %v1686 = vunpack.c.l.b16 %v985
      %v1687 = vunpack.c.l.b16 %v986
      %v1688 = vunpack.c.l.b16 %v987
      %v1689 = vunpack.c.l.b16 %v988
      %v1690 = vunpack.c.l.b16 %v989
      %v1691 = vunpack.c.l.b16 %v990
      %v1692 = vunpack.c.l.b16 %v991
      %v1693 = vunpack.c.l.b16 %v992
      %v1694 = vunpack.c.l.b16 %v993
      %v1695 = vunpack.c.l.b16 %v994
      %v1696 = vunpack.c.l.b16 %v995
      %v1697 = vunpack.c.l.b16 %v996
      %v1698 = vpack.c.b16 %v1667, %v1666
      %v1699 = vpack.c.b16 %v1669, %v1668
      %v1700 = vpack.c.b16 %v1671, %v1670
      %v1701 = vpack.c.b16 %v1673, %v1672
      %v1702 = vpack.c.b16 %v1675, %v1674
      %v1703 = vpack.c.b16 %v1677, %v1676
      %v1704 = vpack.c.b16 %v1679, %v1678
      %v1705 = vpack.c.b16 %v1681, %v1680
      %v1706 = vpack.c.b16 %v1683, %v1682
      %v1707 = vpack.c.b16 %v1685, %v1684
      %v1708 = vpack.c.b16 %v1687, %v1686
      %v1709 = vpack.c.b16 %v1689, %v1688
      %v1710 = vpack.c.b16 %v1691, %v1690
      %v1711 = vpack.c.b16 %v1693, %v1692
      %v1712 = vpack.c.b16 %v1695, %v1694
      %v1713 = vpack.c.b16 %v1697, %v1696
      %v1746 = vunpack.c.l.b16 %v997
      %v1747 = vunpack.c.l.b16 %v998
      %v1748 = vunpack.c.l.b16 %v999
      %v1749 = vunpack.c.l.b16 %v1000
      %v1750 = vunpack.c.l.b16 %v1001
      %v1751 = vunpack.c.l.b16 %v1002
      %v1752 = vunpack.c.l.b16 %v1003
      %v1753 = vunpack.c.l.b16 %v1004
      %v1754 = vunpack.c.l.b16 %v1005
      %v1755 = vunpack.c.l.b16 %v1006
      %v1756 = vunpack.c.l.b16 %v1007
      %v1757 = vunpack.c.l.b16 %v1008
      %v1758 = vunpack.c.l.b16 %v1009
      %v1759 = vunpack.c.l.b16 %v1010
      %v1760 = vunpack.c.l.b16 %v1011
      %v1761 = vunpack.c.l.b16 %v1012
      %v1762 = vpack.c.b16 %v1747, %v1746
      %v1763 = vpack.c.b16 %v1749, %v1748
      %v1764 = vpack.c.b16 %v1751, %v1750
      %v1765 = vpack.c.b16 %v1753, %v1752
      %v1766 = vpack.c.b16 %v1755, %v1754
      %v1767 = vpack.c.b16 %v1757, %v1756
      %v1768 = vpack.c.b16 %v1759, %v1758
      %v1769 = vpack.c.b16 %v1761, %v1760
      %1778 = vmatpush.bf16.msra.mxu0 %v1769
      %1779 = vmatpush.bf16.msra.mxu0 %v1768
      %1780 = vmatpush.bf16.msra.mxu0 %v1767
      %1781 = vmatpush.bf16.msra.mxu0 %v1766
      %1782 = vmatpush.bf16.msra.mxu0 %v1765
      %1783 = vmatpush.bf16.msra.mxu0 %v1764
      %1784 = vmatpush.bf16.msra.mxu0 %v1763
      %1785 = vmatpush.bf16.msra.mxu0 %v1762
      %1786 = vmatmul.bf16.gmra.mxu0 %v1698
      %v1787 = vpop.f32.mrf.mxu0
      %v1788 = vadd.f32 %v1555, %v1787
      %v1789 = vpop.f32.mrf.mxu0
      %v1790 = vadd.f32 %v1557, %v1789
      %1791 = vmatmul.bf16.gmra.mxu0 %v1699
      %v1792 = vpop.f32.mrf.mxu0
      %v1793 = vadd.f32 %v1560, %v1792
      %v1794 = vpop.f32.mrf.mxu0
      %v1795 = vadd.f32 %v1562, %v1794
      %1796 = vmatmul.bf16.gmra.mxu0 %v1700
      %v1797 = vpop.f32.mrf.mxu0
      %v1798 = vadd.f32 %v1565, %v1797
      %v1799 = vpop.f32.mrf.mxu0
      %v1800 = vadd.f32 %v1567, %v1799
      %1801 = vmatmul.bf16.gmra.mxu0 %v1701
      %v1802 = vpop.f32.mrf.mxu0
      %v1803 = vadd.f32 %v1570, %v1802
      %v1804 = vpop.f32.mrf.mxu0
      %v1805 = vadd.f32 %v1572, %v1804
      %1806 = vmatmul.bf16.gmra.mxu0 %v1702
      %v1807 = vpop.f32.mrf.mxu0
      %v1808 = vadd.f32 %v1575, %v1807
      %v1809 = vpop.f32.mrf.mxu0
      %v1810 = vadd.f32 %v1577, %v1809
      %1811 = vmatmul.bf16.gmra.mxu0 %v1703
      %v1812 = vpop.f32.mrf.mxu0
      %v1813 = vadd.f32 %v1580, %v1812
      %v1814 = vpop.f32.mrf.mxu0
      %v1815 = vadd.f32 %v1582, %v1814
      %1816 = vmatmul.bf16.gmra.mxu0 %v1704
      %v1817 = vpop.f32.mrf.mxu0
      %v1818 = vadd.f32 %v1585, %v1817
      %v1819 = vpop.f32.mrf.mxu0
      %v1820 = vadd.f32 %v1587, %v1819
      %1821 = vmatmul.bf16.gmra.mxu0 %v1705
      %v1822 = vpop.f32.mrf.mxu0
      %v1823 = vadd.f32 %v1590, %v1822
      %v1824 = vpop.f32.mrf.mxu0
      %v1825 = vadd.f32 %v1592, %v1824
      %1826 = vmatmul.bf16.gmra.mxu0 %v1706
      %v1827 = vpop.f32.mrf.mxu0
      %v1828 = vadd.f32 %v1595, %v1827
      %v1829 = vpop.f32.mrf.mxu0
      %v1830 = vadd.f32 %v1597, %v1829
      %1831 = vmatmul.bf16.gmra.mxu0 %v1707
      %v1832 = vpop.f32.mrf.mxu0
      %v1833 = vadd.f32 %v1600, %v1832
      %v1834 = vpop.f32.mrf.mxu0
      %v1835 = vadd.f32 %v1602, %v1834
      %1836 = vmatmul.bf16.gmra.mxu0 %v1708
      %v1837 = vpop.f32.mrf.mxu0
      %v1838 = vadd.f32 %v1605, %v1837
      %v1839 = vpop.f32.mrf.mxu0
      %v1840 = vadd.f32 %v1607, %v1839
      %1841 = vmatmul.bf16.gmra.mxu0 %v1709
      %v1842 = vpop.f32.mrf.mxu0
      %v1843 = vadd.f32 %v1610, %v1842
      %v1844 = vpop.f32.mrf.mxu0
      %v1845 = vadd.f32 %v1612, %v1844
      %1846 = vmatmul.bf16.gmra.mxu0 %v1710
      %v1847 = vpop.f32.mrf.mxu0
      %v1848 = vadd.f32 %v1615, %v1847
      %v1849 = vpop.f32.mrf.mxu0
      %v1850 = vadd.f32 %v1617, %v1849
      %1851 = vmatmul.bf16.gmra.mxu0 %v1711
      %v1852 = vpop.f32.mrf.mxu0
      %v1853 = vadd.f32 %v1620, %v1852
      %v1854 = vpop.f32.mrf.mxu0
      %v1855 = vadd.f32 %v1622, %v1854
      %1856 = vmatmul.bf16.gmra.mxu0 %v1712
      %v1857 = vpop.f32.mrf.mxu0
      %v1858 = vadd.f32 %v1625, %v1857
      %v1859 = vpop.f32.mrf.mxu0
      %v1860 = vadd.f32 %v1627, %v1859
      %1861 = vmatmul.bf16.gmra.mxu0 %v1713
      %v1862 = vpop.f32.mrf.mxu0
      %v1863 = vadd.f32 %v1630, %v1862
      %v1864 = vpop.f32.mrf.mxu0
      %v1865 = vadd.f32 %v1632, %v1864
      %1866 = vdwg.mxu0
      %v1867 = vld [vmem:[#allocation2] sm:$0xe]
      %v1868 = vld [vmem:[#allocation2 + $0xc] sm:$0xe]
      %v1869 = vld [vmem:[#allocation2 + $0x18] sm:$0xe]
      %v1870 = vld [vmem:[#allocation2 + $0x24] sm:$0xe]
      %v1871 = vld [vmem:[#allocation2 + $0x30] sm:$0xe]
      %v1872 = vld [vmem:[#allocation2 + $0x3c] sm:$0xe]
      %v1873 = vld [vmem:[#allocation2 + $0x48] sm:$0xe]
      %v1874 = vld [vmem:[#allocation2 + $0x54] sm:$0xe]
      %v1875 = vld [vmem:[#allocation2 + $0x60] sm:$0xe]
      %v1876 = vld [vmem:[#allocation2 + $0x6c] sm:$0xe]
      %v1877 = vld [vmem:[#allocation2 + $0x78] sm:$0xe]
      %v1878 = vld [vmem:[#allocation2 + $0x84] sm:$0xe]
      %v1879 = vld [vmem:[#allocation2 + $0x90] sm:$0xe]
      %v1880 = vld [vmem:[#allocation2 + $0x9c] sm:$0xe]
      %v1881 = vld [vmem:[#allocation2 + $0xa8] sm:$0xe]
      %v1882 = vld [vmem:[#allocation2 + $0xb4] sm:$0xe]
      %vm1915 = vcmask 1042432
      %vm1916 = vcmask 1046532
      %vm1917 = vmor %vm1915, %vm1916
      %v1918 = vrot.slane %v1867, 5
      %v1919 = vrot.slane %v1918, 4
      %v1920 = vrot.slane %v966, 5
      %v1921 = vsel %vm1917, %v1919, %v1920
      %v1922 = vrot.slane %v1920, 4
      %v1923 = vrot.slane %v1013, 5
      %v1924 = vsel %vm1917, %v1922, %v1923
      %v1925 = vrot.slane %v1868, 5
      %v1926 = vrot.slane %v1925, 4
      %v1927 = vrot.slane %v968, 5
      %v1928 = vsel %vm1917, %v1926, %v1927
      %v1929 = vrot.slane %v1927, 4
      %v1930 = vrot.slane %v1014, 5
      %v1931 = vsel %vm1917, %v1929, %v1930
      %v1932 = vrot.slane %v1869, 5
      %v1933 = vrot.slane %v1932, 4
      %v1934 = vrot.slane %v970, 5
      %v1935 = vsel %vm1917, %v1933, %v1934
      %v1936 = vrot.slane %v1934, 4
      %v1937 = vrot.slane %v1015, 5
      %v1938 = vsel %vm1917, %v1936, %v1937
      %v1939 = vrot.slane %v1870, 5
      %v1940 = vrot.slane %v1939, 4
      %v1941 = vrot.slane %v972, 5
      %v1942 = vsel %vm1917, %v1940, %v1941
      %v1943 = vrot.slane %v1941, 4
      %v1944 = vrot.slane %v1016, 5
      %v1945 = vsel %vm1917, %v1943, %v1944
      %v1946 = vrot.slane %v1871, 5
      %v1947 = vrot.slane %v1946, 4
      %v1948 = vrot.slane %v974, 5
      %v1949 = vsel %vm1917, %v1947, %v1948
      %v1950 = vrot.slane %v1948, 4
      %v1951 = vrot.slane %v1017, 5
      %v1952 = vsel %vm1917, %v1950, %v1951
      %v1953 = vrot.slane %v1872, 5
      %v1954 = vrot.slane %v1953, 4
      %v1955 = vrot.slane %v976, 5
      %v1956 = vsel %vm1917, %v1954, %v1955
      %v1957 = vrot.slane %v1955, 4
      %v1958 = vrot.slane %v1018, 5
      %v1959 = vsel %vm1917, %v1957, %v1958
      %v1960 = vrot.slane %v1873, 5
      %v1961 = vrot.slane %v1960, 4
      %v1962 = vrot.slane %v978, 5
      %v1963 = vsel %vm1917, %v1961, %v1962
      %v1964 = vrot.slane %v1962, 4
      %v1965 = vrot.slane %v1019, 5
      %v1966 = vsel %vm1917, %v1964, %v1965
      %v1967 = vrot.slane %v1874, 5
      %v1968 = vrot.slane %v1967, 4
      %v1969 = vrot.slane %v980, 5
      %v1970 = vsel %vm1917, %v1968, %v1969
      %v1971 = vrot.slane %v1969, 4
      %v1972 = vrot.slane %v1020, 5
      %v1973 = vsel %vm1917, %v1971, %v1972
      %v1974 = vrot.slane %v1875, 5
      %v1975 = vrot.slane %v1974, 4
      %v1976 = vrot.slane %v982, 5
      %v1977 = vsel %vm1917, %v1975, %v1976
      %v1978 = vrot.slane %v1976, 4
      %v1979 = vrot.slane %v1021, 5
      %v1980 = vsel %vm1917, %v1978, %v1979
      %v1981 = vrot.slane %v1876, 5
      %v1982 = vrot.slane %v1981, 4
      %v1983 = vrot.slane %v984, 5
      %v1984 = vsel %vm1917, %v1982, %v1983
      %v1985 = vrot.slane %v1983, 4
      %v1986 = vrot.slane %v1022, 5
      %v1987 = vsel %vm1917, %v1985, %v1986
      %v1988 = vrot.slane %v1877, 5
      %v1989 = vrot.slane %v1988, 4
      %v1990 = vrot.slane %v986, 5
      %v1991 = vsel %vm1917, %v1989, %v1990
      %v1992 = vrot.slane %v1990, 4
      %v1993 = vrot.slane %v1023, 5
      %v1994 = vsel %vm1917, %v1992, %v1993
      %v1995 = vrot.slane %v1878, 5
      %v1996 = vrot.slane %v1995, 4
      %v1997 = vrot.slane %v988, 5
      %v1998 = vsel %vm1917, %v1996, %v1997
      %v1999 = vrot.slane %v1997, 4
      %v2000 = vrot.slane %v1024, 5
      %v2001 = vsel %vm1917, %v1999, %v2000
      %v2002 = vrot.slane %v1879, 5
      %v2003 = vrot.slane %v2002, 4
      %v2004 = vrot.slane %v990, 5
      %v2005 = vsel %vm1917, %v2003, %v2004
      %v2006 = vrot.slane %v2004, 4
      %v2007 = vrot.slane %v1025, 5
      %v2008 = vsel %vm1917, %v2006, %v2007
      %v2009 = vrot.slane %v1880, 5
      %v2010 = vrot.slane %v2009, 4
      %v2011 = vrot.slane %v992, 5
      %v2012 = vsel %vm1917, %v2010, %v2011
      %v2013 = vrot.slane %v2011, 4
      %v2014 = vrot.slane %v1026, 5
      %v2015 = vsel %vm1917, %v2013, %v2014
      %v2016 = vrot.slane %v1881, 5
      %v2017 = vrot.slane %v2016, 4
      %v2018 = vrot.slane %v994, 5
      %v2019 = vsel %vm1917, %v2017, %v2018
      %v2020 = vrot.slane %v2018, 4
      %v2021 = vrot.slane %v1027, 5
      %v2022 = vsel %vm1917, %v2020, %v2021
      %v2023 = vrot.slane %v1882, 5
      %v2024 = vrot.slane %v2023, 4
      %v2025 = vrot.slane %v996, 5
      %v2026 = vsel %vm1917, %v2024, %v2025
      %v2027 = vrot.slane %v2025, 4
      %v2028 = vrot.slane %v1028, 5
      %v2029 = vsel %vm1917, %v2027, %v2028
      %s2030 = scalar_lea.vmem %s1, 128
      %v2031 = vld [vmem:[%s2030] sm:$0xf]
      %v2032 = vld [vmem:[%s2030 + $0x4] sm:$0xf]
      %v2033 = vld [vmem:[%s2030 + $0x8] sm:$0xf]
      %v2034 = vld [vmem:[%s2030 + $0xc] sm:$0xf]
      %v2035 = vld [vmem:[%s2030 + $0x10] sm:$0xf]
      %v2036 = vld [vmem:[%s2030 + $0x14] sm:$0xf]
      %v2037 = vld [vmem:[%s2030 + $0x18] sm:$0xf]
      %v2038 = vld [vmem:[%s2030 + $0x1c] sm:$0xf]
      %v2039 = vld [vmem:[%s2030 + $0x20] sm:$0xf]
      %v2040 = vld [vmem:[%s2030 + $0x24] sm:$0xf]
      %v2041 = vld [vmem:[%s2030 + $0x28] sm:$0xf]
      %v2042 = vld [vmem:[%s2030 + $0x2c] sm:$0xf]
      %v2043 = vld [vmem:[%s2030 + $0x30] sm:$0xf]
      %v2044 = vld [vmem:[%s2030 + $0x34] sm:$0xf]
      %v2045 = vld [vmem:[%s2030 + $0x38] sm:$0xf]
      %v2046 = vld [vmem:[%s2030 + $0x3c] sm:$0xf]
      %v2047 = vunpack.c.l.b16 %v1921
      %v2048 = vunpack.c.l.b16 %v1924
      %v2049 = vunpack.c.l.b16 %v1928
      %v2050 = vunpack.c.l.b16 %v1931
      %v2051 = vunpack.c.l.b16 %v1935
      %v2052 = vunpack.c.l.b16 %v1938
      %v2053 = vunpack.c.l.b16 %v1942
      %v2054 = vunpack.c.l.b16 %v1945
      %v2055 = vunpack.c.l.b16 %v1949
      %v2056 = vunpack.c.l.b16 %v1952
      %v2057 = vunpack.c.l.b16 %v1956
      %v2058 = vunpack.c.l.b16 %v1959
      %v2059 = vunpack.c.l.b16 %v1963
      %v2060 = vunpack.c.l.b16 %v1966
      %v2061 = vunpack.c.l.b16 %v1970
      %v2062 = vunpack.c.l.b16 %v1973
      %v2063 = vunpack.c.l.b16 %v1977
      %v2064 = vunpack.c.l.b16 %v1980
      %v2065 = vunpack.c.l.b16 %v1984
      %v2066 = vunpack.c.l.b16 %v1987
      %v2067 = vunpack.c.l.b16 %v1991
      %v2068 = vunpack.c.l.b16 %v1994
      %v2069 = vunpack.c.l.b16 %v1998
      %v2070 = vunpack.c.l.b16 %v2001
      %v2071 = vunpack.c.l.b16 %v2005
      %v2072 = vunpack.c.l.b16 %v2008
      %v2073 = vunpack.c.l.b16 %v2012
      %v2074 = vunpack.c.l.b16 %v2015
      %v2075 = vunpack.c.l.b16 %v2019
      %v2076 = vunpack.c.l.b16 %v2022
      %v2077 = vunpack.c.l.b16 %v2026
      %v2078 = vunpack.c.l.b16 %v2029
      %v2079 = vpack.c.b16 %v2048, %v2047
      %v2080 = vpack.c.b16 %v2050, %v2049
      %v2081 = vpack.c.b16 %v2052, %v2051
      %v2082 = vpack.c.b16 %v2054, %v2053
      %v2083 = vpack.c.b16 %v2056, %v2055
      %v2084 = vpack.c.b16 %v2058, %v2057
      %v2085 = vpack.c.b16 %v2060, %v2059
      %v2086 = vpack.c.b16 %v2062, %v2061
      %v2087 = vpack.c.b16 %v2064, %v2063
      %v2088 = vpack.c.b16 %v2066, %v2065
      %v2089 = vpack.c.b16 %v2068, %v2067
      %v2090 = vpack.c.b16 %v2070, %v2069
      %v2091 = vpack.c.b16 %v2072, %v2071
      %v2092 = vpack.c.b16 %v2074, %v2073
      %v2093 = vpack.c.b16 %v2076, %v2075
      %v2094 = vpack.c.b16 %v2078, %v2077
      %v2127 = vunpack.c.l.b16 %v2031
      %v2128 = vunpack.c.l.b16 %v2032
      %v2129 = vunpack.c.l.b16 %v2033
      %v2130 = vunpack.c.l.b16 %v2034
      %v2131 = vunpack.c.l.b16 %v2035
      %v2132 = vunpack.c.l.b16 %v2036
      %v2133 = vunpack.c.l.b16 %v2037
      %v2134 = vunpack.c.l.b16 %v2038
      %v2135 = vunpack.c.l.b16 %v2039
      %v2136 = vunpack.c.l.b16 %v2040
      %v2137 = vunpack.c.l.b16 %v2041
      %v2138 = vunpack.c.l.b16 %v2042
      %v2139 = vunpack.c.l.b16 %v2043
      %v2140 = vunpack.c.l.b16 %v2044
      %v2141 = vunpack.c.l.b16 %v2045
      %v2142 = vunpack.c.l.b16 %v2046
      %v2143 = vpack.c.b16 %v2128, %v2127
      %v2144 = vpack.c.b16 %v2130, %v2129
      %v2145 = vpack.c.b16 %v2132, %v2131
      %v2146 = vpack.c.b16 %v2134, %v2133
      %v2147 = vpack.c.b16 %v2136, %v2135
      %v2148 = vpack.c.b16 %v2138, %v2137
      %v2149 = vpack.c.b16 %v2140, %v2139
      %v2150 = vpack.c.b16 %v2142, %v2141
      %2159 = vmatpush.bf16.msra.mxu0 %v2150
      %2160 = vmatpush.bf16.msra.mxu0 %v2149
      %2161 = vmatpush.bf16.msra.mxu0 %v2148
      %2162 = vmatpush.bf16.msra.mxu0 %v2147
      %2163 = vmatpush.bf16.msra.mxu0 %v2146
      %2164 = vmatpush.bf16.msra.mxu0 %v2145
      %2165 = vmatpush.bf16.msra.mxu0 %v2144
      %2166 = vmatpush.bf16.msra.mxu0 %v2143
      %2167 = vmatmul.bf16.gmra.mxu0 %v2079
      %v2168 = vpop.f32.mrf.mxu0
      %v2169 = vadd.f32 0.0, %v2168
      %v2170 = vpop.f32.mrf.mxu0
      %v2171 = vadd.f32 0.0, %v2170
      %2172 = vmatmul.bf16.gmra.mxu0 %v2080
      %v2173 = vpop.f32.mrf.mxu0
      %v2174 = vadd.f32 0.0, %v2173
      %v2175 = vpop.f32.mrf.mxu0
      %v2176 = vadd.f32 0.0, %v2175
      %2177 = vmatmul.bf16.gmra.mxu0 %v2081
      %v2178 = vpop.f32.mrf.mxu0
      %v2179 = vadd.f32 0.0, %v2178
      %v2180 = vpop.f32.mrf.mxu0
      %v2181 = vadd.f32 0.0, %v2180
      %2182 = vmatmul.bf16.gmra.mxu0 %v2082
      %v2183 = vpop.f32.mrf.mxu0
      %v2184 = vadd.f32 0.0, %v2183
      %v2185 = vpop.f32.mrf.mxu0
      %v2186 = vadd.f32 0.0, %v2185
      %2187 = vmatmul.bf16.gmra.mxu0 %v2083
      %v2188 = vpop.f32.mrf.mxu0
      %v2189 = vadd.f32 0.0, %v2188
      %v2190 = vpop.f32.mrf.mxu0
      %v2191 = vadd.f32 0.0, %v2190
      %2192 = vmatmul.bf16.gmra.mxu0 %v2084
      %v2193 = vpop.f32.mrf.mxu0
      %v2194 = vadd.f32 0.0, %v2193
      %v2195 = vpop.f32.mrf.mxu0
      %v2196 = vadd.f32 0.0, %v2195
      %2197 = vmatmul.bf16.gmra.mxu0 %v2085
      %v2198 = vpop.f32.mrf.mxu0
      %v2199 = vadd.f32 0.0, %v2198
      %v2200 = vpop.f32.mrf.mxu0
      %v2201 = vadd.f32 0.0, %v2200
      %2202 = vmatmul.bf16.gmra.mxu0 %v2086
      %v2203 = vpop.f32.mrf.mxu0
      %v2204 = vadd.f32 0.0, %v2203
      %v2205 = vpop.f32.mrf.mxu0
      %v2206 = vadd.f32 0.0, %v2205
      %2207 = vmatmul.bf16.gmra.mxu0 %v2087
      %v2208 = vpop.f32.mrf.mxu0
      %v2209 = vadd.f32 0.0, %v2208
      %v2210 = vpop.f32.mrf.mxu0
      %v2211 = vadd.f32 0.0, %v2210
      %2212 = vmatmul.bf16.gmra.mxu0 %v2088
      %v2213 = vpop.f32.mrf.mxu0
      %v2214 = vadd.f32 0.0, %v2213
      %v2215 = vpop.f32.mrf.mxu0
      %v2216 = vadd.f32 0.0, %v2215
      %2217 = vmatmul.bf16.gmra.mxu0 %v2089
      %v2218 = vpop.f32.mrf.mxu0
      %v2219 = vadd.f32 0.0, %v2218
      %v2220 = vpop.f32.mrf.mxu0
      %v2221 = vadd.f32 0.0, %v2220
      %2222 = vmatmul.bf16.gmra.mxu0 %v2090
      %v2223 = vpop.f32.mrf.mxu0
      %v2224 = vadd.f32 0.0, %v2223
      %v2225 = vpop.f32.mrf.mxu0
      %v2226 = vadd.f32 0.0, %v2225
      %2227 = vmatmul.bf16.gmra.mxu0 %v2091
      %v2228 = vpop.f32.mrf.mxu0
      %v2229 = vadd.f32 0.0, %v2228
      %v2230 = vpop.f32.mrf.mxu0
      %v2231 = vadd.f32 0.0, %v2230
      %2232 = vmatmul.bf16.gmra.mxu0 %v2092
      %v2233 = vpop.f32.mrf.mxu0
      %v2234 = vadd.f32 0.0, %v2233
      %v2235 = vpop.f32.mrf.mxu0
      %v2236 = vadd.f32 0.0, %v2235
      %2237 = vmatmul.bf16.gmra.mxu0 %v2093
      %v2238 = vpop.f32.mrf.mxu0
      %v2239 = vadd.f32 0.0, %v2238
      %v2240 = vpop.f32.mrf.mxu0
      %v2241 = vadd.f32 0.0, %v2240
      %2242 = vmatmul.bf16.gmra.mxu0 %v2094
      %v2243 = vpop.f32.mrf.mxu0
      %v2244 = vadd.f32 0.0, %v2243
      %v2245 = vpop.f32.mrf.mxu0
      %v2246 = vadd.f32 0.0, %v2245
      %2247 = vdwg.mxu0
      %v2248 = vadd.f32 %v1788, %v2169
      %v2249 = vadd.f32 %v1790, %v2171
      %v2250 = vadd.f32 %v1793, %v2174
      %v2251 = vadd.f32 %v1795, %v2176
      %v2252 = vadd.f32 %v1798, %v2179
      %v2253 = vadd.f32 %v1800, %v2181
      %v2254 = vadd.f32 %v1803, %v2184
      %v2255 = vadd.f32 %v1805, %v2186
      %v2256 = vadd.f32 %v1808, %v2189
      %v2257 = vadd.f32 %v1810, %v2191
      %v2258 = vadd.f32 %v1813, %v2194
      %v2259 = vadd.f32 %v1815, %v2196
      %v2260 = vadd.f32 %v1818, %v2199
      %v2261 = vadd.f32 %v1820, %v2201
      %v2262 = vadd.f32 %v1823, %v2204
      %v2263 = vadd.f32 %v1825, %v2206
      %v2264 = vadd.f32 %v1828, %v2209
      %v2265 = vadd.f32 %v1830, %v2211
      %v2266 = vadd.f32 %v1833, %v2214
      %v2267 = vadd.f32 %v1835, %v2216
      %v2268 = vadd.f32 %v1838, %v2219
      %v2269 = vadd.f32 %v1840, %v2221
      %v2270 = vadd.f32 %v1843, %v2224
      %v2271 = vadd.f32 %v1845, %v2226
      %v2272 = vadd.f32 %v1848, %v2229
      %v2273 = vadd.f32 %v1850, %v2231
      %v2274 = vadd.f32 %v1853, %v2234
      %v2275 = vadd.f32 %v1855, %v2236
      %v2276 = vadd.f32 %v1858, %v2239
      %v2277 = vadd.f32 %v1860, %v2241
      %v2278 = vadd.f32 %v1863, %v2244
      %v2279 = vadd.f32 %v1865, %v2246
      %v2280 = vld [vmem:[%s847] sm:$0xf]
      %v2281 = vld [vmem:[%s847 + $0x4] sm:$0xf]
      %v2282 = vld [vmem:[%s847 + $0xc] sm:$0xf]
      %v2283 = vld [vmem:[%s847 + $0x10] sm:$0xf]
      %v2284 = vld [vmem:[%s847 + $0x18] sm:$0xf]
      %v2285 = vld [vmem:[%s847 + $0x1c] sm:$0xf]
      %v2286 = vld [vmem:[%s847 + $0x24] sm:$0xf]
      %v2287 = vld [vmem:[%s847 + $0x28] sm:$0xf]
      %v2288 = vld [vmem:[%s847 + $0x30] sm:$0xf]
      %v2289 = vld [vmem:[%s847 + $0x34] sm:$0xf]
      %v2290 = vld [vmem:[%s847 + $0x3c] sm:$0xf]
      %v2291 = vld [vmem:[%s847 + $0x40] sm:$0xf]
      %v2292 = vld [vmem:[%s847 + $0x48] sm:$0xf]
      %v2293 = vld [vmem:[%s847 + $0x4c] sm:$0xf]
      %v2294 = vld [vmem:[%s847 + $0x54] sm:$0xf]
      %v2295 = vld [vmem:[%s847 + $0x58] sm:$0xf]
      %v2296 = vld [vmem:[%s847 + $0x60] sm:$0xf]
      %v2297 = vld [vmem:[%s847 + $0x64] sm:$0xf]
      %v2298 = vld [vmem:[%s847 + $0x6c] sm:$0xf]
      %v2299 = vld [vmem:[%s847 + $0x70] sm:$0xf]
      %v2300 = vld [vmem:[%s847 + $0x78] sm:$0xf]
      %v2301 = vld [vmem:[%s847 + $0x7c] sm:$0xf]
      %v2302 = vld [vmem:[%s847 + $0x84] sm:$0xf]
      %v2303 = vld [vmem:[%s847 + $0x88] sm:$0xf]
      %v2304 = vld [vmem:[%s847 + $0x90] sm:$0xf]
      %v2305 = vld [vmem:[%s847 + $0x94] sm:$0xf]
      %v2306 = vld [vmem:[%s847 + $0x9c] sm:$0xf]
      %v2307 = vld [vmem:[%s847 + $0xa0] sm:$0xf]
      %v2308 = vld [vmem:[%s847 + $0xa8] sm:$0xf]
      %v2309 = vld [vmem:[%s847 + $0xac] sm:$0xf]
      %v2310 = vld [vmem:[%s847 + $0xb4] sm:$0xf]
      %v2311 = vld [vmem:[%s847 + $0xb8] sm:$0xf]
      %s2312 = scalar_lea.vmem %s1, 192
      %v2313 = vld [vmem:[%s2312] sm:$0xf]
      %v2314 = vld [vmem:[%s2312 + $0x4] sm:$0xf]
      %v2315 = vld [vmem:[%s2312 + $0x8] sm:$0xf]
      %v2316 = vld [vmem:[%s2312 + $0xc] sm:$0xf]
      %v2317 = vld [vmem:[%s2312 + $0x10] sm:$0xf]
      %v2318 = vld [vmem:[%s2312 + $0x14] sm:$0xf]
      %v2319 = vld [vmem:[%s2312 + $0x18] sm:$0xf]
      %v2320 = vld [vmem:[%s2312 + $0x1c] sm:$0xf]
      %v2321 = vld [vmem:[%s2312 + $0x20] sm:$0xf]
      %v2322 = vld [vmem:[%s2312 + $0x24] sm:$0xf]
      %v2323 = vld [vmem:[%s2312 + $0x28] sm:$0xf]
      %v2324 = vld [vmem:[%s2312 + $0x2c] sm:$0xf]
      %v2325 = vld [vmem:[%s2312 + $0x30] sm:$0xf]
      %v2326 = vld [vmem:[%s2312 + $0x34] sm:$0xf]
      %v2327 = vld [vmem:[%s2312 + $0x38] sm:$0xf]
      %v2328 = vld [vmem:[%s2312 + $0x3c] sm:$0xf]
      %v2361 = vunpack.c.l.b16 %v2280
      %v2362 = vunpack.c.l.b16 %v2281
      %v2363 = vunpack.c.l.b16 %v2282
      %v2364 = vunpack.c.l.b16 %v2283
      %v2365 = vunpack.c.l.b16 %v2284
      %v2366 = vunpack.c.l.b16 %v2285
      %v2367 = vunpack.c.l.b16 %v2286
      %v2368 = vunpack.c.l.b16 %v2287
      %v2369 = vunpack.c.l.b16 %v2288
      %v2370 = vunpack.c.l.b16 %v2289
      %v2371 = vunpack.c.l.b16 %v2290
      %v2372 = vunpack.c.l.b16 %v2291
      %v2373 = vunpack.c.l.b16 %v2292
      %v2374 = vunpack.c.l.b16 %v2293
      %v2375 = vunpack.c.l.b16 %v2294
      %v2376 = vunpack.c.l.b16 %v2295
      %v2377 = vunpack.c.l.b16 %v2296
      %v2378 = vunpack.c.l.b16 %v2297
      %v2379 = vunpack.c.l.b16 %v2298
      %v2380 = vunpack.c.l.b16 %v2299
      %v2381 = vunpack.c.l.b16 %v2300
      %v2382 = vunpack.c.l.b16 %v2301
      %v2383 = vunpack.c.l.b16 %v2302
      %v2384 = vunpack.c.l.b16 %v2303
      %v2385 = vunpack.c.l.b16 %v2304
      %v2386 = vunpack.c.l.b16 %v2305
      %v2387 = vunpack.c.l.b16 %v2306
      %v2388 = vunpack.c.l.b16 %v2307
      %v2389 = vunpack.c.l.b16 %v2308
      %v2390 = vunpack.c.l.b16 %v2309
      %v2391 = vunpack.c.l.b16 %v2310
      %v2392 = vunpack.c.l.b16 %v2311
      %v2393 = vpack.c.b16 %v2362, %v2361
      %v2394 = vpack.c.b16 %v2364, %v2363
      %v2395 = vpack.c.b16 %v2366, %v2365
      %v2396 = vpack.c.b16 %v2368, %v2367
      %v2397 = vpack.c.b16 %v2370, %v2369
      %v2398 = vpack.c.b16 %v2372, %v2371
      %v2399 = vpack.c.b16 %v2374, %v2373
      %v2400 = vpack.c.b16 %v2376, %v2375
      %v2401 = vpack.c.b16 %v2378, %v2377
      %v2402 = vpack.c.b16 %v2380, %v2379
      %v2403 = vpack.c.b16 %v2382, %v2381
      %v2404 = vpack.c.b16 %v2384, %v2383
      %v2405 = vpack.c.b16 %v2386, %v2385
      %v2406 = vpack.c.b16 %v2388, %v2387
      %v2407 = vpack.c.b16 %v2390, %v2389
      %v2408 = vpack.c.b16 %v2392, %v2391
      %v2441 = vunpack.c.l.b16 %v2313
      %v2442 = vunpack.c.l.b16 %v2314
      %v2443 = vunpack.c.l.b16 %v2315
      %v2444 = vunpack.c.l.b16 %v2316
      %v2445 = vunpack.c.l.b16 %v2317
      %v2446 = vunpack.c.l.b16 %v2318
      %v2447 = vunpack.c.l.b16 %v2319
      %v2448 = vunpack.c.l.b16 %v2320
      %v2449 = vunpack.c.l.b16 %v2321
      %v2450 = vunpack.c.l.b16 %v2322
      %v2451 = vunpack.c.l.b16 %v2323
      %v2452 = vunpack.c.l.b16 %v2324
      %v2453 = vunpack.c.l.b16 %v2325
      %v2454 = vunpack.c.l.b16 %v2326
      %v2455 = vunpack.c.l.b16 %v2327
      %v2456 = vunpack.c.l.b16 %v2328
      %v2457 = vpack.c.b16 %v2442, %v2441
      %v2458 = vpack.c.b16 %v2444, %v2443
      %v2459 = vpack.c.b16 %v2446, %v2445
      %v2460 = vpack.c.b16 %v2448, %v2447
      %v2461 = vpack.c.b16 %v2450, %v2449
      %v2462 = vpack.c.b16 %v2452, %v2451
      %v2463 = vpack.c.b16 %v2454, %v2453
      %v2464 = vpack.c.b16 %v2456, %v2455
      %2473 = vmatpush.bf16.msra.mxu0 %v2464
      %2474 = vmatpush.bf16.msra.mxu0 %v2463
      %2475 = vmatpush.bf16.msra.mxu0 %v2462
      %2476 = vmatpush.bf16.msra.mxu0 %v2461
      %2477 = vmatpush.bf16.msra.mxu0 %v2460
      %2478 = vmatpush.bf16.msra.mxu0 %v2459
      %2479 = vmatpush.bf16.msra.mxu0 %v2458
      %2480 = vmatpush.bf16.msra.mxu0 %v2457
      %2481 = vmatmul.bf16.gmra.mxu0 %v2393
      %v2482 = vpop.f32.mrf.mxu0
      %v2483 = vadd.f32 0.0, %v2482
      %v2484 = vpop.f32.mrf.mxu0
      %v2485 = vadd.f32 0.0, %v2484
      %2486 = vmatmul.bf16.gmra.mxu0 %v2394
      %v2487 = vpop.f32.mrf.mxu0
      %v2488 = vadd.f32 0.0, %v2487
      %v2489 = vpop.f32.mrf.mxu0
      %v2490 = vadd.f32 0.0, %v2489
      %2491 = vmatmul.bf16.gmra.mxu0 %v2395
      %v2492 = vpop.f32.mrf.mxu0
      %v2493 = vadd.f32 0.0, %v2492
      %v2494 = vpop.f32.mrf.mxu0
      %v2495 = vadd.f32 0.0, %v2494
      %2496 = vmatmul.bf16.gmra.mxu0 %v2396
      %v2497 = vpop.f32.mrf.mxu0
      %v2498 = vadd.f32 0.0, %v2497
      %v2499 = vpop.f32.mrf.mxu0
      %v2500 = vadd.f32 0.0, %v2499
      %2501 = vmatmul.bf16.gmra.mxu0 %v2397
      %v2502 = vpop.f32.mrf.mxu0
      %v2503 = vadd.f32 0.0, %v2502
      %v2504 = vpop.f32.mrf.mxu0
      %v2505 = vadd.f32 0.0, %v2504
      %2506 = vmatmul.bf16.gmra.mxu0 %v2398
      %v2507 = vpop.f32.mrf.mxu0
      %v2508 = vadd.f32 0.0, %v2507
      %v2509 = vpop.f32.mrf.mxu0
      %v2510 = vadd.f32 0.0, %v2509
      %2511 = vmatmul.bf16.gmra.mxu0 %v2399
      %v2512 = vpop.f32.mrf.mxu0
      %v2513 = vadd.f32 0.0, %v2512
      %v2514 = vpop.f32.mrf.mxu0
      %v2515 = vadd.f32 0.0, %v2514
      %2516 = vmatmul.bf16.gmra.mxu0 %v2400
      %v2517 = vpop.f32.mrf.mxu0
      %v2518 = vadd.f32 0.0, %v2517
      %v2519 = vpop.f32.mrf.mxu0
      %v2520 = vadd.f32 0.0, %v2519
      %2521 = vmatmul.bf16.gmra.mxu0 %v2401
      %v2522 = vpop.f32.mrf.mxu0
      %v2523 = vadd.f32 0.0, %v2522
      %v2524 = vpop.f32.mrf.mxu0
      %v2525 = vadd.f32 0.0, %v2524
      %2526 = vmatmul.bf16.gmra.mxu0 %v2402
      %v2527 = vpop.f32.mrf.mxu0
      %v2528 = vadd.f32 0.0, %v2527
      %v2529 = vpop.f32.mrf.mxu0
      %v2530 = vadd.f32 0.0, %v2529
      %2531 = vmatmul.bf16.gmra.mxu0 %v2403
      %v2532 = vpop.f32.mrf.mxu0
      %v2533 = vadd.f32 0.0, %v2532
      %v2534 = vpop.f32.mrf.mxu0
      %v2535 = vadd.f32 0.0, %v2534
      %2536 = vmatmul.bf16.gmra.mxu0 %v2404
      %v2537 = vpop.f32.mrf.mxu0
      %v2538 = vadd.f32 0.0, %v2537
      %v2539 = vpop.f32.mrf.mxu0
      %v2540 = vadd.f32 0.0, %v2539
      %2541 = vmatmul.bf16.gmra.mxu0 %v2405
      %v2542 = vpop.f32.mrf.mxu0
      %v2543 = vadd.f32 0.0, %v2542
      %v2544 = vpop.f32.mrf.mxu0
      %v2545 = vadd.f32 0.0, %v2544
      %2546 = vmatmul.bf16.gmra.mxu0 %v2406
      %v2547 = vpop.f32.mrf.mxu0
      %v2548 = vadd.f32 0.0, %v2547
      %v2549 = vpop.f32.mrf.mxu0
      %v2550 = vadd.f32 0.0, %v2549
      %2551 = vmatmul.bf16.gmra.mxu0 %v2407
      %v2552 = vpop.f32.mrf.mxu0
      %v2553 = vadd.f32 0.0, %v2552
      %v2554 = vpop.f32.mrf.mxu0
      %v2555 = vadd.f32 0.0, %v2554
      %2556 = vmatmul.bf16.gmra.mxu0 %v2408
      %v2557 = vpop.f32.mrf.mxu0
      %v2558 = vadd.f32 0.0, %v2557
      %v2559 = vpop.f32.mrf.mxu0
      %v2560 = vadd.f32 0.0, %v2559
      %2561 = vdwg.mxu0
      %v2562 = vadd.f32 %v2248, %v2483
      %v2563 = vadd.f32 %v2249, %v2485
      %v2564 = vadd.f32 %v2250, %v2488
      %v2565 = vadd.f32 %v2251, %v2490
      %v2566 = vadd.f32 %v2252, %v2493
      %v2567 = vadd.f32 %v2253, %v2495
      %v2568 = vadd.f32 %v2254, %v2498
      %v2569 = vadd.f32 %v2255, %v2500
      %v2570 = vadd.f32 %v2256, %v2503
      %v2571 = vadd.f32 %v2257, %v2505
      %v2572 = vadd.f32 %v2258, %v2508
      %v2573 = vadd.f32 %v2259, %v2510
      %v2574 = vadd.f32 %v2260, %v2513
      %v2575 = vadd.f32 %v2261, %v2515
      %v2576 = vadd.f32 %v2262, %v2518
      %v2577 = vadd.f32 %v2263, %v2520
      %v2578 = vadd.f32 %v2264, %v2523
      %v2579 = vadd.f32 %v2265, %v2525
      %v2580 = vadd.f32 %v2266, %v2528
      %v2581 = vadd.f32 %v2267, %v2530
      %v2582 = vadd.f32 %v2268, %v2533
      %v2583 = vadd.f32 %v2269, %v2535
      %v2584 = vadd.f32 %v2270, %v2538
      %v2585 = vadd.f32 %v2271, %v2540
      %v2586 = vadd.f32 %v2272, %v2543
      %v2587 = vadd.f32 %v2273, %v2545
      %v2588 = vadd.f32 %v2274, %v2548
      %v2589 = vadd.f32 %v2275, %v2550
      %v2590 = vadd.f32 %v2276, %v2553
      %v2591 = vadd.f32 %v2277, %v2555
      %v2592 = vadd.f32 %v2278, %v2558
      %v2593 = vadd.f32 %v2279, %v2560
      %v2594 = vld [vmem:[%s847] sm:$0xf]
      %v2595 = vld [vmem:[%s847 + $0x4] sm:$0xf]
      %v2596 = vld [vmem:[%s847 + $0x8] sm:$0x1]
      %v2597 = vld [vmem:[%s847 + $0xc] sm:$0xf]
      %v2598 = vld [vmem:[%s847 + $0x10] sm:$0xf]
      %v2599 = vld [vmem:[%s847 + $0x14] sm:$0x1]
      %v2600 = vld [vmem:[%s847 + $0x18] sm:$0xf]
      %v2601 = vld [vmem:[%s847 + $0x1c] sm:$0xf]
      %v2602 = vld [vmem:[%s847 + $0x20] sm:$0x1]
      %v2603 = vld [vmem:[%s847 + $0x24] sm:$0xf]
      %v2604 = vld [vmem:[%s847 + $0x28] sm:$0xf]
      %v2605 = vld [vmem:[%s847 + $0x2c] sm:$0x1]
      %v2606 = vld [vmem:[%s847 + $0x30] sm:$0xf]
      %v2607 = vld [vmem:[%s847 + $0x34] sm:$0xf]
      %v2608 = vld [vmem:[%s847 + $0x38] sm:$0x1]
      %v2609 = vld [vmem:[%s847 + $0x3c] sm:$0xf]
      %v2610 = vld [vmem:[%s847 + $0x40] sm:$0xf]
      %v2611 = vld [vmem:[%s847 + $0x44] sm:$0x1]
      %v2612 = vld [vmem:[%s847 + $0x48] sm:$0xf]
      %v2613 = vld [vmem:[%s847 + $0x4c] sm:$0xf]
      %v2614 = vld [vmem:[%s847 + $0x50] sm:$0x1]
      %v2615 = vld [vmem:[%s847 + $0x54] sm:$0xf]
      %v2616 = vld [vmem:[%s847 + $0x58] sm:$0xf]
      %v2617 = vld [vmem:[%s847 + $0x5c] sm:$0x1]
      %v2618 = vld [vmem:[%s847 + $0x60] sm:$0xf]
      %v2619 = vld [vmem:[%s847 + $0x64] sm:$0xf]
      %v2620 = vld [vmem:[%s847 + $0x68] sm:$0x1]
      %v2621 = vld [vmem:[%s847 + $0x6c] sm:$0xf]
      %v2622 = vld [vmem:[%s847 + $0x70] sm:$0xf]
      %v2623 = vld [vmem:[%s847 + $0x74] sm:$0x1]
      %v2624 = vld [vmem:[%s847 + $0x78] sm:$0xf]
      %v2625 = vld [vmem:[%s847 + $0x7c] sm:$0xf]
      %v2626 = vld [vmem:[%s847 + $0x80] sm:$0x1]
      %v2627 = vld [vmem:[%s847 + $0x84] sm:$0xf]
      %v2628 = vld [vmem:[%s847 + $0x88] sm:$0xf]
      %v2629 = vld [vmem:[%s847 + $0x8c] sm:$0x1]
      %v2630 = vld [vmem:[%s847 + $0x90] sm:$0xf]
      %v2631 = vld [vmem:[%s847 + $0x94] sm:$0xf]
      %v2632 = vld [vmem:[%s847 + $0x98] sm:$0x1]
      %v2633 = vld [vmem:[%s847 + $0x9c] sm:$0xf]
      %v2634 = vld [vmem:[%s847 + $0xa0] sm:$0xf]
      %v2635 = vld [vmem:[%s847 + $0xa4] sm:$0x1]
      %v2636 = vld [vmem:[%s847 + $0xa8] sm:$0xf]
      %v2637 = vld [vmem:[%s847 + $0xac] sm:$0xf]
      %v2638 = vld [vmem:[%s847 + $0xb0] sm:$0x1]
      %v2639 = vld [vmem:[%s847 + $0xb4] sm:$0xf]
      %v2640 = vld [vmem:[%s847 + $0xb8] sm:$0xf]
      %v2641 = vld [vmem:[%s847 + $0xbc] sm:$0x1]
      %v2643 = vshrl.u32 %v2594, 16
      %v2645 = vrot.slane %v2643, 4
      %v2646 = vshll.u32 %v2594, 16
      %v2648 = vrot.slane %v2646, 5
      %v2649 = vor.u32 %v2645, %v2648
      %v2650 = vrot.slane %v2649, 4
      %v2652 = vshll.u32 %v2595, 16
      %v2654 = vrot.slane %v2652, 5
      %v2655 = vsel %vm1031, %v2650, %v2654
      %v2656 = vshrl.u32 %v2595, 16
      %v2658 = vrot.slane %v2656, 4
      %v2659 = vor.u32 %v2658, %v2654
      %v2660 = vrot.slane %v2659, 4
      %v2662 = vshll.u32 %v2596, 16
      %v2664 = vrot.slane %v2662, 5
      %v2665 = vsel %vm1031, %v2660, %v2664
      %v2667 = vshrl.u32 %v2597, 16
      %v2669 = vrot.slane %v2667, 4
      %v2670 = vshll.u32 %v2597, 16
      %v2672 = vrot.slane %v2670, 5
      %v2673 = vor.u32 %v2669, %v2672
      %v2674 = vrot.slane %v2673, 4
      %v2676 = vshll.u32 %v2598, 16
      %v2678 = vrot.slane %v2676, 5
      %v2679 = vsel %vm1031, %v2674, %v2678
      %v2680 = vshrl.u32 %v2598, 16
      %v2682 = vrot.slane %v2680, 4
      %v2683 = vor.u32 %v2682, %v2678
      %v2684 = vrot.slane %v2683, 4
      %v2686 = vshll.u32 %v2599, 16
      %v2688 = vrot.slane %v2686, 5
      %v2689 = vsel %vm1031, %v2684, %v2688
      %v2691 = vshrl.u32 %v2600, 16
      %v2693 = vrot.slane %v2691, 4
      %v2694 = vshll.u32 %v2600, 16
      %v2696 = vrot.slane %v2694, 5
      %v2697 = vor.u32 %v2693, %v2696
      %v2698 = vrot.slane %v2697, 4
      %v2700 = vshll.u32 %v2601, 16
      %v2702 = vrot.slane %v2700, 5
      %v2703 = vsel %vm1031, %v2698, %v2702
      %v2704 = vshrl.u32 %v2601, 16
      %v2706 = vrot.slane %v2704, 4
      %v2707 = vor.u32 %v2706, %v2702
      %v2708 = vrot.slane %v2707, 4
      %v2710 = vshll.u32 %v2602, 16
      %v2712 = vrot.slane %v2710, 5
      %v2713 = vsel %vm1031, %v2708, %v2712
      %v2715 = vshrl.u32 %v2603, 16
      %v2717 = vrot.slane %v2715, 4
      %v2718 = vshll.u32 %v2603, 16
      %v2720 = vrot.slane %v2718, 5
      %v2721 = vor.u32 %v2717, %v2720
      %v2722 = vrot.slane %v2721, 4
      %v2724 = vshll.u32 %v2604, 16
      %v2726 = vrot.slane %v2724, 5
      %v2727 = vsel %vm1031, %v2722, %v2726
      %v2728 = vshrl.u32 %v2604, 16
      %v2730 = vrot.slane %v2728, 4
      %v2731 = vor.u32 %v2730, %v2726
      %v2732 = vrot.slane %v2731, 4
      %v2734 = vshll.u32 %v2605, 16
      %v2736 = vrot.slane %v2734, 5
      %v2737 = vsel %vm1031, %v2732, %v2736
      %v2739 = vshrl.u32 %v2606, 16
      %v2741 = vrot.slane %v2739, 4
      %v2742 = vshll.u32 %v2606, 16
      %v2744 = vrot.slane %v2742, 5
      %v2745 = vor.u32 %v2741, %v2744
      %v2746 = vrot.slane %v2745, 4
      %v2748 = vshll.u32 %v2607, 16
      %v2750 = vrot.slane %v2748, 5
      %v2751 = vsel %vm1031, %v2746, %v2750
      %v2752 = vshrl.u32 %v2607, 16
      %v2754 = vrot.slane %v2752, 4
      %v2755 = vor.u32 %v2754, %v2750
      %v2756 = vrot.slane %v2755, 4
      %v2758 = vshll.u32 %v2608, 16
      %v2760 = vrot.slane %v2758, 5
      %v2761 = vsel %vm1031, %v2756, %v2760
      %v2763 = vshrl.u32 %v2609, 16
      %v2765 = vrot.slane %v2763, 4
      %v2766 = vshll.u32 %v2609, 16
      %v2768 = vrot.slane %v2766, 5
      %v2769 = vor.u32 %v2765, %v2768
      %v2770 = vrot.slane %v2769, 4
      %v2772 = vshll.u32 %v2610, 16
      %v2774 = vrot.slane %v2772, 5
      %v2775 = vsel %vm1031, %v2770, %v2774
      %v2776 = vshrl.u32 %v2610, 16
      %v2778 = vrot.slane %v2776, 4
      %v2779 = vor.u32 %v2778, %v2774
      %v2780 = vrot.slane %v2779, 4
      %v2782 = vshll.u32 %v2611, 16
      %v2784 = vrot.slane %v2782, 5
      %v2785 = vsel %vm1031, %v2780, %v2784
      %v2787 = vshrl.u32 %v2612, 16
      %v2789 = vrot.slane %v2787, 4
      %v2790 = vshll.u32 %v2612, 16
      %v2792 = vrot.slane %v2790, 5
      %v2793 = vor.u32 %v2789, %v2792
      %v2794 = vrot.slane %v2793, 4
      %v2796 = vshll.u32 %v2613, 16
      %v2798 = vrot.slane %v2796, 5
      %v2799 = vsel %vm1031, %v2794, %v2798
      %v2800 = vshrl.u32 %v2613, 16
      %v2802 = vrot.slane %v2800, 4
      %v2803 = vor.u32 %v2802, %v2798
      %v2804 = vrot.slane %v2803, 4
      %v2806 = vshll.u32 %v2614, 16
      %v2808 = vrot.slane %v2806, 5
      %v2809 = vsel %vm1031, %v2804, %v2808
      %v2811 = vshrl.u32 %v2615, 16
      %v2813 = vrot.slane %v2811, 4
      %v2814 = vshll.u32 %v2615, 16
      %v2816 = vrot.slane %v2814, 5
      %v2817 = vor.u32 %v2813, %v2816
      %v2818 = vrot.slane %v2817, 4
      %v2820 = vshll.u32 %v2616, 16
      %v2822 = vrot.slane %v2820, 5
      %v2823 = vsel %vm1031, %v2818, %v2822
      %v2824 = vshrl.u32 %v2616, 16
      %v2826 = vrot.slane %v2824, 4
      %v2827 = vor.u32 %v2826, %v2822
      %v2828 = vrot.slane %v2827, 4
      %v2830 = vshll.u32 %v2617, 16
      %v2832 = vrot.slane %v2830, 5
      %v2833 = vsel %vm1031, %v2828, %v2832
      %v2835 = vshrl.u32 %v2618, 16
      %v2837 = vrot.slane %v2835, 4
      %v2838 = vshll.u32 %v2618, 16
      %v2840 = vrot.slane %v2838, 5
      %v2841 = vor.u32 %v2837, %v2840
      %v2842 = vrot.slane %v2841, 4
      %v2844 = vshll.u32 %v2619, 16
      %v2846 = vrot.slane %v2844, 5
      %v2847 = vsel %vm1031, %v2842, %v2846
      %v2848 = vshrl.u32 %v2619, 16
      %v2850 = vrot.slane %v2848, 4
      %v2851 = vor.u32 %v2850, %v2846
      %v2852 = vrot.slane %v2851, 4
      %v2854 = vshll.u32 %v2620, 16
      %v2856 = vrot.slane %v2854, 5
      %v2857 = vsel %vm1031, %v2852, %v2856
      %v2859 = vshrl.u32 %v2621, 16
      %v2861 = vrot.slane %v2859, 4
      %v2862 = vshll.u32 %v2621, 16
      %v2864 = vrot.slane %v2862, 5
      %v2865 = vor.u32 %v2861, %v2864
      %v2866 = vrot.slane %v2865, 4
      %v2868 = vshll.u32 %v2622, 16
      %v2870 = vrot.slane %v2868, 5
      %v2871 = vsel %vm1031, %v2866, %v2870
      %v2872 = vshrl.u32 %v2622, 16
      %v2874 = vrot.slane %v2872, 4
      %v2875 = vor.u32 %v2874, %v2870
      %v2876 = vrot.slane %v2875, 4
      %v2878 = vshll.u32 %v2623, 16
      %v2880 = vrot.slane %v2878, 5
      %v2881 = vsel %vm1031, %v2876, %v2880
      %v2883 = vshrl.u32 %v2624, 16
      %v2885 = vrot.slane %v2883, 4
      %v2886 = vshll.u32 %v2624, 16
      %v2888 = vrot.slane %v2886, 5
      %v2889 = vor.u32 %v2885, %v2888
      %v2890 = vrot.slane %v2889, 4
      %v2892 = vshll.u32 %v2625, 16
      %v2894 = vrot.slane %v2892, 5
      %v2895 = vsel %vm1031, %v2890, %v2894
      %v2896 = vshrl.u32 %v2625, 16
      %v2898 = vrot.slane %v2896, 4
      %v2899 = vor.u32 %v2898, %v2894
      %v2900 = vrot.slane %v2899, 4
      %v2902 = vshll.u32 %v2626, 16
      %v2904 = vrot.slane %v2902, 5
      %v2905 = vsel %vm1031, %v2900, %v2904
      %v2907 = vshrl.u32 %v2627, 16
      %v2909 = vrot.slane %v2907, 4
      %v2910 = vshll.u32 %v2627, 16
      %v2912 = vrot.slane %v2910, 5
      %v2913 = vor.u32 %v2909, %v2912
      %v2914 = vrot.slane %v2913, 4
      %v2916 = vshll.u32 %v2628, 16
      %v2918 = vrot.slane %v2916, 5
      %v2919 = vsel %vm1031, %v2914, %v2918
      %v2920 = vshrl.u32 %v2628, 16
      %v2922 = vrot.slane %v2920, 4
      %v2923 = vor.u32 %v2922, %v2918
      %v2924 = vrot.slane %v2923, 4
      %v2926 = vshll.u32 %v2629, 16
      %v2928 = vrot.slane %v2926, 5
      %v2929 = vsel %vm1031, %v2924, %v2928
      %v2931 = vshrl.u32 %v2630, 16
      %v2933 = vrot.slane %v2931, 4
      %v2934 = vshll.u32 %v2630, 16
      %v2936 = vrot.slane %v2934, 5
      %v2937 = vor.u32 %v2933, %v2936
      %v2938 = vrot.slane %v2937, 4
      %v2940 = vshll.u32 %v2631, 16
      %v2942 = vrot.slane %v2940, 5
      %v2943 = vsel %vm1031, %v2938, %v2942
      %v2944 = vshrl.u32 %v2631, 16
      %v2946 = vrot.slane %v2944, 4
      %v2947 = vor.u32 %v2946, %v2942
      %v2948 = vrot.slane %v2947, 4
      %v2950 = vshll.u32 %v2632, 16
      %v2952 = vrot.slane %v2950, 5
      %v2953 = vsel %vm1031, %v2948, %v2952
      %v2955 = vshrl.u32 %v2633, 16
      %v2957 = vrot.slane %v2955, 4
      %v2958 = vshll.u32 %v2633, 16
      %v2960 = vrot.slane %v2958, 5
      %v2961 = vor.u32 %v2957, %v2960
      %v2962 = vrot.slane %v2961, 4
      %v2964 = vshll.u32 %v2634, 16
      %v2966 = vrot.slane %v2964, 5
      %v2967 = vsel %vm1031, %v2962, %v2966
      %v2968 = vshrl.u32 %v2634, 16
      %v2970 = vrot.slane %v2968, 4
      %v2971 = vor.u32 %v2970, %v2966
      %v2972 = vrot.slane %v2971, 4
      %v2974 = vshll.u32 %v2635, 16
      %v2976 = vrot.slane %v2974, 5
      %v2977 = vsel %vm1031, %v2972, %v2976
      %v2979 = vshrl.u32 %v2636, 16
      %v2981 = vrot.slane %v2979, 4
      %v2982 = vshll.u32 %v2636, 16
      %v2984 = vrot.slane %v2982, 5
      %v2985 = vor.u32 %v2981, %v2984
      %v2986 = vrot.slane %v2985, 4
      %v2988 = vshll.u32 %v2637, 16
      %v2990 = vrot.slane %v2988, 5
      %v2991 = vsel %vm1031, %v2986, %v2990
      %v2992 = vshrl.u32 %v2637, 16
      %v2994 = vrot.slane %v2992, 4
      %v2995 = vor.u32 %v2994, %v2990
      %v2996 = vrot.slane %v2995, 4
      %v2998 = vshll.u32 %v2638, 16
      %v3000 = vrot.slane %v2998, 5
      %v3001 = vsel %vm1031, %v2996, %v3000
      %v3003 = vshrl.u32 %v2639, 16
      %v3005 = vrot.slane %v3003, 4
      %v3006 = vshll.u32 %v2639, 16
      %v3008 = vrot.slane %v3006, 5
      %v3009 = vor.u32 %v3005, %v3008
      %v3010 = vrot.slane %v3009, 4
      %v3012 = vshll.u32 %v2640, 16
      %v3014 = vrot.slane %v3012, 5
      %v3015 = vsel %vm1031, %v3010, %v3014
      %v3016 = vshrl.u32 %v2640, 16
      %v3018 = vrot.slane %v3016, 4
      %v3019 = vor.u32 %v3018, %v3014
      %v3020 = vrot.slane %v3019, 4
      %v3022 = vshll.u32 %v2641, 16
      %v3024 = vrot.slane %v3022, 5
      %v3025 = vsel %vm1031, %v3020, %v3024
      %s3026 = scalar_lea.vmem %s1, 256
      %v3027 = vld [vmem:[%s3026] sm:$0xf]
      %v3028 = vld [vmem:[%s3026 + $0x4] sm:$0xf]
      %v3029 = vld [vmem:[%s3026 + $0x8] sm:$0xf]
      %v3030 = vld [vmem:[%s3026 + $0xc] sm:$0xf]
      %v3031 = vld [vmem:[%s3026 + $0x10] sm:$0xf]
      %v3032 = vld [vmem:[%s3026 + $0x14] sm:$0xf]
      %v3033 = vld [vmem:[%s3026 + $0x18] sm:$0xf]
      %v3034 = vld [vmem:[%s3026 + $0x1c] sm:$0xf]
      %v3035 = vld [vmem:[%s3026 + $0x20] sm:$0xf]
      %v3036 = vld [vmem:[%s3026 + $0x24] sm:$0xf]
      %v3037 = vld [vmem:[%s3026 + $0x28] sm:$0xf]
      %v3038 = vld [vmem:[%s3026 + $0x2c] sm:$0xf]
      %v3039 = vld [vmem:[%s3026 + $0x30] sm:$0xf]
      %v3040 = vld [vmem:[%s3026 + $0x34] sm:$0xf]
      %v3041 = vld [vmem:[%s3026 + $0x38] sm:$0xf]
      %v3042 = vld [vmem:[%s3026 + $0x3c] sm:$0xf]
      %v3043 = vunpack.c.l.b16 %v2655
      %v3044 = vunpack.c.l.b16 %v2665
      %v3045 = vunpack.c.l.b16 %v2679
      %v3046 = vunpack.c.l.b16 %v2689
      %v3047 = vunpack.c.l.b16 %v2703
      %v3048 = vunpack.c.l.b16 %v2713
      %v3049 = vunpack.c.l.b16 %v2727
      %v3050 = vunpack.c.l.b16 %v2737
      %v3051 = vunpack.c.l.b16 %v2751
      %v3052 = vunpack.c.l.b16 %v2761
      %v3053 = vunpack.c.l.b16 %v2775
      %v3054 = vunpack.c.l.b16 %v2785
      %v3055 = vunpack.c.l.b16 %v2799
      %v3056 = vunpack.c.l.b16 %v2809
      %v3057 = vunpack.c.l.b16 %v2823
      %v3058 = vunpack.c.l.b16 %v2833
      %v3059 = vunpack.c.l.b16 %v2847
      %v3060 = vunpack.c.l.b16 %v2857
      %v3061 = vunpack.c.l.b16 %v2871
      %v3062 = vunpack.c.l.b16 %v2881
      %v3063 = vunpack.c.l.b16 %v2895
      %v3064 = vunpack.c.l.b16 %v2905
      %v3065 = vunpack.c.l.b16 %v2919
      %v3066 = vunpack.c.l.b16 %v2929
      %v3067 = vunpack.c.l.b16 %v2943
      %v3068 = vunpack.c.l.b16 %v2953
      %v3069 = vunpack.c.l.b16 %v2967
      %v3070 = vunpack.c.l.b16 %v2977
      %v3071 = vunpack.c.l.b16 %v2991
      %v3072 = vunpack.c.l.b16 %v3001
      %v3073 = vunpack.c.l.b16 %v3015
      %v3074 = vunpack.c.l.b16 %v3025
      %v3075 = vpack.c.b16 %v3044, %v3043
      %v3076 = vpack.c.b16 %v3046, %v3045
      %v3077 = vpack.c.b16 %v3048, %v3047
      %v3078 = vpack.c.b16 %v3050, %v3049
      %v3079 = vpack.c.b16 %v3052, %v3051
      %v3080 = vpack.c.b16 %v3054, %v3053
      %v3081 = vpack.c.b16 %v3056, %v3055
      %v3082 = vpack.c.b16 %v3058, %v3057
      %v3083 = vpack.c.b16 %v3060, %v3059
      %v3084 = vpack.c.b16 %v3062, %v3061
      %v3085 = vpack.c.b16 %v3064, %v3063
      %v3086 = vpack.c.b16 %v3066, %v3065
      %v3087 = vpack.c.b16 %v3068, %v3067
      %v3088 = vpack.c.b16 %v3070, %v3069
      %v3089 = vpack.c.b16 %v3072, %v3071
      %v3090 = vpack.c.b16 %v3074, %v3073
      %v3123 = vunpack.c.l.b16 %v3027
      %v3124 = vunpack.c.l.b16 %v3028
      %v3125 = vunpack.c.l.b16 %v3029
      %v3126 = vunpack.c.l.b16 %v3030
      %v3127 = vunpack.c.l.b16 %v3031
      %v3128 = vunpack.c.l.b16 %v3032
      %v3129 = vunpack.c.l.b16 %v3033
      %v3130 = vunpack.c.l.b16 %v3034
      %v3131 = vunpack.c.l.b16 %v3035
      %v3132 = vunpack.c.l.b16 %v3036
      %v3133 = vunpack.c.l.b16 %v3037
      %v3134 = vunpack.c.l.b16 %v3038
      %v3135 = vunpack.c.l.b16 %v3039
      %v3136 = vunpack.c.l.b16 %v3040
      %v3137 = vunpack.c.l.b16 %v3041
      %v3138 = vunpack.c.l.b16 %v3042
      %v3139 = vpack.c.b16 %v3124, %v3123
      %v3140 = vpack.c.b16 %v3126, %v3125
      %v3141 = vpack.c.b16 %v3128, %v3127
      %v3142 = vpack.c.b16 %v3130, %v3129
      %v3143 = vpack.c.b16 %v3132, %v3131
      %v3144 = vpack.c.b16 %v3134, %v3133
      %v3145 = vpack.c.b16 %v3136, %v3135
      %v3146 = vpack.c.b16 %v3138, %v3137
      %3155 = vmatpush.bf16.msra.mxu0 %v3146
      %3156 = vmatpush.bf16.msra.mxu0 %v3145
      %3157 = vmatpush.bf16.msra.mxu0 %v3144
      %3158 = vmatpush.bf16.msra.mxu0 %v3143
      %3159 = vmatpush.bf16.msra.mxu0 %v3142
      %3160 = vmatpush.bf16.msra.mxu0 %v3141
      %3161 = vmatpush.bf16.msra.mxu0 %v3140
      %3162 = vmatpush.bf16.msra.mxu0 %v3139
      %3163 = vmatmul.bf16.gmra.mxu0 %v3075
      %v3164 = vpop.f32.mrf.mxu0
      %v3165 = vadd.f32 0.0, %v3164
      %v3166 = vpop.f32.mrf.mxu0
      %v3167 = vadd.f32 0.0, %v3166
      %3168 = vmatmul.bf16.gmra.mxu0 %v3076
      %v3169 = vpop.f32.mrf.mxu0
      %v3170 = vadd.f32 0.0, %v3169
      %v3171 = vpop.f32.mrf.mxu0
      %v3172 = vadd.f32 0.0, %v3171
      %3173 = vmatmul.bf16.gmra.mxu0 %v3077
      %v3174 = vpop.f32.mrf.mxu0
      %v3175 = vadd.f32 0.0, %v3174
      %v3176 = vpop.f32.mrf.mxu0
      %v3177 = vadd.f32 0.0, %v3176
      %3178 = vmatmul.bf16.gmra.mxu0 %v3078
      %v3179 = vpop.f32.mrf.mxu0
      %v3180 = vadd.f32 0.0, %v3179
      %v3181 = vpop.f32.mrf.mxu0
      %v3182 = vadd.f32 0.0, %v3181
      %3183 = vmatmul.bf16.gmra.mxu0 %v3079
      %v3184 = vpop.f32.mrf.mxu0
      %v3185 = vadd.f32 0.0, %v3184
      %v3186 = vpop.f32.mrf.mxu0
      %v3187 = vadd.f32 0.0, %v3186
      %3188 = vmatmul.bf16.gmra.mxu0 %v3080
      %v3189 = vpop.f32.mrf.mxu0
      %v3190 = vadd.f32 0.0, %v3189
      %v3191 = vpop.f32.mrf.mxu0
      %v3192 = vadd.f32 0.0, %v3191
      %3193 = vmatmul.bf16.gmra.mxu0 %v3081
      %v3194 = vpop.f32.mrf.mxu0
      %v3195 = vadd.f32 0.0, %v3194
      %v3196 = vpop.f32.mrf.mxu0
      %v3197 = vadd.f32 0.0, %v3196
      %3198 = vmatmul.bf16.gmra.mxu0 %v3082
      %v3199 = vpop.f32.mrf.mxu0
      %v3200 = vadd.f32 0.0, %v3199
      %v3201 = vpop.f32.mrf.mxu0
      %v3202 = vadd.f32 0.0, %v3201
      %3203 = vmatmul.bf16.gmra.mxu0 %v3083
      %v3204 = vpop.f32.mrf.mxu0
      %v3205 = vadd.f32 0.0, %v3204
      %v3206 = vpop.f32.mrf.mxu0
      %v3207 = vadd.f32 0.0, %v3206
      %3208 = vmatmul.bf16.gmra.mxu0 %v3084
      %v3209 = vpop.f32.mrf.mxu0
      %v3210 = vadd.f32 0.0, %v3209
      %v3211 = vpop.f32.mrf.mxu0
      %v3212 = vadd.f32 0.0, %v3211
      %3213 = vmatmul.bf16.gmra.mxu0 %v3085
      %v3214 = vpop.f32.mrf.mxu0
      %v3215 = vadd.f32 0.0, %v3214
      %v3216 = vpop.f32.mrf.mxu0
      %v3217 = vadd.f32 0.0, %v3216
      %3218 = vmatmul.bf16.gmra.mxu0 %v3086
      %v3219 = vpop.f32.mrf.mxu0
      %v3220 = vadd.f32 0.0, %v3219
      %v3221 = vpop.f32.mrf.mxu0
      %v3222 = vadd.f32 0.0, %v3221
      %3223 = vmatmul.bf16.gmra.mxu0 %v3087
      %v3224 = vpop.f32.mrf.mxu0
      %v3225 = vadd.f32 0.0, %v3224
      %v3226 = vpop.f32.mrf.mxu0
      %v3227 = vadd.f32 0.0, %v3226
      %3228 = vmatmul.bf16.gmra.mxu0 %v3088
      %v3229 = vpop.f32.mrf.mxu0
      %v3230 = vadd.f32 0.0, %v3229
      %v3231 = vpop.f32.mrf.mxu0
      %v3232 = vadd.f32 0.0, %v3231
      %3233 = vmatmul.bf16.gmra.mxu0 %v3089
      %v3234 = vpop.f32.mrf.mxu0
      %v3235 = vadd.f32 0.0, %v3234
      %v3236 = vpop.f32.mrf.mxu0
      %v3237 = vadd.f32 0.0, %v3236
      %3238 = vmatmul.bf16.gmra.mxu0 %v3090
      %v3239 = vpop.f32.mrf.mxu0
      %v3240 = vadd.f32 0.0, %v3239
      %v3241 = vpop.f32.mrf.mxu0
      %v3242 = vadd.f32 0.0, %v3241
      %3243 = vdwg.mxu0
      %v3244 = vadd.f32 %v2562, %v3165
      %v3245 = vadd.f32 %v2563, %v3167
      %v3246 = vadd.f32 %v2564, %v3170
      %v3247 = vadd.f32 %v2565, %v3172
      %v3248 = vadd.f32 %v2566, %v3175
      %v3249 = vadd.f32 %v2567, %v3177
      %v3250 = vadd.f32 %v2568, %v3180
      %v3251 = vadd.f32 %v2569, %v3182
      %v3252 = vadd.f32 %v2570, %v3185
      %v3253 = vadd.f32 %v2571, %v3187
      %v3254 = vadd.f32 %v2572, %v3190
      %v3255 = vadd.f32 %v2573, %v3192
      %v3256 = vadd.f32 %v2574, %v3195
      %v3257 = vadd.f32 %v2575, %v3197
      %v3258 = vadd.f32 %v2576, %v3200
      %v3259 = vadd.f32 %v2577, %v3202
      %v3260 = vadd.f32 %v2578, %v3205
      %v3261 = vadd.f32 %v2579, %v3207
      %v3262 = vadd.f32 %v2580, %v3210
      %v3263 = vadd.f32 %v2581, %v3212
      %v3264 = vadd.f32 %v2582, %v3215
      %v3265 = vadd.f32 %v2583, %v3217
      %v3266 = vadd.f32 %v2584, %v3220
      %v3267 = vadd.f32 %v2585, %v3222
      %v3268 = vadd.f32 %v2586, %v3225
      %v3269 = vadd.f32 %v2587, %v3227
      %v3270 = vadd.f32 %v2588, %v3230
      %v3271 = vadd.f32 %v2589, %v3232
      %v3272 = vadd.f32 %v2590, %v3235
      %v3273 = vadd.f32 %v2591, %v3237
      %v3274 = vadd.f32 %v2592, %v3240
      %v3275 = vadd.f32 %v2593, %v3242
      %v3276 = vld [vmem:[%s847] sm:$0xe]
      %v3277 = vld [vmem:[%s847 + $0xc] sm:$0xe]
      %v3278 = vld [vmem:[%s847 + $0x18] sm:$0xe]
      %v3279 = vld [vmem:[%s847 + $0x24] sm:$0xe]
      %v3280 = vld [vmem:[%s847 + $0x30] sm:$0xe]
      %v3281 = vld [vmem:[%s847 + $0x3c] sm:$0xe]
      %v3282 = vld [vmem:[%s847 + $0x48] sm:$0xe]
      %v3283 = vld [vmem:[%s847 + $0x54] sm:$0xe]
      %v3284 = vld [vmem:[%s847 + $0x60] sm:$0xe]
      %v3285 = vld [vmem:[%s847 + $0x6c] sm:$0xe]
      %v3286 = vld [vmem:[%s847 + $0x78] sm:$0xe]
      %v3287 = vld [vmem:[%s847 + $0x84] sm:$0xe]
      %v3288 = vld [vmem:[%s847 + $0x90] sm:$0xe]
      %v3289 = vld [vmem:[%s847 + $0x9c] sm:$0xe]
      %v3290 = vld [vmem:[%s847 + $0xa8] sm:$0xe]
      %v3291 = vld [vmem:[%s847 + $0xb4] sm:$0xe]
      %v3340 = vrot.slane %v3276, 5
      %v3341 = vrot.slane %v3340, 4
      %v3342 = vrot.slane %v2595, 5
      %v3343 = vsel %vm1917, %v3341, %v3342
      %v3344 = vrot.slane %v3342, 4
      %v3345 = vrot.slane %v2596, 5
      %v3346 = vsel %vm1917, %v3344, %v3345
      %v3347 = vrot.slane %v3277, 5
      %v3348 = vrot.slane %v3347, 4
      %v3349 = vrot.slane %v2598, 5
      %v3350 = vsel %vm1917, %v3348, %v3349
      %v3351 = vrot.slane %v3349, 4
      %v3352 = vrot.slane %v2599, 5
      %v3353 = vsel %vm1917, %v3351, %v3352
      %v3354 = vrot.slane %v3278, 5
      %v3355 = vrot.slane %v3354, 4
      %v3356 = vrot.slane %v2601, 5
      %v3357 = vsel %vm1917, %v3355, %v3356
      %v3358 = vrot.slane %v3356, 4
      %v3359 = vrot.slane %v2602, 5
      %v3360 = vsel %vm1917, %v3358, %v3359
      %v3361 = vrot.slane %v3279, 5
      %v3362 = vrot.slane %v3361, 4
      %v3363 = vrot.slane %v2604, 5
      %v3364 = vsel %vm1917, %v3362, %v3363
      %v3365 = vrot.slane %v3363, 4
      %v3366 = vrot.slane %v2605, 5
      %v3367 = vsel %vm1917, %v3365, %v3366
      %v3368 = vrot.slane %v3280, 5
      %v3369 = vrot.slane %v3368, 4
      %v3370 = vrot.slane %v2607, 5
      %v3371 = vsel %vm1917, %v3369, %v3370
      %v3372 = vrot.slane %v3370, 4
      %v3373 = vrot.slane %v2608, 5
      %v3374 = vsel %vm1917, %v3372, %v3373
      %v3375 = vrot.slane %v3281, 5
      %v3376 = vrot.slane %v3375, 4
      %v3377 = vrot.slane %v2610, 5
      %v3378 = vsel %vm1917, %v3376, %v3377
      %v3379 = vrot.slane %v3377, 4
      %v3380 = vrot.slane %v2611, 5
      %v3381 = vsel %vm1917, %v3379, %v3380
      %v3382 = vrot.slane %v3282, 5
      %v3383 = vrot.slane %v3382, 4
      %v3384 = vrot.slane %v2613, 5
      %v3385 = vsel %vm1917, %v3383, %v3384
      %v3386 = vrot.slane %v3384, 4
      %v3387 = vrot.slane %v2614, 5
      %v3388 = vsel %vm1917, %v3386, %v3387
      %v3389 = vrot.slane %v3283, 5
      %v3390 = vrot.slane %v3389, 4
      %v3391 = vrot.slane %v2616, 5
      %v3392 = vsel %vm1917, %v3390, %v3391
      %v3393 = vrot.slane %v3391, 4
      %v3394 = vrot.slane %v2617, 5
      %v3395 = vsel %vm1917, %v3393, %v3394
      %v3396 = vrot.slane %v3284, 5
      %v3397 = vrot.slane %v3396, 4
      %v3398 = vrot.slane %v2619, 5
      %v3399 = vsel %vm1917, %v3397, %v3398
      %v3400 = vrot.slane %v3398, 4
      %v3401 = vrot.slane %v2620, 5
      %v3402 = vsel %vm1917, %v3400, %v3401
      %v3403 = vrot.slane %v3285, 5
      %v3404 = vrot.slane %v3403, 4
      %v3405 = vrot.slane %v2622, 5
      %v3406 = vsel %vm1917, %v3404, %v3405
      %v3407 = vrot.slane %v3405, 4
      %v3408 = vrot.slane %v2623, 5
      %v3409 = vsel %vm1917, %v3407, %v3408
      %v3410 = vrot.slane %v3286, 5
      %v3411 = vrot.slane %v3410, 4
      %v3412 = vrot.slane %v2625, 5
      %v3413 = vsel %vm1917, %v3411, %v3412
      %v3414 = vrot.slane %v3412, 4
      %v3415 = vrot.slane %v2626, 5
      %v3416 = vsel %vm1917, %v3414, %v3415
      %v3417 = vrot.slane %v3287, 5
      %v3418 = vrot.slane %v3417, 4
      %v3419 = vrot.slane %v2628, 5
      %v3420 = vsel %vm1917, %v3418, %v3419
      %v3421 = vrot.slane %v3419, 4
      %v3422 = vrot.slane %v2629, 5
      %v3423 = vsel %vm1917, %v3421, %v3422
      %v3424 = vrot.slane %v3288, 5
      %v3425 = vrot.slane %v3424, 4
      %v3426 = vrot.slane %v2631, 5
      %v3427 = vsel %vm1917, %v3425, %v3426
      %v3428 = vrot.slane %v3426, 4
      %v3429 = vrot.slane %v2632, 5
      %v3430 = vsel %vm1917, %v3428, %v3429
      %v3431 = vrot.slane %v3289, 5
      %v3432 = vrot.slane %v3431, 4
      %v3433 = vrot.slane %v2634, 5
      %v3434 = vsel %vm1917, %v3432, %v3433
      %v3435 = vrot.slane %v3433, 4
      %v3436 = vrot.slane %v2635, 5
      %v3437 = vsel %vm1917, %v3435, %v3436
      %v3438 = vrot.slane %v3290, 5
      %v3439 = vrot.slane %v3438, 4
      %v3440 = vrot.slane %v2637, 5
      %v3441 = vsel %vm1917, %v3439, %v3440
      %v3442 = vrot.slane %v3440, 4
      %v3443 = vrot.slane %v2638, 5
      %v3444 = vsel %vm1917, %v3442, %v3443
      %v3445 = vrot.slane %v3291, 5
      %v3446 = vrot.slane %v3445, 4
      %v3447 = vrot.slane %v2640, 5
      %v3448 = vsel %vm1917, %v3446, %v3447
      %v3449 = vrot.slane %v3447, 4
      %v3450 = vrot.slane %v2641, 5
      %v3451 = vsel %vm1917, %v3449, %v3450
      %s3452 = scalar_lea.vmem %s1, 320
      %v3453 = vld [vmem:[%s3452] sm:$0xf]
      %v3454 = vld [vmem:[%s3452 + $0x4] sm:$0xf]
      %v3455 = vld [vmem:[%s3452 + $0x8] sm:$0xf]
      %v3456 = vld [vmem:[%s3452 + $0xc] sm:$0xf]
      %v3457 = vld [vmem:[%s3452 + $0x10] sm:$0xf]
      %v3458 = vld [vmem:[%s3452 + $0x14] sm:$0xf]
      %v3459 = vld [vmem:[%s3452 + $0x18] sm:$0xf]
      %v3460 = vld [vmem:[%s3452 + $0x1c] sm:$0xf]
      %v3461 = vld [vmem:[%s3452 + $0x20] sm:$0xf]
      %v3462 = vld [vmem:[%s3452 + $0x24] sm:$0xf]
      %v3463 = vld [vmem:[%s3452 + $0x28] sm:$0xf]
      %v3464 = vld [vmem:[%s3452 + $0x2c] sm:$0xf]
      %v3465 = vld [vmem:[%s3452 + $0x30] sm:$0xf]
      %v3466 = vld [vmem:[%s3452 + $0x34] sm:$0xf]
      %v3467 = vld [vmem:[%s3452 + $0x38] sm:$0xf]
      %v3468 = vld [vmem:[%s3452 + $0x3c] sm:$0xf]
      %v3469 = vunpack.c.l.b16 %v3343
      %v3470 = vunpack.c.l.b16 %v3346
      %v3471 = vunpack.c.l.b16 %v3350
      %v3472 = vunpack.c.l.b16 %v3353
      %v3473 = vunpack.c.l.b16 %v3357
      %v3474 = vunpack.c.l.b16 %v3360
      %v3475 = vunpack.c.l.b16 %v3364
      %v3476 = vunpack.c.l.b16 %v3367
      %v3477 = vunpack.c.l.b16 %v3371
      %v3478 = vunpack.c.l.b16 %v3374
      %v3479 = vunpack.c.l.b16 %v3378
      %v3480 = vunpack.c.l.b16 %v3381
      %v3481 = vunpack.c.l.b16 %v3385
      %v3482 = vunpack.c.l.b16 %v3388
      %v3483 = vunpack.c.l.b16 %v3392
      %v3484 = vunpack.c.l.b16 %v3395
      %v3485 = vunpack.c.l.b16 %v3399
      %v3486 = vunpack.c.l.b16 %v3402
      %v3487 = vunpack.c.l.b16 %v3406
      %v3488 = vunpack.c.l.b16 %v3409
      %v3489 = vunpack.c.l.b16 %v3413
      %v3490 = vunpack.c.l.b16 %v3416
      %v3491 = vunpack.c.l.b16 %v3420
      %v3492 = vunpack.c.l.b16 %v3423
      %v3493 = vunpack.c.l.b16 %v3427
      %v3494 = vunpack.c.l.b16 %v3430
      %v3495 = vunpack.c.l.b16 %v3434
      %v3496 = vunpack.c.l.b16 %v3437
      %v3497 = vunpack.c.l.b16 %v3441
      %v3498 = vunpack.c.l.b16 %v3444
      %v3499 = vunpack.c.l.b16 %v3448
      %v3500 = vunpack.c.l.b16 %v3451
      %v3501 = vpack.c.b16 %v3470, %v3469
      %v3502 = vpack.c.b16 %v3472, %v3471
      %v3503 = vpack.c.b16 %v3474, %v3473
      %v3504 = vpack.c.b16 %v3476, %v3475
      %v3505 = vpack.c.b16 %v3478, %v3477
      %v3506 = vpack.c.b16 %v3480, %v3479
      %v3507 = vpack.c.b16 %v3482, %v3481
      %v3508 = vpack.c.b16 %v3484, %v3483
      %v3509 = vpack.c.b16 %v3486, %v3485
      %v3510 = vpack.c.b16 %v3488, %v3487
      %v3511 = vpack.c.b16 %v3490, %v3489
      %v3512 = vpack.c.b16 %v3492, %v3491
      %v3513 = vpack.c.b16 %v3494, %v3493
      %v3514 = vpack.c.b16 %v3496, %v3495
      %v3515 = vpack.c.b16 %v3498, %v3497
      %v3516 = vpack.c.b16 %v3500, %v3499
      %v3549 = vunpack.c.l.b16 %v3453
      %v3550 = vunpack.c.l.b16 %v3454
      %v3551 = vunpack.c.l.b16 %v3455
      %v3552 = vunpack.c.l.b16 %v3456
      %v3553 = vunpack.c.l.b16 %v3457
      %v3554 = vunpack.c.l.b16 %v3458
      %v3555 = vunpack.c.l.b16 %v3459
      %v3556 = vunpack.c.l.b16 %v3460
      %v3557 = vunpack.c.l.b16 %v3461
      %v3558 = vunpack.c.l.b16 %v3462
      %v3559 = vunpack.c.l.b16 %v3463
      %v3560 = vunpack.c.l.b16 %v3464
      %v3561 = vunpack.c.l.b16 %v3465
      %v3562 = vunpack.c.l.b16 %v3466
      %v3563 = vunpack.c.l.b16 %v3467
      %v3564 = vunpack.c.l.b16 %v3468
      %v3565 = vpack.c.b16 %v3550, %v3549
      %v3566 = vpack.c.b16 %v3552, %v3551
      %v3567 = vpack.c.b16 %v3554, %v3553
      %v3568 = vpack.c.b16 %v3556, %v3555
      %v3569 = vpack.c.b16 %v3558, %v3557
      %v3570 = vpack.c.b16 %v3560, %v3559
      %v3571 = vpack.c.b16 %v3562, %v3561
      %v3572 = vpack.c.b16 %v3564, %v3563
      %3581 = vmatpush.bf16.msra.mxu0 %v3572
      %3582 = vmatpush.bf16.msra.mxu0 %v3571
      %3583 = vmatpush.bf16.msra.mxu0 %v3570
      %3584 = vmatpush.bf16.msra.mxu0 %v3569
      %3585 = vmatpush.bf16.msra.mxu0 %v3568
      %3586 = vmatpush.bf16.msra.mxu0 %v3567
      %3587 = vmatpush.bf16.msra.mxu0 %v3566
      %3588 = vmatpush.bf16.msra.mxu0 %v3565
      %3589 = vmatmul.bf16.gmra.mxu0 %v3501
      %v3590 = vpop.f32.mrf.mxu0
      %v3591 = vadd.f32 0.0, %v3590
      %v3592 = vpop.f32.mrf.mxu0
      %v3593 = vadd.f32 0.0, %v3592
      %3594 = vmatmul.bf16.gmra.mxu0 %v3502
      %v3595 = vpop.f32.mrf.mxu0
      %v3596 = vadd.f32 0.0, %v3595
      %v3597 = vpop.f32.mrf.mxu0
      %v3598 = vadd.f32 0.0, %v3597
      %3599 = vmatmul.bf16.gmra.mxu0 %v3503
      %v3600 = vpop.f32.mrf.mxu0
      %v3601 = vadd.f32 0.0, %v3600
      %v3602 = vpop.f32.mrf.mxu0
      %v3603 = vadd.f32 0.0, %v3602
      %3604 = vmatmul.bf16.gmra.mxu0 %v3504
      %v3605 = vpop.f32.mrf.mxu0
      %v3606 = vadd.f32 0.0, %v3605
      %v3607 = vpop.f32.mrf.mxu0
      %v3608 = vadd.f32 0.0, %v3607
      %3609 = vmatmul.bf16.gmra.mxu0 %v3505
      %v3610 = vpop.f32.mrf.mxu0
      %v3611 = vadd.f32 0.0, %v3610
      %v3612 = vpop.f32.mrf.mxu0
      %v3613 = vadd.f32 0.0, %v3612
      %3614 = vmatmul.bf16.gmra.mxu0 %v3506
      %v3615 = vpop.f32.mrf.mxu0
      %v3616 = vadd.f32 0.0, %v3615
      %v3617 = vpop.f32.mrf.mxu0
      %v3618 = vadd.f32 0.0, %v3617
      %3619 = vmatmul.bf16.gmra.mxu0 %v3507
      %v3620 = vpop.f32.mrf.mxu0
      %v3621 = vadd.f32 0.0, %v3620
      %v3622 = vpop.f32.mrf.mxu0
      %v3623 = vadd.f32 0.0, %v3622
      %3624 = vmatmul.bf16.gmra.mxu0 %v3508
      %v3625 = vpop.f32.mrf.mxu0
      %v3626 = vadd.f32 0.0, %v3625
      %v3627 = vpop.f32.mrf.mxu0
      %v3628 = vadd.f32 0.0, %v3627
      %3629 = vmatmul.bf16.gmra.mxu0 %v3509
      %v3630 = vpop.f32.mrf.mxu0
      %v3631 = vadd.f32 0.0, %v3630
      %v3632 = vpop.f32.mrf.mxu0
      %v3633 = vadd.f32 0.0, %v3632
      %3634 = vmatmul.bf16.gmra.mxu0 %v3510
      %v3635 = vpop.f32.mrf.mxu0
      %v3636 = vadd.f32 0.0, %v3635
      %v3637 = vpop.f32.mrf.mxu0
      %v3638 = vadd.f32 0.0, %v3637
      %3639 = vmatmul.bf16.gmra.mxu0 %v3511
      %v3640 = vpop.f32.mrf.mxu0
      %v3641 = vadd.f32 0.0, %v3640
      %v3642 = vpop.f32.mrf.mxu0
      %v3643 = vadd.f32 0.0, %v3642
      %3644 = vmatmul.bf16.gmra.mxu0 %v3512
      %v3645 = vpop.f32.mrf.mxu0
      %v3646 = vadd.f32 0.0, %v3645
      %v3647 = vpop.f32.mrf.mxu0
      %v3648 = vadd.f32 0.0, %v3647
      %3649 = vmatmul.bf16.gmra.mxu0 %v3513
      %v3650 = vpop.f32.mrf.mxu0
      %v3651 = vadd.f32 0.0, %v3650
      %v3652 = vpop.f32.mrf.mxu0
      %v3653 = vadd.f32 0.0, %v3652
      %3654 = vmatmul.bf16.gmra.mxu0 %v3514
      %v3655 = vpop.f32.mrf.mxu0
      %v3656 = vadd.f32 0.0, %v3655
      %v3657 = vpop.f32.mrf.mxu0
      %v3658 = vadd.f32 0.0, %v3657
      %3659 = vmatmul.bf16.gmra.mxu0 %v3515
      %v3660 = vpop.f32.mrf.mxu0
      %v3661 = vadd.f32 0.0, %v3660
      %v3662 = vpop.f32.mrf.mxu0
      %v3663 = vadd.f32 0.0, %v3662
      %3664 = vmatmul.bf16.gmra.mxu0 %v3516
      %v3665 = vpop.f32.mrf.mxu0
      %v3666 = vadd.f32 0.0, %v3665
      %v3667 = vpop.f32.mrf.mxu0
      %v3668 = vadd.f32 0.0, %v3667
      %3669 = vdwg.mxu0
      %v3670 = vadd.f32 %v3244, %v3591
      %v3671 = vadd.f32 %v3245, %v3593
      %v3672 = vadd.f32 %v3246, %v3596
      %v3673 = vadd.f32 %v3247, %v3598
      %v3674 = vadd.f32 %v3248, %v3601
      %v3675 = vadd.f32 %v3249, %v3603
      %v3676 = vadd.f32 %v3250, %v3606
      %v3677 = vadd.f32 %v3251, %v3608
      %v3678 = vadd.f32 %v3252, %v3611
      %v3679 = vadd.f32 %v3253, %v3613
      %v3680 = vadd.f32 %v3254, %v3616
      %v3681 = vadd.f32 %v3255, %v3618
      %v3682 = vadd.f32 %v3256, %v3621
      %v3683 = vadd.f32 %v3257, %v3623
      %v3684 = vadd.f32 %v3258, %v3626
      %v3685 = vadd.f32 %v3259, %v3628
      %v3686 = vadd.f32 %v3260, %v3631
      %v3687 = vadd.f32 %v3261, %v3633
      %v3688 = vadd.f32 %v3262, %v3636
      %v3689 = vadd.f32 %v3263, %v3638
      %v3690 = vadd.f32 %v3264, %v3641
      %v3691 = vadd.f32 %v3265, %v3643
      %v3692 = vadd.f32 %v3266, %v3646
      %v3693 = vadd.f32 %v3267, %v3648
      %v3694 = vadd.f32 %v3268, %v3651
      %v3695 = vadd.f32 %v3269, %v3653
      %v3696 = vadd.f32 %v3270, %v3656
      %v3697 = vadd.f32 %v3271, %v3658
      %v3698 = vadd.f32 %v3272, %v3661
      %v3699 = vadd.f32 %v3273, %v3663
      %v3700 = vadd.f32 %v3274, %v3666
      %v3701 = vadd.f32 %v3275, %v3668
      %s3702 = scalar_lea.vmem [#allocation2], 24
      %v3703 = vld [vmem:[%s3702] sm:$0xf]
      %v3704 = vld [vmem:[%s3702 + $0x4] sm:$0xf]
      %v3705 = vld [vmem:[%s3702 + $0xc] sm:$0xf]
      %v3706 = vld [vmem:[%s3702 + $0x10] sm:$0xf]
      %v3707 = vld [vmem:[%s3702 + $0x18] sm:$0xf]
      %v3708 = vld [vmem:[%s3702 + $0x1c] sm:$0xf]
      %v3709 = vld [vmem:[%s3702 + $0x24] sm:$0xf]
      %v3710 = vld [vmem:[%s3702 + $0x28] sm:$0xf]
      %v3711 = vld [vmem:[%s3702 + $0x30] sm:$0xf]
      %v3712 = vld [vmem:[%s3702 + $0x34] sm:$0xf]
      %v3713 = vld [vmem:[%s3702 + $0x3c] sm:$0xf]
      %v3714 = vld [vmem:[%s3702 + $0x40] sm:$0xf]
      %v3715 = vld [vmem:[%s3702 + $0x48] sm:$0xf]
      %v3716 = vld [vmem:[%s3702 + $0x4c] sm:$0xf]
      %v3717 = vld [vmem:[%s3702 + $0x54] sm:$0xf]
      %v3718 = vld [vmem:[%s3702 + $0x58] sm:$0xf]
      %v3719 = vld [vmem:[%s3702 + $0x60] sm:$0xf]
      %v3720 = vld [vmem:[%s3702 + $0x64] sm:$0xf]
      %v3721 = vld [vmem:[%s3702 + $0x6c] sm:$0xf]
      %v3722 = vld [vmem:[%s3702 + $0x70] sm:$0xf]
      %v3723 = vld [vmem:[%s3702 + $0x78] sm:$0xf]
      %v3724 = vld [vmem:[%s3702 + $0x7c] sm:$0xf]
      %v3725 = vld [vmem:[%s3702 + $0x84] sm:$0xf]
      %v3726 = vld [vmem:[%s3702 + $0x88] sm:$0xf]
      %v3727 = vld [vmem:[%s3702 + $0x90] sm:$0xf]
      %v3728 = vld [vmem:[%s3702 + $0x94] sm:$0xf]
      %v3729 = vld [vmem:[%s3702 + $0x9c] sm:$0xf]
      %v3730 = vld [vmem:[%s3702 + $0xa0] sm:$0xf]
      %v3731 = vld [vmem:[%s3702 + $0xa8] sm:$0xf]
      %v3732 = vld [vmem:[%s3702 + $0xac] sm:$0xf]
      %v3733 = vld [vmem:[%s3702 + $0xb4] sm:$0xf]
      %v3734 = vld [vmem:[%s3702 + $0xb8] sm:$0xf]
      %s3735 = scalar_lea.vmem %s1, 384
      %v3736 = vld [vmem:[%s3735] sm:$0xf]
      %v3737 = vld [vmem:[%s3735 + $0x4] sm:$0xf]
      %v3738 = vld [vmem:[%s3735 + $0x8] sm:$0xf]
      %v3739 = vld [vmem:[%s3735 + $0xc] sm:$0xf]
      %v3740 = vld [vmem:[%s3735 + $0x10] sm:$0xf]
      %v3741 = vld [vmem:[%s3735 + $0x14] sm:$0xf]
      %v3742 = vld [vmem:[%s3735 + $0x18] sm:$0xf]
      %v3743 = vld [vmem:[%s3735 + $0x1c] sm:$0xf]
      %v3744 = vld [vmem:[%s3735 + $0x20] sm:$0xf]
      %v3745 = vld [vmem:[%s3735 + $0x24] sm:$0xf]
      %v3746 = vld [vmem:[%s3735 + $0x28] sm:$0xf]
      %v3747 = vld [vmem:[%s3735 + $0x2c] sm:$0xf]
      %v3748 = vld [vmem:[%s3735 + $0x30] sm:$0xf]
      %v3749 = vld [vmem:[%s3735 + $0x34] sm:$0xf]
      %v3750 = vld [vmem:[%s3735 + $0x38] sm:$0xf]
      %v3751 = vld [vmem:[%s3735 + $0x3c] sm:$0xf]
      %v3784 = vunpack.c.l.b16 %v3703
      %v3785 = vunpack.c.l.b16 %v3704
      %v3786 = vunpack.c.l.b16 %v3705
      %v3787 = vunpack.c.l.b16 %v3706
      %v3788 = vunpack.c.l.b16 %v3707
      %v3789 = vunpack.c.l.b16 %v3708
      %v3790 = vunpack.c.l.b16 %v3709
      %v3791 = vunpack.c.l.b16 %v3710
      %v3792 = vunpack.c.l.b16 %v3711
      %v3793 = vunpack.c.l.b16 %v3712
      %v3794 = vunpack.c.l.b16 %v3713
      %v3795 = vunpack.c.l.b16 %v3714
      %v3796 = vunpack.c.l.b16 %v3715
      %v3797 = vunpack.c.l.b16 %v3716
      %v3798 = vunpack.c.l.b16 %v3717
      %v3799 = vunpack.c.l.b16 %v3718
      %v3800 = vunpack.c.l.b16 %v3719
      %v3801 = vunpack.c.l.b16 %v3720
      %v3802 = vunpack.c.l.b16 %v3721
      %v3803 = vunpack.c.l.b16 %v3722
      %v3804 = vunpack.c.l.b16 %v3723
      %v3805 = vunpack.c.l.b16 %v3724
      %v3806 = vunpack.c.l.b16 %v3725
      %v3807 = vunpack.c.l.b16 %v3726
      %v3808 = vunpack.c.l.b16 %v3727
      %v3809 = vunpack.c.l.b16 %v3728
      %v3810 = vunpack.c.l.b16 %v3729
      %v3811 = vunpack.c.l.b16 %v3730
      %v3812 = vunpack.c.l.b16 %v3731
      %v3813 = vunpack.c.l.b16 %v3732
      %v3814 = vunpack.c.l.b16 %v3733
      %v3815 = vunpack.c.l.b16 %v3734
      %v3816 = vpack.c.b16 %v3785, %v3784
      %v3817 = vpack.c.b16 %v3787, %v3786
      %v3818 = vpack.c.b16 %v3789, %v3788
      %v3819 = vpack.c.b16 %v3791, %v3790
      %v3820 = vpack.c.b16 %v3793, %v3792
      %v3821 = vpack.c.b16 %v3795, %v3794
      %v3822 = vpack.c.b16 %v3797, %v3796
      %v3823 = vpack.c.b16 %v3799, %v3798
      %v3824 = vpack.c.b16 %v3801, %v3800
      %v3825 = vpack.c.b16 %v3803, %v3802
      %v3826 = vpack.c.b16 %v3805, %v3804
      %v3827 = vpack.c.b16 %v3807, %v3806
      %v3828 = vpack.c.b16 %v3809, %v3808
      %v3829 = vpack.c.b16 %v3811, %v3810
      %v3830 = vpack.c.b16 %v3813, %v3812
      %v3831 = vpack.c.b16 %v3815, %v3814
      %v3864 = vunpack.c.l.b16 %v3736
      %v3865 = vunpack.c.l.b16 %v3737
      %v3866 = vunpack.c.l.b16 %v3738
      %v3867 = vunpack.c.l.b16 %v3739
      %v3868 = vunpack.c.l.b16 %v3740
      %v3869 = vunpack.c.l.b16 %v3741
      %v3870 = vunpack.c.l.b16 %v3742
      %v3871 = vunpack.c.l.b16 %v3743
      %v3872 = vunpack.c.l.b16 %v3744
      %v3873 = vunpack.c.l.b16 %v3745
      %v3874 = vunpack.c.l.b16 %v3746
      %v3875 = vunpack.c.l.b16 %v3747
      %v3876 = vunpack.c.l.b16 %v3748
      %v3877 = vunpack.c.l.b16 %v3749
      %v3878 = vunpack.c.l.b16 %v3750
      %v3879 = vunpack.c.l.b16 %v3751
      %v3880 = vpack.c.b16 %v3865, %v3864
      %v3881 = vpack.c.b16 %v3867, %v3866
      %v3882 = vpack.c.b16 %v3869, %v3868
      %v3883 = vpack.c.b16 %v3871, %v3870
      %v3884 = vpack.c.b16 %v3873, %v3872
      %v3885 = vpack.c.b16 %v3875, %v3874
      %v3886 = vpack.c.b16 %v3877, %v3876
      %v3887 = vpack.c.b16 %v3879, %v3878
      %3896 = vmatpush.bf16.msra.mxu0 %v3887
      %3897 = vmatpush.bf16.msra.mxu0 %v3886
      %3898 = vmatpush.bf16.msra.mxu0 %v3885
      %3899 = vmatpush.bf16.msra.mxu0 %v3884
      %3900 = vmatpush.bf16.msra.mxu0 %v3883
      %3901 = vmatpush.bf16.msra.mxu0 %v3882
      %3902 = vmatpush.bf16.msra.mxu0 %v3881
      %3903 = vmatpush.bf16.msra.mxu0 %v3880
      %3904 = vmatmul.bf16.gmra.mxu0 %v3816
      %v3905 = vpop.f32.mrf.mxu0
      %v3906 = vadd.f32 0.0, %v3905
      %v3907 = vpop.f32.mrf.mxu0
      %v3908 = vadd.f32 0.0, %v3907
      %3909 = vmatmul.bf16.gmra.mxu0 %v3817
      %v3910 = vpop.f32.mrf.mxu0
      %v3911 = vadd.f32 0.0, %v3910
      %v3912 = vpop.f32.mrf.mxu0
      %v3913 = vadd.f32 0.0, %v3912
      %3914 = vmatmul.bf16.gmra.mxu0 %v3818
      %v3915 = vpop.f32.mrf.mxu0
      %v3916 = vadd.f32 0.0, %v3915
      %v3917 = vpop.f32.mrf.mxu0
      %v3918 = vadd.f32 0.0, %v3917
      %3919 = vmatmul.bf16.gmra.mxu0 %v3819
      %v3920 = vpop.f32.mrf.mxu0
      %v3921 = vadd.f32 0.0, %v3920
      %v3922 = vpop.f32.mrf.mxu0
      %v3923 = vadd.f32 0.0, %v3922
      %3924 = vmatmul.bf16.gmra.mxu0 %v3820
      %v3925 = vpop.f32.mrf.mxu0
      %v3926 = vadd.f32 0.0, %v3925
      %v3927 = vpop.f32.mrf.mxu0
      %v3928 = vadd.f32 0.0, %v3927
      %3929 = vmatmul.bf16.gmra.mxu0 %v3821
      %v3930 = vpop.f32.mrf.mxu0
      %v3931 = vadd.f32 0.0, %v3930
      %v3932 = vpop.f32.mrf.mxu0
      %v3933 = vadd.f32 0.0, %v3932
      %3934 = vmatmul.bf16.gmra.mxu0 %v3822
      %v3935 = vpop.f32.mrf.mxu0
      %v3936 = vadd.f32 0.0, %v3935
      %v3937 = vpop.f32.mrf.mxu0
      %v3938 = vadd.f32 0.0, %v3937
      %3939 = vmatmul.bf16.gmra.mxu0 %v3823
      %v3940 = vpop.f32.mrf.mxu0
      %v3941 = vadd.f32 0.0, %v3940
      %v3942 = vpop.f32.mrf.mxu0
      %v3943 = vadd.f32 0.0, %v3942
      %3944 = vmatmul.bf16.gmra.mxu0 %v3824
      %v3945 = vpop.f32.mrf.mxu0
      %v3946 = vadd.f32 0.0, %v3945
      %v3947 = vpop.f32.mrf.mxu0
      %v3948 = vadd.f32 0.0, %v3947
      %3949 = vmatmul.bf16.gmra.mxu0 %v3825
      %v3950 = vpop.f32.mrf.mxu0
      %v3951 = vadd.f32 0.0, %v3950
      %v3952 = vpop.f32.mrf.mxu0
      %v3953 = vadd.f32 0.0, %v3952
      %3954 = vmatmul.bf16.gmra.mxu0 %v3826
      %v3955 = vpop.f32.mrf.mxu0
      %v3956 = vadd.f32 0.0, %v3955
      %v3957 = vpop.f32.mrf.mxu0
      %v3958 = vadd.f32 0.0, %v3957
      %3959 = vmatmul.bf16.gmra.mxu0 %v3827
      %v3960 = vpop.f32.mrf.mxu0
      %v3961 = vadd.f32 0.0, %v3960
      %v3962 = vpop.f32.mrf.mxu0
      %v3963 = vadd.f32 0.0, %v3962
      %3964 = vmatmul.bf16.gmra.mxu0 %v3828
      %v3965 = vpop.f32.mrf.mxu0
      %v3966 = vadd.f32 0.0, %v3965
      %v3967 = vpop.f32.mrf.mxu0
      %v3968 = vadd.f32 0.0, %v3967
      %3969 = vmatmul.bf16.gmra.mxu0 %v3829
      %v3970 = vpop.f32.mrf.mxu0
      %v3971 = vadd.f32 0.0, %v3970
      %v3972 = vpop.f32.mrf.mxu0
      %v3973 = vadd.f32 0.0, %v3972
      %3974 = vmatmul.bf16.gmra.mxu0 %v3830
      %v3975 = vpop.f32.mrf.mxu0
      %v3976 = vadd.f32 0.0, %v3975
      %v3977 = vpop.f32.mrf.mxu0
      %v3978 = vadd.f32 0.0, %v3977
      %3979 = vmatmul.bf16.gmra.mxu0 %v3831
      %v3980 = vpop.f32.mrf.mxu0
      %v3981 = vadd.f32 0.0, %v3980
      %v3982 = vpop.f32.mrf.mxu0
      %v3983 = vadd.f32 0.0, %v3982
      %3984 = vdwg.mxu0
      %v3985 = vadd.f32 %v3670, %v3906
      %v3986 = vadd.f32 %v3671, %v3908
      %v3987 = vadd.f32 %v3672, %v3911
      %v3988 = vadd.f32 %v3673, %v3913
      %v3989 = vadd.f32 %v3674, %v3916
      %v3990 = vadd.f32 %v3675, %v3918
      %v3991 = vadd.f32 %v3676, %v3921
      %v3992 = vadd.f32 %v3677, %v3923
      %v3993 = vadd.f32 %v3678, %v3926
      %v3994 = vadd.f32 %v3679, %v3928
      %v3995 = vadd.f32 %v3680, %v3931
      %v3996 = vadd.f32 %v3681, %v3933
      %v3997 = vadd.f32 %v3682, %v3936
      %v3998 = vadd.f32 %v3683, %v3938
      %v3999 = vadd.f32 %v3684, %v3941
      %v4000 = vadd.f32 %v3685, %v3943
      %v4001 = vadd.f32 %v3686, %v3946
      %v4002 = vadd.f32 %v3687, %v3948
      %v4003 = vadd.f32 %v3688, %v3951
      %v4004 = vadd.f32 %v3689, %v3953
      %v4005 = vadd.f32 %v3690, %v3956
      %v4006 = vadd.f32 %v3691, %v3958
      %v4007 = vadd.f32 %v3692, %v3961
      %v4008 = vadd.f32 %v3693, %v3963
      %v4009 = vadd.f32 %v3694, %v3966
      %v4010 = vadd.f32 %v3695, %v3968
      %v4011 = vadd.f32 %v3696, %v3971
      %v4012 = vadd.f32 %v3697, %v3973
      %v4013 = vadd.f32 %v3698, %v3976
      %v4014 = vadd.f32 %v3699, %v3978
      %v4015 = vadd.f32 %v3700, %v3981
      %v4016 = vadd.f32 %v3701, %v3983
      %v4017 = vld [vmem:[%s3702] sm:$0xf]
      %v4018 = vld [vmem:[%s3702 + $0x4] sm:$0xf]
      %v4019 = vld [vmem:[%s3702 + $0x8] sm:$0x1]
      %v4020 = vld [vmem:[%s3702 + $0xc] sm:$0xf]
      %v4021 = vld [vmem:[%s3702 + $0x10] sm:$0xf]
      %v4022 = vld [vmem:[%s3702 + $0x14] sm:$0x1]
      %v4023 = vld [vmem:[%s3702 + $0x18] sm:$0xf]
      %v4024 = vld [vmem:[%s3702 + $0x1c] sm:$0xf]
      %v4025 = vld [vmem:[%s3702 + $0x20] sm:$0x1]
      %v4026 = vld [vmem:[%s3702 + $0x24] sm:$0xf]
      %v4027 = vld [vmem:[%s3702 + $0x28] sm:$0xf]
      %v4028 = vld [vmem:[%s3702 + $0x2c] sm:$0x1]
      %v4029 = vld [vmem:[%s3702 + $0x30] sm:$0xf]
      %v4030 = vld [vmem:[%s3702 + $0x34] sm:$0xf]
      %v4031 = vld [vmem:[%s3702 + $0x38] sm:$0x1]
      %v4032 = vld [vmem:[%s3702 + $0x3c] sm:$0xf]
      %v4033 = vld [vmem:[%s3702 + $0x40] sm:$0xf]
      %v4034 = vld [vmem:[%s3702 + $0x44] sm:$0x1]
      %v4035 = vld [vmem:[%s3702 + $0x48] sm:$0xf]
      %v4036 = vld [vmem:[%s3702 + $0x4c] sm:$0xf]
      %v4037 = vld [vmem:[%s3702 + $0x50] sm:$0x1]
      %v4038 = vld [vmem:[%s3702 + $0x54] sm:$0xf]
      %v4039 = vld [vmem:[%s3702 + $0x58] sm:$0xf]
      %v4040 = vld [vmem:[%s3702 + $0x5c] sm:$0x1]
      %v4041 = vld [vmem:[%s3702 + $0x60] sm:$0xf]
      %v4042 = vld [vmem:[%s3702 + $0x64] sm:$0xf]
      %v4043 = vld [vmem:[%s3702 + $0x68] sm:$0x1]
      %v4044 = vld [vmem:[%s3702 + $0x6c] sm:$0xf]
      %v4045 = vld [vmem:[%s3702 + $0x70] sm:$0xf]
      %v4046 = vld [vmem:[%s3702 + $0x74] sm:$0x1]
      %v4047 = vld [vmem:[%s3702 + $0x78] sm:$0xf]
      %v4048 = vld [vmem:[%s3702 + $0x7c] sm:$0xf]
      %v4049 = vld [vmem:[%s3702 + $0x80] sm:$0x1]
      %v4050 = vld [vmem:[%s3702 + $0x84] sm:$0xf]
      %v4051 = vld [vmem:[%s3702 + $0x88] sm:$0xf]
      %v4052 = vld [vmem:[%s3702 + $0x8c] sm:$0x1]
      %v4053 = vld [vmem:[%s3702 + $0x90] sm:$0xf]
      %v4054 = vld [vmem:[%s3702 + $0x94] sm:$0xf]
      %v4055 = vld [vmem:[%s3702 + $0x98] sm:$0x1]
      %v4056 = vld [vmem:[%s3702 + $0x9c] sm:$0xf]
      %v4057 = vld [vmem:[%s3702 + $0xa0] sm:$0xf]
      %v4058 = vld [vmem:[%s3702 + $0xa4] sm:$0x1]
      %v4059 = vld [vmem:[%s3702 + $0xa8] sm:$0xf]
      %v4060 = vld [vmem:[%s3702 + $0xac] sm:$0xf]
      %v4061 = vld [vmem:[%s3702 + $0xb0] sm:$0x1]
      %v4062 = vld [vmem:[%s3702 + $0xb4] sm:$0xf]
      %v4063 = vld [vmem:[%s3702 + $0xb8] sm:$0xf]
      %v4064 = vld [vmem:[%s3702 + $0xbc] sm:$0x1]
      %v4066 = vshrl.u32 %v4017, 16
      %v4068 = vrot.slane %v4066, 4
      %v4069 = vshll.u32 %v4017, 16
      %v4071 = vrot.slane %v4069, 5
      %v4072 = vor.u32 %v4068, %v4071
      %v4073 = vrot.slane %v4072, 4
      %v4075 = vshll.u32 %v4018, 16
      %v4077 = vrot.slane %v4075, 5
      %v4078 = vsel %vm1031, %v4073, %v4077
      %v4079 = vshrl.u32 %v4018, 16
      %v4081 = vrot.slane %v4079, 4
      %v4082 = vor.u32 %v4081, %v4077
      %v4083 = vrot.slane %v4082, 4
      %v4085 = vshll.u32 %v4019, 16
      %v4087 = vrot.slane %v4085, 5
      %v4088 = vsel %vm1031, %v4083, %v4087
      %v4090 = vshrl.u32 %v4020, 16
      %v4092 = vrot.slane %v4090, 4
      %v4093 = vshll.u32 %v4020, 16
      %v4095 = vrot.slane %v4093, 5
      %v4096 = vor.u32 %v4092, %v4095
      %v4097 = vrot.slane %v4096, 4
      %v4099 = vshll.u32 %v4021, 16
      %v4101 = vrot.slane %v4099, 5
      %v4102 = vsel %vm1031, %v4097, %v4101
      %v4103 = vshrl.u32 %v4021, 16
      %v4105 = vrot.slane %v4103, 4
      %v4106 = vor.u32 %v4105, %v4101
      %v4107 = vrot.slane %v4106, 4
      %v4109 = vshll.u32 %v4022, 16
      %v4111 = vrot.slane %v4109, 5
      %v4112 = vsel %vm1031, %v4107, %v4111
      %v4114 = vshrl.u32 %v4023, 16
      %v4116 = vrot.slane %v4114, 4
      %v4117 = vshll.u32 %v4023, 16
      %v4119 = vrot.slane %v4117, 5
      %v4120 = vor.u32 %v4116, %v4119
      %v4121 = vrot.slane %v4120, 4
      %v4123 = vshll.u32 %v4024, 16
      %v4125 = vrot.slane %v4123, 5
      %v4126 = vsel %vm1031, %v4121, %v4125
      %v4127 = vshrl.u32 %v4024, 16
      %v4129 = vrot.slane %v4127, 4
      %v4130 = vor.u32 %v4129, %v4125
      %v4131 = vrot.slane %v4130, 4
      %v4133 = vshll.u32 %v4025, 16
      %v4135 = vrot.slane %v4133, 5
      %v4136 = vsel %vm1031, %v4131, %v4135
      %v4138 = vshrl.u32 %v4026, 16
      %v4140 = vrot.slane %v4138, 4
      %v4141 = vshll.u32 %v4026, 16
      %v4143 = vrot.slane %v4141, 5
      %v4144 = vor.u32 %v4140, %v4143
      %v4145 = vrot.slane %v4144, 4
      %v4147 = vshll.u32 %v4027, 16
      %v4149 = vrot.slane %v4147, 5
      %v4150 = vsel %vm1031, %v4145, %v4149
      %v4151 = vshrl.u32 %v4027, 16
      %v4153 = vrot.slane %v4151, 4
      %v4154 = vor.u32 %v4153, %v4149
      %v4155 = vrot.slane %v4154, 4
      %v4157 = vshll.u32 %v4028, 16
      %v4159 = vrot.slane %v4157, 5
      %v4160 = vsel %vm1031, %v4155, %v4159
      %v4162 = vshrl.u32 %v4029, 16
      %v4164 = vrot.slane %v4162, 4
      %v4165 = vshll.u32 %v4029, 16
      %v4167 = vrot.slane %v4165, 5
      %v4168 = vor.u32 %v4164, %v4167
      %v4169 = vrot.slane %v4168, 4
      %v4171 = vshll.u32 %v4030, 16
      %v4173 = vrot.slane %v4171, 5
      %v4174 = vsel %vm1031, %v4169, %v4173
      %v4175 = vshrl.u32 %v4030, 16
      %v4177 = vrot.slane %v4175, 4
      %v4178 = vor.u32 %v4177, %v4173
      %v4179 = vrot.slane %v4178, 4
      %v4181 = vshll.u32 %v4031, 16
      %v4183 = vrot.slane %v4181, 5
      %v4184 = vsel %vm1031, %v4179, %v4183
      %v4186 = vshrl.u32 %v4032, 16
      %v4188 = vrot.slane %v4186, 4
      %v4189 = vshll.u32 %v4032, 16
      %v4191 = vrot.slane %v4189, 5
      %v4192 = vor.u32 %v4188, %v4191
      %v4193 = vrot.slane %v4192, 4
      %v4195 = vshll.u32 %v4033, 16
      %v4197 = vrot.slane %v4195, 5
      %v4198 = vsel %vm1031, %v4193, %v4197
      %v4199 = vshrl.u32 %v4033, 16
      %v4201 = vrot.slane %v4199, 4
      %v4202 = vor.u32 %v4201, %v4197
      %v4203 = vrot.slane %v4202, 4
      %v4205 = vshll.u32 %v4034, 16
      %v4207 = vrot.slane %v4205, 5
      %v4208 = vsel %vm1031, %v4203, %v4207
      %v4210 = vshrl.u32 %v4035, 16
      %v4212 = vrot.slane %v4210, 4
      %v4213 = vshll.u32 %v4035, 16
      %v4215 = vrot.slane %v4213, 5
      %v4216 = vor.u32 %v4212, %v4215
      %v4217 = vrot.slane %v4216, 4
      %v4219 = vshll.u32 %v4036, 16
      %v4221 = vrot.slane %v4219, 5
      %v4222 = vsel %vm1031, %v4217, %v4221
      %v4223 = vshrl.u32 %v4036, 16
      %v4225 = vrot.slane %v4223, 4
      %v4226 = vor.u32 %v4225, %v4221
      %v4227 = vrot.slane %v4226, 4
      %v4229 = vshll.u32 %v4037, 16
      %v4231 = vrot.slane %v4229, 5
      %v4232 = vsel %vm1031, %v4227, %v4231
      %v4234 = vshrl.u32 %v4038, 16
      %v4236 = vrot.slane %v4234, 4
      %v4237 = vshll.u32 %v4038, 16
      %v4239 = vrot.slane %v4237, 5
      %v4240 = vor.u32 %v4236, %v4239
      %v4241 = vrot.slane %v4240, 4
      %v4243 = vshll.u32 %v4039, 16
      %v4245 = vrot.slane %v4243, 5
      %v4246 = vsel %vm1031, %v4241, %v4245
      %v4247 = vshrl.u32 %v4039, 16
      %v4249 = vrot.slane %v4247, 4
      %v4250 = vor.u32 %v4249, %v4245
      %v4251 = vrot.slane %v4250, 4
      %v4253 = vshll.u32 %v4040, 16
      %v4255 = vrot.slane %v4253, 5
      %v4256 = vsel %vm1031, %v4251, %v4255
      %v4258 = vshrl.u32 %v4041, 16
      %v4260 = vrot.slane %v4258, 4
      %v4261 = vshll.u32 %v4041, 16
      %v4263 = vrot.slane %v4261, 5
      %v4264 = vor.u32 %v4260, %v4263
      %v4265 = vrot.slane %v4264, 4
      %v4267 = vshll.u32 %v4042, 16
      %v4269 = vrot.slane %v4267, 5
      %v4270 = vsel %vm1031, %v4265, %v4269
      %v4271 = vshrl.u32 %v4042, 16
      %v4273 = vrot.slane %v4271, 4
      %v4274 = vor.u32 %v4273, %v4269
      %v4275 = vrot.slane %v4274, 4
      %v4277 = vshll.u32 %v4043, 16
      %v4279 = vrot.slane %v4277, 5
      %v4280 = vsel %vm1031, %v4275, %v4279
      %v4282 = vshrl.u32 %v4044, 16
      %v4284 = vrot.slane %v4282, 4
      %v4285 = vshll.u32 %v4044, 16
      %v4287 = vrot.slane %v4285, 5
      %v4288 = vor.u32 %v4284, %v4287
      %v4289 = vrot.slane %v4288, 4
      %v4291 = vshll.u32 %v4045, 16
      %v4293 = vrot.slane %v4291, 5
      %v4294 = vsel %vm1031, %v4289, %v4293
      %v4295 = vshrl.u32 %v4045, 16
      %v4297 = vrot.slane %v4295, 4
      %v4298 = vor.u32 %v4297, %v4293
      %v4299 = vrot.slane %v4298, 4
      %v4301 = vshll.u32 %v4046, 16
      %v4303 = vrot.slane %v4301, 5
      %v4304 = vsel %vm1031, %v4299, %v4303
      %v4306 = vshrl.u32 %v4047, 16
      %v4308 = vrot.slane %v4306, 4
      %v4309 = vshll.u32 %v4047, 16
      %v4311 = vrot.slane %v4309, 5
      %v4312 = vor.u32 %v4308, %v4311
      %v4313 = vrot.slane %v4312, 4
      %v4315 = vshll.u32 %v4048, 16
      %v4317 = vrot.slane %v4315, 5
      %v4318 = vsel %vm1031, %v4313, %v4317
      %v4319 = vshrl.u32 %v4048, 16
      %v4321 = vrot.slane %v4319, 4
      %v4322 = vor.u32 %v4321, %v4317
      %v4323 = vrot.slane %v4322, 4
      %v4325 = vshll.u32 %v4049, 16
      %v4327 = vrot.slane %v4325, 5
      %v4328 = vsel %vm1031, %v4323, %v4327
      %v4330 = vshrl.u32 %v4050, 16
      %v4332 = vrot.slane %v4330, 4
      %v4333 = vshll.u32 %v4050, 16
      %v4335 = vrot.slane %v4333, 5
      %v4336 = vor.u32 %v4332, %v4335
      %v4337 = vrot.slane %v4336, 4
      %v4339 = vshll.u32 %v4051, 16
      %v4341 = vrot.slane %v4339, 5
      %v4342 = vsel %vm1031, %v4337, %v4341
      %v4343 = vshrl.u32 %v4051, 16
      %v4345 = vrot.slane %v4343, 4
      %v4346 = vor.u32 %v4345, %v4341
      %v4347 = vrot.slane %v4346, 4
      %v4349 = vshll.u32 %v4052, 16
      %v4351 = vrot.slane %v4349, 5
      %v4352 = vsel %vm1031, %v4347, %v4351
      %v4354 = vshrl.u32 %v4053, 16
      %v4356 = vrot.slane %v4354, 4
      %v4357 = vshll.u32 %v4053, 16
      %v4359 = vrot.slane %v4357, 5
      %v4360 = vor.u32 %v4356, %v4359
      %v4361 = vrot.slane %v4360, 4
      %v4363 = vshll.u32 %v4054, 16
      %v4365 = vrot.slane %v4363, 5
      %v4366 = vsel %vm1031, %v4361, %v4365
      %v4367 = vshrl.u32 %v4054, 16
      %v4369 = vrot.slane %v4367, 4
      %v4370 = vor.u32 %v4369, %v4365
      %v4371 = vrot.slane %v4370, 4
      %v4373 = vshll.u32 %v4055, 16
      %v4375 = vrot.slane %v4373, 5
      %v4376 = vsel %vm1031, %v4371, %v4375
      %v4378 = vshrl.u32 %v4056, 16
      %v4380 = vrot.slane %v4378, 4
      %v4381 = vshll.u32 %v4056, 16
      %v4383 = vrot.slane %v4381, 5
      %v4384 = vor.u32 %v4380, %v4383
      %v4385 = vrot.slane %v4384, 4
      %v4387 = vshll.u32 %v4057, 16
      %v4389 = vrot.slane %v4387, 5
      %v4390 = vsel %vm1031, %v4385, %v4389
      %v4391 = vshrl.u32 %v4057, 16
      %v4393 = vrot.slane %v4391, 4
      %v4394 = vor.u32 %v4393, %v4389
      %v4395 = vrot.slane %v4394, 4
      %v4397 = vshll.u32 %v4058, 16
      %v4399 = vrot.slane %v4397, 5
      %v4400 = vsel %vm1031, %v4395, %v4399
      %v4402 = vshrl.u32 %v4059, 16
      %v4404 = vrot.slane %v4402, 4
      %v4405 = vshll.u32 %v4059, 16
      %v4407 = vrot.slane %v4405, 5
      %v4408 = vor.u32 %v4404, %v4407
      %v4409 = vrot.slane %v4408, 4
      %v4411 = vshll.u32 %v4060, 16
      %v4413 = vrot.slane %v4411, 5
      %v4414 = vsel %vm1031, %v4409, %v4413
      %v4415 = vshrl.u32 %v4060, 16
      %v4417 = vrot.slane %v4415, 4
      %v4418 = vor.u32 %v4417, %v4413
      %v4419 = vrot.slane %v4418, 4
      %v4421 = vshll.u32 %v4061, 16
      %v4423 = vrot.slane %v4421, 5
      %v4424 = vsel %vm1031, %v4419, %v4423
      %v4426 = vshrl.u32 %v4062, 16
      %v4428 = vrot.slane %v4426, 4
      %v4429 = vshll.u32 %v4062, 16
      %v4431 = vrot.slane %v4429, 5
      %v4432 = vor.u32 %v4428, %v4431
      %v4433 = vrot.slane %v4432, 4
      %v4435 = vshll.u32 %v4063, 16
      %v4437 = vrot.slane %v4435, 5
      %v4438 = vsel %vm1031, %v4433, %v4437
      %v4439 = vshrl.u32 %v4063, 16
      %v4441 = vrot.slane %v4439, 4
      %v4442 = vor.u32 %v4441, %v4437
      %v4443 = vrot.slane %v4442, 4
      %v4445 = vshll.u32 %v4064, 16
      %v4447 = vrot.slane %v4445, 5
      %v4448 = vsel %vm1031, %v4443, %v4447
      %s4449 = scalar_lea.vmem %s1, 448
      %v4450 = vld [vmem:[%s4449] sm:$0xf]
      %v4451 = vld [vmem:[%s4449 + $0x4] sm:$0xf]
      %v4452 = vld [vmem:[%s4449 + $0x8] sm:$0xf]
      %v4453 = vld [vmem:[%s4449 + $0xc] sm:$0xf]
      %v4454 = vld [vmem:[%s4449 + $0x10] sm:$0xf]
      %v4455 = vld [vmem:[%s4449 + $0x14] sm:$0xf]
      %v4456 = vld [vmem:[%s4449 + $0x18] sm:$0xf]
      %v4457 = vld [vmem:[%s4449 + $0x1c] sm:$0xf]
      %v4458 = vld [vmem:[%s4449 + $0x20] sm:$0xf]
      %v4459 = vld [vmem:[%s4449 + $0x24] sm:$0xf]
      %v4460 = vld [vmem:[%s4449 + $0x28] sm:$0xf]
      %v4461 = vld [vmem:[%s4449 + $0x2c] sm:$0xf]
      %v4462 = vld [vmem:[%s4449 + $0x30] sm:$0xf]
      %v4463 = vld [vmem:[%s4449 + $0x34] sm:$0xf]
      %v4464 = vld [vmem:[%s4449 + $0x38] sm:$0xf]
      %v4465 = vld [vmem:[%s4449 + $0x3c] sm:$0xf]
      %v4466 = vunpack.c.l.b16 %v4078
      %v4467 = vunpack.c.l.b16 %v4088
      %v4468 = vunpack.c.l.b16 %v4102
      %v4469 = vunpack.c.l.b16 %v4112
      %v4470 = vunpack.c.l.b16 %v4126
      %v4471 = vunpack.c.l.b16 %v4136
      %v4472 = vunpack.c.l.b16 %v4150
      %v4473 = vunpack.c.l.b16 %v4160
      %v4474 = vunpack.c.l.b16 %v4174
      %v4475 = vunpack.c.l.b16 %v4184
      %v4476 = vunpack.c.l.b16 %v4198
      %v4477 = vunpack.c.l.b16 %v4208
      %v4478 = vunpack.c.l.b16 %v4222
      %v4479 = vunpack.c.l.b16 %v4232
      %v4480 = vunpack.c.l.b16 %v4246
      %v4481 = vunpack.c.l.b16 %v4256
      %v4482 = vunpack.c.l.b16 %v4270
      %v4483 = vunpack.c.l.b16 %v4280
      %v4484 = vunpack.c.l.b16 %v4294
      %v4485 = vunpack.c.l.b16 %v4304
      %v4486 = vunpack.c.l.b16 %v4318
      %v4487 = vunpack.c.l.b16 %v4328
      %v4488 = vunpack.c.l.b16 %v4342
      %v4489 = vunpack.c.l.b16 %v4352
      %v4490 = vunpack.c.l.b16 %v4366
      %v4491 = vunpack.c.l.b16 %v4376
      %v4492 = vunpack.c.l.b16 %v4390
      %v4493 = vunpack.c.l.b16 %v4400
      %v4494 = vunpack.c.l.b16 %v4414
      %v4495 = vunpack.c.l.b16 %v4424
      %v4496 = vunpack.c.l.b16 %v4438
      %v4497 = vunpack.c.l.b16 %v4448
      %v4498 = vpack.c.b16 %v4467, %v4466
      %v4499 = vpack.c.b16 %v4469, %v4468
      %v4500 = vpack.c.b16 %v4471, %v4470
      %v4501 = vpack.c.b16 %v4473, %v4472
      %v4502 = vpack.c.b16 %v4475, %v4474
      %v4503 = vpack.c.b16 %v4477, %v4476
      %v4504 = vpack.c.b16 %v4479, %v4478
      %v4505 = vpack.c.b16 %v4481, %v4480
      %v4506 = vpack.c.b16 %v4483, %v4482
      %v4507 = vpack.c.b16 %v4485, %v4484
      %v4508 = vpack.c.b16 %v4487, %v4486
      %v4509 = vpack.c.b16 %v4489, %v4488
      %v4510 = vpack.c.b16 %v4491, %v4490
      %v4511 = vpack.c.b16 %v4493, %v4492
      %v4512 = vpack.c.b16 %v4495, %v4494
      %v4513 = vpack.c.b16 %v4497, %v4496
      %v4546 = vunpack.c.l.b16 %v4450
      %v4547 = vunpack.c.l.b16 %v4451
      %v4548 = vunpack.c.l.b16 %v4452
      %v4549 = vunpack.c.l.b16 %v4453
      %v4550 = vunpack.c.l.b16 %v4454
      %v4551 = vunpack.c.l.b16 %v4455
      %v4552 = vunpack.c.l.b16 %v4456
      %v4553 = vunpack.c.l.b16 %v4457
      %v4554 = vunpack.c.l.b16 %v4458
      %v4555 = vunpack.c.l.b16 %v4459
      %v4556 = vunpack.c.l.b16 %v4460
      %v4557 = vunpack.c.l.b16 %v4461
      %v4558 = vunpack.c.l.b16 %v4462
      %v4559 = vunpack.c.l.b16 %v4463
      %v4560 = vunpack.c.l.b16 %v4464
      %v4561 = vunpack.c.l.b16 %v4465
      %v4562 = vpack.c.b16 %v4547, %v4546
      %v4563 = vpack.c.b16 %v4549, %v4548
      %v4564 = vpack.c.b16 %v4551, %v4550
      %v4565 = vpack.c.b16 %v4553, %v4552
      %v4566 = vpack.c.b16 %v4555, %v4554
      %v4567 = vpack.c.b16 %v4557, %v4556
      %v4568 = vpack.c.b16 %v4559, %v4558
      %v4569 = vpack.c.b16 %v4561, %v4560
      %4578 = vmatpush.bf16.msra.mxu0 %v4569
      %4579 = vmatpush.bf16.msra.mxu0 %v4568
      %4580 = vmatpush.bf16.msra.mxu0 %v4567
      %4581 = vmatpush.bf16.msra.mxu0 %v4566
      %4582 = vmatpush.bf16.msra.mxu0 %v4565
      %4583 = vmatpush.bf16.msra.mxu0 %v4564
      %4584 = vmatpush.bf16.msra.mxu0 %v4563
      %4585 = vmatpush.bf16.msra.mxu0 %v4562
      %4586 = vmatmul.bf16.gmra.mxu0 %v4498
      %v4587 = vpop.f32.mrf.mxu0
      %v4588 = vadd.f32 0.0, %v4587
      %v4589 = vpop.f32.mrf.mxu0
      %v4590 = vadd.f32 0.0, %v4589
      %4591 = vmatmul.bf16.gmra.mxu0 %v4499
      %v4592 = vpop.f32.mrf.mxu0
      %v4593 = vadd.f32 0.0, %v4592
      %v4594 = vpop.f32.mrf.mxu0
      %v4595 = vadd.f32 0.0, %v4594
      %4596 = vmatmul.bf16.gmra.mxu0 %v4500
      %v4597 = vpop.f32.mrf.mxu0
      %v4598 = vadd.f32 0.0, %v4597
      %v4599 = vpop.f32.mrf.mxu0
      %v4600 = vadd.f32 0.0, %v4599
      %4601 = vmatmul.bf16.gmra.mxu0 %v4501
      %v4602 = vpop.f32.mrf.mxu0
      %v4603 = vadd.f32 0.0, %v4602
      %v4604 = vpop.f32.mrf.mxu0
      %v4605 = vadd.f32 0.0, %v4604
      %4606 = vmatmul.bf16.gmra.mxu0 %v4502
      %v4607 = vpop.f32.mrf.mxu0
      %v4608 = vadd.f32 0.0, %v4607
      %v4609 = vpop.f32.mrf.mxu0
      %v4610 = vadd.f32 0.0, %v4609
      %4611 = vmatmul.bf16.gmra.mxu0 %v4503
      %v4612 = vpop.f32.mrf.mxu0
      %v4613 = vadd.f32 0.0, %v4612
      %v4614 = vpop.f32.mrf.mxu0
      %v4615 = vadd.f32 0.0, %v4614
      %4616 = vmatmul.bf16.gmra.mxu0 %v4504
      %v4617 = vpop.f32.mrf.mxu0
      %v4618 = vadd.f32 0.0, %v4617
      %v4619 = vpop.f32.mrf.mxu0
      %v4620 = vadd.f32 0.0, %v4619
      %4621 = vmatmul.bf16.gmra.mxu0 %v4505
      %v4622 = vpop.f32.mrf.mxu0
      %v4623 = vadd.f32 0.0, %v4622
      %v4624 = vpop.f32.mrf.mxu0
      %v4625 = vadd.f32 0.0, %v4624
      %4626 = vmatmul.bf16.gmra.mxu0 %v4506
      %v4627 = vpop.f32.mrf.mxu0
      %v4628 = vadd.f32 0.0, %v4627
      %v4629 = vpop.f32.mrf.mxu0
      %v4630 = vadd.f32 0.0, %v4629
      %4631 = vmatmul.bf16.gmra.mxu0 %v4507
      %v4632 = vpop.f32.mrf.mxu0
      %v4633 = vadd.f32 0.0, %v4632
      %v4634 = vpop.f32.mrf.mxu0
      %v4635 = vadd.f32 0.0, %v4634
      %4636 = vmatmul.bf16.gmra.mxu0 %v4508
      %v4637 = vpop.f32.mrf.mxu0
      %v4638 = vadd.f32 0.0, %v4637
      %v4639 = vpop.f32.mrf.mxu0
      %v4640 = vadd.f32 0.0, %v4639
      %4641 = vmatmul.bf16.gmra.mxu0 %v4509
      %v4642 = vpop.f32.mrf.mxu0
      %v4643 = vadd.f32 0.0, %v4642
      %v4644 = vpop.f32.mrf.mxu0
      %v4645 = vadd.f32 0.0, %v4644
      %4646 = vmatmul.bf16.gmra.mxu0 %v4510
      %v4647 = vpop.f32.mrf.mxu0
      %v4648 = vadd.f32 0.0, %v4647
      %v4649 = vpop.f32.mrf.mxu0
      %v4650 = vadd.f32 0.0, %v4649
      %4651 = vmatmul.bf16.gmra.mxu0 %v4511
      %v4652 = vpop.f32.mrf.mxu0
      %v4653 = vadd.f32 0.0, %v4652
      %v4654 = vpop.f32.mrf.mxu0
      %v4655 = vadd.f32 0.0, %v4654
      %4656 = vmatmul.bf16.gmra.mxu0 %v4512
      %v4657 = vpop.f32.mrf.mxu0
      %v4658 = vadd.f32 0.0, %v4657
      %v4659 = vpop.f32.mrf.mxu0
      %v4660 = vadd.f32 0.0, %v4659
      %4661 = vmatmul.bf16.gmra.mxu0 %v4513
      %v4662 = vpop.f32.mrf.mxu0
      %v4663 = vadd.f32 0.0, %v4662
      %v4664 = vpop.f32.mrf.mxu0
      %v4665 = vadd.f32 0.0, %v4664
      %4666 = vdwg.mxu0
      %v4667 = vadd.f32 %v3985, %v4588
      %v4668 = vadd.f32 %v3986, %v4590
      %v4669 = vadd.f32 %v3987, %v4593
      %v4670 = vadd.f32 %v3988, %v4595
      %v4671 = vadd.f32 %v3989, %v4598
      %v4672 = vadd.f32 %v3990, %v4600
      %v4673 = vadd.f32 %v3991, %v4603
      %v4674 = vadd.f32 %v3992, %v4605
      %v4675 = vadd.f32 %v3993, %v4608
      %v4676 = vadd.f32 %v3994, %v4610
      %v4677 = vadd.f32 %v3995, %v4613
      %v4678 = vadd.f32 %v3996, %v4615
      %v4679 = vadd.f32 %v3997, %v4618
      %v4680 = vadd.f32 %v3998, %v4620
      %v4681 = vadd.f32 %v3999, %v4623
      %v4682 = vadd.f32 %v4000, %v4625
      %v4683 = vadd.f32 %v4001, %v4628
      %v4684 = vadd.f32 %v4002, %v4630
      %v4685 = vadd.f32 %v4003, %v4633
      %v4686 = vadd.f32 %v4004, %v4635
      %v4687 = vadd.f32 %v4005, %v4638
      %v4688 = vadd.f32 %v4006, %v4640
      %v4689 = vadd.f32 %v4007, %v4643
      %v4690 = vadd.f32 %v4008, %v4645
      %v4691 = vadd.f32 %v4009, %v4648
      %v4692 = vadd.f32 %v4010, %v4650
      %v4693 = vadd.f32 %v4011, %v4653
      %v4694 = vadd.f32 %v4012, %v4655
      %v4695 = vadd.f32 %v4013, %v4658
      %v4696 = vadd.f32 %v4014, %v4660
      %v4697 = vadd.f32 %v4015, %v4663
      %v4698 = vadd.f32 %v4016, %v4665
      %v4699 = vld [vmem:[%s3702] sm:$0xe]
      %v4700 = vld [vmem:[%s3702 + $0xc] sm:$0xe]
      %v4701 = vld [vmem:[%s3702 + $0x18] sm:$0xe]
      %v4702 = vld [vmem:[%s3702 + $0x24] sm:$0xe]
      %v4703 = vld [vmem:[%s3702 + $0x30] sm:$0xe]
      %v4704 = vld [vmem:[%s3702 + $0x3c] sm:$0xe]
      %v4705 = vld [vmem:[%s3702 + $0x48] sm:$0xe]
      %v4706 = vld [vmem:[%s3702 + $0x54] sm:$0xe]
      %v4707 = vld [vmem:[%s3702 + $0x60] sm:$0xe]
      %v4708 = vld [vmem:[%s3702 + $0x6c] sm:$0xe]
      %v4709 = vld [vmem:[%s3702 + $0x78] sm:$0xe]
      %v4710 = vld [vmem:[%s3702 + $0x84] sm:$0xe]
      %v4711 = vld [vmem:[%s3702 + $0x90] sm:$0xe]
      %v4712 = vld [vmem:[%s3702 + $0x9c] sm:$0xe]
      %v4713 = vld [vmem:[%s3702 + $0xa8] sm:$0xe]
      %v4714 = vld [vmem:[%s3702 + $0xb4] sm:$0xe]
      %v4763 = vrot.slane %v4699, 5
      %v4764 = vrot.slane %v4763, 4
      %v4765 = vrot.slane %v4018, 5
      %v4766 = vsel %vm1917, %v4764, %v4765
      %v4767 = vrot.slane %v4765, 4
      %v4768 = vrot.slane %v4019, 5
      %v4769 = vsel %vm1917, %v4767, %v4768
      %v4770 = vrot.slane %v4700, 5
      %v4771 = vrot.slane %v4770, 4
      %v4772 = vrot.slane %v4021, 5
      %v4773 = vsel %vm1917, %v4771, %v4772
      %v4774 = vrot.slane %v4772, 4
      %v4775 = vrot.slane %v4022, 5
      %v4776 = vsel %vm1917, %v4774, %v4775
      %v4777 = vrot.slane %v4701, 5
      %v4778 = vrot.slane %v4777, 4
      %v4779 = vrot.slane %v4024, 5
      %v4780 = vsel %vm1917, %v4778, %v4779
      %v4781 = vrot.slane %v4779, 4
      %v4782 = vrot.slane %v4025, 5
      %v4783 = vsel %vm1917, %v4781, %v4782
      %v4784 = vrot.slane %v4702, 5
      %v4785 = vrot.slane %v4784, 4
      %v4786 = vrot.slane %v4027, 5
      %v4787 = vsel %vm1917, %v4785, %v4786
      %v4788 = vrot.slane %v4786, 4
      %v4789 = vrot.slane %v4028, 5
      %v4790 = vsel %vm1917, %v4788, %v4789
      %v4791 = vrot.slane %v4703, 5
      %v4792 = vrot.slane %v4791, 4
      %v4793 = vrot.slane %v4030, 5
      %v4794 = vsel %vm1917, %v4792, %v4793
      %v4795 = vrot.slane %v4793, 4
      %v4796 = vrot.slane %v4031, 5
      %v4797 = vsel %vm1917, %v4795, %v4796
      %v4798 = vrot.slane %v4704, 5
      %v4799 = vrot.slane %v4798, 4
      %v4800 = vrot.slane %v4033, 5
      %v4801 = vsel %vm1917, %v4799, %v4800
      %v4802 = vrot.slane %v4800, 4
      %v4803 = vrot.slane %v4034, 5
      %v4804 = vsel %vm1917, %v4802, %v4803
      %v4805 = vrot.slane %v4705, 5
      %v4806 = vrot.slane %v4805, 4
      %v4807 = vrot.slane %v4036, 5
      %v4808 = vsel %vm1917, %v4806, %v4807
      %v4809 = vrot.slane %v4807, 4
      %v4810 = vrot.slane %v4037, 5
      %v4811 = vsel %vm1917, %v4809, %v4810
      %v4812 = vrot.slane %v4706, 5
      %v4813 = vrot.slane %v4812, 4
      %v4814 = vrot.slane %v4039, 5
      %v4815 = vsel %vm1917, %v4813, %v4814
      %v4816 = vrot.slane %v4814, 4
      %v4817 = vrot.slane %v4040, 5
      %v4818 = vsel %vm1917, %v4816, %v4817
      %v4819 = vrot.slane %v4707, 5
      %v4820 = vrot.slane %v4819, 4
      %v4821 = vrot.slane %v4042, 5
      %v4822 = vsel %vm1917, %v4820, %v4821
      %v4823 = vrot.slane %v4821, 4
      %v4824 = vrot.slane %v4043, 5
      %v4825 = vsel %vm1917, %v4823, %v4824
      %v4826 = vrot.slane %v4708, 5
      %v4827 = vrot.slane %v4826, 4
      %v4828 = vrot.slane %v4045, 5
      %v4829 = vsel %vm1917, %v4827, %v4828
      %v4830 = vrot.slane %v4828, 4
      %v4831 = vrot.slane %v4046, 5
      %v4832 = vsel %vm1917, %v4830, %v4831
      %v4833 = vrot.slane %v4709, 5
      %v4834 = vrot.slane %v4833, 4
      %v4835 = vrot.slane %v4048, 5
      %v4836 = vsel %vm1917, %v4834, %v4835
      %v4837 = vrot.slane %v4835, 4
      %v4838 = vrot.slane %v4049, 5
      %v4839 = vsel %vm1917, %v4837, %v4838
      %v4840 = vrot.slane %v4710, 5
      %v4841 = vrot.slane %v4840, 4
      %v4842 = vrot.slane %v4051, 5
      %v4843 = vsel %vm1917, %v4841, %v4842
      %v4844 = vrot.slane %v4842, 4
      %v4845 = vrot.slane %v4052, 5
      %v4846 = vsel %vm1917, %v4844, %v4845
      %v4847 = vrot.slane %v4711, 5
      %v4848 = vrot.slane %v4847, 4
      %v4849 = vrot.slane %v4054, 5
      %v4850 = vsel %vm1917, %v4848, %v4849
      %v4851 = vrot.slane %v4849, 4
      %v4852 = vrot.slane %v4055, 5
      %v4853 = vsel %vm1917, %v4851, %v4852
      %v4854 = vrot.slane %v4712, 5
      %v4855 = vrot.slane %v4854, 4
      %v4856 = vrot.slane %v4057, 5
      %v4857 = vsel %vm1917, %v4855, %v4856
      %v4858 = vrot.slane %v4856, 4
      %v4859 = vrot.slane %v4058, 5
      %v4860 = vsel %vm1917, %v4858, %v4859
      %v4861 = vrot.slane %v4713, 5
      %v4862 = vrot.slane %v4861, 4
      %v4863 = vrot.slane %v4060, 5
      %v4864 = vsel %vm1917, %v4862, %v4863
      %v4865 = vrot.slane %v4863, 4
      %v4866 = vrot.slane %v4061, 5
      %v4867 = vsel %vm1917, %v4865, %v4866
      %v4868 = vrot.slane %v4714, 5
      %v4869 = vrot.slane %v4868, 4
      %v4870 = vrot.slane %v4063, 5
      %v4871 = vsel %vm1917, %v4869, %v4870
      %v4872 = vrot.slane %v4870, 4
      %v4873 = vrot.slane %v4064, 5
      %v4874 = vsel %vm1917, %v4872, %v4873
      %s4875 = scalar_lea.vmem %s1, 512
      %v4876 = vld [vmem:[%s4875] sm:$0xf]
      %v4877 = vld [vmem:[%s4875 + $0x4] sm:$0xf]
      %v4878 = vld [vmem:[%s4875 + $0x8] sm:$0xf]
      %v4879 = vld [vmem:[%s4875 + $0xc] sm:$0xf]
      %v4880 = vld [vmem:[%s4875 + $0x10] sm:$0xf]
      %v4881 = vld [vmem:[%s4875 + $0x14] sm:$0xf]
      %v4882 = vld [vmem:[%s4875 + $0x18] sm:$0xf]
      %v4883 = vld [vmem:[%s4875 + $0x1c] sm:$0xf]
      %v4884 = vld [vmem:[%s4875 + $0x20] sm:$0xf]
      %v4885 = vld [vmem:[%s4875 + $0x24] sm:$0xf]
      %v4886 = vld [vmem:[%s4875 + $0x28] sm:$0xf]
      %v4887 = vld [vmem:[%s4875 + $0x2c] sm:$0xf]
      %v4888 = vld [vmem:[%s4875 + $0x30] sm:$0xf]
      %v4889 = vld [vmem:[%s4875 + $0x34] sm:$0xf]
      %v4890 = vld [vmem:[%s4875 + $0x38] sm:$0xf]
      %v4891 = vld [vmem:[%s4875 + $0x3c] sm:$0xf]
      %v4892 = vunpack.c.l.b16 %v4766
      %v4893 = vunpack.c.l.b16 %v4769
      %v4894 = vunpack.c.l.b16 %v4773
      %v4895 = vunpack.c.l.b16 %v4776
      %v4896 = vunpack.c.l.b16 %v4780
      %v4897 = vunpack.c.l.b16 %v4783
      %v4898 = vunpack.c.l.b16 %v4787
      %v4899 = vunpack.c.l.b16 %v4790
      %v4900 = vunpack.c.l.b16 %v4794
      %v4901 = vunpack.c.l.b16 %v4797
      %v4902 = vunpack.c.l.b16 %v4801
      %v4903 = vunpack.c.l.b16 %v4804
      %v4904 = vunpack.c.l.b16 %v4808
      %v4905 = vunpack.c.l.b16 %v4811
      %v4906 = vunpack.c.l.b16 %v4815
      %v4907 = vunpack.c.l.b16 %v4818
      %v4908 = vunpack.c.l.b16 %v4822
      %v4909 = vunpack.c.l.b16 %v4825
      %v4910 = vunpack.c.l.b16 %v4829
      %v4911 = vunpack.c.l.b16 %v4832
      %v4912 = vunpack.c.l.b16 %v4836
      %v4913 = vunpack.c.l.b16 %v4839
      %v4914 = vunpack.c.l.b16 %v4843
      %v4915 = vunpack.c.l.b16 %v4846
      %v4916 = vunpack.c.l.b16 %v4850
      %v4917 = vunpack.c.l.b16 %v4853
      %v4918 = vunpack.c.l.b16 %v4857
      %v4919 = vunpack.c.l.b16 %v4860
      %v4920 = vunpack.c.l.b16 %v4864
      %v4921 = vunpack.c.l.b16 %v4867
      %v4922 = vunpack.c.l.b16 %v4871
      %v4923 = vunpack.c.l.b16 %v4874
      %v4924 = vpack.c.b16 %v4893, %v4892
      %v4925 = vpack.c.b16 %v4895, %v4894
      %v4926 = vpack.c.b16 %v4897, %v4896
      %v4927 = vpack.c.b16 %v4899, %v4898
      %v4928 = vpack.c.b16 %v4901, %v4900
      %v4929 = vpack.c.b16 %v4903, %v4902
      %v4930 = vpack.c.b16 %v4905, %v4904
      %v4931 = vpack.c.b16 %v4907, %v4906
      %v4932 = vpack.c.b16 %v4909, %v4908
      %v4933 = vpack.c.b16 %v4911, %v4910
      %v4934 = vpack.c.b16 %v4913, %v4912
      %v4935 = vpack.c.b16 %v4915, %v4914
      %v4936 = vpack.c.b16 %v4917, %v4916
      %v4937 = vpack.c.b16 %v4919, %v4918
      %v4938 = vpack.c.b16 %v4921, %v4920
      %v4939 = vpack.c.b16 %v4923, %v4922
      %v4972 = vunpack.c.l.b16 %v4876
      %v4973 = vunpack.c.l.b16 %v4877
      %v4974 = vunpack.c.l.b16 %v4878
      %v4975 = vunpack.c.l.b16 %v4879
      %v4976 = vunpack.c.l.b16 %v4880
      %v4977 = vunpack.c.l.b16 %v4881
      %v4978 = vunpack.c.l.b16 %v4882
      %v4979 = vunpack.c.l.b16 %v4883
      %v4980 = vunpack.c.l.b16 %v4884
      %v4981 = vunpack.c.l.b16 %v4885
      %v4982 = vunpack.c.l.b16 %v4886
      %v4983 = vunpack.c.l.b16 %v4887
      %v4984 = vunpack.c.l.b16 %v4888
      %v4985 = vunpack.c.l.b16 %v4889
      %v4986 = vunpack.c.l.b16 %v4890
      %v4987 = vunpack.c.l.b16 %v4891
      %v4988 = vpack.c.b16 %v4973, %v4972
      %v4989 = vpack.c.b16 %v4975, %v4974
      %v4990 = vpack.c.b16 %v4977, %v4976
      %v4991 = vpack.c.b16 %v4979, %v4978
      %v4992 = vpack.c.b16 %v4981, %v4980
      %v4993 = vpack.c.b16 %v4983, %v4982
      %v4994 = vpack.c.b16 %v4985, %v4984
      %v4995 = vpack.c.b16 %v4987, %v4986
      %5004 = vmatpush.bf16.msra.mxu0 %v4995
      %5005 = vmatpush.bf16.msra.mxu0 %v4994
      %5006 = vmatpush.bf16.msra.mxu0 %v4993
      %5007 = vmatpush.bf16.msra.mxu0 %v4992
      %5008 = vmatpush.bf16.msra.mxu0 %v4991
      %5009 = vmatpush.bf16.msra.mxu0 %v4990
      %5010 = vmatpush.bf16.msra.mxu0 %v4989
      %5011 = vmatpush.bf16.msra.mxu0 %v4988
      %5012 = vmatmul.bf16.gmra.mxu0 %v4924
      %v5013 = vpop.f32.mrf.mxu0
      %v5014 = vadd.f32 0.0, %v5013
      %v5015 = vpop.f32.mrf.mxu0
      %v5016 = vadd.f32 0.0, %v5015
      %5017 = vmatmul.bf16.gmra.mxu0 %v4925
      %v5018 = vpop.f32.mrf.mxu0
      %v5019 = vadd.f32 0.0, %v5018
      %v5020 = vpop.f32.mrf.mxu0
      %v5021 = vadd.f32 0.0, %v5020
      %5022 = vmatmul.bf16.gmra.mxu0 %v4926
      %v5023 = vpop.f32.mrf.mxu0
      %v5024 = vadd.f32 0.0, %v5023
      %v5025 = vpop.f32.mrf.mxu0
      %v5026 = vadd.f32 0.0, %v5025
      %5027 = vmatmul.bf16.gmra.mxu0 %v4927
      %v5028 = vpop.f32.mrf.mxu0
      %v5029 = vadd.f32 0.0, %v5028
      %v5030 = vpop.f32.mrf.mxu0
      %v5031 = vadd.f32 0.0, %v5030
      %5032 = vmatmul.bf16.gmra.mxu0 %v4928
      %v5033 = vpop.f32.mrf.mxu0
      %v5034 = vadd.f32 0.0, %v5033
      %v5035 = vpop.f32.mrf.mxu0
      %v5036 = vadd.f32 0.0, %v5035
      %5037 = vmatmul.bf16.gmra.mxu0 %v4929
      %v5038 = vpop.f32.mrf.mxu0
      %v5039 = vadd.f32 0.0, %v5038
      %v5040 = vpop.f32.mrf.mxu0
      %v5041 = vadd.f32 0.0, %v5040
      %5042 = vmatmul.bf16.gmra.mxu0 %v4930
      %v5043 = vpop.f32.mrf.mxu0
      %v5044 = vadd.f32 0.0, %v5043
      %v5045 = vpop.f32.mrf.mxu0
      %v5046 = vadd.f32 0.0, %v5045
      %5047 = vmatmul.bf16.gmra.mxu0 %v4931
      %v5048 = vpop.f32.mrf.mxu0
      %v5049 = vadd.f32 0.0, %v5048
      %v5050 = vpop.f32.mrf.mxu0
      %v5051 = vadd.f32 0.0, %v5050
      %5052 = vmatmul.bf16.gmra.mxu0 %v4932
      %v5053 = vpop.f32.mrf.mxu0
      %v5054 = vadd.f32 0.0, %v5053
      %v5055 = vpop.f32.mrf.mxu0
      %v5056 = vadd.f32 0.0, %v5055
      %5057 = vmatmul.bf16.gmra.mxu0 %v4933
      %v5058 = vpop.f32.mrf.mxu0
      %v5059 = vadd.f32 0.0, %v5058
      %v5060 = vpop.f32.mrf.mxu0
      %v5061 = vadd.f32 0.0, %v5060
      %5062 = vmatmul.bf16.gmra.mxu0 %v4934
      %v5063 = vpop.f32.mrf.mxu0
      %v5064 = vadd.f32 0.0, %v5063
      %v5065 = vpop.f32.mrf.mxu0
      %v5066 = vadd.f32 0.0, %v5065
      %5067 = vmatmul.bf16.gmra.mxu0 %v4935
      %v5068 = vpop.f32.mrf.mxu0
      %v5069 = vadd.f32 0.0, %v5068
      %v5070 = vpop.f32.mrf.mxu0
      %v5071 = vadd.f32 0.0, %v5070
      %5072 = vmatmul.bf16.gmra.mxu0 %v4936
      %v5073 = vpop.f32.mrf.mxu0
      %v5074 = vadd.f32 0.0, %v5073
      %v5075 = vpop.f32.mrf.mxu0
      %v5076 = vadd.f32 0.0, %v5075
      %5077 = vmatmul.bf16.gmra.mxu0 %v4937
      %v5078 = vpop.f32.mrf.mxu0
      %v5079 = vadd.f32 0.0, %v5078
      %v5080 = vpop.f32.mrf.mxu0
      %v5081 = vadd.f32 0.0, %v5080
      %5082 = vmatmul.bf16.gmra.mxu0 %v4938
      %v5083 = vpop.f32.mrf.mxu0
      %v5084 = vadd.f32 0.0, %v5083
      %v5085 = vpop.f32.mrf.mxu0
      %v5086 = vadd.f32 0.0, %v5085
      %5087 = vmatmul.bf16.gmra.mxu0 %v4939
      %v5088 = vpop.f32.mrf.mxu0
      %v5089 = vadd.f32 0.0, %v5088
      %v5090 = vpop.f32.mrf.mxu0
      %v5091 = vadd.f32 0.0, %v5090
      %5092 = vdwg.mxu0
      %v5093 = vadd.f32 %v4667, %v5014
      %v5094 = vadd.f32 %v4668, %v5016
      %v5095 = vadd.f32 %v4669, %v5019
      %v5096 = vadd.f32 %v4670, %v5021
      %v5097 = vadd.f32 %v4671, %v5024
      %v5098 = vadd.f32 %v4672, %v5026
      %v5099 = vadd.f32 %v4673, %v5029
      %v5100 = vadd.f32 %v4674, %v5031
      %v5101 = vadd.f32 %v4675, %v5034
      %v5102 = vadd.f32 %v4676, %v5036
      %v5103 = vadd.f32 %v4677, %v5039
      %v5104 = vadd.f32 %v4678, %v5041
      %v5105 = vadd.f32 %v4679, %v5044
      %v5106 = vadd.f32 %v4680, %v5046
      %v5107 = vadd.f32 %v4681, %v5049
      %v5108 = vadd.f32 %v4682, %v5051
      %v5109 = vadd.f32 %v4683, %v5054
      %v5110 = vadd.f32 %v4684, %v5056
      %v5111 = vadd.f32 %v4685, %v5059
      %v5112 = vadd.f32 %v4686, %v5061
      %v5113 = vadd.f32 %v4687, %v5064
      %v5114 = vadd.f32 %v4688, %v5066
      %v5115 = vadd.f32 %v4689, %v5069
      %v5116 = vadd.f32 %v4690, %v5071
      %v5117 = vadd.f32 %v4691, %v5074
      %v5118 = vadd.f32 %v4692, %v5076
      %v5119 = vadd.f32 %v4693, %v5079
      %v5120 = vadd.f32 %v4694, %v5081
      %v5121 = vadd.f32 %v4695, %v5084
      %v5122 = vadd.f32 %v4696, %v5086
      %v5123 = vadd.f32 %v4697, %v5089
      %v5124 = vadd.f32 %v4698, %v5091
      %v5125 = vpack.c.bf16 %v5093, %v5093
      %v5126 = vpack.c.bf16 %v5094, %v5094
      %v5127 = vpack.c.bf16 %v5095, %v5095
      %v5128 = vpack.c.bf16 %v5096, %v5096
      %v5129 = vpack.c.bf16 %v5097, %v5097
      %v5130 = vpack.c.bf16 %v5098, %v5098
      %v5131 = vpack.c.bf16 %v5099, %v5099
      %v5132 = vpack.c.bf16 %v5100, %v5100
      %v5133 = vpack.c.bf16 %v5101, %v5101
      %v5134 = vpack.c.bf16 %v5102, %v5102
      %v5135 = vpack.c.bf16 %v5103, %v5103
      %v5136 = vpack.c.bf16 %v5104, %v5104
      %v5137 = vpack.c.bf16 %v5105, %v5105
      %v5138 = vpack.c.bf16 %v5106, %v5106
      %v5139 = vpack.c.bf16 %v5107, %v5107
      %v5140 = vpack.c.bf16 %v5108, %v5108
      %v5141 = vpack.c.bf16 %v5109, %v5109
      %v5142 = vpack.c.bf16 %v5110, %v5110
      %v5143 = vpack.c.bf16 %v5111, %v5111
      %v5144 = vpack.c.bf16 %v5112, %v5112
      %v5145 = vpack.c.bf16 %v5113, %v5113
      %v5146 = vpack.c.bf16 %v5114, %v5114
      %v5147 = vpack.c.bf16 %v5115, %v5115
      %v5148 = vpack.c.bf16 %v5116, %v5116
      %v5149 = vpack.c.bf16 %v5117, %v5117
      %v5150 = vpack.c.bf16 %v5118, %v5118
      %v5151 = vpack.c.bf16 %v5119, %v5119
      %v5152 = vpack.c.bf16 %v5120, %v5120
      %v5153 = vpack.c.bf16 %v5121, %v5121
      %v5154 = vpack.c.bf16 %v5122, %v5122
      %v5155 = vpack.c.bf16 %v5123, %v5123
      %v5156 = vpack.c.bf16 %v5124, %v5124
      %5157 = vst [vmem:[%s262] sm:$0xf] %v5125
      %5158 = vst [vmem:[%s262 + $0x4] sm:$0xf] %v5126
      %5159 = vst [vmem:[%s262 + $0x8] sm:$0xf] %v5127
      %5160 = vst [vmem:[%s262 + $0xc] sm:$0xf] %v5128
      %5161 = vst [vmem:[%s262 + $0x10] sm:$0xf] %v5129
      %5162 = vst [vmem:[%s262 + $0x14] sm:$0xf] %v5130
      %5163 = vst [vmem:[%s262 + $0x18] sm:$0xf] %v5131
      %5164 = vst [vmem:[%s262 + $0x1c] sm:$0xf] %v5132
      %5165 = vst [vmem:[%s262 + $0x20] sm:$0xf] %v5133
      %5166 = vst [vmem:[%s262 + $0x24] sm:$0xf] %v5134
      %5167 = vst [vmem:[%s262 + $0x28] sm:$0xf] %v5135
      %5168 = vst [vmem:[%s262 + $0x2c] sm:$0xf] %v5136
      %5169 = vst [vmem:[%s262 + $0x30] sm:$0xf] %v5137
      %5170 = vst [vmem:[%s262 + $0x34] sm:$0xf] %v5138
      %5171 = vst [vmem:[%s262 + $0x38] sm:$0xf] %v5139
      %5172 = vst [vmem:[%s262 + $0x3c] sm:$0xf] %v5140
      %5173 = vst [vmem:[%s262 + $0x40] sm:$0xf] %v5141
      %5174 = vst [vmem:[%s262 + $0x44] sm:$0xf] %v5142
      %5175 = vst [vmem:[%s262 + $0x48] sm:$0xf] %v5143
      %5176 = vst [vmem:[%s262 + $0x4c] sm:$0xf] %v5144
      %5177 = vst [vmem:[%s262 + $0x50] sm:$0xf] %v5145
      %5178 = vst [vmem:[%s262 + $0x54] sm:$0xf] %v5146
      %5179 = vst [vmem:[%s262 + $0x58] sm:$0xf] %v5147
      %5180 = vst [vmem:[%s262 + $0x5c] sm:$0xf] %v5148
      %5181 = vst [vmem:[%s262 + $0x60] sm:$0xf] %v5149
      %5182 = vst [vmem:[%s262 + $0x64] sm:$0xf] %v5150
      %5183 = vst [vmem:[%s262 + $0x68] sm:$0xf] %v5151
      %5184 = vst [vmem:[%s262 + $0x6c] sm:$0xf] %v5152
      %5185 = vst [vmem:[%s262 + $0x70] sm:$0xf] %v5153
      %5186 = vst [vmem:[%s262 + $0x74] sm:$0xf] %v5154
      %5187 = vst [vmem:[%s262 + $0x78] sm:$0xf] %v5155
      %5188 = vst [vmem:[%s262 + $0x7c] sm:$0xf] %v5156
      %v5189 = vadd.f32 %v5093, %v5094
      %v5190 = vadd.f32 %v5189, %v5095
      %v5191 = vadd.f32 %v5190, %v5096
      %v5192 = vadd.f32 %v5191, %v5097
      %v5193 = vadd.f32 %v5192, %v5098
      %v5194 = vadd.f32 %v5193, %v5099
      %v5195 = vadd.f32 %v5194, %v5100
      %v5196 = vadd.f32 %v5195, %v5101
      %v5197 = vadd.f32 %v5196, %v5102
      %v5198 = vadd.f32 %v5197, %v5103
      %v5199 = vadd.f32 %v5198, %v5104
      %v5200 = vadd.f32 %v5199, %v5105
      %v5201 = vadd.f32 %v5200, %v5106
      %v5202 = vadd.f32 %v5201, %v5107
      %v5203 = vadd.f32 %v5202, %v5108
      %v5204 = vadd.f32 %v5203, %v5109
      %v5205 = vadd.f32 %v5204, %v5110
      %v5206 = vadd.f32 %v5205, %v5111
      %v5207 = vadd.f32 %v5206, %v5112
      %v5208 = vadd.f32 %v5207, %v5113
      %v5209 = vadd.f32 %v5208, %v5114
      %v5210 = vadd.f32 %v5209, %v5115
      %v5211 = vadd.f32 %v5210, %v5116
      %v5212 = vadd.f32 %v5211, %v5117
      %v5213 = vadd.f32 %v5212, %v5118
      %v5214 = vadd.f32 %v5213, %v5119
      %v5215 = vadd.f32 %v5214, %v5120
      %v5216 = vadd.f32 %v5215, %v5121
      %v5217 = vadd.f32 %v5216, %v5122
      %v5218 = vadd.f32 %v5217, %v5123
      %v5219 = vadd.f32 %v5218, %v5124
      %v5220 = vrot.slane %v5219, 4
      %v5221 = vadd.f32 %v5219, %v5220
      %v5222 = vrot.slane %v5221, 2
      %v5223 = vadd.f32 %v5221, %v5222
      %v5224 = vrot.slane %v5223, 1
      %v5225 = vadd.f32 %v5223, %v5224
      %5226 = vst [vmem:[%s265] sm:$0x1] %v5225
      %v5227 = vmul.f32 %v5093, %v5093
      %v5228 = vmul.f32 %v5094, %v5094
      %v5229 = vmul.f32 %v5095, %v5095
      %v5230 = vmul.f32 %v5096, %v5096
      %v5231 = vmul.f32 %v5097, %v5097
      %v5232 = vmul.f32 %v5098, %v5098
      %v5233 = vmul.f32 %v5099, %v5099
      %v5234 = vmul.f32 %v5100, %v5100
      %v5235 = vmul.f32 %v5101, %v5101
      %v5236 = vmul.f32 %v5102, %v5102
      %v5237 = vmul.f32 %v5103, %v5103
      %v5238 = vmul.f32 %v5104, %v5104
      %v5239 = vmul.f32 %v5105, %v5105
      %v5240 = vmul.f32 %v5106, %v5106
      %v5241 = vmul.f32 %v5107, %v5107
      %v5242 = vmul.f32 %v5108, %v5108
      %v5243 = vmul.f32 %v5109, %v5109
      %v5244 = vmul.f32 %v5110, %v5110
      %v5245 = vmul.f32 %v5111, %v5111
      %v5246 = vmul.f32 %v5112, %v5112
      %v5247 = vmul.f32 %v5113, %v5113
      %v5248 = vmul.f32 %v5114, %v5114
      %v5249 = vmul.f32 %v5115, %v5115
      %v5250 = vmul.f32 %v5116, %v5116
      %v5251 = vmul.f32 %v5117, %v5117
      %v5252 = vmul.f32 %v5118, %v5118
      %v5253 = vmul.f32 %v5119, %v5119
      %v5254 = vmul.f32 %v5120, %v5120
      %v5255 = vmul.f32 %v5121, %v5121
      %v5256 = vmul.f32 %v5122, %v5122
      %v5257 = vmul.f32 %v5123, %v5123
      %v5258 = vmul.f32 %v5124, %v5124
      %v5259 = vadd.f32 %v5227, %v5228
      %v5260 = vadd.f32 %v5259, %v5229
      %v5261 = vadd.f32 %v5260, %v5230
      %v5262 = vadd.f32 %v5261, %v5231
      %v5263 = vadd.f32 %v5262, %v5232
      %v5264 = vadd.f32 %v5263, %v5233
      %v5265 = vadd.f32 %v5264, %v5234
      %v5266 = vadd.f32 %v5265, %v5235
      %v5267 = vadd.f32 %v5266, %v5236
      %v5268 = vadd.f32 %v5267, %v5237
      %v5269 = vadd.f32 %v5268, %v5238
      %v5270 = vadd.f32 %v5269, %v5239
      %v5271 = vadd.f32 %v5270, %v5240
      %v5272 = vadd.f32 %v5271, %v5241
      %v5273 = vadd.f32 %v5272, %v5242
      %v5274 = vadd.f32 %v5273, %v5243
      %v5275 = vadd.f32 %v5274, %v5244
      %v5276 = vadd.f32 %v5275, %v5245
      %v5277 = vadd.f32 %v5276, %v5246
      %v5278 = vadd.f32 %v5277, %v5247
      %v5279 = vadd.f32 %v5278, %v5248
      %v5280 = vadd.f32 %v5279, %v5249
      %v5281 = vadd.f32 %v5280, %v5250
      %v5282 = vadd.f32 %v5281, %v5251
      %v5283 = vadd.f32 %v5282, %v5252
      %v5284 = vadd.f32 %v5283, %v5253
      %v5285 = vadd.f32 %v5284, %v5254
      %v5286 = vadd.f32 %v5285, %v5255
      %v5287 = vadd.f32 %v5286, %v5256
      %v5288 = vadd.f32 %v5287, %v5257
      %v5289 = vadd.f32 %v5288, %v5258
      %v5290 = vrot.slane %v5289, 4
      %v5291 = vadd.f32 %v5289, %v5290
      %v5292 = vrot.slane %v5291, 2
      %v5293 = vadd.f32 %v5291, %v5292
      %v5294 = vrot.slane %v5293, 1
      %v5295 = vadd.f32 %v5293, %v5294
      %5296 = vst [vmem:[%s268] sm:$0x1] %v5295
      %p5297 = scmp.lt.s32.totalorder %s18, 1
      %s5298 = scalar_select %p5297, %s18, 1
      %s5299 = smul.addr %s5298, 32
      %s5300 = smul.addr %s5299, 4
      %s5301 = scalar_lea.vmem %s4, %s5300
      %p5302 = scmp.lt.s32.totalorder %s18, 1
      %s5303 = scalar_select %p5302, %s18, 1
      %s5304 = scalar_lea.vmem %s5, %s5303
      %p5305 = scmp.lt.s32.totalorder %s18, 1
      %s5306 = scalar_select %p5305, %s18, 1
      %s5307 = scalar_lea.vmem %s6, %s5306
      // Predicated region
      $region37: #{basic_block_meta_forward.4} parent=35 // pred_check
        %p5308 = pneg %p125
      $region38: #{basic_block_meta_forward.4} parent=35 // pred_check_branch
        %5310 = sbr.rel (%p5308) target = $region40
      $region39: #{basic_block_meta_forward.4} parent=35 // pred_region
        _
      $region40: #{basic_block_meta_forward.4} parent=35 // pred_fallthru
        _
      // Predicated region
      $region41: #{basic_block_meta_forward.4} parent=35 // pred_check
        %p5311 = pneg %p151
      $region42: #{basic_block_meta_forward.4} parent=35 // pred_check_branch
        %5313 = sbr.rel (%p5311) target = $region44
      $region43: #{basic_block_meta_forward.4} parent=35 // pred_region
        _
      $region44: #{basic_block_meta_forward.4} parent=35 // pred_fallthru
        _
      // Predicated region
      $region45: #{basic_block_meta_forward.4} parent=35 // pred_check
        %p5314 = pneg %p177
      $region46: #{basic_block_meta_forward.4} parent=35 // pred_check_branch
        %5316 = sbr.rel (%p5314) target = $region48
      $region47: #{basic_block_meta_forward.4} parent=35 // pred_region
        _
      $region48: #{basic_block_meta_forward.4} parent=35 // pred_fallthru
        _
    $region36: #{basic_block_meta_forward.4} parent=5 // pred_fallthru
      _
    %p5317 = scmp.le.s32.totalorder 2, %s13
    // Predicated region
    $region49: #{basic_block_meta_forward.4} parent=5 // pred_check
      %p5318 = pneg %p5317
    $region50: #{basic_block_meta_forward.4} parent=5 // pred_check_branch
      %5320 = sbr.rel (%p5318) target = $region52
    $region51: #{basic_block_meta_forward.4} parent=5 // pred_region
      %s5321 = ssub.s32 %s13, 2
      // Predicated region
      $region53: #{basic_block_meta_forward.4} parent=51 // pred_check
        %p5322 = pneg %p131
      $region54: #{basic_block_meta_forward.4} parent=51 // pred_check_branch
        %5324 = sbr.rel (%p5322) target = $region56
      $region55: #{basic_block_meta_forward.4} parent=51 // pred_region
        %p5325 = scmp.lt.s32.totalorder %s19, 1
        %s5326 = scalar_select %p5325, %s19, 1
        %s5327 = smul.addr %s5326, 32
        %s5328 = smul.addr %s5327, 4
        %s5329 = scalar_lea.vmem %s4, %s5328
      $region56: #{basic_block_meta_forward.4} parent=51 // pred_fallthru
        _
      // Predicated region
      $region57: #{basic_block_meta_forward.4} parent=51 // pred_check
        %p5330 = pneg %p157
      $region58: #{basic_block_meta_forward.4} parent=51 // pred_check_branch
        %5332 = sbr.rel (%p5330) target = $region60
      $region59: #{basic_block_meta_forward.4} parent=51 // pred_region
        %p5333 = scmp.lt.s32.totalorder %s19, 1
        %s5334 = scalar_select %p5333, %s19, 1
        %s5335 = scalar_lea.vmem %s5, %s5334
      $region60: #{basic_block_meta_forward.4} parent=51 // pred_fallthru
        _
      // Predicated region
      $region61: #{basic_block_meta_forward.4} parent=51 // pred_check
        %p5336 = pneg %p183
      $region62: #{basic_block_meta_forward.4} parent=51 // pred_check_branch
        %5338 = sbr.rel (%p5336) target = $region64
      $region63: #{basic_block_meta_forward.4} parent=51 // pred_region
        %p5339 = scmp.lt.s32.totalorder %s19, 1
        %s5340 = scalar_select %p5339, %s19, 1
        %s5341 = scalar_lea.vmem %s6, %s5340
      $region64: #{basic_block_meta_forward.4} parent=51 // pred_fallthru
        _
    $region52: #{basic_block_meta_forward.4} parent=5 // pred_fallthru
      _
  $region6: #{basic_block_meta_forward.4} parent=0 // loop_footer
    %s17 = sadd.s32 1, %s13
  $region7: #{basic_block_meta_forward.4} parent=0 // loop_footer_branch
    %12 = sbr.rel target = $region3
  $region8: #{basic_block_meta_forward.4} parent=0 // loop_exit
    _

// kernel: basic_block_meta_forward.3
$region0: #{basic_block_meta_forward.3}
  #allocation0 [shape = 'u32[]', space=smem, size = 0x4, offset = 0x4, fixed_abs, tag = 'smem constant byte address 0x4 - core index']
  #allocation1 [shape = 'u32[72,128]{1,0:T(1,128)}', space=vmem, size = 0x9000, scoped, tag = 'internal scratch']
  %s0 = inlined_call_operand.vmem [shape: bf16[2,18,18,8], index: 0, kind: input, shape index: {}]
  %s1 = inlined_call_operand.vmem [shape: bf16[9,8,128], index: 1, kind: input, shape index: {}]
  %s2 = inlined_call_operand.vmem [shape: bf16[2,16,16,128], index: 2, kind: output, shape index: {0}]
  %s3 = inlined_call_operand.vmem [shape: f32[2,1,128], index: 3, kind: output, shape index: {1}]
  %s4 = inlined_call_operand.vmem [shape: f32[2,1,128], index: 4, kind: output, shape index: {2}]
  %5 = xla_tuple %s2, %s3, %s4
  %s6 = sld [smem:[#allocation0]]
  $region57: #{basic_block_meta_forward.3} parent=0
    _
  %s8 = ssub.s32 1, %s6
  %s9 = scalar_select 0, %s8, %s6
  loop: start=0, step=1, limit=4
  $region2: #{basic_block_meta_forward.3} parent=0 // loop_pre_header
    _
  $region3: #{basic_block_meta_forward.3} parent=0 // loop_header
    %s11 = sphi 0, %s15
    %p12 = scmp.ge.s32.totalorder %s11, 4
    %s21 = sphi 0, %s23
    %s24 = sphi 0, %s21
    %s25 = sphi 0, %s24
    %s41 = sphi 0, %s25
    %s45 = sphi 0, %s45
    %s47 = sphi 0, %s45
    %s48 = sphi 0, %s47
    %s62 = sphi 0, %s48
    %s68 = sphi 0, %s70
    %s71 = sphi 0, %s68
    %s72 = sphi 0, %s71
    %s88 = sphi 0, %s72
    %s94 = sphi 0, %s96
    %s97 = sphi 0, %s94
    %s98 = sphi 0, %s97
    %s114 = sphi 0, %s98
    %s120 = sphi 0, %s122
    %s123 = sphi 0, %s120
    %s124 = sphi 0, %s123
    %s140 = sphi 0, %s124
  $region4: #{basic_block_meta_forward.3} parent=0 // loop_header_branch
    %14 = sbr.rel (%p12) target = $region8
  $region5: #{basic_block_meta_forward.3} parent=0 // loop_body
    %s16 = ssub.s32 %s11, 1
    %s17 = ssub.s32 %s11, 2
    %s18 = sadd.s32 %s11, 1
    %s19 = ssub.s32 %s11, %s18
    %p20 = scmp.eq.s32.totalorder %s19, 0
    %s22 = sadd.s32 %s21, 1
    %s23 = scalar_select %p20, %s21, %s22
    %p26 = pneg %p20
    %p27 = scmp.eq.s32.totalorder %s11, 1
    %p28 = por %p26, %p27
    %p29 = scmp.ne.s32.totalorder %s21, %s24
    %p30 = scmp.eq.s32.totalorder %s11, 0
    %p31 = por %p29, %p30
    %p32 = scmp.ne.s32.totalorder %s21, %s24
    %p33 = scmp.eq.s32.totalorder %s16, 1
    %p34 = por %p32, %p33
    %p35 = scmp.ne.s32.totalorder %s24, %s25
    %p36 = scmp.eq.s32.totalorder %s16, 0
    %p37 = por %p35, %p36
    %p38 = scmp.ne.s32.totalorder %s24, %s25
    %p39 = scmp.eq.s32.totalorder %s17, 1
    %p40 = por %p38, %p39
    %p42 = scmp.ne.s32.totalorder %s25, %s41
    %p43 = scmp.eq.s32.totalorder %s17, 0
    %p44 = por %p42, %p43
    %s46 = sadd.s32 %s45, 1
    %p49 = scmp.eq.s32.totalorder %s11, 1
    %p50 = scmp.ne.s32.totalorder %s45, %s47
    %p51 = scmp.eq.s32.totalorder %s11, 0
    %p52 = por %p50, %p51
    %p53 = scmp.ne.s32.totalorder %s45, %s47
    %p54 = scmp.eq.s32.totalorder %s16, 1
    %p55 = por %p53, %p54
    %p56 = scmp.ne.s32.totalorder %s47, %s48
    %p57 = scmp.eq.s32.totalorder %s16, 0
    %p58 = por %p56, %p57
    %p59 = scmp.ne.s32.totalorder %s47, %s48
    %p60 = scmp.eq.s32.totalorder %s17, 1
    %p61 = por %p59, %p60
    %p63 = scmp.ne.s32.totalorder %s48, %s62
    %p64 = scmp.eq.s32.totalorder %s17, 0
    %p65 = por %p63, %p64
    %s66 = ssub.s32 %s11, %s18
    %p67 = scmp.eq.s32.totalorder %s66, 0
    %s69 = sadd.s32 %s68, 1
    %s70 = scalar_select %p67, %s68, %s69
    %p73 = pneg %p67
    %p74 = scmp.eq.s32.totalorder %s11, 1
    %p75 = por %p73, %p74
    %p76 = scmp.ne.s32.totalorder %s68, %s71
    %p77 = scmp.eq.s32.totalorder %s11, 0
    %p78 = por %p76, %p77
    %p79 = scmp.ne.s32.totalorder %s68, %s71
    %p80 = scmp.eq.s32.totalorder %s16, 1
    %p81 = por %p79, %p80
    %p82 = scmp.ne.s32.totalorder %s71, %s72
    %p83 = scmp.eq.s32.totalorder %s16, 0
    %p84 = por %p82, %p83
    %p85 = scmp.ne.s32.totalorder %s71, %s72
    %p86 = scmp.eq.s32.totalorder %s17, 1
    %p87 = por %p85, %p86
    %p89 = scmp.ne.s32.totalorder %s72, %s88
    %p90 = scmp.eq.s32.totalorder %s17, 0
    %p91 = por %p89, %p90
    %s92 = ssub.s32 %s11, %s18
    %p93 = scmp.eq.s32.totalorder %s92, 0
    %s95 = sadd.s32 %s94, 1
    %s96 = scalar_select %p93, %s94, %s95
    %p99 = pneg %p93
    %p100 = scmp.eq.s32.totalorder %s11, 1
    %p101 = por %p99, %p100
    %p102 = scmp.ne.s32.totalorder %s94, %s97
    %p103 = scmp.eq.s32.totalorder %s11, 0
    %p104 = por %p102, %p103
    %p105 = scmp.ne.s32.totalorder %s94, %s97
    %p106 = scmp.eq.s32.totalorder %s16, 1
    %p107 = por %p105, %p106
    %p108 = scmp.ne.s32.totalorder %s97, %s98
    %p109 = scmp.eq.s32.totalorder %s16, 0
    %p110 = por %p108, %p109
    %p111 = scmp.ne.s32.totalorder %s97, %s98
    %p112 = scmp.eq.s32.totalorder %s17, 1
    %p113 = por %p111, %p112
    %p115 = scmp.ne.s32.totalorder %s98, %s114
    %p116 = scmp.eq.s32.totalorder %s17, 0
    %p117 = por %p115, %p116
    %s118 = ssub.s32 %s11, %s18
    %p119 = scmp.eq.s32.totalorder %s118, 0
    %s121 = sadd.s32 %s120, 1
    %s122 = scalar_select %p119, %s120, %s121
    %p125 = pneg %p119
    %p126 = scmp.eq.s32.totalorder %s11, 1
    %p127 = por %p125, %p126
    %p128 = scmp.ne.s32.totalorder %s120, %s123
    %p129 = scmp.eq.s32.totalorder %s11, 0
    %p130 = por %p128, %p129
    %p131 = scmp.ne.s32.totalorder %s120, %s123
    %p132 = scmp.eq.s32.totalorder %s16, 1
    %p133 = por %p131, %p132
    %p134 = scmp.ne.s32.totalorder %s123, %s124
    %p135 = scmp.eq.s32.totalorder %s16, 0
    %p136 = por %p134, %p135
    %p137 = scmp.ne.s32.totalorder %s123, %s124
    %p138 = scmp.eq.s32.totalorder %s17, 1
    %p139 = por %p137, %p138
    %p141 = scmp.ne.s32.totalorder %s124, %s140
    %p142 = scmp.eq.s32.totalorder %s17, 0
    %p143 = por %p141, %p142
    %p144 = scmp.le.s32.totalorder 1, %s11
    %p145 = scmp.lt.s32.totalorder %s11, 3
    %p146 = pnand %p144, %p145
    %p147 = pneg %p146
    // Predicated region
    $region9: #{basic_block_meta_forward.3} parent=5 // pred_check
      _
    $region10: #{basic_block_meta_forward.3} parent=5 // pred_check_branch
      %149 = sbr.rel (%p146) target = $region12
    $region11: #{basic_block_meta_forward.3} parent=5 // pred_region
      %s150 = ssub.s32 %s11, 1
      // Predicated region
      $region13: #{basic_block_meta_forward.3} parent=11 // pred_check
        %p151 = pneg %p58
      $region14: #{basic_block_meta_forward.3} parent=11 // pred_check_branch
        %153 = sbr.rel (%p151) target = $region16
      $region15: #{basic_block_meta_forward.3} parent=11 // pred_region
        _
      $region16: #{basic_block_meta_forward.3} parent=11 // pred_fallthru
        _
    $region12: #{basic_block_meta_forward.3} parent=5 // pred_fallthru
      _
    %p154 = scmp.lt.s32.totalorder %s11, 2
    // Predicated region
    $region17: #{basic_block_meta_forward.3} parent=5 // pred_check
      %p155 = pneg %p154
    $region18: #{basic_block_meta_forward.3} parent=5 // pred_check_branch
      %157 = sbr.rel (%p155) target = $region20
    $region19: #{basic_block_meta_forward.3} parent=5 // pred_region
      // Predicated region
      $region21: #{basic_block_meta_forward.3} parent=19 // pred_check
        %p158 = pneg %p31
      $region22: #{basic_block_meta_forward.3} parent=19 // pred_check_branch
        %160 = sbr.rel (%p158) target = $region24
      $region23: #{basic_block_meta_forward.3} parent=19 // pred_region
        %p161 = scmp.lt.s32.totalorder %s11, 1
        %s162 = scalar_select %p161, %s11, 1
        %s163 = smul.addr %s162, 54
        %s164 = smul.addr %s163, 4
        %s165 = scalar_lea.vmem %s0, %s164
      $region24: #{basic_block_meta_forward.3} parent=19 // pred_fallthru
        _
    $region20: #{basic_block_meta_forward.3} parent=5 // pred_fallthru
      _
    %p166 = scmp.le.s32.totalorder 1, %s11
    %p167 = scmp.lt.s32.totalorder %s11, 3
    %p168 = pnand %p166, %p167
    %p169 = pneg %p168
    // Predicated region
    $region25: #{basic_block_meta_forward.3} parent=5 // pred_check
      _
    $region26: #{basic_block_meta_forward.3} parent=5 // pred_check_branch
      %171 = sbr.rel (%p168) target = $region28
    $region27: #{basic_block_meta_forward.3} parent=5 // pred_region
      %s172 = ssub.s32 %s11, 1
      %p173 = scmp.lt.s32.totalorder %s16, 1
      %s174 = scalar_select %p173, %s16, 1
      %s175 = smul.addr %s174, 54
      %s176 = smul.addr %s175, 4
      %s177 = scalar_lea.vmem %s0, %s176
      %p178 = pneg %p37
      %p179 = pneg %p34
      %p180 = pneg %p58
      %p181 = pneg %p55
      %p182 = pneg %p84
      %p183 = pneg %p81
      %p184 = scmp.lt.s32.totalorder %s16, 1
      %s185 = scalar_select %p184, %s16, 1
      %s186 = smul.addr %s185, 32
      %s187 = smul.addr %s186, 4
      %s188 = scalar_lea.vmem %s2, %s187
      %p189 = pneg %p110
      %p190 = pneg %p107
      %p191 = scmp.lt.s32.totalorder %s16, 1
      %s192 = scalar_select %p191, %s16, 1
      %s193 = scalar_lea.vmem %s3, %s192
      %p194 = pneg %p136
      %p195 = pneg %p133
      %p196 = scmp.lt.s32.totalorder %s16, 1
      %s197 = scalar_select %p196, %s16, 1
      %s198 = scalar_lea.vmem %s4, %s197
      %p199 = scmp.lt.s32.totalorder %s16, 1
      %s200 = scalar_select %p199, %s16, 1
      %s201 = smul.addr %s200, 54
      %s202 = smul.addr %s201, 4
      %s203 = scalar_lea.vmem %s0, %s202
      %p204 = scmp.lt.s32.totalorder %s16, 1
      %s205 = scalar_select %p204, %s16, 1
      %s206 = smul.addr %s205, 32
      %s207 = smul.addr %s206, 4
      %s208 = scalar_lea.vmem %s2, %s207
      %p209 = scmp.lt.s32.totalorder %s16, 1
      %s210 = scalar_select %p209, %s16, 1
      %s211 = scalar_lea.vmem %s3, %s210
      %p212 = scmp.lt.s32.totalorder %s16, 1
      %s213 = scalar_select %p212, %s16, 1
      %s214 = scalar_lea.vmem %s4, %s213
      %v216 = vld [vmem:[%s203] sm:$0xf]
      %v217 = vld [vmem:[%s203 + $0x4] sm:$0xf]
      %v218 = vld [vmem:[%s203 + $0xc] sm:$0xf]
      %v219 = vld [vmem:[%s203 + $0x10] sm:$0xf]
      %v220 = vld [vmem:[%s203 + $0x18] sm:$0xf]
      %v221 = vld [vmem:[%s203 + $0x1c] sm:$0xf]
      %v222 = vld [vmem:[%s203 + $0x24] sm:$0xf]
      %v223 = vld [vmem:[%s203 + $0x28] sm:$0xf]
      %v224 = vld [vmem:[%s203 + $0x30] sm:$0xf]
      %v225 = vld [vmem:[%s203 + $0x34] sm:$0xf]
      %v226 = vld [vmem:[%s203 + $0x3c] sm:$0xf]
      %v227 = vld [vmem:[%s203 + $0x40] sm:$0xf]
      %v228 = vld [vmem:[%s203 + $0x48] sm:$0xf]
      %v229 = vld [vmem:[%s203 + $0x4c] sm:$0xf]
      %v230 = vld [vmem:[%s203 + $0x54] sm:$0xf]
      %v231 = vld [vmem:[%s203 + $0x58] sm:$0xf]
      %v232 = vld [vmem:[%s203 + $0x60] sm:$0xf]
      %v233 = vld [vmem:[%s203 + $0x64] sm:$0xf]
      %v234 = vld [vmem:[%s203 + $0x6c] sm:$0xf]
      %v235 = vld [vmem:[%s203 + $0x70] sm:$0xf]
      %v236 = vld [vmem:[%s203 + $0x78] sm:$0xf]
      %v237 = vld [vmem:[%s203 + $0x7c] sm:$0xf]
      %v238 = vld [vmem:[%s203 + $0x84] sm:$0xf]
      %v239 = vld [vmem:[%s203 + $0x88] sm:$0xf]
      %v240 = vld [vmem:[%s203 + $0x90] sm:$0xf]
      %v241 = vld [vmem:[%s203 + $0x94] sm:$0xf]
      %v242 = vld [vmem:[%s203 + $0x9c] sm:$0xf]
      %v243 = vld [vmem:[%s203 + $0xa0] sm:$0xf]
      %v244 = vld [vmem:[%s203 + $0xa8] sm:$0xf]
      %v245 = vld [vmem:[%s203 + $0xac] sm:$0xf]
      %v246 = vld [vmem:[%s203 + $0xb4] sm:$0xf]
      %v247 = vld [vmem:[%s203 + $0xb8] sm:$0xf]
      %v248 = vld [vmem:[%s1] sm:$0xf]
      %v249 = vld [vmem:[%s203 + $0x8] sm:$0x1]
      %v250 = vld [vmem:[%s203 + $0x14] sm:$0x1]
      %v251 = vld [vmem:[%s203 + $0x20] sm:$0x1]
      %v252 = vld [vmem:[%s203 + $0x2c] sm:$0x1]
      %v253 = vld [vmem:[%s203 + $0x38] sm:$0x1]
      %v254 = vld [vmem:[%s203 + $0x44] sm:$0x1]
      %v255 = vld [vmem:[%s203 + $0x50] sm:$0x1]
      %v256 = vld [vmem:[%s203 + $0x5c] sm:$0x1]
      %v257 = vld [vmem:[%s203 + $0x68] sm:$0x1]
      %v258 = vld [vmem:[%s203 + $0x74] sm:$0x1]
      %v259 = vld [vmem:[%s203 + $0x80] sm:$0x1]
      %v260 = vld [vmem:[%s203 + $0x8c] sm:$0x1]
      %v261 = vld [vmem:[%s203 + $0x98] sm:$0x1]
      %v262 = vld [vmem:[%s203 + $0xa4] sm:$0x1]
      %v263 = vld [vmem:[%s203 + $0xb0] sm:$0x1]
      %v264 = vld [vmem:[%s203 + $0xbc] sm:$0x1]
      %vm265 = vsmask.f32 3328
      %vm266 = vsmask.f32 7440
      %vm267 = vmor %vm265, %vm266
      %v269 = vshrl.u32 %v216, 16
      %v271 = vrot.slane %v269, 4
      %v272 = vshll.u32 %v216, 16
      %v274 = vrot.slane %v272, 5
      %v275 = vor.u32 %v271, %v274
      %v276 = vrot.slane %v275, 4
      %v278 = vshll.u32 %v217, 16
      %v280 = vrot.slane %v278, 5
      %v281 = vsel %vm267, %v276, %v280
      %v282 = vshrl.u32 %v217, 16
      %v284 = vrot.slane %v282, 4
      %v285 = vor.u32 %v284, %v280
      %v286 = vrot.slane %v285, 4
      %v288 = vshll.u32 %v249, 16
      %v290 = vrot.slane %v288, 5
      %v291 = vsel %vm267, %v286, %v290
      %v293 = vshrl.u32 %v218, 16
      %v295 = vrot.slane %v293, 4
      %v296 = vshll.u32 %v218, 16
      %v298 = vrot.slane %v296, 5
      %v299 = vor.u32 %v295, %v298
      %v300 = vrot.slane %v299, 4
      %v302 = vshll.u32 %v219, 16
      %v304 = vrot.slane %v302, 5
      %v305 = vsel %vm267, %v300, %v304
      %v306 = vshrl.u32 %v219, 16
      %v308 = vrot.slane %v306, 4
      %v309 = vor.u32 %v308, %v304
      %v310 = vrot.slane %v309, 4
      %v312 = vshll.u32 %v250, 16
      %v314 = vrot.slane %v312, 5
      %v315 = vsel %vm267, %v310, %v314
      %v317 = vshrl.u32 %v220, 16
      %v319 = vrot.slane %v317, 4
      %v320 = vshll.u32 %v220, 16
      %v322 = vrot.slane %v320, 5
      %v323 = vor.u32 %v319, %v322
      %v324 = vrot.slane %v323, 4
      %v326 = vshll.u32 %v221, 16
      %v328 = vrot.slane %v326, 5
      %v329 = vsel %vm267, %v324, %v328
      %v330 = vshrl.u32 %v221, 16
      %v332 = vrot.slane %v330, 4
      %v333 = vor.u32 %v332, %v328
      %v334 = vrot.slane %v333, 4
      %v336 = vshll.u32 %v251, 16
      %v338 = vrot.slane %v336, 5
      %v339 = vsel %vm267, %v334, %v338
      %v341 = vshrl.u32 %v222, 16
      %v343 = vrot.slane %v341, 4
      %v344 = vshll.u32 %v222, 16
      %v346 = vrot.slane %v344, 5
      %v347 = vor.u32 %v343, %v346
      %v348 = vrot.slane %v347, 4
      %v350 = vshll.u32 %v223, 16
      %v352 = vrot.slane %v350, 5
      %v353 = vsel %vm267, %v348, %v352
      %v354 = vshrl.u32 %v223, 16
      %v356 = vrot.slane %v354, 4
      %v357 = vor.u32 %v356, %v352
      %v358 = vrot.slane %v357, 4
      %v360 = vshll.u32 %v252, 16
      %v362 = vrot.slane %v360, 5
      %v363 = vsel %vm267, %v358, %v362
      %v365 = vshrl.u32 %v224, 16
      %v367 = vrot.slane %v365, 4
      %v368 = vshll.u32 %v224, 16
      %v370 = vrot.slane %v368, 5
      %v371 = vor.u32 %v367, %v370
      %v372 = vrot.slane %v371, 4
      %v374 = vshll.u32 %v225, 16
      %v376 = vrot.slane %v374, 5
      %v377 = vsel %vm267, %v372, %v376
      %v378 = vshrl.u32 %v225, 16
      %v380 = vrot.slane %v378, 4
      %v381 = vor.u32 %v380, %v376
      %v382 = vrot.slane %v381, 4
      %v384 = vshll.u32 %v253, 16
      %v386 = vrot.slane %v384, 5
      %v387 = vsel %vm267, %v382, %v386
      %v389 = vshrl.u32 %v226, 16
      %v391 = vrot.slane %v389, 4
      %v392 = vshll.u32 %v226, 16
      %v394 = vrot.slane %v392, 5
      %v395 = vor.u32 %v391, %v394
      %v396 = vrot.slane %v395, 4
      %v398 = vshll.u32 %v227, 16
      %v400 = vrot.slane %v398, 5
      %v401 = vsel %vm267, %v396, %v400
      %v402 = vshrl.u32 %v227, 16
      %v404 = vrot.slane %v402, 4
      %v405 = vor.u32 %v404, %v400
      %v406 = vrot.slane %v405, 4
      %v408 = vshll.u32 %v254, 16
      %v410 = vrot.slane %v408, 5
      %v411 = vsel %vm267, %v406, %v410
      %v413 = vshrl.u32 %v228, 16
      %v415 = vrot.slane %v413, 4
      %v416 = vshll.u32 %v228, 16
      %v418 = vrot.slane %v416, 5
      %v419 = vor.u32 %v415, %v418
      %v420 = vrot.slane %v419, 4
      %v422 = vshll.u32 %v229, 16
      %v424 = vrot.slane %v422, 5
      %v425 = vsel %vm267, %v420, %v424
      %v426 = vshrl.u32 %v229, 16
      %v428 = vrot.slane %v426, 4
      %v429 = vor.u32 %v428, %v424
      %v430 = vrot.slane %v429, 4
      %v432 = vshll.u32 %v255, 16
      %v434 = vrot.slane %v432, 5
      %v435 = vsel %vm267, %v430, %v434
      %v437 = vshrl.u32 %v230, 16
      %v439 = vrot.slane %v437, 4
      %v440 = vshll.u32 %v230, 16
      %v442 = vrot.slane %v440, 5
      %v443 = vor.u32 %v439, %v442
      %v444 = vrot.slane %v443, 4
      %v446 = vshll.u32 %v231, 16
      %v448 = vrot.slane %v446, 5
      %v449 = vsel %vm267, %v444, %v448
      %v450 = vshrl.u32 %v231, 16
      %v452 = vrot.slane %v450, 4
      %v453 = vor.u32 %v452, %v448
      %v454 = vrot.slane %v453, 4
      %v456 = vshll.u32 %v256, 16
      %v458 = vrot.slane %v456, 5
      %v459 = vsel %vm267, %v454, %v458
      %v461 = vshrl.u32 %v232, 16
      %v463 = vrot.slane %v461, 4
      %v464 = vshll.u32 %v232, 16
      %v466 = vrot.slane %v464, 5
      %v467 = vor.u32 %v463, %v466
      %v468 = vrot.slane %v467, 4
      %v470 = vshll.u32 %v233, 16
      %v472 = vrot.slane %v470, 5
      %v473 = vsel %vm267, %v468, %v472
      %v474 = vshrl.u32 %v233, 16
      %v476 = vrot.slane %v474, 4
      %v477 = vor.u32 %v476, %v472
      %v478 = vrot.slane %v477, 4
      %v480 = vshll.u32 %v257, 16
      %v482 = vrot.slane %v480, 5
      %v483 = vsel %vm267, %v478, %v482
      %v485 = vshrl.u32 %v234, 16
      %v487 = vrot.slane %v485, 4
      %v488 = vshll.u32 %v234, 16
      %v490 = vrot.slane %v488, 5
      %v491 = vor.u32 %v487, %v490
      %v492 = vrot.slane %v491, 4
      %v494 = vshll.u32 %v235, 16
      %v496 = vrot.slane %v494, 5
      %v497 = vsel %vm267, %v492, %v496
      %v498 = vshrl.u32 %v235, 16
      %v500 = vrot.slane %v498, 4
      %v501 = vor.u32 %v500, %v496
      %v502 = vrot.slane %v501, 4
      %v504 = vshll.u32 %v258, 16
      %v506 = vrot.slane %v504, 5
      %v507 = vsel %vm267, %v502, %v506
      %v509 = vshrl.u32 %v236, 16
      %v511 = vrot.slane %v509, 4
      %v512 = vshll.u32 %v236, 16
      %v514 = vrot.slane %v512, 5
      %v515 = vor.u32 %v511, %v514
      %v516 = vrot.slane %v515, 4
      %v518 = vshll.u32 %v237, 16
      %v520 = vrot.slane %v518, 5
      %v521 = vsel %vm267, %v516, %v520
      %v522 = vshrl.u32 %v237, 16
      %v524 = vrot.slane %v522, 4
      %v525 = vor.u32 %v524, %v520
      %v526 = vrot.slane %v525, 4
      %v528 = vshll.u32 %v259, 16
      %v530 = vrot.slane %v528, 5
      %v531 = vsel %vm267, %v526, %v530
      %v533 = vshrl.u32 %v238, 16
      %v535 = vrot.slane %v533, 4
      %v536 = vshll.u32 %v238, 16
      %v538 = vrot.slane %v536, 5
      %v539 = vor.u32 %v535, %v538
      %v540 = vrot.slane %v539, 4
      %v542 = vshll.u32 %v239, 16
      %v544 = vrot.slane %v542, 5
      %v545 = vsel %vm267, %v540, %v544
      %v546 = vshrl.u32 %v239, 16
      %v548 = vrot.slane %v546, 4
      %v549 = vor.u32 %v548, %v544
      %v550 = vrot.slane %v549, 4
      %v552 = vshll.u32 %v260, 16
      %v554 = vrot.slane %v552, 5
      %v555 = vsel %vm267, %v550, %v554
      %v557 = vshrl.u32 %v240, 16
      %v559 = vrot.slane %v557, 4
      %v560 = vshll.u32 %v240, 16
      %v562 = vrot.slane %v560, 5
      %v563 = vor.u32 %v559, %v562
      %v564 = vrot.slane %v563, 4
      %v566 = vshll.u32 %v241, 16
      %v568 = vrot.slane %v566, 5
      %v569 = vsel %vm267, %v564, %v568
      %v570 = vshrl.u32 %v241, 16
      %v572 = vrot.slane %v570, 4
      %v573 = vor.u32 %v572, %v568
      %v574 = vrot.slane %v573, 4
      %v576 = vshll.u32 %v261, 16
      %v578 = vrot.slane %v576, 5
      %v579 = vsel %vm267, %v574, %v578
      %v581 = vshrl.u32 %v242, 16
      %v583 = vrot.slane %v581, 4
      %v584 = vshll.u32 %v242, 16
      %v586 = vrot.slane %v584, 5
      %v587 = vor.u32 %v583, %v586
      %v588 = vrot.slane %v587, 4
      %v590 = vshll.u32 %v243, 16
      %v592 = vrot.slane %v590, 5
      %v593 = vsel %vm267, %v588, %v592
      %v594 = vshrl.u32 %v243, 16
      %v596 = vrot.slane %v594, 4
      %v597 = vor.u32 %v596, %v592
      %v598 = vrot.slane %v597, 4
      %v600 = vshll.u32 %v262, 16
      %v602 = vrot.slane %v600, 5
      %v603 = vsel %vm267, %v598, %v602
      %v605 = vshrl.u32 %v244, 16
      %v607 = vrot.slane %v605, 4
      %v608 = vshll.u32 %v244, 16
      %v610 = vrot.slane %v608, 5
      %v611 = vor.u32 %v607, %v610
      %v612 = vrot.slane %v611, 4
      %v614 = vshll.u32 %v245, 16
      %v616 = vrot.slane %v614, 5
      %v617 = vsel %vm267, %v612, %v616
      %v618 = vshrl.u32 %v245, 16
      %v620 = vrot.slane %v618, 4
      %v621 = vor.u32 %v620, %v616
      %v622 = vrot.slane %v621, 4
      %v624 = vshll.u32 %v263, 16
      %v626 = vrot.slane %v624, 5
      %v627 = vsel %vm267, %v622, %v626
      %v629 = vshrl.u32 %v246, 16
      %v631 = vrot.slane %v629, 4
      %v632 = vshll.u32 %v246, 16
      %v634 = vrot.slane %v632, 5
      %v635 = vor.u32 %v631, %v634
      %v636 = vrot.slane %v635, 4
      %v638 = vshll.u32 %v247, 16
      %v640 = vrot.slane %v638, 5
      %v641 = vsel %vm267, %v636, %v640
      %v642 = vshrl.u32 %v247, 16
      %v644 = vrot.slane %v642, 4
      %v645 = vor.u32 %v644, %v640
      %v646 = vrot.slane %v645, 4
      %v648 = vshll.u32 %v264, 16
      %v650 = vrot.slane %v648, 5
      %v651 = vsel %vm267, %v646, %v650
      %s652 = scalar_lea.vmem %s1, 4
      %v653 = vld [vmem:[%s652] sm:$0xf]
      %v654 = vunpack.c.l.b16 %v281
      %v655 = vunpack.c.l.b16 %v291
      %v656 = vunpack.c.l.b16 %v305
      %v657 = vunpack.c.l.b16 %v315
      %v658 = vunpack.c.l.b16 %v329
      %v659 = vunpack.c.l.b16 %v339
      %v660 = vunpack.c.l.b16 %v353
      %v661 = vunpack.c.l.b16 %v363
      %v662 = vunpack.c.l.b16 %v377
      %v663 = vunpack.c.l.b16 %v387
      %v664 = vunpack.c.l.b16 %v401
      %v665 = vunpack.c.l.b16 %v411
      %v666 = vunpack.c.l.b16 %v425
      %v667 = vunpack.c.l.b16 %v435
      %v668 = vunpack.c.l.b16 %v449
      %v669 = vunpack.c.l.b16 %v459
      %v670 = vunpack.c.l.b16 %v473
      %v671 = vunpack.c.l.b16 %v483
      %v672 = vunpack.c.l.b16 %v497
      %v673 = vunpack.c.l.b16 %v507
      %v674 = vunpack.c.l.b16 %v521
      %v675 = vunpack.c.l.b16 %v531
      %v676 = vunpack.c.l.b16 %v545
      %v677 = vunpack.c.l.b16 %v555
      %v678 = vunpack.c.l.b16 %v569
      %v679 = vunpack.c.l.b16 %v579
      %v680 = vunpack.c.l.b16 %v593
      %v681 = vunpack.c.l.b16 %v603
      %v682 = vunpack.c.l.b16 %v617
      %v683 = vunpack.c.l.b16 %v627
      %v684 = vunpack.c.l.b16 %v641
      %v685 = vunpack.c.l.b16 %v651
      %v686 = vpack.c.b16 %v655, %v654
      %v687 = vpack.c.b16 %v657, %v656
      %v688 = vpack.c.b16 %v659, %v658
      %v689 = vpack.c.b16 %v661, %v660
      %v690 = vpack.c.b16 %v663, %v662
      %v691 = vpack.c.b16 %v665, %v664
      %v692 = vpack.c.b16 %v667, %v666
      %v693 = vpack.c.b16 %v669, %v668
      %v694 = vpack.c.b16 %v671, %v670
      %v695 = vpack.c.b16 %v673, %v672
      %v696 = vpack.c.b16 %v675, %v674
      %v697 = vpack.c.b16 %v677, %v676
      %v698 = vpack.c.b16 %v679, %v678
      %v699 = vpack.c.b16 %v681, %v680
      %v700 = vpack.c.b16 %v683, %v682
      %v701 = vpack.c.b16 %v685, %v684
      %vm702 = vcmask 64512
      %v704 = vsel %vm702, %v686, 0
      %v707 = vsel %vm702, %v687, 0
      %v710 = vsel %vm702, %v688, 0
      %v713 = vsel %vm702, %v689, 0
      %v716 = vsel %vm702, %v690, 0
      %v719 = vsel %vm702, %v691, 0
      %v722 = vsel %vm702, %v692, 0
      %v725 = vsel %vm702, %v693, 0
      %v728 = vsel %vm702, %v694, 0
      %v731 = vsel %vm702, %v695, 0
      %v734 = vsel %vm702, %v696, 0
      %v737 = vsel %vm702, %v697, 0
      %v740 = vsel %vm702, %v698, 0
      %v743 = vsel %vm702, %v699, 0
      %v746 = vsel %vm702, %v700, 0
      %v749 = vsel %vm702, %v701, 0
      %vm751 = vcmask 1043456
      %v753 = vsel %vm751, %v653, 0
      %755 = vmatpush.bf16.msra.mxu0 0
      %756 = vmatpush.bf16.msra.mxu0 0
      %757 = vmatpush.bf16.msra.mxu0 0
      %758 = vmatpush.bf16.msra.mxu0 0
      %759 = vmatpush.bf16.msra.mxu0 0
      %760 = vmatpush.bf16.msra.mxu0 0
      %761 = vmatpush.bf16.msra.mxu0 0
      %762 = vmatpush.bf16.msra.mxu0 %v753
      %763 = vmatmul.bf16.gmra.mxu0 %v704
      %v764 = vpop.f32.mrf.mxu0
      %v765 = vadd.f32 0.0, %v764
      %v766 = vpop.f32.mrf.mxu0
      %v767 = vadd.f32 0.0, %v766
      %768 = vmatmul.bf16.gmra.mxu0 %v707
      %v769 = vpop.f32.mrf.mxu0
      %v770 = vadd.f32 0.0, %v769
      %v771 = vpop.f32.mrf.mxu0
      %v772 = vadd.f32 0.0, %v771
      %773 = vmatmul.bf16.gmra.mxu0 %v710
      %v774 = vpop.f32.mrf.mxu0
      %v775 = vadd.f32 0.0, %v774
      %v776 = vpop.f32.mrf.mxu0
      %v777 = vadd.f32 0.0, %v776
      %778 = vmatmul.bf16.gmra.mxu0 %v713
      %v779 = vpop.f32.mrf.mxu0
      %v780 = vadd.f32 0.0, %v779
      %v781 = vpop.f32.mrf.mxu0
      %v782 = vadd.f32 0.0, %v781
      %783 = vmatmul.bf16.gmra.mxu0 %v716
      %v784 = vpop.f32.mrf.mxu0
      %v785 = vadd.f32 0.0, %v784
      %v786 = vpop.f32.mrf.mxu0
      %v787 = vadd.f32 0.0, %v786
      %788 = vmatmul.bf16.gmra.mxu0 %v719
      %v789 = vpop.f32.mrf.mxu0
      %v790 = vadd.f32 0.0, %v789
      %v791 = vpop.f32.mrf.mxu0
      %v792 = vadd.f32 0.0, %v791
      %793 = vmatmul.bf16.gmra.mxu0 %v722
      %v794 = vpop.f32.mrf.mxu0
      %v795 = vadd.f32 0.0, %v794
      %v796 = vpop.f32.mrf.mxu0
      %v797 = vadd.f32 0.0, %v796
      %798 = vmatmul.bf16.gmra.mxu0 %v725
      %v799 = vpop.f32.mrf.mxu0
      %v800 = vadd.f32 0.0, %v799
      %v801 = vpop.f32.mrf.mxu0
      %v802 = vadd.f32 0.0, %v801
      %803 = vmatmul.bf16.gmra.mxu0 %v728
      %v804 = vpop.f32.mrf.mxu0
      %v805 = vadd.f32 0.0, %v804
      %v806 = vpop.f32.mrf.mxu0
      %v807 = vadd.f32 0.0, %v806
      %808 = vmatmul.bf16.gmra.mxu0 %v731
      %v809 = vpop.f32.mrf.mxu0
      %v810 = vadd.f32 0.0, %v809
      %v811 = vpop.f32.mrf.mxu0
      %v812 = vadd.f32 0.0, %v811
      %813 = vmatmul.bf16.gmra.mxu0 %v734
      %v814 = vpop.f32.mrf.mxu0
      %v815 = vadd.f32 0.0, %v814
      %v816 = vpop.f32.mrf.mxu0
      %v817 = vadd.f32 0.0, %v816
      %818 = vmatmul.bf16.gmra.mxu0 %v737
      %v819 = vpop.f32.mrf.mxu0
      %v820 = vadd.f32 0.0, %v819
      %v821 = vpop.f32.mrf.mxu0
      %v822 = vadd.f32 0.0, %v821
      %823 = vmatmul.bf16.gmra.mxu0 %v740
      %v824 = vpop.f32.mrf.mxu0
      %v825 = vadd.f32 0.0, %v824
      %v826 = vpop.f32.mrf.mxu0
      %v827 = vadd.f32 0.0, %v826
      %828 = vmatmul.bf16.gmra.mxu0 %v743
      %v829 = vpop.f32.mrf.mxu0
      %v830 = vadd.f32 0.0, %v829
      %v831 = vpop.f32.mrf.mxu0
      %v832 = vadd.f32 0.0, %v831
      %833 = vmatmul.bf16.gmra.mxu0 %v746
      %v834 = vpop.f32.mrf.mxu0
      %v835 = vadd.f32 0.0, %v834
      %v836 = vpop.f32.mrf.mxu0
      %v837 = vadd.f32 0.0, %v836
      %838 = vmatmul.bf16.gmra.mxu0 %v749
      %v839 = vpop.f32.mrf.mxu0
      %v840 = vadd.f32 0.0, %v839
      %v841 = vpop.f32.mrf.mxu0
      %v842 = vadd.f32 0.0, %v841
      %843 = vdwg.mxu0
      %v876 = vunpack.c.l.b16 %v216
      %v877 = vunpack.c.l.b16 %v217
      %v878 = vunpack.c.l.b16 %v218
      %v879 = vunpack.c.l.b16 %v219
      %v880 = vunpack.c.l.b16 %v220
      %v881 = vunpack.c.l.b16 %v221
      %v882 = vunpack.c.l.b16 %v222
      %v883 = vunpack.c.l.b16 %v223
      %v884 = vunpack.c.l.b16 %v224
      %v885 = vunpack.c.l.b16 %v225
      %v886 = vunpack.c.l.b16 %v226
      %v887 = vunpack.c.l.b16 %v227
      %v888 = vunpack.c.l.b16 %v228
      %v889 = vunpack.c.l.b16 %v229
      %v890 = vunpack.c.l.b16 %v230
      %v891 = vunpack.c.l.b16 %v231
      %v892 = vunpack.c.l.b16 %v232
      %v893 = vunpack.c.l.b16 %v233
      %v894 = vunpack.c.l.b16 %v234
      %v895 = vunpack.c.l.b16 %v235
      %v896 = vunpack.c.l.b16 %v236
      %v897 = vunpack.c.l.b16 %v237
      %v898 = vunpack.c.l.b16 %v238
      %v899 = vunpack.c.l.b16 %v239
      %v900 = vunpack.c.l.b16 %v240
      %v901 = vunpack.c.l.b16 %v241
      %v902 = vunpack.c.l.b16 %v242
      %v903 = vunpack.c.l.b16 %v243
      %v904 = vunpack.c.l.b16 %v244
      %v905 = vunpack.c.l.b16 %v245
      %v906 = vunpack.c.l.b16 %v246
      %v907 = vunpack.c.l.b16 %v247
      %v908 = vpack.c.b16 %v877, %v876
      %v909 = vpack.c.b16 %v879, %v878
      %v910 = vpack.c.b16 %v881, %v880
      %v911 = vpack.c.b16 %v883, %v882
      %v912 = vpack.c.b16 %v885, %v884
      %v913 = vpack.c.b16 %v887, %v886
      %v914 = vpack.c.b16 %v889, %v888
      %v915 = vpack.c.b16 %v891, %v890
      %v916 = vpack.c.b16 %v893, %v892
      %v917 = vpack.c.b16 %v895, %v894
      %v918 = vpack.c.b16 %v897, %v896
      %v919 = vpack.c.b16 %v899, %v898
      %v920 = vpack.c.b16 %v901, %v900
      %v921 = vpack.c.b16 %v903, %v902
      %v922 = vpack.c.b16 %v905, %v904
      %v923 = vpack.c.b16 %v907, %v906
      %v925 = vsel %vm702, %v908, 0
      %v928 = vsel %vm702, %v909, 0
      %v931 = vsel %vm702, %v910, 0
      %v934 = vsel %vm702, %v911, 0
      %v937 = vsel %vm702, %v912, 0
      %v940 = vsel %vm702, %v913, 0
      %v943 = vsel %vm702, %v914, 0
      %v946 = vsel %vm702, %v915, 0
      %v949 = vsel %vm702, %v916, 0
      %v952 = vsel %vm702, %v917, 0
      %v955 = vsel %vm702, %v918, 0
      %v958 = vsel %vm702, %v919, 0
      %v961 = vsel %vm702, %v920, 0
      %v964 = vsel %vm702, %v921, 0
      %v967 = vsel %vm702, %v922, 0
      %v970 = vsel %vm702, %v923, 0
      %v973 = vsel %vm751, %v248, 0
      %975 = vmatpush.bf16.msra.mxu0 0
      %976 = vmatpush.bf16.msra.mxu0 0
      %977 = vmatpush.bf16.msra.mxu0 0
      %978 = vmatpush.bf16.msra.mxu0 0
      %979 = vmatpush.bf16.msra.mxu0 0
      %980 = vmatpush.bf16.msra.mxu0 0
      %981 = vmatpush.bf16.msra.mxu0 0
      %982 = vmatpush.bf16.msra.mxu0 %v973
      %983 = vmatmul.bf16.gmra.mxu0 %v925
      %v984 = vpop.f32.mrf.mxu0
      %v985 = vadd.f32 %v765, %v984
      %v986 = vpop.f32.mrf.mxu0
      %v987 = vadd.f32 %v767, %v986
      %988 = vmatmul.bf16.gmra.mxu0 %v928
      %v989 = vpop.f32.mrf.mxu0
      %v990 = vadd.f32 %v770, %v989
      %v991 = vpop.f32.mrf.mxu0
      %v992 = vadd.f32 %v772, %v991
      %993 = vmatmul.bf16.gmra.mxu0 %v931
      %v994 = vpop.f32.mrf.mxu0
      %v995 = vadd.f32 %v775, %v994
      %v996 = vpop.f32.mrf.mxu0
      %v997 = vadd.f32 %v777, %v996
      %998 = vmatmul.bf16.gmra.mxu0 %v934
      %v999 = vpop.f32.mrf.mxu0
      %v1000 = vadd.f32 %v780, %v999
      %v1001 = vpop.f32.mrf.mxu0
      %v1002 = vadd.f32 %v782, %v1001
      %1003 = vmatmul.bf16.gmra.mxu0 %v937
      %v1004 = vpop.f32.mrf.mxu0
      %v1005 = vadd.f32 %v785, %v1004
      %v1006 = vpop.f32.mrf.mxu0
      %v1007 = vadd.f32 %v787, %v1006
      %1008 = vmatmul.bf16.gmra.mxu0 %v940
      %v1009 = vpop.f32.mrf.mxu0
      %v1010 = vadd.f32 %v790, %v1009
      %v1011 = vpop.f32.mrf.mxu0
      %v1012 = vadd.f32 %v792, %v1011
      %1013 = vmatmul.bf16.gmra.mxu0 %v943
      %v1014 = vpop.f32.mrf.mxu0
      %v1015 = vadd.f32 %v795, %v1014
      %v1016 = vpop.f32.mrf.mxu0
      %v1017 = vadd.f32 %v797, %v1016
      %1018 = vmatmul.bf16.gmra.mxu0 %v946
      %v1019 = vpop.f32.mrf.mxu0
      %v1020 = vadd.f32 %v800, %v1019
      %v1021 = vpop.f32.mrf.mxu0
      %v1022 = vadd.f32 %v802, %v1021
      %1023 = vmatmul.bf16.gmra.mxu0 %v949
      %v1024 = vpop.f32.mrf.mxu0
      %v1025 = vadd.f32 %v805, %v1024
      %v1026 = vpop.f32.mrf.mxu0
      %v1027 = vadd.f32 %v807, %v1026
      %1028 = vmatmul.bf16.gmra.mxu0 %v952
      %v1029 = vpop.f32.mrf.mxu0
      %v1030 = vadd.f32 %v810, %v1029
      %v1031 = vpop.f32.mrf.mxu0
      %v1032 = vadd.f32 %v812, %v1031
      %1033 = vmatmul.bf16.gmra.mxu0 %v955
      %v1034 = vpop.f32.mrf.mxu0
      %v1035 = vadd.f32 %v815, %v1034
      %v1036 = vpop.f32.mrf.mxu0
      %v1037 = vadd.f32 %v817, %v1036
      %1038 = vmatmul.bf16.gmra.mxu0 %v958
      %v1039 = vpop.f32.mrf.mxu0
      %v1040 = vadd.f32 %v820, %v1039
      %v1041 = vpop.f32.mrf.mxu0
      %v1042 = vadd.f32 %v822, %v1041
      %1043 = vmatmul.bf16.gmra.mxu0 %v961
      %v1044 = vpop.f32.mrf.mxu0
      %v1045 = vadd.f32 %v825, %v1044
      %v1046 = vpop.f32.mrf.mxu0
      %v1047 = vadd.f32 %v827, %v1046
      %1048 = vmatmul.bf16.gmra.mxu0 %v964
      %v1049 = vpop.f32.mrf.mxu0
      %v1050 = vadd.f32 %v830, %v1049
      %v1051 = vpop.f32.mrf.mxu0
      %v1052 = vadd.f32 %v832, %v1051
      %1053 = vmatmul.bf16.gmra.mxu0 %v967
      %v1054 = vpop.f32.mrf.mxu0
      %v1055 = vadd.f32 %v835, %v1054
      %v1056 = vpop.f32.mrf.mxu0
      %v1057 = vadd.f32 %v837, %v1056
      %1058 = vmatmul.bf16.gmra.mxu0 %v970
      %v1059 = vpop.f32.mrf.mxu0
      %v1060 = vadd.f32 %v840, %v1059
      %v1061 = vpop.f32.mrf.mxu0
      %v1062 = vadd.f32 %v842, %v1061
      %1063 = vdwg.mxu0
      %v1064 = vld [vmem:[%s203] sm:$0xe]
      %v1065 = vld [vmem:[%s203 + $0xc] sm:$0xe]
      %v1066 = vld [vmem:[%s203 + $0x18] sm:$0xe]
      %v1067 = vld [vmem:[%s203 + $0x24] sm:$0xe]
      %v1068 = vld [vmem:[%s203 + $0x30] sm:$0xe]
      %v1069 = vld [vmem:[%s203 + $0x3c] sm:$0xe]
      %v1070 = vld [vmem:[%s203 + $0x48] sm:$0xe]
      %v1071 = vld [vmem:[%s203 + $0x54] sm:$0xe]
      %v1072 = vld [vmem:[%s203 + $0x60] sm:$0xe]
      %v1073 = vld [vmem:[%s203 + $0x6c] sm:$0xe]
      %v1074 = vld [vmem:[%s203 + $0x78] sm:$0xe]
      %v1075 = vld [vmem:[%s203 + $0x84] sm:$0xe]
      %v1076 = vld [vmem:[%s203 + $0x90] sm:$0xe]
      %v1077 = vld [vmem:[%s203 + $0x9c] sm:$0xe]
      %v1078 = vld [vmem:[%s203 + $0xa8] sm:$0xe]
      %v1079 = vld [vmem:[%s203 + $0xb4] sm:$0xe]
      %vm1112 = vcmask 1042432
      %vm1113 = vcmask 1046532
      %vm1114 = vmor %vm1112, %vm1113
      %v1115 = vrot.slane %v1064, 5
      %v1116 = vrot.slane %v1115, 4
      %v1117 = vrot.slane %v217, 5
      %v1118 = vsel %vm1114, %v1116, %v1117
      %v1119 = vrot.slane %v1117, 4
      %v1120 = vrot.slane %v249, 5
      %v1121 = vsel %vm1114, %v1119, %v1120
      %v1122 = vrot.slane %v1065, 5
      %v1123 = vrot.slane %v1122, 4
      %v1124 = vrot.slane %v219, 5
      %v1125 = vsel %vm1114, %v1123, %v1124
      %v1126 = vrot.slane %v1124, 4
      %v1127 = vrot.slane %v250, 5
      %v1128 = vsel %vm1114, %v1126, %v1127
      %v1129 = vrot.slane %v1066, 5
      %v1130 = vrot.slane %v1129, 4
      %v1131 = vrot.slane %v221, 5
      %v1132 = vsel %vm1114, %v1130, %v1131
      %v1133 = vrot.slane %v1131, 4
      %v1134 = vrot.slane %v251, 5
      %v1135 = vsel %vm1114, %v1133, %v1134
      %v1136 = vrot.slane %v1067, 5
      %v1137 = vrot.slane %v1136, 4
      %v1138 = vrot.slane %v223, 5
      %v1139 = vsel %vm1114, %v1137, %v1138
      %v1140 = vrot.slane %v1138, 4
      %v1141 = vrot.slane %v252, 5
      %v1142 = vsel %vm1114, %v1140, %v1141
      %v1143 = vrot.slane %v1068, 5
      %v1144 = vrot.slane %v1143, 4
      %v1145 = vrot.slane %v225, 5
      %v1146 = vsel %vm1114, %v1144, %v1145
      %v1147 = vrot.slane %v1145, 4
      %v1148 = vrot.slane %v253, 5
      %v1149 = vsel %vm1114, %v1147, %v1148
      %v1150 = vrot.slane %v1069, 5
      %v1151 = vrot.slane %v1150, 4
      %v1152 = vrot.slane %v227, 5
      %v1153 = vsel %vm1114, %v1151, %v1152
      %v1154 = vrot.slane %v1152, 4
      %v1155 = vrot.slane %v254, 5
      %v1156 = vsel %vm1114, %v1154, %v1155
      %v1157 = vrot.slane %v1070, 5
      %v1158 = vrot.slane %v1157, 4
      %v1159 = vrot.slane %v229, 5
      %v1160 = vsel %vm1114, %v1158, %v1159
      %v1161 = vrot.slane %v1159, 4
      %v1162 = vrot.slane %v255, 5
      %v1163 = vsel %vm1114, %v1161, %v1162
      %v1164 = vrot.slane %v1071, 5
      %v1165 = vrot.slane %v1164, 4
      %v1166 = vrot.slane %v231, 5
      %v1167 = vsel %vm1114, %v1165, %v1166
      %v1168 = vrot.slane %v1166, 4
      %v1169 = vrot.slane %v256, 5
      %v1170 = vsel %vm1114, %v1168, %v1169
      %v1171 = vrot.slane %v1072, 5
      %v1172 = vrot.slane %v1171, 4
      %v1173 = vrot.slane %v233, 5
      %v1174 = vsel %vm1114, %v1172, %v1173
      %v1175 = vrot.slane %v1173, 4
      %v1176 = vrot.slane %v257, 5
      %v1177 = vsel %vm1114, %v1175, %v1176
      %v1178 = vrot.slane %v1073, 5
      %v1179 = vrot.slane %v1178, 4
      %v1180 = vrot.slane %v235, 5
      %v1181 = vsel %vm1114, %v1179, %v1180
      %v1182 = vrot.slane %v1180, 4
      %v1183 = vrot.slane %v258, 5
      %v1184 = vsel %vm1114, %v1182, %v1183
      %v1185 = vrot.slane %v1074, 5
      %v1186 = vrot.slane %v1185, 4
      %v1187 = vrot.slane %v237, 5
      %v1188 = vsel %vm1114, %v1186, %v1187
      %v1189 = vrot.slane %v1187, 4
      %v1190 = vrot.slane %v259, 5
      %v1191 = vsel %vm1114, %v1189, %v1190
      %v1192 = vrot.slane %v1075, 5
      %v1193 = vrot.slane %v1192, 4
      %v1194 = vrot.slane %v239, 5
      %v1195 = vsel %vm1114, %v1193, %v1194
      %v1196 = vrot.slane %v1194, 4
      %v1197 = vrot.slane %v260, 5
      %v1198 = vsel %vm1114, %v1196, %v1197
      %v1199 = vrot.slane %v1076, 5
      %v1200 = vrot.slane %v1199, 4
      %v1201 = vrot.slane %v241, 5
      %v1202 = vsel %vm1114, %v1200, %v1201
      %v1203 = vrot.slane %v1201, 4
      %v1204 = vrot.slane %v261, 5
      %v1205 = vsel %vm1114, %v1203, %v1204
      %v1206 = vrot.slane %v1077, 5
      %v1207 = vrot.slane %v1206, 4
      %v1208 = vrot.slane %v243, 5
      %v1209 = vsel %vm1114, %v1207, %v1208
      %v1210 = vrot.slane %v1208, 4
      %v1211 = vrot.slane %v262, 5
      %v1212 = vsel %vm1114, %v1210, %v1211
      %v1213 = vrot.slane %v1078, 5
      %v1214 = vrot.slane %v1213, 4
      %v1215 = vrot.slane %v245, 5
      %v1216 = vsel %vm1114, %v1214, %v1215
      %v1217 = vrot.slane %v1215, 4
      %v1218 = vrot.slane %v263, 5
      %v1219 = vsel %vm1114, %v1217, %v1218
      %v1220 = vrot.slane %v1079, 5
      %v1221 = vrot.slane %v1220, 4
      %v1222 = vrot.slane %v247, 5
      %v1223 = vsel %vm1114, %v1221, %v1222
      %v1224 = vrot.slane %v1222, 4
      %v1225 = vrot.slane %v264, 5
      %v1226 = vsel %vm1114, %v1224, %v1225
      %s1227 = scalar_lea.vmem %s1, 8
      %v1228 = vld [vmem:[%s1227] sm:$0xf]
      %v1229 = vunpack.c.l.b16 %v1118
      %v1230 = vunpack.c.l.b16 %v1121
      %v1231 = vunpack.c.l.b16 %v1125
      %v1232 = vunpack.c.l.b16 %v1128
      %v1233 = vunpack.c.l.b16 %v1132
      %v1234 = vunpack.c.l.b16 %v1135
      %v1235 = vunpack.c.l.b16 %v1139
      %v1236 = vunpack.c.l.b16 %v1142
      %v1237 = vunpack.c.l.b16 %v1146
      %v1238 = vunpack.c.l.b16 %v1149
      %v1239 = vunpack.c.l.b16 %v1153
      %v1240 = vunpack.c.l.b16 %v1156
      %v1241 = vunpack.c.l.b16 %v1160
      %v1242 = vunpack.c.l.b16 %v1163
      %v1243 = vunpack.c.l.b16 %v1167
      %v1244 = vunpack.c.l.b16 %v1170
      %v1245 = vunpack.c.l.b16 %v1174
      %v1246 = vunpack.c.l.b16 %v1177
      %v1247 = vunpack.c.l.b16 %v1181
      %v1248 = vunpack.c.l.b16 %v1184
      %v1249 = vunpack.c.l.b16 %v1188
      %v1250 = vunpack.c.l.b16 %v1191
      %v1251 = vunpack.c.l.b16 %v1195
      %v1252 = vunpack.c.l.b16 %v1198
      %v1253 = vunpack.c.l.b16 %v1202
      %v1254 = vunpack.c.l.b16 %v1205
      %v1255 = vunpack.c.l.b16 %v1209
      %v1256 = vunpack.c.l.b16 %v1212
      %v1257 = vunpack.c.l.b16 %v1216
      %v1258 = vunpack.c.l.b16 %v1219
      %v1259 = vunpack.c.l.b16 %v1223
      %v1260 = vunpack.c.l.b16 %v1226
      %v1261 = vpack.c.b16 %v1230, %v1229
      %v1262 = vpack.c.b16 %v1232, %v1231
      %v1263 = vpack.c.b16 %v1234, %v1233
      %v1264 = vpack.c.b16 %v1236, %v1235
      %v1265 = vpack.c.b16 %v1238, %v1237
      %v1266 = vpack.c.b16 %v1240, %v1239
      %v1267 = vpack.c.b16 %v1242, %v1241
      %v1268 = vpack.c.b16 %v1244, %v1243
      %v1269 = vpack.c.b16 %v1246, %v1245
      %v1270 = vpack.c.b16 %v1248, %v1247
      %v1271 = vpack.c.b16 %v1250, %v1249
      %v1272 = vpack.c.b16 %v1252, %v1251
      %v1273 = vpack.c.b16 %v1254, %v1253
      %v1274 = vpack.c.b16 %v1256, %v1255
      %v1275 = vpack.c.b16 %v1258, %v1257
      %v1276 = vpack.c.b16 %v1260, %v1259
      %v1278 = vsel %vm702, %v1261, 0
      %v1281 = vsel %vm702, %v1262, 0
      %v1284 = vsel %vm702, %v1263, 0
      %v1287 = vsel %vm702, %v1264, 0
      %v1290 = vsel %vm702, %v1265, 0
      %v1293 = vsel %vm702, %v1266, 0
      %v1296 = vsel %vm702, %v1267, 0
      %v1299 = vsel %vm702, %v1268, 0
      %v1302 = vsel %vm702, %v1269, 0
      %v1305 = vsel %vm702, %v1270, 0
      %v1308 = vsel %vm702, %v1271, 0
      %v1311 = vsel %vm702, %v1272, 0
      %v1314 = vsel %vm702, %v1273, 0
      %v1317 = vsel %vm702, %v1274, 0
      %v1320 = vsel %vm702, %v1275, 0
      %v1323 = vsel %vm702, %v1276, 0
      %v1326 = vsel %vm751, %v1228, 0
      %1328 = vmatpush.bf16.msra.mxu0 0
      %1329 = vmatpush.bf16.msra.mxu0 0
      %1330 = vmatpush.bf16.msra.mxu0 0
      %1331 = vmatpush.bf16.msra.mxu0 0
      %1332 = vmatpush.bf16.msra.mxu0 0
      %1333 = vmatpush.bf16.msra.mxu0 0
      %1334 = vmatpush.bf16.msra.mxu0 0
      %1335 = vmatpush.bf16.msra.mxu0 %v1326
      %1336 = vmatmul.bf16.gmra.mxu0 %v1278
      %v1337 = vpop.f32.mrf.mxu0
      %v1338 = vadd.f32 0.0, %v1337
      %v1339 = vpop.f32.mrf.mxu0
      %v1340 = vadd.f32 0.0, %v1339
      %1341 = vmatmul.bf16.gmra.mxu0 %v1281
      %v1342 = vpop.f32.mrf.mxu0
      %v1343 = vadd.f32 0.0, %v1342
      %v1344 = vpop.f32.mrf.mxu0
      %v1345 = vadd.f32 0.0, %v1344
      %1346 = vmatmul.bf16.gmra.mxu0 %v1284
      %v1347 = vpop.f32.mrf.mxu0
      %v1348 = vadd.f32 0.0, %v1347
      %v1349 = vpop.f32.mrf.mxu0
      %v1350 = vadd.f32 0.0, %v1349
      %1351 = vmatmul.bf16.gmra.mxu0 %v1287
      %v1352 = vpop.f32.mrf.mxu0
      %v1353 = vadd.f32 0.0, %v1352
      %v1354 = vpop.f32.mrf.mxu0
      %v1355 = vadd.f32 0.0, %v1354
      %1356 = vmatmul.bf16.gmra.mxu0 %v1290
      %v1357 = vpop.f32.mrf.mxu0
      %v1358 = vadd.f32 0.0, %v1357
      %v1359 = vpop.f32.mrf.mxu0
      %v1360 = vadd.f32 0.0, %v1359
      %1361 = vmatmul.bf16.gmra.mxu0 %v1293
      %v1362 = vpop.f32.mrf.mxu0
      %v1363 = vadd.f32 0.0, %v1362
      %v1364 = vpop.f32.mrf.mxu0
      %v1365 = vadd.f32 0.0, %v1364
      %1366 = vmatmul.bf16.gmra.mxu0 %v1296
      %v1367 = vpop.f32.mrf.mxu0
      %v1368 = vadd.f32 0.0, %v1367
      %v1369 = vpop.f32.mrf.mxu0
      %v1370 = vadd.f32 0.0, %v1369
      %1371 = vmatmul.bf16.gmra.mxu0 %v1299
      %v1372 = vpop.f32.mrf.mxu0
      %v1373 = vadd.f32 0.0, %v1372
      %v1374 = vpop.f32.mrf.mxu0
      %v1375 = vadd.f32 0.0, %v1374
      %1376 = vmatmul.bf16.gmra.mxu0 %v1302
      %v1377 = vpop.f32.mrf.mxu0
      %v1378 = vadd.f32 0.0, %v1377
      %v1379 = vpop.f32.mrf.mxu0
      %v1380 = vadd.f32 0.0, %v1379
      %1381 = vmatmul.bf16.gmra.mxu0 %v1305
      %v1382 = vpop.f32.mrf.mxu0
      %v1383 = vadd.f32 0.0, %v1382
      %v1384 = vpop.f32.mrf.mxu0
      %v1385 = vadd.f32 0.0, %v1384
      %1386 = vmatmul.bf16.gmra.mxu0 %v1308
      %v1387 = vpop.f32.mrf.mxu0
      %v1388 = vadd.f32 0.0, %v1387
      %v1389 = vpop.f32.mrf.mxu0
      %v1390 = vadd.f32 0.0, %v1389
      %1391 = vmatmul.bf16.gmra.mxu0 %v1311
      %v1392 = vpop.f32.mrf.mxu0
      %v1393 = vadd.f32 0.0, %v1392
      %v1394 = vpop.f32.mrf.mxu0
      %v1395 = vadd.f32 0.0, %v1394
      %1396 = vmatmul.bf16.gmra.mxu0 %v1314
      %v1397 = vpop.f32.mrf.mxu0
      %v1398 = vadd.f32 0.0, %v1397
      %v1399 = vpop.f32.mrf.mxu0
      %v1400 = vadd.f32 0.0, %v1399
      %1401 = vmatmul.bf16.gmra.mxu0 %v1317
      %v1402 = vpop.f32.mrf.mxu0
      %v1403 = vadd.f32 0.0, %v1402
      %v1404 = vpop.f32.mrf.mxu0
      %v1405 = vadd.f32 0.0, %v1404
      %1406 = vmatmul.bf16.gmra.mxu0 %v1320
      %v1407 = vpop.f32.mrf.mxu0
      %v1408 = vadd.f32 0.0, %v1407
      %v1409 = vpop.f32.mrf.mxu0
      %v1410 = vadd.f32 0.0, %v1409
      %1411 = vmatmul.bf16.gmra.mxu0 %v1323
      %v1412 = vpop.f32.mrf.mxu0
      %v1413 = vadd.f32 0.0, %v1412
      %v1414 = vpop.f32.mrf.mxu0
      %v1415 = vadd.f32 0.0, %v1414
      %1416 = vdwg.mxu0
      %v1417 = vadd.f32 %v985, %v1338
      %v1418 = vadd.f32 %v987, %v1340
      %v1419 = vadd.f32 %v990, %v1343
      %v1420 = vadd.f32 %v992, %v1345
      %v1421 = vadd.f32 %v995, %v1348
      %v1422 = vadd.f32 %v997, %v1350
      %v1423 = vadd.f32 %v1000, %v1353
      %v1424 = vadd.f32 %v1002, %v1355
      %v1425 = vadd.f32 %v1005, %v1358
      %v1426 = vadd.f32 %v1007, %v1360
      %v1427 = vadd.f32 %v1010, %v1363
      %v1428 = vadd.f32 %v1012, %v1365
      %v1429 = vadd.f32 %v1015, %v1368
      %v1430 = vadd.f32 %v1017, %v1370
      %v1431 = vadd.f32 %v1020, %v1373
      %v1432 = vadd.f32 %v1022, %v1375
      %v1433 = vadd.f32 %v1025, %v1378
      %v1434 = vadd.f32 %v1027, %v1380
      %v1435 = vadd.f32 %v1030, %v1383
      %v1436 = vadd.f32 %v1032, %v1385
      %v1437 = vadd.f32 %v1035, %v1388
      %v1438 = vadd.f32 %v1037, %v1390
      %v1439 = vadd.f32 %v1040, %v1393
      %v1440 = vadd.f32 %v1042, %v1395
      %v1441 = vadd.f32 %v1045, %v1398
      %v1442 = vadd.f32 %v1047, %v1400
      %v1443 = vadd.f32 %v1050, %v1403
      %v1444 = vadd.f32 %v1052, %v1405
      %v1445 = vadd.f32 %v1055, %v1408
      %v1446 = vadd.f32 %v1057, %v1410
      %v1447 = vadd.f32 %v1060, %v1413
      %v1448 = vadd.f32 %v1062, %v1415
      %s1449 = scalar_lea.vmem %s203, 12
      %v1450 = vld [vmem:[%s1449] sm:$0xf]
      %v1451 = vld [vmem:[%s1449 + $0x4] sm:$0xf]
      %v1452 = vld [vmem:[%s1449 + $0xc] sm:$0xf]
      %v1453 = vld [vmem:[%s1449 + $0x10] sm:$0xf]
      %v1454 = vld [vmem:[%s1449 + $0x18] sm:$0xf]
      %v1455 = vld [vmem:[%s1449 + $0x1c] sm:$0xf]
      %v1456 = vld [vmem:[%s1449 + $0x24] sm:$0xf]
      %v1457 = vld [vmem:[%s1449 + $0x28] sm:$0xf]
      %v1458 = vld [vmem:[%s1449 + $0x30] sm:$0xf]
      %v1459 = vld [vmem:[%s1449 + $0x34] sm:$0xf]
      %v1460 = vld [vmem:[%s1449 + $0x3c] sm:$0xf]
      %v1461 = vld [vmem:[%s1449 + $0x40] sm:$0xf]
      %v1462 = vld [vmem:[%s1449 + $0x48] sm:$0xf]
      %v1463 = vld [vmem:[%s1449 + $0x4c] sm:$0xf]
      %v1464 = vld [vmem:[%s1449 + $0x54] sm:$0xf]
      %v1465 = vld [vmem:[%s1449 + $0x58] sm:$0xf]
      %v1466 = vld [vmem:[%s1449 + $0x60] sm:$0xf]
      %v1467 = vld [vmem:[%s1449 + $0x64] sm:$0xf]
      %v1468 = vld [vmem:[%s1449 + $0x6c] sm:$0xf]
      %v1469 = vld [vmem:[%s1449 + $0x70] sm:$0xf]
      %v1470 = vld [vmem:[%s1449 + $0x78] sm:$0xf]
      %v1471 = vld [vmem:[%s1449 + $0x7c] sm:$0xf]
      %v1472 = vld [vmem:[%s1449 + $0x84] sm:$0xf]
      %v1473 = vld [vmem:[%s1449 + $0x88] sm:$0xf]
      %v1474 = vld [vmem:[%s1449 + $0x90] sm:$0xf]
      %v1475 = vld [vmem:[%s1449 + $0x94] sm:$0xf]
      %v1476 = vld [vmem:[%s1449 + $0x9c] sm:$0xf]
      %v1477 = vld [vmem:[%s1449 + $0xa0] sm:$0xf]
      %v1478 = vld [vmem:[%s1449 + $0xa8] sm:$0xf]
      %v1479 = vld [vmem:[%s1449 + $0xac] sm:$0xf]
      %v1480 = vld [vmem:[%s1449 + $0xb4] sm:$0xf]
      %v1481 = vld [vmem:[%s1449 + $0xb8] sm:$0xf]
      %s1482 = scalar_lea.vmem %s1, 12
      %v1483 = vld [vmem:[%s1482] sm:$0xf]
      %v1516 = vunpack.c.l.b16 %v1450
      %v1517 = vunpack.c.l.b16 %v1451
      %v1518 = vunpack.c.l.b16 %v1452
      %v1519 = vunpack.c.l.b16 %v1453
      %v1520 = vunpack.c.l.b16 %v1454
      %v1521 = vunpack.c.l.b16 %v1455
      %v1522 = vunpack.c.l.b16 %v1456
      %v1523 = vunpack.c.l.b16 %v1457
      %v1524 = vunpack.c.l.b16 %v1458
      %v1525 = vunpack.c.l.b16 %v1459
      %v1526 = vunpack.c.l.b16 %v1460
      %v1527 = vunpack.c.l.b16 %v1461
      %v1528 = vunpack.c.l.b16 %v1462
      %v1529 = vunpack.c.l.b16 %v1463
      %v1530 = vunpack.c.l.b16 %v1464
      %v1531 = vunpack.c.l.b16 %v1465
      %v1532 = vunpack.c.l.b16 %v1466
      %v1533 = vunpack.c.l.b16 %v1467
      %v1534 = vunpack.c.l.b16 %v1468
      %v1535 = vunpack.c.l.b16 %v1469
      %v1536 = vunpack.c.l.b16 %v1470
      %v1537 = vunpack.c.l.b16 %v1471
      %v1538 = vunpack.c.l.b16 %v1472
      %v1539 = vunpack.c.l.b16 %v1473
      %v1540 = vunpack.c.l.b16 %v1474
      %v1541 = vunpack.c.l.b16 %v1475
      %v1542 = vunpack.c.l.b16 %v1476
      %v1543 = vunpack.c.l.b16 %v1477
      %v1544 = vunpack.c.l.b16 %v1478
      %v1545 = vunpack.c.l.b16 %v1479
      %v1546 = vunpack.c.l.b16 %v1480
      %v1547 = vunpack.c.l.b16 %v1481
      %v1548 = vpack.c.b16 %v1517, %v1516
      %v1549 = vpack.c.b16 %v1519, %v1518
      %v1550 = vpack.c.b16 %v1521, %v1520
      %v1551 = vpack.c.b16 %v1523, %v1522
      %v1552 = vpack.c.b16 %v1525, %v1524
      %v1553 = vpack.c.b16 %v1527, %v1526
      %v1554 = vpack.c.b16 %v1529, %v1528
      %v1555 = vpack.c.b16 %v1531, %v1530
      %v1556 = vpack.c.b16 %v1533, %v1532
      %v1557 = vpack.c.b16 %v1535, %v1534
      %v1558 = vpack.c.b16 %v1537, %v1536
      %v1559 = vpack.c.b16 %v1539, %v1538
      %v1560 = vpack.c.b16 %v1541, %v1540
      %v1561 = vpack.c.b16 %v1543, %v1542
      %v1562 = vpack.c.b16 %v1545, %v1544
      %v1563 = vpack.c.b16 %v1547, %v1546
      %v1565 = vsel %vm702, %v1548, 0
      %v1568 = vsel %vm702, %v1549, 0
      %v1571 = vsel %vm702, %v1550, 0
      %v1574 = vsel %vm702, %v1551, 0
      %v1577 = vsel %vm702, %v1552, 0
      %v1580 = vsel %vm702, %v1553, 0
      %v1583 = vsel %vm702, %v1554, 0
      %v1586 = vsel %vm702, %v1555, 0
      %v1589 = vsel %vm702, %v1556, 0
      %v1592 = vsel %vm702, %v1557, 0
      %v1595 = vsel %vm702, %v1558, 0
      %v1598 = vsel %vm702, %v1559, 0
      %v1601 = vsel %vm702, %v1560, 0
      %v1604 = vsel %vm702, %v1561, 0
      %v1607 = vsel %vm702, %v1562, 0
      %v1610 = vsel %vm702, %v1563, 0
      %v1613 = vsel %vm751, %v1483, 0
      %1615 = vmatpush.bf16.msra.mxu0 0
      %1616 = vmatpush.bf16.msra.mxu0 0
      %1617 = vmatpush.bf16.msra.mxu0 0
      %1618 = vmatpush.bf16.msra.mxu0 0
      %1619 = vmatpush.bf16.msra.mxu0 0
      %1620 = vmatpush.bf16.msra.mxu0 0
      %1621 = vmatpush.bf16.msra.mxu0 0
      %1622 = vmatpush.bf16.msra.mxu0 %v1613
      %1623 = vmatmul.bf16.gmra.mxu0 %v1565
      %v1624 = vpop.f32.mrf.mxu0
      %v1625 = vadd.f32 0.0, %v1624
      %v1626 = vpop.f32.mrf.mxu0
      %v1627 = vadd.f32 0.0, %v1626
      %1628 = vmatmul.bf16.gmra.mxu0 %v1568
      %v1629 = vpop.f32.mrf.mxu0
      %v1630 = vadd.f32 0.0, %v1629
      %v1631 = vpop.f32.mrf.mxu0
      %v1632 = vadd.f32 0.0, %v1631
      %1633 = vmatmul.bf16.gmra.mxu0 %v1571
      %v1634 = vpop.f32.mrf.mxu0
      %v1635 = vadd.f32 0.0, %v1634
      %v1636 = vpop.f32.mrf.mxu0
      %v1637 = vadd.f32 0.0, %v1636
      %1638 = vmatmul.bf16.gmra.mxu0 %v1574
      %v1639 = vpop.f32.mrf.mxu0
      %v1640 = vadd.f32 0.0, %v1639
      %v1641 = vpop.f32.mrf.mxu0
      %v1642 = vadd.f32 0.0, %v1641
      %1643 = vmatmul.bf16.gmra.mxu0 %v1577
      %v1644 = vpop.f32.mrf.mxu0
      %v1645 = vadd.f32 0.0, %v1644
      %v1646 = vpop.f32.mrf.mxu0
      %v1647 = vadd.f32 0.0, %v1646
      %1648 = vmatmul.bf16.gmra.mxu0 %v1580
      %v1649 = vpop.f32.mrf.mxu0
      %v1650 = vadd.f32 0.0, %v1649
      %v1651 = vpop.f32.mrf.mxu0
      %v1652 = vadd.f32 0.0, %v1651
      %1653 = vmatmul.bf16.gmra.mxu0 %v1583
      %v1654 = vpop.f32.mrf.mxu0
      %v1655 = vadd.f32 0.0, %v1654
      %v1656 = vpop.f32.mrf.mxu0
      %v1657 = vadd.f32 0.0, %v1656
      %1658 = vmatmul.bf16.gmra.mxu0 %v1586
      %v1659 = vpop.f32.mrf.mxu0
      %v1660 = vadd.f32 0.0, %v1659
      %v1661 = vpop.f32.mrf.mxu0
      %v1662 = vadd.f32 0.0, %v1661
      %1663 = vmatmul.bf16.gmra.mxu0 %v1589
      %v1664 = vpop.f32.mrf.mxu0
      %v1665 = vadd.f32 0.0, %v1664
      %v1666 = vpop.f32.mrf.mxu0
      %v1667 = vadd.f32 0.0, %v1666
      %1668 = vmatmul.bf16.gmra.mxu0 %v1592
      %v1669 = vpop.f32.mrf.mxu0
      %v1670 = vadd.f32 0.0, %v1669
      %v1671 = vpop.f32.mrf.mxu0
      %v1672 = vadd.f32 0.0, %v1671
      %1673 = vmatmul.bf16.gmra.mxu0 %v1595
      %v1674 = vpop.f32.mrf.mxu0
      %v1675 = vadd.f32 0.0, %v1674
      %v1676 = vpop.f32.mrf.mxu0
      %v1677 = vadd.f32 0.0, %v1676
      %1678 = vmatmul.bf16.gmra.mxu0 %v1598
      %v1679 = vpop.f32.mrf.mxu0
      %v1680 = vadd.f32 0.0, %v1679
      %v1681 = vpop.f32.mrf.mxu0
      %v1682 = vadd.f32 0.0, %v1681
      %1683 = vmatmul.bf16.gmra.mxu0 %v1601
      %v1684 = vpop.f32.mrf.mxu0
      %v1685 = vadd.f32 0.0, %v1684
      %v1686 = vpop.f32.mrf.mxu0
      %v1687 = vadd.f32 0.0, %v1686
      %1688 = vmatmul.bf16.gmra.mxu0 %v1604
      %v1689 = vpop.f32.mrf.mxu0
      %v1690 = vadd.f32 0.0, %v1689
      %v1691 = vpop.f32.mrf.mxu0
      %v1692 = vadd.f32 0.0, %v1691
      %1693 = vmatmul.bf16.gmra.mxu0 %v1607
      %v1694 = vpop.f32.mrf.mxu0
      %v1695 = vadd.f32 0.0, %v1694
      %v1696 = vpop.f32.mrf.mxu0
      %v1697 = vadd.f32 0.0, %v1696
      %1698 = vmatmul.bf16.gmra.mxu0 %v1610
      %v1699 = vpop.f32.mrf.mxu0
      %v1700 = vadd.f32 0.0, %v1699
      %v1701 = vpop.f32.mrf.mxu0
      %v1702 = vadd.f32 0.0, %v1701
      %1703 = vdwg.mxu0
      %v1704 = vadd.f32 %v1417, %v1625
      %v1705 = vadd.f32 %v1418, %v1627
      %v1706 = vadd.f32 %v1419, %v1630
      %v1707 = vadd.f32 %v1420, %v1632
      %v1708 = vadd.f32 %v1421, %v1635
      %v1709 = vadd.f32 %v1422, %v1637
      %v1710 = vadd.f32 %v1423, %v1640
      %v1711 = vadd.f32 %v1424, %v1642
      %v1712 = vadd.f32 %v1425, %v1645
      %v1713 = vadd.f32 %v1426, %v1647
      %v1714 = vadd.f32 %v1427, %v1650
      %v1715 = vadd.f32 %v1428, %v1652
      %v1716 = vadd.f32 %v1429, %v1655
      %v1717 = vadd.f32 %v1430, %v1657
      %v1718 = vadd.f32 %v1431, %v1660
      %v1719 = vadd.f32 %v1432, %v1662
      %v1720 = vadd.f32 %v1433, %v1665
      %v1721 = vadd.f32 %v1434, %v1667
      %v1722 = vadd.f32 %v1435, %v1670
      %v1723 = vadd.f32 %v1436, %v1672
      %v1724 = vadd.f32 %v1437, %v1675
      %v1725 = vadd.f32 %v1438, %v1677
      %v1726 = vadd.f32 %v1439, %v1680
      %v1727 = vadd.f32 %v1440, %v1682
      %v1728 = vadd.f32 %v1441, %v1685
      %v1729 = vadd.f32 %v1442, %v1687
      %v1730 = vadd.f32 %v1443, %v1690
      %v1731 = vadd.f32 %v1444, %v1692
      %v1732 = vadd.f32 %v1445, %v1695
      %v1733 = vadd.f32 %v1446, %v1697
      %v1734 = vadd.f32 %v1447, %v1700
      %v1735 = vadd.f32 %v1448, %v1702
      %v1736 = vld [vmem:[%s1449] sm:$0xf]
      %v1737 = vld [vmem:[%s1449 + $0x4] sm:$0xf]
      %v1738 = vld [vmem:[%s1449 + $0x8] sm:$0x1]
      %v1739 = vld [vmem:[%s1449 + $0xc] sm:$0xf]
      %v1740 = vld [vmem:[%s1449 + $0x10] sm:$0xf]
      %v1741 = vld [vmem:[%s1449 + $0x14] sm:$0x1]
      %v1742 = vld [vmem:[%s1449 + $0x18] sm:$0xf]
      %v1743 = vld [vmem:[%s1449 + $0x1c] sm:$0xf]
      %v1744 = vld [vmem:[%s1449 + $0x20] sm:$0x1]
      %v1745 = vld [vmem:[%s1449 + $0x24] sm:$0xf]
      %v1746 = vld [vmem:[%s1449 + $0x28] sm:$0xf]
      %v1747 = vld [vmem:[%s1449 + $0x2c] sm:$0x1]
      %v1748 = vld [vmem:[%s1449 + $0x30] sm:$0xf]
      %v1749 = vld [vmem:[%s1449 + $0x34] sm:$0xf]
      %v1750 = vld [vmem:[%s1449 + $0x38] sm:$0x1]
      %v1751 = vld [vmem:[%s1449 + $0x3c] sm:$0xf]
      %v1752 = vld [vmem:[%s1449 + $0x40] sm:$0xf]
      %v1753 = vld [vmem:[%s1449 + $0x44] sm:$0x1]
      %v1754 = vld [vmem:[%s1449 + $0x48] sm:$0xf]
      %v1755 = vld [vmem:[%s1449 + $0x4c] sm:$0xf]
      %v1756 = vld [vmem:[%s1449 + $0x50] sm:$0x1]
      %v1757 = vld [vmem:[%s1449 + $0x54] sm:$0xf]
      %v1758 = vld [vmem:[%s1449 + $0x58] sm:$0xf]
      %v1759 = vld [vmem:[%s1449 + $0x5c] sm:$0x1]
      %v1760 = vld [vmem:[%s1449 + $0x60] sm:$0xf]
      %v1761 = vld [vmem:[%s1449 + $0x64] sm:$0xf]
      %v1762 = vld [vmem:[%s1449 + $0x68] sm:$0x1]
      %v1763 = vld [vmem:[%s1449 + $0x6c] sm:$0xf]
      %v1764 = vld [vmem:[%s1449 + $0x70] sm:$0xf]
      %v1765 = vld [vmem:[%s1449 + $0x74] sm:$0x1]
      %v1766 = vld [vmem:[%s1449 + $0x78] sm:$0xf]
      %v1767 = vld [vmem:[%s1449 + $0x7c] sm:$0xf]
      %v1768 = vld [vmem:[%s1449 + $0x80] sm:$0x1]
      %v1769 = vld [vmem:[%s1449 + $0x84] sm:$0xf]
      %v1770 = vld [vmem:[%s1449 + $0x88] sm:$0xf]
      %v1771 = vld [vmem:[%s1449 + $0x8c] sm:$0x1]
      %v1772 = vld [vmem:[%s1449 + $0x90] sm:$0xf]
      %v1773 = vld [vmem:[%s1449 + $0x94] sm:$0xf]
      %v1774 = vld [vmem:[%s1449 + $0x98] sm:$0x1]
      %v1775 = vld [vmem:[%s1449 + $0x9c] sm:$0xf]
      %v1776 = vld [vmem:[%s1449 + $0xa0] sm:$0xf]
      %v1777 = vld [vmem:[%s1449 + $0xa4] sm:$0x1]
      %v1778 = vld [vmem:[%s1449 + $0xa8] sm:$0xf]
      %v1779 = vld [vmem:[%s1449 + $0xac] sm:$0xf]
      %v1780 = vld [vmem:[%s1449 + $0xb0] sm:$0x1]
      %v1781 = vld [vmem:[%s1449 + $0xb4] sm:$0xf]
      %v1782 = vld [vmem:[%s1449 + $0xb8] sm:$0xf]
      %v1783 = vld [vmem:[%s1449 + $0xbc] sm:$0x1]
      %v1785 = vshrl.u32 %v1736, 16
      %v1787 = vrot.slane %v1785, 4
      %v1788 = vshll.u32 %v1736, 16
      %v1790 = vrot.slane %v1788, 5
      %v1791 = vor.u32 %v1787, %v1790
      %v1792 = vrot.slane %v1791, 4
      %v1794 = vshll.u32 %v1737, 16
      %v1796 = vrot.slane %v1794, 5
      %v1797 = vsel %vm267, %v1792, %v1796
      %v1798 = vshrl.u32 %v1737, 16
      %v1800 = vrot.slane %v1798, 4
      %v1801 = vor.u32 %v1800, %v1796
      %v1802 = vrot.slane %v1801, 4
      %v1804 = vshll.u32 %v1738, 16
      %v1806 = vrot.slane %v1804, 5
      %v1807 = vsel %vm267, %v1802, %v1806
      %v1809 = vshrl.u32 %v1739, 16
      %v1811 = vrot.slane %v1809, 4
      %v1812 = vshll.u32 %v1739, 16
      %v1814 = vrot.slane %v1812, 5
      %v1815 = vor.u32 %v1811, %v1814
      %v1816 = vrot.slane %v1815, 4
      %v1818 = vshll.u32 %v1740, 16
      %v1820 = vrot.slane %v1818, 5
      %v1821 = vsel %vm267, %v1816, %v1820
      %v1822 = vshrl.u32 %v1740, 16
      %v1824 = vrot.slane %v1822, 4
      %v1825 = vor.u32 %v1824, %v1820
      %v1826 = vrot.slane %v1825, 4
      %v1828 = vshll.u32 %v1741, 16
      %v1830 = vrot.slane %v1828, 5
      %v1831 = vsel %vm267, %v1826, %v1830
      %v1833 = vshrl.u32 %v1742, 16
      %v1835 = vrot.slane %v1833, 4
      %v1836 = vshll.u32 %v1742, 16
      %v1838 = vrot.slane %v1836, 5
      %v1839 = vor.u32 %v1835, %v1838
      %v1840 = vrot.slane %v1839, 4
      %v1842 = vshll.u32 %v1743, 16
      %v1844 = vrot.slane %v1842, 5
      %v1845 = vsel %vm267, %v1840, %v1844
      %v1846 = vshrl.u32 %v1743, 16
      %v1848 = vrot.slane %v1846, 4
      %v1849 = vor.u32 %v1848, %v1844
      %v1850 = vrot.slane %v1849, 4
      %v1852 = vshll.u32 %v1744, 16
      %v1854 = vrot.slane %v1852, 5
      %v1855 = vsel %vm267, %v1850, %v1854
      %v1857 = vshrl.u32 %v1745, 16
      %v1859 = vrot.slane %v1857, 4
      %v1860 = vshll.u32 %v1745, 16
      %v1862 = vrot.slane %v1860, 5
      %v1863 = vor.u32 %v1859, %v1862
      %v1864 = vrot.slane %v1863, 4
      %v1866 = vshll.u32 %v1746, 16
      %v1868 = vrot.slane %v1866, 5
      %v1869 = vsel %vm267, %v1864, %v1868
      %v1870 = vshrl.u32 %v1746, 16
      %v1872 = vrot.slane %v1870, 4
      %v1873 = vor.u32 %v1872, %v1868
      %v1874 = vrot.slane %v1873, 4
      %v1876 = vshll.u32 %v1747, 16
      %v1878 = vrot.slane %v1876, 5
      %v1879 = vsel %vm267, %v1874, %v1878
      %v1881 = vshrl.u32 %v1748, 16
      %v1883 = vrot.slane %v1881, 4
      %v1884 = vshll.u32 %v1748, 16
      %v1886 = vrot.slane %v1884, 5
      %v1887 = vor.u32 %v1883, %v1886
      %v1888 = vrot.slane %v1887, 4
      %v1890 = vshll.u32 %v1749, 16
      %v1892 = vrot.slane %v1890, 5
      %v1893 = vsel %vm267, %v1888, %v1892
      %v1894 = vshrl.u32 %v1749, 16
      %v1896 = vrot.slane %v1894, 4
      %v1897 = vor.u32 %v1896, %v1892
      %v1898 = vrot.slane %v1897, 4
      %v1900 = vshll.u32 %v1750, 16
      %v1902 = vrot.slane %v1900, 5
      %v1903 = vsel %vm267, %v1898, %v1902
      %v1905 = vshrl.u32 %v1751, 16
      %v1907 = vrot.slane %v1905, 4
      %v1908 = vshll.u32 %v1751, 16
      %v1910 = vrot.slane %v1908, 5
      %v1911 = vor.u32 %v1907, %v1910
      %v1912 = vrot.slane %v1911, 4
      %v1914 = vshll.u32 %v1752, 16
      %v1916 = vrot.slane %v1914, 5
      %v1917 = vsel %vm267, %v1912, %v1916
      %v1918 = vshrl.u32 %v1752, 16
      %v1920 = vrot.slane %v1918, 4
      %v1921 = vor.u32 %v1920, %v1916
      %v1922 = vrot.slane %v1921, 4
      %v1924 = vshll.u32 %v1753, 16
      %v1926 = vrot.slane %v1924, 5
      %v1927 = vsel %vm267, %v1922, %v1926
      %v1929 = vshrl.u32 %v1754, 16
      %v1931 = vrot.slane %v1929, 4
      %v1932 = vshll.u32 %v1754, 16
      %v1934 = vrot.slane %v1932, 5
      %v1935 = vor.u32 %v1931, %v1934
      %v1936 = vrot.slane %v1935, 4
      %v1938 = vshll.u32 %v1755, 16
      %v1940 = vrot.slane %v1938, 5
      %v1941 = vsel %vm267, %v1936, %v1940
      %v1942 = vshrl.u32 %v1755, 16
      %v1944 = vrot.slane %v1942, 4
      %v1945 = vor.u32 %v1944, %v1940
      %v1946 = vrot.slane %v1945, 4
      %v1948 = vshll.u32 %v1756, 16
      %v1950 = vrot.slane %v1948, 5
      %v1951 = vsel %vm267, %v1946, %v1950
      %v1953 = vshrl.u32 %v1757, 16
      %v1955 = vrot.slane %v1953, 4
      %v1956 = vshll.u32 %v1757, 16
      %v1958 = vrot.slane %v1956, 5
      %v1959 = vor.u32 %v1955, %v1958
      %v1960 = vrot.slane %v1959, 4
      %v1962 = vshll.u32 %v1758, 16
      %v1964 = vrot.slane %v1962, 5
      %v1965 = vsel %vm267, %v1960, %v1964
      %v1966 = vshrl.u32 %v1758, 16
      %v1968 = vrot.slane %v1966, 4
      %v1969 = vor.u32 %v1968, %v1964
      %v1970 = vrot.slane %v1969, 4
      %v1972 = vshll.u32 %v1759, 16
      %v1974 = vrot.slane %v1972, 5
      %v1975 = vsel %vm267, %v1970, %v1974
      %v1977 = vshrl.u32 %v1760, 16
      %v1979 = vrot.slane %v1977, 4
      %v1980 = vshll.u32 %v1760, 16
      %v1982 = vrot.slane %v1980, 5
      %v1983 = vor.u32 %v1979, %v1982
      %v1984 = vrot.slane %v1983, 4
      %v1986 = vshll.u32 %v1761, 16
      %v1988 = vrot.slane %v1986, 5
      %v1989 = vsel %vm267, %v1984, %v1988
      %v1990 = vshrl.u32 %v1761, 16
      %v1992 = vrot.slane %v1990, 4
      %v1993 = vor.u32 %v1992, %v1988
      %v1994 = vrot.slane %v1993, 4
      %v1996 = vshll.u32 %v1762, 16
      %v1998 = vrot.slane %v1996, 5
      %v1999 = vsel %vm267, %v1994, %v1998
      %v2001 = vshrl.u32 %v1763, 16
      %v2003 = vrot.slane %v2001, 4
      %v2004 = vshll.u32 %v1763, 16
      %v2006 = vrot.slane %v2004, 5
      %v2007 = vor.u32 %v2003, %v2006
      %v2008 = vrot.slane %v2007, 4
      %v2010 = vshll.u32 %v1764, 16
      %v2012 = vrot.slane %v2010, 5
      %v2013 = vsel %vm267, %v2008, %v2012
      %v2014 = vshrl.u32 %v1764, 16
      %v2016 = vrot.slane %v2014, 4
      %v2017 = vor.u32 %v2016, %v2012
      %v2018 = vrot.slane %v2017, 4
      %v2020 = vshll.u32 %v1765, 16
      %v2022 = vrot.slane %v2020, 5
      %v2023 = vsel %vm267, %v2018, %v2022
      %v2025 = vshrl.u32 %v1766, 16
      %v2027 = vrot.slane %v2025, 4
      %v2028 = vshll.u32 %v1766, 16
      %v2030 = vrot.slane %v2028, 5
      %v2031 = vor.u32 %v2027, %v2030
      %v2032 = vrot.slane %v2031, 4
      %v2034 = vshll.u32 %v1767, 16
      %v2036 = vrot.slane %v2034, 5
      %v2037 = vsel %vm267, %v2032, %v2036
      %v2038 = vshrl.u32 %v1767, 16
      %v2040 = vrot.slane %v2038, 4
      %v2041 = vor.u32 %v2040, %v2036
      %v2042 = vrot.slane %v2041, 4
      %v2044 = vshll.u32 %v1768, 16
      %v2046 = vrot.slane %v2044, 5
      %v2047 = vsel %vm267, %v2042, %v2046
      %v2049 = vshrl.u32 %v1769, 16
      %v2051 = vrot.slane %v2049, 4
      %v2052 = vshll.u32 %v1769, 16
      %v2054 = vrot.slane %v2052, 5
      %v2055 = vor.u32 %v2051, %v2054
      %v2056 = vrot.slane %v2055, 4
      %v2058 = vshll.u32 %v1770, 16
      %v2060 = vrot.slane %v2058, 5
      %v2061 = vsel %vm267, %v2056, %v2060
      %v2062 = vshrl.u32 %v1770, 16
      %v2064 = vrot.slane %v2062, 4
      %v2065 = vor.u32 %v2064, %v2060
      %v2066 = vrot.slane %v2065, 4
      %v2068 = vshll.u32 %v1771, 16
      %v2070 = vrot.slane %v2068, 5
      %v2071 = vsel %vm267, %v2066, %v2070
      %v2073 = vshrl.u32 %v1772, 16
      %v2075 = vrot.slane %v2073, 4
      %v2076 = vshll.u32 %v1772, 16
      %v2078 = vrot.slane %v2076, 5
      %v2079 = vor.u32 %v2075, %v2078
      %v2080 = vrot.slane %v2079, 4
      %v2082 = vshll.u32 %v1773, 16
      %v2084 = vrot.slane %v2082, 5
      %v2085 = vsel %vm267, %v2080, %v2084
      %v2086 = vshrl.u32 %v1773, 16
      %v2088 = vrot.slane %v2086, 4
      %v2089 = vor.u32 %v2088, %v2084
      %v2090 = vrot.slane %v2089, 4
      %v2092 = vshll.u32 %v1774, 16
      %v2094 = vrot.slane %v2092, 5
      %v2095 = vsel %vm267, %v2090, %v2094
      %v2097 = vshrl.u32 %v1775, 16
      %v2099 = vrot.slane %v2097, 4
      %v2100 = vshll.u32 %v1775, 16
      %v2102 = vrot.slane %v2100, 5
      %v2103 = vor.u32 %v2099, %v2102
      %v2104 = vrot.slane %v2103, 4
      %v2106 = vshll.u32 %v1776, 16
      %v2108 = vrot.slane %v2106, 5
      %v2109 = vsel %vm267, %v2104, %v2108
      %v2110 = vshrl.u32 %v1776, 16
      %v2112 = vrot.slane %v2110, 4
      %v2113 = vor.u32 %v2112, %v2108
      %v2114 = vrot.slane %v2113, 4
      %v2116 = vshll.u32 %v1777, 16
      %v2118 = vrot.slane %v2116, 5
      %v2119 = vsel %vm267, %v2114, %v2118
      %v2121 = vshrl.u32 %v1778, 16
      %v2123 = vrot.slane %v2121, 4
      %v2124 = vshll.u32 %v1778, 16
      %v2126 = vrot.slane %v2124, 5
      %v2127 = vor.u32 %v2123, %v2126
      %v2128 = vrot.slane %v2127, 4
      %v2130 = vshll.u32 %v1779, 16
      %v2132 = vrot.slane %v2130, 5
      %v2133 = vsel %vm267, %v2128, %v2132
      %v2134 = vshrl.u32 %v1779, 16
      %v2136 = vrot.slane %v2134, 4
      %v2137 = vor.u32 %v2136, %v2132
      %v2138 = vrot.slane %v2137, 4
      %v2140 = vshll.u32 %v1780, 16
      %v2142 = vrot.slane %v2140, 5
      %v2143 = vsel %vm267, %v2138, %v2142
      %v2145 = vshrl.u32 %v1781, 16
      %v2147 = vrot.slane %v2145, 4
      %v2148 = vshll.u32 %v1781, 16
      %v2150 = vrot.slane %v2148, 5
      %v2151 = vor.u32 %v2147, %v2150
      %v2152 = vrot.slane %v2151, 4
      %v2154 = vshll.u32 %v1782, 16
      %v2156 = vrot.slane %v2154, 5
      %v2157 = vsel %vm267, %v2152, %v2156
      %v2158 = vshrl.u32 %v1782, 16
      %v2160 = vrot.slane %v2158, 4
      %v2161 = vor.u32 %v2160, %v2156
      %v2162 = vrot.slane %v2161, 4
      %v2164 = vshll.u32 %v1783, 16
      %v2166 = vrot.slane %v2164, 5
      %v2167 = vsel %vm267, %v2162, %v2166
      %s2168 = scalar_lea.vmem %s1, 16
      %v2169 = vld [vmem:[%s2168] sm:$0xf]
      %v2170 = vunpack.c.l.b16 %v1797
      %v2171 = vunpack.c.l.b16 %v1807
      %v2172 = vunpack.c.l.b16 %v1821
      %v2173 = vunpack.c.l.b16 %v1831
      %v2174 = vunpack.c.l.b16 %v1845
      %v2175 = vunpack.c.l.b16 %v1855
      %v2176 = vunpack.c.l.b16 %v1869
      %v2177 = vunpack.c.l.b16 %v1879
      %v2178 = vunpack.c.l.b16 %v1893
      %v2179 = vunpack.c.l.b16 %v1903
      %v2180 = vunpack.c.l.b16 %v1917
      %v2181 = vunpack.c.l.b16 %v1927
      %v2182 = vunpack.c.l.b16 %v1941
      %v2183 = vunpack.c.l.b16 %v1951
      %v2184 = vunpack.c.l.b16 %v1965
      %v2185 = vunpack.c.l.b16 %v1975
      %v2186 = vunpack.c.l.b16 %v1989
      %v2187 = vunpack.c.l.b16 %v1999
      %v2188 = vunpack.c.l.b16 %v2013
      %v2189 = vunpack.c.l.b16 %v2023
      %v2190 = vunpack.c.l.b16 %v2037
      %v2191 = vunpack.c.l.b16 %v2047
      %v2192 = vunpack.c.l.b16 %v2061
      %v2193 = vunpack.c.l.b16 %v2071
      %v2194 = vunpack.c.l.b16 %v2085
      %v2195 = vunpack.c.l.b16 %v2095
      %v2196 = vunpack.c.l.b16 %v2109
      %v2197 = vunpack.c.l.b16 %v2119
      %v2198 = vunpack.c.l.b16 %v2133
      %v2199 = vunpack.c.l.b16 %v2143
      %v2200 = vunpack.c.l.b16 %v2157
      %v2201 = vunpack.c.l.b16 %v2167
      %v2202 = vpack.c.b16 %v2171, %v2170
      %v2203 = vpack.c.b16 %v2173, %v2172
      %v2204 = vpack.c.b16 %v2175, %v2174
      %v2205 = vpack.c.b16 %v2177, %v2176
      %v2206 = vpack.c.b16 %v2179, %v2178
      %v2207 = vpack.c.b16 %v2181, %v2180
      %v2208 = vpack.c.b16 %v2183, %v2182
      %v2209 = vpack.c.b16 %v2185, %v2184
      %v2210 = vpack.c.b16 %v2187, %v2186
      %v2211 = vpack.c.b16 %v2189, %v2188
      %v2212 = vpack.c.b16 %v2191, %v2190
      %v2213 = vpack.c.b16 %v2193, %v2192
      %v2214 = vpack.c.b16 %v2195, %v2194
      %v2215 = vpack.c.b16 %v2197, %v2196
      %v2216 = vpack.c.b16 %v2199, %v2198
      %v2217 = vpack.c.b16 %v2201, %v2200
      %v2219 = vsel %vm702, %v2202, 0
      %v2222 = vsel %vm702, %v2203, 0
      %v2225 = vsel %vm702, %v2204, 0
      %v2228 = vsel %vm702, %v2205, 0
      %v2231 = vsel %vm702, %v2206, 0
      %v2234 = vsel %vm702, %v2207, 0
      %v2237 = vsel %vm702, %v2208, 0
      %v2240 = vsel %vm702, %v2209, 0
      %v2243 = vsel %vm702, %v2210, 0
      %v2246 = vsel %vm702, %v2211, 0
      %v2249 = vsel %vm702, %v2212, 0
      %v2252 = vsel %vm702, %v2213, 0
      %v2255 = vsel %vm702, %v2214, 0
      %v2258 = vsel %vm702, %v2215, 0
      %v2261 = vsel %vm702, %v2216, 0
      %v2264 = vsel %vm702, %v2217, 0
      %v2267 = vsel %vm751, %v2169, 0
      %2269 = vmatpush.bf16.msra.mxu0 0
      %2270 = vmatpush.bf16.msra.mxu0 0
      %2271 = vmatpush.bf16.msra.mxu0 0
      %2272 = vmatpush.bf16.msra.mxu0 0
      %2273 = vmatpush.bf16.msra.mxu0 0
      %2274 = vmatpush.bf16.msra.mxu0 0
      %2275 = vmatpush.bf16.msra.mxu0 0
      %2276 = vmatpush.bf16.msra.mxu0 %v2267
      %2277 = vmatmul.bf16.gmra.mxu0 %v2219
      %v2278 = vpop.f32.mrf.mxu0
      %v2279 = vadd.f32 0.0, %v2278
      %v2280 = vpop.f32.mrf.mxu0
      %v2281 = vadd.f32 0.0, %v2280
      %2282 = vmatmul.bf16.gmra.mxu0 %v2222
      %v2283 = vpop.f32.mrf.mxu0
      %v2284 = vadd.f32 0.0, %v2283
      %v2285 = vpop.f32.mrf.mxu0
      %v2286 = vadd.f32 0.0, %v2285
      %2287 = vmatmul.bf16.gmra.mxu0 %v2225
      %v2288 = vpop.f32.mrf.mxu0
      %v2289 = vadd.f32 0.0, %v2288
      %v2290 = vpop.f32.mrf.mxu0
      %v2291 = vadd.f32 0.0, %v2290
      %2292 = vmatmul.bf16.gmra.mxu0 %v2228
      %v2293 = vpop.f32.mrf.mxu0
      %v2294 = vadd.f32 0.0, %v2293
      %v2295 = vpop.f32.mrf.mxu0
      %v2296 = vadd.f32 0.0, %v2295
      %2297 = vmatmul.bf16.gmra.mxu0 %v2231
      %v2298 = vpop.f32.mrf.mxu0
      %v2299 = vadd.f32 0.0, %v2298
      %v2300 = vpop.f32.mrf.mxu0
      %v2301 = vadd.f32 0.0, %v2300
      %2302 = vmatmul.bf16.gmra.mxu0 %v2234
      %v2303 = vpop.f32.mrf.mxu0
      %v2304 = vadd.f32 0.0, %v2303
      %v2305 = vpop.f32.mrf.mxu0
      %v2306 = vadd.f32 0.0, %v2305
      %2307 = vmatmul.bf16.gmra.mxu0 %v2237
      %v2308 = vpop.f32.mrf.mxu0
      %v2309 = vadd.f32 0.0, %v2308
      %v2310 = vpop.f32.mrf.mxu0
      %v2311 = vadd.f32 0.0, %v2310
      %2312 = vmatmul.bf16.gmra.mxu0 %v2240
      %v2313 = vpop.f32.mrf.mxu0
      %v2314 = vadd.f32 0.0, %v2313
      %v2315 = vpop.f32.mrf.mxu0
      %v2316 = vadd.f32 0.0, %v2315
      %2317 = vmatmul.bf16.gmra.mxu0 %v2243
      %v2318 = vpop.f32.mrf.mxu0
      %v2319 = vadd.f32 0.0, %v2318
      %v2320 = vpop.f32.mrf.mxu0
      %v2321 = vadd.f32 0.0, %v2320
      %2322 = vmatmul.bf16.gmra.mxu0 %v2246
      %v2323 = vpop.f32.mrf.mxu0
      %v2324 = vadd.f32 0.0, %v2323
      %v2325 = vpop.f32.mrf.mxu0
      %v2326 = vadd.f32 0.0, %v2325
      %2327 = vmatmul.bf16.gmra.mxu0 %v2249
      %v2328 = vpop.f32.mrf.mxu0
      %v2329 = vadd.f32 0.0, %v2328
      %v2330 = vpop.f32.mrf.mxu0
      %v2331 = vadd.f32 0.0, %v2330
      %2332 = vmatmul.bf16.gmra.mxu0 %v2252
      %v2333 = vpop.f32.mrf.mxu0
      %v2334 = vadd.f32 0.0, %v2333
      %v2335 = vpop.f32.mrf.mxu0
      %v2336 = vadd.f32 0.0, %v2335
      %2337 = vmatmul.bf16.gmra.mxu0 %v2255
      %v2338 = vpop.f32.mrf.mxu0
      %v2339 = vadd.f32 0.0, %v2338
      %v2340 = vpop.f32.mrf.mxu0
      %v2341 = vadd.f32 0.0, %v2340
      %2342 = vmatmul.bf16.gmra.mxu0 %v2258
      %v2343 = vpop.f32.mrf.mxu0
      %v2344 = vadd.f32 0.0, %v2343
      %v2345 = vpop.f32.mrf.mxu0
      %v2346 = vadd.f32 0.0, %v2345
      %2347 = vmatmul.bf16.gmra.mxu0 %v2261
      %v2348 = vpop.f32.mrf.mxu0
      %v2349 = vadd.f32 0.0, %v2348
      %v2350 = vpop.f32.mrf.mxu0
      %v2351 = vadd.f32 0.0, %v2350
      %2352 = vmatmul.bf16.gmra.mxu0 %v2264
      %v2353 = vpop.f32.mrf.mxu0
      %v2354 = vadd.f32 0.0, %v2353
      %v2355 = vpop.f32.mrf.mxu0
      %v2356 = vadd.f32 0.0, %v2355
      %2357 = vdwg.mxu0
      %v2358 = vadd.f32 %v1704, %v2279
      %v2359 = vadd.f32 %v1705, %v2281
      %v2360 = vadd.f32 %v1706, %v2284
      %v2361 = vadd.f32 %v1707, %v2286
      %v2362 = vadd.f32 %v1708, %v2289
      %v2363 = vadd.f32 %v1709, %v2291
      %v2364 = vadd.f32 %v1710, %v2294
      %v2365 = vadd.f32 %v1711, %v2296
      %v2366 = vadd.f32 %v1712, %v2299
      %v2367 = vadd.f32 %v1713, %v2301
      %v2368 = vadd.f32 %v1714, %v2304
      %v2369 = vadd.f32 %v1715, %v2306
      %v2370 = vadd.f32 %v1716, %v2309
      %v2371 = vadd.f32 %v1717, %v2311
      %v2372 = vadd.f32 %v1718, %v2314
      %v2373 = vadd.f32 %v1719, %v2316
      %v2374 = vadd.f32 %v1720, %v2319
      %v2375 = vadd.f32 %v1721, %v2321
      %v2376 = vadd.f32 %v1722, %v2324
      %v2377 = vadd.f32 %v1723, %v2326
      %v2378 = vadd.f32 %v1724, %v2329
      %v2379 = vadd.f32 %v1725, %v2331
      %v2380 = vadd.f32 %v1726, %v2334
      %v2381 = vadd.f32 %v1727, %v2336
      %v2382 = vadd.f32 %v1728, %v2339
      %v2383 = vadd.f32 %v1729, %v2341
      %v2384 = vadd.f32 %v1730, %v2344
      %v2385 = vadd.f32 %v1731, %v2346
      %v2386 = vadd.f32 %v1732, %v2349
      %v2387 = vadd.f32 %v1733, %v2351
      %v2388 = vadd.f32 %v1734, %v2354
      %v2389 = vadd.f32 %v1735, %v2356
      %v2390 = vld [vmem:[%s1449] sm:$0xe]
      %v2391 = vld [vmem:[%s1449 + $0xc] sm:$0xe]
      %v2392 = vld [vmem:[%s1449 + $0x18] sm:$0xe]
      %v2393 = vld [vmem:[%s1449 + $0x24] sm:$0xe]
      %v2394 = vld [vmem:[%s1449 + $0x30] sm:$0xe]
      %v2395 = vld [vmem:[%s1449 + $0x3c] sm:$0xe]
      %v2396 = vld [vmem:[%s1449 + $0x48] sm:$0xe]
      %v2397 = vld [vmem:[%s1449 + $0x54] sm:$0xe]
      %v2398 = vld [vmem:[%s1449 + $0x60] sm:$0xe]
      %v2399 = vld [vmem:[%s1449 + $0x6c] sm:$0xe]
      %v2400 = vld [vmem:[%s1449 + $0x78] sm:$0xe]
      %v2401 = vld [vmem:[%s1449 + $0x84] sm:$0xe]
      %v2402 = vld [vmem:[%s1449 + $0x90] sm:$0xe]
      %v2403 = vld [vmem:[%s1449 + $0x9c] sm:$0xe]
      %v2404 = vld [vmem:[%s1449 + $0xa8] sm:$0xe]
      %v2405 = vld [vmem:[%s1449 + $0xb4] sm:$0xe]
      %v2454 = vrot.slane %v2390, 5
      %v2455 = vrot.slane %v2454, 4
      %v2456 = vrot.slane %v1737, 5
      %v2457 = vsel %vm1114, %v2455, %v2456
      %v2458 = vrot.slane %v2456, 4
      %v2459 = vrot.slane %v1738, 5
      %v2460 = vsel %vm1114, %v2458, %v2459
      %v2461 = vrot.slane %v2391, 5
      %v2462 = vrot.slane %v2461, 4
      %v2463 = vrot.slane %v1740, 5
      %v2464 = vsel %vm1114, %v2462, %v2463
      %v2465 = vrot.slane %v2463, 4
      %v2466 = vrot.slane %v1741, 5
      %v2467 = vsel %vm1114, %v2465, %v2466
      %v2468 = vrot.slane %v2392, 5
      %v2469 = vrot.slane %v2468, 4
      %v2470 = vrot.slane %v1743, 5
      %v2471 = vsel %vm1114, %v2469, %v2470
      %v2472 = vrot.slane %v2470, 4
      %v2473 = vrot.slane %v1744, 5
      %v2474 = vsel %vm1114, %v2472, %v2473
      %v2475 = vrot.slane %v2393, 5
      %v2476 = vrot.slane %v2475, 4
      %v2477 = vrot.slane %v1746, 5
      %v2478 = vsel %vm1114, %v2476, %v2477
      %v2479 = vrot.slane %v2477, 4
      %v2480 = vrot.slane %v1747, 5
      %v2481 = vsel %vm1114, %v2479, %v2480
      %v2482 = vrot.slane %v2394, 5
      %v2483 = vrot.slane %v2482, 4
      %v2484 = vrot.slane %v1749, 5
      %v2485 = vsel %vm1114, %v2483, %v2484
      %v2486 = vrot.slane %v2484, 4
      %v2487 = vrot.slane %v1750, 5
      %v2488 = vsel %vm1114, %v2486, %v2487
      %v2489 = vrot.slane %v2395, 5
      %v2490 = vrot.slane %v2489, 4
      %v2491 = vrot.slane %v1752, 5
      %v2492 = vsel %vm1114, %v2490, %v2491
      %v2493 = vrot.slane %v2491, 4
      %v2494 = vrot.slane %v1753, 5
      %v2495 = vsel %vm1114, %v2493, %v2494
      %v2496 = vrot.slane %v2396, 5
      %v2497 = vrot.slane %v2496, 4
      %v2498 = vrot.slane %v1755, 5
      %v2499 = vsel %vm1114, %v2497, %v2498
      %v2500 = vrot.slane %v2498, 4
      %v2501 = vrot.slane %v1756, 5
      %v2502 = vsel %vm1114, %v2500, %v2501
      %v2503 = vrot.slane %v2397, 5
      %v2504 = vrot.slane %v2503, 4
      %v2505 = vrot.slane %v1758, 5
      %v2506 = vsel %vm1114, %v2504, %v2505
      %v2507 = vrot.slane %v2505, 4
      %v2508 = vrot.slane %v1759, 5
      %v2509 = vsel %vm1114, %v2507, %v2508
      %v2510 = vrot.slane %v2398, 5
      %v2511 = vrot.slane %v2510, 4
      %v2512 = vrot.slane %v1761, 5
      %v2513 = vsel %vm1114, %v2511, %v2512
      %v2514 = vrot.slane %v2512, 4
      %v2515 = vrot.slane %v1762, 5
      %v2516 = vsel %vm1114, %v2514, %v2515
      %v2517 = vrot.slane %v2399, 5
      %v2518 = vrot.slane %v2517, 4
      %v2519 = vrot.slane %v1764, 5
      %v2520 = vsel %vm1114, %v2518, %v2519
      %v2521 = vrot.slane %v2519, 4
      %v2522 = vrot.slane %v1765, 5
      %v2523 = vsel %vm1114, %v2521, %v2522
      %v2524 = vrot.slane %v2400, 5
      %v2525 = vrot.slane %v2524, 4
      %v2526 = vrot.slane %v1767, 5
      %v2527 = vsel %vm1114, %v2525, %v2526
      %v2528 = vrot.slane %v2526, 4
      %v2529 = vrot.slane %v1768, 5
      %v2530 = vsel %vm1114, %v2528, %v2529
      %v2531 = vrot.slane %v2401, 5
      %v2532 = vrot.slane %v2531, 4
      %v2533 = vrot.slane %v1770, 5
      %v2534 = vsel %vm1114, %v2532, %v2533
      %v2535 = vrot.slane %v2533, 4
      %v2536 = vrot.slane %v1771, 5
      %v2537 = vsel %vm1114, %v2535, %v2536
      %v2538 = vrot.slane %v2402, 5
      %v2539 = vrot.slane %v2538, 4
      %v2540 = vrot.slane %v1773, 5
      %v2541 = vsel %vm1114, %v2539, %v2540
      %v2542 = vrot.slane %v2540, 4
      %v2543 = vrot.slane %v1774, 5
      %v2544 = vsel %vm1114, %v2542, %v2543
      %v2545 = vrot.slane %v2403, 5
      %v2546 = vrot.slane %v2545, 4
      %v2547 = vrot.slane %v1776, 5
      %v2548 = vsel %vm1114, %v2546, %v2547
      %v2549 = vrot.slane %v2547, 4
      %v2550 = vrot.slane %v1777, 5
      %v2551 = vsel %vm1114, %v2549, %v2550
      %v2552 = vrot.slane %v2404, 5
      %v2553 = vrot.slane %v2552, 4
      %v2554 = vrot.slane %v1779, 5
      %v2555 = vsel %vm1114, %v2553, %v2554
      %v2556 = vrot.slane %v2554, 4
      %v2557 = vrot.slane %v1780, 5
      %v2558 = vsel %vm1114, %v2556, %v2557
      %v2559 = vrot.slane %v2405, 5
      %v2560 = vrot.slane %v2559, 4
      %v2561 = vrot.slane %v1782, 5
      %v2562 = vsel %vm1114, %v2560, %v2561
      %v2563 = vrot.slane %v2561, 4
      %v2564 = vrot.slane %v1783, 5
      %v2565 = vsel %vm1114, %v2563, %v2564
      %s2566 = scalar_lea.vmem %s1, 20
      %v2567 = vld [vmem:[%s2566] sm:$0xf]
      %v2568 = vunpack.c.l.b16 %v2457
      %v2569 = vunpack.c.l.b16 %v2460
      %v2570 = vunpack.c.l.b16 %v2464
      %v2571 = vunpack.c.l.b16 %v2467
      %v2572 = vunpack.c.l.b16 %v2471
      %v2573 = vunpack.c.l.b16 %v2474
      %v2574 = vunpack.c.l.b16 %v2478
      %v2575 = vunpack.c.l.b16 %v2481
      %v2576 = vunpack.c.l.b16 %v2485
      %v2577 = vunpack.c.l.b16 %v2488
      %v2578 = vunpack.c.l.b16 %v2492
      %v2579 = vunpack.c.l.b16 %v2495
      %v2580 = vunpack.c.l.b16 %v2499
      %v2581 = vunpack.c.l.b16 %v2502
      %v2582 = vunpack.c.l.b16 %v2506
      %v2583 = vunpack.c.l.b16 %v2509
      %v2584 = vunpack.c.l.b16 %v2513
      %v2585 = vunpack.c.l.b16 %v2516
      %v2586 = vunpack.c.l.b16 %v2520
      %v2587 = vunpack.c.l.b16 %v2523
      %v2588 = vunpack.c.l.b16 %v2527
      %v2589 = vunpack.c.l.b16 %v2530
      %v2590 = vunpack.c.l.b16 %v2534
      %v2591 = vunpack.c.l.b16 %v2537
      %v2592 = vunpack.c.l.b16 %v2541
      %v2593 = vunpack.c.l.b16 %v2544
      %v2594 = vunpack.c.l.b16 %v2548
      %v2595 = vunpack.c.l.b16 %v2551
      %v2596 = vunpack.c.l.b16 %v2555
      %v2597 = vunpack.c.l.b16 %v2558
      %v2598 = vunpack.c.l.b16 %v2562
      %v2599 = vunpack.c.l.b16 %v2565
      %v2600 = vpack.c.b16 %v2569, %v2568
      %v2601 = vpack.c.b16 %v2571, %v2570
      %v2602 = vpack.c.b16 %v2573, %v2572
      %v2603 = vpack.c.b16 %v2575, %v2574
      %v2604 = vpack.c.b16 %v2577, %v2576
      %v2605 = vpack.c.b16 %v2579, %v2578
      %v2606 = vpack.c.b16 %v2581, %v2580
      %v2607 = vpack.c.b16 %v2583, %v2582
      %v2608 = vpack.c.b16 %v2585, %v2584
      %v2609 = vpack.c.b16 %v2587, %v2586
      %v2610 = vpack.c.b16 %v2589, %v2588
      %v2611 = vpack.c.b16 %v2591, %v2590
      %v2612 = vpack.c.b16 %v2593, %v2592
      %v2613 = vpack.c.b16 %v2595, %v2594
      %v2614 = vpack.c.b16 %v2597, %v2596
      %v2615 = vpack.c.b16 %v2599, %v2598
      %v2617 = vsel %vm702, %v2600, 0
      %v2620 = vsel %vm702, %v2601, 0
      %v2623 = vsel %vm702, %v2602, 0
      %v2626 = vsel %vm702, %v2603, 0
      %v2629 = vsel %vm702, %v2604, 0
      %v2632 = vsel %vm702, %v2605, 0
      %v2635 = vsel %vm702, %v2606, 0
      %v2638 = vsel %vm702, %v2607, 0
      %v2641 = vsel %vm702, %v2608, 0
      %v2644 = vsel %vm702, %v2609, 0
      %v2647 = vsel %vm702, %v2610, 0
      %v2650 = vsel %vm702, %v2611, 0
      %v2653 = vsel %vm702, %v2612, 0
      %v2656 = vsel %vm702, %v2613, 0
      %v2659 = vsel %vm702, %v2614, 0
      %v2662 = vsel %vm702, %v2615, 0
      %v2665 = vsel %vm751, %v2567, 0
      %2667 = vmatpush.bf16.msra.mxu0 0
      %2668 = vmatpush.bf16.msra.mxu0 0
      %2669 = vmatpush.bf16.msra.mxu0 0
      %2670 = vmatpush.bf16.msra.mxu0 0
      %2671 = vmatpush.bf16.msra.mxu0 0
      %2672 = vmatpush.bf16.msra.mxu0 0
      %2673 = vmatpush.bf16.msra.mxu0 0
      %2674 = vmatpush.bf16.msra.mxu0 %v2665
      %2675 = vmatmul.bf16.gmra.mxu0 %v2617
      %v2676 = vpop.f32.mrf.mxu0
      %v2677 = vadd.f32 0.0, %v2676
      %v2678 = vpop.f32.mrf.mxu0
      %v2679 = vadd.f32 0.0, %v2678
      %2680 = vmatmul.bf16.gmra.mxu0 %v2620
      %v2681 = vpop.f32.mrf.mxu0
      %v2682 = vadd.f32 0.0, %v2681
      %v2683 = vpop.f32.mrf.mxu0
      %v2684 = vadd.f32 0.0, %v2683
      %2685 = vmatmul.bf16.gmra.mxu0 %v2623
      %v2686 = vpop.f32.mrf.mxu0
      %v2687 = vadd.f32 0.0, %v2686
      %v2688 = vpop.f32.mrf.mxu0
      %v2689 = vadd.f32 0.0, %v2688
      %2690 = vmatmul.bf16.gmra.mxu0 %v2626
      %v2691 = vpop.f32.mrf.mxu0
      %v2692 = vadd.f32 0.0, %v2691
      %v2693 = vpop.f32.mrf.mxu0
      %v2694 = vadd.f32 0.0, %v2693
      %2695 = vmatmul.bf16.gmra.mxu0 %v2629
      %v2696 = vpop.f32.mrf.mxu0
      %v2697 = vadd.f32 0.0, %v2696
      %v2698 = vpop.f32.mrf.mxu0
      %v2699 = vadd.f32 0.0, %v2698
      %2700 = vmatmul.bf16.gmra.mxu0 %v2632
      %v2701 = vpop.f32.mrf.mxu0
      %v2702 = vadd.f32 0.0, %v2701
      %v2703 = vpop.f32.mrf.mxu0
      %v2704 = vadd.f32 0.0, %v2703
      %2705 = vmatmul.bf16.gmra.mxu0 %v2635
      %v2706 = vpop.f32.mrf.mxu0
      %v2707 = vadd.f32 0.0, %v2706
      %v2708 = vpop.f32.mrf.mxu0
      %v2709 = vadd.f32 0.0, %v2708
      %2710 = vmatmul.bf16.gmra.mxu0 %v2638
      %v2711 = vpop.f32.mrf.mxu0
      %v2712 = vadd.f32 0.0, %v2711
      %v2713 = vpop.f32.mrf.mxu0
      %v2714 = vadd.f32 0.0, %v2713
      %2715 = vmatmul.bf16.gmra.mxu0 %v2641
      %v2716 = vpop.f32.mrf.mxu0
      %v2717 = vadd.f32 0.0, %v2716
      %v2718 = vpop.f32.mrf.mxu0
      %v2719 = vadd.f32 0.0, %v2718
      %2720 = vmatmul.bf16.gmra.mxu0 %v2644
      %v2721 = vpop.f32.mrf.mxu0
      %v2722 = vadd.f32 0.0, %v2721
      %v2723 = vpop.f32.mrf.mxu0
      %v2724 = vadd.f32 0.0, %v2723
      %2725 = vmatmul.bf16.gmra.mxu0 %v2647
      %v2726 = vpop.f32.mrf.mxu0
      %v2727 = vadd.f32 0.0, %v2726
      %v2728 = vpop.f32.mrf.mxu0
      %v2729 = vadd.f32 0.0, %v2728
      %2730 = vmatmul.bf16.gmra.mxu0 %v2650
      %v2731 = vpop.f32.mrf.mxu0
      %v2732 = vadd.f32 0.0, %v2731
      %v2733 = vpop.f32.mrf.mxu0
      %v2734 = vadd.f32 0.0, %v2733
      %2735 = vmatmul.bf16.gmra.mxu0 %v2653
      %v2736 = vpop.f32.mrf.mxu0
      %v2737 = vadd.f32 0.0, %v2736
      %v2738 = vpop.f32.mrf.mxu0
      %v2739 = vadd.f32 0.0, %v2738
      %2740 = vmatmul.bf16.gmra.mxu0 %v2656
      %v2741 = vpop.f32.mrf.mxu0
      %v2742 = vadd.f32 0.0, %v2741
      %v2743 = vpop.f32.mrf.mxu0
      %v2744 = vadd.f32 0.0, %v2743
      %2745 = vmatmul.bf16.gmra.mxu0 %v2659
      %v2746 = vpop.f32.mrf.mxu0
      %v2747 = vadd.f32 0.0, %v2746
      %v2748 = vpop.f32.mrf.mxu0
      %v2749 = vadd.f32 0.0, %v2748
      %2750 = vmatmul.bf16.gmra.mxu0 %v2662
      %v2751 = vpop.f32.mrf.mxu0
      %v2752 = vadd.f32 0.0, %v2751
      %v2753 = vpop.f32.mrf.mxu0
      %v2754 = vadd.f32 0.0, %v2753
      %2755 = vdwg.mxu0
      %v2756 = vadd.f32 %v2358, %v2677
      %v2757 = vadd.f32 %v2359, %v2679
      %v2758 = vadd.f32 %v2360, %v2682
      %v2759 = vadd.f32 %v2361, %v2684
      %v2760 = vadd.f32 %v2362, %v2687
      %v2761 = vadd.f32 %v2363, %v2689
      %v2762 = vadd.f32 %v2364, %v2692
      %v2763 = vadd.f32 %v2365, %v2694
      %v2764 = vadd.f32 %v2366, %v2697
      %v2765 = vadd.f32 %v2367, %v2699
      %v2766 = vadd.f32 %v2368, %v2702
      %v2767 = vadd.f32 %v2369, %v2704
      %v2768 = vadd.f32 %v2370, %v2707
      %v2769 = vadd.f32 %v2371, %v2709
      %v2770 = vadd.f32 %v2372, %v2712
      %v2771 = vadd.f32 %v2373, %v2714
      %v2772 = vadd.f32 %v2374, %v2717
      %v2773 = vadd.f32 %v2375, %v2719
      %v2774 = vadd.f32 %v2376, %v2722
      %v2775 = vadd.f32 %v2377, %v2724
      %v2776 = vadd.f32 %v2378, %v2727
      %v2777 = vadd.f32 %v2379, %v2729
      %v2778 = vadd.f32 %v2380, %v2732
      %v2779 = vadd.f32 %v2381, %v2734
      %v2780 = vadd.f32 %v2382, %v2737
      %v2781 = vadd.f32 %v2383, %v2739
      %v2782 = vadd.f32 %v2384, %v2742
      %v2783 = vadd.f32 %v2385, %v2744
      %v2784 = vadd.f32 %v2386, %v2747
      %v2785 = vadd.f32 %v2387, %v2749
      %v2786 = vadd.f32 %v2388, %v2752
      %v2787 = vadd.f32 %v2389, %v2754
      %s2788 = scalar_lea.vmem %s203, 24
      %v2789 = vld [vmem:[%s2788] sm:$0xf]
      %v2790 = vld [vmem:[%s2788 + $0x4] sm:$0xf]
      %v2791 = vld [vmem:[%s2788 + $0xc] sm:$0xf]
      %v2792 = vld [vmem:[%s2788 + $0x10] sm:$0xf]
      %v2793 = vld [vmem:[%s2788 + $0x18] sm:$0xf]
      %v2794 = vld [vmem:[%s2788 + $0x1c] sm:$0xf]
      %v2795 = vld [vmem:[%s2788 + $0x24] sm:$0xf]
      %v2796 = vld [vmem:[%s2788 + $0x28] sm:$0xf]
      %v2797 = vld [vmem:[%s2788 + $0x30] sm:$0xf]
      %v2798 = vld [vmem:[%s2788 + $0x34] sm:$0xf]
      %v2799 = vld [vmem:[%s2788 + $0x3c] sm:$0xf]
      %v2800 = vld [vmem:[%s2788 + $0x40] sm:$0xf]
      %v2801 = vld [vmem:[%s2788 + $0x48] sm:$0xf]
      %v2802 = vld [vmem:[%s2788 + $0x4c] sm:$0xf]
      %v2803 = vld [vmem:[%s2788 + $0x54] sm:$0xf]
      %v2804 = vld [vmem:[%s2788 + $0x58] sm:$0xf]
      %v2805 = vld [vmem:[%s2788 + $0x60] sm:$0xf]
      %v2806 = vld [vmem:[%s2788 + $0x64] sm:$0xf]
      %v2807 = vld [vmem:[%s2788 + $0x6c] sm:$0xf]
      %v2808 = vld [vmem:[%s2788 + $0x70] sm:$0xf]
      %v2809 = vld [vmem:[%s2788 + $0x78] sm:$0xf]
      %v2810 = vld [vmem:[%s2788 + $0x7c] sm:$0xf]
      %v2811 = vld [vmem:[%s2788 + $0x84] sm:$0xf]
      %v2812 = vld [vmem:[%s2788 + $0x88] sm:$0xf]
      %v2813 = vld [vmem:[%s2788 + $0x90] sm:$0xf]
      %v2814 = vld [vmem:[%s2788 + $0x94] sm:$0xf]
      %v2815 = vld [vmem:[%s2788 + $0x9c] sm:$0xf]
      %v2816 = vld [vmem:[%s2788 + $0xa0] sm:$0xf]
      %v2817 = vld [vmem:[%s2788 + $0xa8] sm:$0xf]
      %v2818 = vld [vmem:[%s2788 + $0xac] sm:$0xf]
      %v2819 = vld [vmem:[%s2788 + $0xb4] sm:$0xf]
      %v2820 = vld [vmem:[%s2788 + $0xb8] sm:$0xf]
      %s2821 = scalar_lea.vmem %s1, 24
      %v2822 = vld [vmem:[%s2821] sm:$0xf]
      %v2855 = vunpack.c.l.b16 %v2789
      %v2856 = vunpack.c.l.b16 %v2790
      %v2857 = vunpack.c.l.b16 %v2791
      %v2858 = vunpack.c.l.b16 %v2792
      %v2859 = vunpack.c.l.b16 %v2793
      %v2860 = vunpack.c.l.b16 %v2794
      %v2861 = vunpack.c.l.b16 %v2795
      %v2862 = vunpack.c.l.b16 %v2796
      %v2863 = vunpack.c.l.b16 %v2797
      %v2864 = vunpack.c.l.b16 %v2798
      %v2865 = vunpack.c.l.b16 %v2799
      %v2866 = vunpack.c.l.b16 %v2800
      %v2867 = vunpack.c.l.b16 %v2801
      %v2868 = vunpack.c.l.b16 %v2802
      %v2869 = vunpack.c.l.b16 %v2803
      %v2870 = vunpack.c.l.b16 %v2804
      %v2871 = vunpack.c.l.b16 %v2805
      %v2872 = vunpack.c.l.b16 %v2806
      %v2873 = vunpack.c.l.b16 %v2807
      %v2874 = vunpack.c.l.b16 %v2808
      %v2875 = vunpack.c.l.b16 %v2809
      %v2876 = vunpack.c.l.b16 %v2810
      %v2877 = vunpack.c.l.b16 %v2811
      %v2878 = vunpack.c.l.b16 %v2812
      %v2879 = vunpack.c.l.b16 %v2813
      %v2880 = vunpack.c.l.b16 %v2814
      %v2881 = vunpack.c.l.b16 %v2815
      %v2882 = vunpack.c.l.b16 %v2816
      %v2883 = vunpack.c.l.b16 %v2817
      %v2884 = vunpack.c.l.b16 %v2818
      %v2885 = vunpack.c.l.b16 %v2819
      %v2886 = vunpack.c.l.b16 %v2820
      %v2887 = vpack.c.b16 %v2856, %v2855
      %v2888 = vpack.c.b16 %v2858, %v2857
      %v2889 = vpack.c.b16 %v2860, %v2859
      %v2890 = vpack.c.b16 %v2862, %v2861
      %v2891 = vpack.c.b16 %v2864, %v2863
      %v2892 = vpack.c.b16 %v2866, %v2865
      %v2893 = vpack.c.b16 %v2868, %v2867
      %v2894 = vpack.c.b16 %v2870, %v2869
      %v2895 = vpack.c.b16 %v2872, %v2871
      %v2896 = vpack.c.b16 %v2874, %v2873
      %v2897 = vpack.c.b16 %v2876, %v2875
      %v2898 = vpack.c.b16 %v2878, %v2877
      %v2899 = vpack.c.b16 %v2880, %v2879
      %v2900 = vpack.c.b16 %v2882, %v2881
      %v2901 = vpack.c.b16 %v2884, %v2883
      %v2902 = vpack.c.b16 %v2886, %v2885
      %v2904 = vsel %vm702, %v2887, 0
      %v2907 = vsel %vm702, %v2888, 0
      %v2910 = vsel %vm702, %v2889, 0
      %v2913 = vsel %vm702, %v2890, 0
      %v2916 = vsel %vm702, %v2891, 0
      %v2919 = vsel %vm702, %v2892, 0
      %v2922 = vsel %vm702, %v2893, 0
      %v2925 = vsel %vm702, %v2894, 0
      %v2928 = vsel %vm702, %v2895, 0
      %v2931 = vsel %vm702, %v2896, 0
      %v2934 = vsel %vm702, %v2897, 0
      %v2937 = vsel %vm702, %v2898, 0
      %v2940 = vsel %vm702, %v2899, 0
      %v2943 = vsel %vm702, %v2900, 0
      %v2946 = vsel %vm702, %v2901, 0
      %v2949 = vsel %vm702, %v2902, 0
      %v2952 = vsel %vm751, %v2822, 0
      %2954 = vmatpush.bf16.msra.mxu0 0
      %2955 = vmatpush.bf16.msra.mxu0 0
      %2956 = vmatpush.bf16.msra.mxu0 0
      %2957 = vmatpush.bf16.msra.mxu0 0
      %2958 = vmatpush.bf16.msra.mxu0 0
      %2959 = vmatpush.bf16.msra.mxu0 0
      %2960 = vmatpush.bf16.msra.mxu0 0
      %2961 = vmatpush.bf16.msra.mxu0 %v2952
      %2962 = vmatmul.bf16.gmra.mxu0 %v2904
      %v2963 = vpop.f32.mrf.mxu0
      %v2964 = vadd.f32 0.0, %v2963
      %v2965 = vpop.f32.mrf.mxu0
      %v2966 = vadd.f32 0.0, %v2965
      %2967 = vmatmul.bf16.gmra.mxu0 %v2907
      %v2968 = vpop.f32.mrf.mxu0
      %v2969 = vadd.f32 0.0, %v2968
      %v2970 = vpop.f32.mrf.mxu0
      %v2971 = vadd.f32 0.0, %v2970
      %2972 = vmatmul.bf16.gmra.mxu0 %v2910
      %v2973 = vpop.f32.mrf.mxu0
      %v2974 = vadd.f32 0.0, %v2973
      %v2975 = vpop.f32.mrf.mxu0
      %v2976 = vadd.f32 0.0, %v2975
      %2977 = vmatmul.bf16.gmra.mxu0 %v2913
      %v2978 = vpop.f32.mrf.mxu0
      %v2979 = vadd.f32 0.0, %v2978
      %v2980 = vpop.f32.mrf.mxu0
      %v2981 = vadd.f32 0.0, %v2980
      %2982 = vmatmul.bf16.gmra.mxu0 %v2916
      %v2983 = vpop.f32.mrf.mxu0
      %v2984 = vadd.f32 0.0, %v2983
      %v2985 = vpop.f32.mrf.mxu0
      %v2986 = vadd.f32 0.0, %v2985
      %2987 = vmatmul.bf16.gmra.mxu0 %v2919
      %v2988 = vpop.f32.mrf.mxu0
      %v2989 = vadd.f32 0.0, %v2988
      %v2990 = vpop.f32.mrf.mxu0
      %v2991 = vadd.f32 0.0, %v2990
      %2992 = vmatmul.bf16.gmra.mxu0 %v2922
      %v2993 = vpop.f32.mrf.mxu0
      %v2994 = vadd.f32 0.0, %v2993
      %v2995 = vpop.f32.mrf.mxu0
      %v2996 = vadd.f32 0.0, %v2995
      %2997 = vmatmul.bf16.gmra.mxu0 %v2925
      %v2998 = vpop.f32.mrf.mxu0
      %v2999 = vadd.f32 0.0, %v2998
      %v3000 = vpop.f32.mrf.mxu0
      %v3001 = vadd.f32 0.0, %v3000
      %3002 = vmatmul.bf16.gmra.mxu0 %v2928
      %v3003 = vpop.f32.mrf.mxu0
      %v3004 = vadd.f32 0.0, %v3003
      %v3005 = vpop.f32.mrf.mxu0
      %v3006 = vadd.f32 0.0, %v3005
      %3007 = vmatmul.bf16.gmra.mxu0 %v2931
      %v3008 = vpop.f32.mrf.mxu0
      %v3009 = vadd.f32 0.0, %v3008
      %v3010 = vpop.f32.mrf.mxu0
      %v3011 = vadd.f32 0.0, %v3010
      %3012 = vmatmul.bf16.gmra.mxu0 %v2934
      %v3013 = vpop.f32.mrf.mxu0
      %v3014 = vadd.f32 0.0, %v3013
      %v3015 = vpop.f32.mrf.mxu0
      %v3016 = vadd.f32 0.0, %v3015
      %3017 = vmatmul.bf16.gmra.mxu0 %v2937
      %v3018 = vpop.f32.mrf.mxu0
      %v3019 = vadd.f32 0.0, %v3018
      %v3020 = vpop.f32.mrf.mxu0
      %v3021 = vadd.f32 0.0, %v3020
      %3022 = vmatmul.bf16.gmra.mxu0 %v2940
      %v3023 = vpop.f32.mrf.mxu0
      %v3024 = vadd.f32 0.0, %v3023
      %v3025 = vpop.f32.mrf.mxu0
      %v3026 = vadd.f32 0.0, %v3025
      %3027 = vmatmul.bf16.gmra.mxu0 %v2943
      %v3028 = vpop.f32.mrf.mxu0
      %v3029 = vadd.f32 0.0, %v3028
      %v3030 = vpop.f32.mrf.mxu0
      %v3031 = vadd.f32 0.0, %v3030
      %3032 = vmatmul.bf16.gmra.mxu0 %v2946
      %v3033 = vpop.f32.mrf.mxu0
      %v3034 = vadd.f32 0.0, %v3033
      %v3035 = vpop.f32.mrf.mxu0
      %v3036 = vadd.f32 0.0, %v3035
      %3037 = vmatmul.bf16.gmra.mxu0 %v2949
      %v3038 = vpop.f32.mrf.mxu0
      %v3039 = vadd.f32 0.0, %v3038
      %v3040 = vpop.f32.mrf.mxu0
      %v3041 = vadd.f32 0.0, %v3040
      %3042 = vdwg.mxu0
      %v3043 = vadd.f32 %v2756, %v2964
      %v3044 = vadd.f32 %v2757, %v2966
      %v3045 = vadd.f32 %v2758, %v2969
      %v3046 = vadd.f32 %v2759, %v2971
      %v3047 = vadd.f32 %v2760, %v2974
      %v3048 = vadd.f32 %v2761, %v2976
      %v3049 = vadd.f32 %v2762, %v2979
      %v3050 = vadd.f32 %v2763, %v2981
      %v3051 = vadd.f32 %v2764, %v2984
      %v3052 = vadd.f32 %v2765, %v2986
      %v3053 = vadd.f32 %v2766, %v2989
      %v3054 = vadd.f32 %v2767, %v2991
      %v3055 = vadd.f32 %v2768, %v2994
      %v3056 = vadd.f32 %v2769, %v2996
      %v3057 = vadd.f32 %v2770, %v2999
      %v3058 = vadd.f32 %v2771, %v3001
      %v3059 = vadd.f32 %v2772, %v3004
      %v3060 = vadd.f32 %v2773, %v3006
      %v3061 = vadd.f32 %v2774, %v3009
      %v3062 = vadd.f32 %v2775, %v3011
      %v3063 = vadd.f32 %v2776, %v3014
      %v3064 = vadd.f32 %v2777, %v3016
      %v3065 = vadd.f32 %v2778, %v3019
      %v3066 = vadd.f32 %v2779, %v3021
      %v3067 = vadd.f32 %v2780, %v3024
      %v3068 = vadd.f32 %v2781, %v3026
      %v3069 = vadd.f32 %v2782, %v3029
      %v3070 = vadd.f32 %v2783, %v3031
      %v3071 = vadd.f32 %v2784, %v3034
      %v3072 = vadd.f32 %v2785, %v3036
      %v3073 = vadd.f32 %v2786, %v3039
      %v3074 = vadd.f32 %v2787, %v3041
      %v3075 = vld [vmem:[%s2788] sm:$0xf]
      %v3076 = vld [vmem:[%s2788 + $0x4] sm:$0xf]
      %v3077 = vld [vmem:[%s2788 + $0x8] sm:$0x1]
      %v3078 = vld [vmem:[%s2788 + $0xc] sm:$0xf]
      %v3079 = vld [vmem:[%s2788 + $0x10] sm:$0xf]
      %v3080 = vld [vmem:[%s2788 + $0x14] sm:$0x1]
      %v3081 = vld [vmem:[%s2788 + $0x18] sm:$0xf]
      %v3082 = vld [vmem:[%s2788 + $0x1c] sm:$0xf]
      %v3083 = vld [vmem:[%s2788 + $0x20] sm:$0x1]
      %v3084 = vld [vmem:[%s2788 + $0x24] sm:$0xf]
      %v3085 = vld [vmem:[%s2788 + $0x28] sm:$0xf]
      %v3086 = vld [vmem:[%s2788 + $0x2c] sm:$0x1]
      %v3087 = vld [vmem:[%s2788 + $0x30] sm:$0xf]
      %v3088 = vld [vmem:[%s2788 + $0x34] sm:$0xf]
      %v3089 = vld [vmem:[%s2788 + $0x38] sm:$0x1]
      %v3090 = vld [vmem:[%s2788 + $0x3c] sm:$0xf]
      %v3091 = vld [vmem:[%s2788 + $0x40] sm:$0xf]
      %v3092 = vld [vmem:[%s2788 + $0x44] sm:$0x1]
      %v3093 = vld [vmem:[%s2788 + $0x48] sm:$0xf]
      %v3094 = vld [vmem:[%s2788 + $0x4c] sm:$0xf]
      %v3095 = vld [vmem:[%s2788 + $0x50] sm:$0x1]
      %v3096 = vld [vmem:[%s2788 + $0x54] sm:$0xf]
      %v3097 = vld [vmem:[%s2788 + $0x58] sm:$0xf]
      %v3098 = vld [vmem:[%s2788 + $0x5c] sm:$0x1]
      %v3099 = vld [vmem:[%s2788 + $0x60] sm:$0xf]
      %v3100 = vld [vmem:[%s2788 + $0x64] sm:$0xf]
      %v3101 = vld [vmem:[%s2788 + $0x68] sm:$0x1]
      %v3102 = vld [vmem:[%s2788 + $0x6c] sm:$0xf]
      %v3103 = vld [vmem:[%s2788 + $0x70] sm:$0xf]
      %v3104 = vld [vmem:[%s2788 + $0x74] sm:$0x1]
      %v3105 = vld [vmem:[%s2788 + $0x78] sm:$0xf]
      %v3106 = vld [vmem:[%s2788 + $0x7c] sm:$0xf]
      %v3107 = vld [vmem:[%s2788 + $0x80] sm:$0x1]
      %v3108 = vld [vmem:[%s2788 + $0x84] sm:$0xf]
      %v3109 = vld [vmem:[%s2788 + $0x88] sm:$0xf]
      %v3110 = vld [vmem:[%s2788 + $0x8c] sm:$0x1]
      %v3111 = vld [vmem:[%s2788 + $0x90] sm:$0xf]
      %v3112 = vld [vmem:[%s2788 + $0x94] sm:$0xf]
      %v3113 = vld [vmem:[%s2788 + $0x98] sm:$0x1]
      %v3114 = vld [vmem:[%s2788 + $0x9c] sm:$0xf]
      %v3115 = vld [vmem:[%s2788 + $0xa0] sm:$0xf]
      %v3116 = vld [vmem:[%s2788 + $0xa4] sm:$0x1]
      %v3117 = vld [vmem:[%s2788 + $0xa8] sm:$0xf]
      %v3118 = vld [vmem:[%s2788 + $0xac] sm:$0xf]
      %v3119 = vld [vmem:[%s2788 + $0xb0] sm:$0x1]
      %v3120 = vld [vmem:[%s2788 + $0xb4] sm:$0xf]
      %v3121 = vld [vmem:[%s2788 + $0xb8] sm:$0xf]
      %v3122 = vld [vmem:[%s2788 + $0xbc] sm:$0x1]
      %v3124 = vshrl.u32 %v3075, 16
      %v3126 = vrot.slane %v3124, 4
      %v3127 = vshll.u32 %v3075, 16
      %v3129 = vrot.slane %v3127, 5
      %v3130 = vor.u32 %v3126, %v3129
      %v3131 = vrot.slane %v3130, 4
      %v3133 = vshll.u32 %v3076, 16
      %v3135 = vrot.slane %v3133, 5
      %v3136 = vsel %vm267, %v3131, %v3135
      %v3137 = vshrl.u32 %v3076, 16
      %v3139 = vrot.slane %v3137, 4
      %v3140 = vor.u32 %v3139, %v3135
      %v3141 = vrot.slane %v3140, 4
      %v3143 = vshll.u32 %v3077, 16
      %v3145 = vrot.slane %v3143, 5
      %v3146 = vsel %vm267, %v3141, %v3145
      %v3148 = vshrl.u32 %v3078, 16
      %v3150 = vrot.slane %v3148, 4
      %v3151 = vshll.u32 %v3078, 16
      %v3153 = vrot.slane %v3151, 5
      %v3154 = vor.u32 %v3150, %v3153
      %v3155 = vrot.slane %v3154, 4
      %v3157 = vshll.u32 %v3079, 16
      %v3159 = vrot.slane %v3157, 5
      %v3160 = vsel %vm267, %v3155, %v3159
      %v3161 = vshrl.u32 %v3079, 16
      %v3163 = vrot.slane %v3161, 4
      %v3164 = vor.u32 %v3163, %v3159
      %v3165 = vrot.slane %v3164, 4
      %v3167 = vshll.u32 %v3080, 16
      %v3169 = vrot.slane %v3167, 5
      %v3170 = vsel %vm267, %v3165, %v3169
      %v3172 = vshrl.u32 %v3081, 16
      %v3174 = vrot.slane %v3172, 4
      %v3175 = vshll.u32 %v3081, 16
      %v3177 = vrot.slane %v3175, 5
      %v3178 = vor.u32 %v3174, %v3177
      %v3179 = vrot.slane %v3178, 4
      %v3181 = vshll.u32 %v3082, 16
      %v3183 = vrot.slane %v3181, 5
      %v3184 = vsel %vm267, %v3179, %v3183
      %v3185 = vshrl.u32 %v3082, 16
      %v3187 = vrot.slane %v3185, 4
      %v3188 = vor.u32 %v3187, %v3183
      %v3189 = vrot.slane %v3188, 4
      %v3191 = vshll.u32 %v3083, 16
      %v3193 = vrot.slane %v3191, 5
      %v3194 = vsel %vm267, %v3189, %v3193
      %v3196 = vshrl.u32 %v3084, 16
      %v3198 = vrot.slane %v3196, 4
      %v3199 = vshll.u32 %v3084, 16
      %v3201 = vrot.slane %v3199, 5
      %v3202 = vor.u32 %v3198, %v3201
      %v3203 = vrot.slane %v3202, 4
      %v3205 = vshll.u32 %v3085, 16
      %v3207 = vrot.slane %v3205, 5
      %v3208 = vsel %vm267, %v3203, %v3207
      %v3209 = vshrl.u32 %v3085, 16
      %v3211 = vrot.slane %v3209, 4
      %v3212 = vor.u32 %v3211, %v3207
      %v3213 = vrot.slane %v3212, 4
      %v3215 = vshll.u32 %v3086, 16
      %v3217 = vrot.slane %v3215, 5
      %v3218 = vsel %vm267, %v3213, %v3217
      %v3220 = vshrl.u32 %v3087, 16
      %v3222 = vrot.slane %v3220, 4
      %v3223 = vshll.u32 %v3087, 16
      %v3225 = vrot.slane %v3223, 5
      %v3226 = vor.u32 %v3222, %v3225
      %v3227 = vrot.slane %v3226, 4
      %v3229 = vshll.u32 %v3088, 16
      %v3231 = vrot.slane %v3229, 5
      %v3232 = vsel %vm267, %v3227, %v3231
      %v3233 = vshrl.u32 %v3088, 16
      %v3235 = vrot.slane %v3233, 4
      %v3236 = vor.u32 %v3235, %v3231
      %v3237 = vrot.slane %v3236, 4
      %v3239 = vshll.u32 %v3089, 16
      %v3241 = vrot.slane %v3239, 5
      %v3242 = vsel %vm267, %v3237, %v3241
      %v3244 = vshrl.u32 %v3090, 16
      %v3246 = vrot.slane %v3244, 4
      %v3247 = vshll.u32 %v3090, 16
      %v3249 = vrot.slane %v3247, 5
      %v3250 = vor.u32 %v3246, %v3249
      %v3251 = vrot.slane %v3250, 4
      %v3253 = vshll.u32 %v3091, 16
      %v3255 = vrot.slane %v3253, 5
      %v3256 = vsel %vm267, %v3251, %v3255
      %v3257 = vshrl.u32 %v3091, 16
      %v3259 = vrot.slane %v3257, 4
      %v3260 = vor.u32 %v3259, %v3255
      %v3261 = vrot.slane %v3260, 4
      %v3263 = vshll.u32 %v3092, 16
      %v3265 = vrot.slane %v3263, 5
      %v3266 = vsel %vm267, %v3261, %v3265
      %v3268 = vshrl.u32 %v3093, 16
      %v3270 = vrot.slane %v3268, 4
      %v3271 = vshll.u32 %v3093, 16
      %v3273 = vrot.slane %v3271, 5
      %v3274 = vor.u32 %v3270, %v3273
      %v3275 = vrot.slane %v3274, 4
      %v3277 = vshll.u32 %v3094, 16
      %v3279 = vrot.slane %v3277, 5
      %v3280 = vsel %vm267, %v3275, %v3279
      %v3281 = vshrl.u32 %v3094, 16
      %v3283 = vrot.slane %v3281, 4
      %v3284 = vor.u32 %v3283, %v3279
      %v3285 = vrot.slane %v3284, 4
      %v3287 = vshll.u32 %v3095, 16
      %v3289 = vrot.slane %v3287, 5
      %v3290 = vsel %vm267, %v3285, %v3289
      %v3292 = vshrl.u32 %v3096, 16
      %v3294 = vrot.slane %v3292, 4
      %v3295 = vshll.u32 %v3096, 16
      %v3297 = vrot.slane %v3295, 5
      %v3298 = vor.u32 %v3294, %v3297
      %v3299 = vrot.slane %v3298, 4
      %v3301 = vshll.u32 %v3097, 16
      %v3303 = vrot.slane %v3301, 5
      %v3304 = vsel %vm267, %v3299, %v3303
      %v3305 = vshrl.u32 %v3097, 16
      %v3307 = vrot.slane %v3305, 4
      %v3308 = vor.u32 %v3307, %v3303
      %v3309 = vrot.slane %v3308, 4
      %v3311 = vshll.u32 %v3098, 16
      %v3313 = vrot.slane %v3311, 5
      %v3314 = vsel %vm267, %v3309, %v3313
      %v3316 = vshrl.u32 %v3099, 16
      %v3318 = vrot.slane %v3316, 4
      %v3319 = vshll.u32 %v3099, 16
      %v3321 = vrot.slane %v3319, 5
      %v3322 = vor.u32 %v3318, %v3321
      %v3323 = vrot.slane %v3322, 4
      %v3325 = vshll.u32 %v3100, 16
      %v3327 = vrot.slane %v3325, 5
      %v3328 = vsel %vm267, %v3323, %v3327
      %v3329 = vshrl.u32 %v3100, 16
      %v3331 = vrot.slane %v3329, 4
      %v3332 = vor.u32 %v3331, %v3327
      %v3333 = vrot.slane %v3332, 4
      %v3335 = vshll.u32 %v3101, 16
      %v3337 = vrot.slane %v3335, 5
      %v3338 = vsel %vm267, %v3333, %v3337
      %v3340 = vshrl.u32 %v3102, 16
      %v3342 = vrot.slane %v3340, 4
      %v3343 = vshll.u32 %v3102, 16
      %v3345 = vrot.slane %v3343, 5
      %v3346 = vor.u32 %v3342, %v3345
      %v3347 = vrot.slane %v3346, 4
      %v3349 = vshll.u32 %v3103, 16
      %v3351 = vrot.slane %v3349, 5
      %v3352 = vsel %vm267, %v3347, %v3351
      %v3353 = vshrl.u32 %v3103, 16
      %v3355 = vrot.slane %v3353, 4
      %v3356 = vor.u32 %v3355, %v3351
      %v3357 = vrot.slane %v3356, 4
      %v3359 = vshll.u32 %v3104, 16
      %v3361 = vrot.slane %v3359, 5
      %v3362 = vsel %vm267, %v3357, %v3361
      %v3364 = vshrl.u32 %v3105, 16
      %v3366 = vrot.slane %v3364, 4
      %v3367 = vshll.u32 %v3105, 16
      %v3369 = vrot.slane %v3367, 5
      %v3370 = vor.u32 %v3366, %v3369
      %v3371 = vrot.slane %v3370, 4
      %v3373 = vshll.u32 %v3106, 16
      %v3375 = vrot.slane %v3373, 5
      %v3376 = vsel %vm267, %v3371, %v3375
      %v3377 = vshrl.u32 %v3106, 16
      %v3379 = vrot.slane %v3377, 4
      %v3380 = vor.u32 %v3379, %v3375
      %v3381 = vrot.slane %v3380, 4
      %v3383 = vshll.u32 %v3107, 16
      %v3385 = vrot.slane %v3383, 5
      %v3386 = vsel %vm267, %v3381, %v3385
      %v3388 = vshrl.u32 %v3108, 16
      %v3390 = vrot.slane %v3388, 4
      %v3391 = vshll.u32 %v3108, 16
      %v3393 = vrot.slane %v3391, 5
      %v3394 = vor.u32 %v3390, %v3393
      %v3395 = vrot.slane %v3394, 4
      %v3397 = vshll.u32 %v3109, 16
      %v3399 = vrot.slane %v3397, 5
      %v3400 = vsel %vm267, %v3395, %v3399
      %v3401 = vshrl.u32 %v3109, 16
      %v3403 = vrot.slane %v3401, 4
      %v3404 = vor.u32 %v3403, %v3399
      %v3405 = vrot.slane %v3404, 4
      %v3407 = vshll.u32 %v3110, 16
      %v3409 = vrot.slane %v3407, 5
      %v3410 = vsel %vm267, %v3405, %v3409
      %v3412 = vshrl.u32 %v3111, 16
      %v3414 = vrot.slane %v3412, 4
      %v3415 = vshll.u32 %v3111, 16
      %v3417 = vrot.slane %v3415, 5
      %v3418 = vor.u32 %v3414, %v3417
      %v3419 = vrot.slane %v3418, 4
      %v3421 = vshll.u32 %v3112, 16
      %v3423 = vrot.slane %v3421, 5
      %v3424 = vsel %vm267, %v3419, %v3423
      %v3425 = vshrl.u32 %v3112, 16
      %v3427 = vrot.slane %v3425, 4
      %v3428 = vor.u32 %v3427, %v3423
      %v3429 = vrot.slane %v3428, 4
      %v3431 = vshll.u32 %v3113, 16
      %v3433 = vrot.slane %v3431, 5
      %v3434 = vsel %vm267, %v3429, %v3433
      %v3436 = vshrl.u32 %v3114, 16
      %v3438 = vrot.slane %v3436, 4
      %v3439 = vshll.u32 %v3114, 16
      %v3441 = vrot.slane %v3439, 5
      %v3442 = vor.u32 %v3438, %v3441
      %v3443 = vrot.slane %v3442, 4
      %v3445 = vshll.u32 %v3115, 16
      %v3447 = vrot.slane %v3445, 5
      %v3448 = vsel %vm267, %v3443, %v3447
      %v3449 = vshrl.u32 %v3115, 16
      %v3451 = vrot.slane %v3449, 4
      %v3452 = vor.u32 %v3451, %v3447
      %v3453 = vrot.slane %v3452, 4
      %v3455 = vshll.u32 %v3116, 16
      %v3457 = vrot.slane %v3455, 5
      %v3458 = vsel %vm267, %v3453, %v3457
      %v3460 = vshrl.u32 %v3117, 16
      %v3462 = vrot.slane %v3460, 4
      %v3463 = vshll.u32 %v3117, 16
      %v3465 = vrot.slane %v3463, 5
      %v3466 = vor.u32 %v3462, %v3465
      %v3467 = vrot.slane %v3466, 4
      %v3469 = vshll.u32 %v3118, 16
      %v3471 = vrot.slane %v3469, 5
      %v3472 = vsel %vm267, %v3467, %v3471
      %v3473 = vshrl.u32 %v3118, 16
      %v3475 = vrot.slane %v3473, 4
      %v3476 = vor.u32 %v3475, %v3471
      %v3477 = vrot.slane %v3476, 4
      %v3479 = vshll.u32 %v3119, 16
      %v3481 = vrot.slane %v3479, 5
      %v3482 = vsel %vm267, %v3477, %v3481
      %v3484 = vshrl.u32 %v3120, 16
      %v3486 = vrot.slane %v3484, 4
      %v3487 = vshll.u32 %v3120, 16
      %v3489 = vrot.slane %v3487, 5
      %v3490 = vor.u32 %v3486, %v3489
      %v3491 = vrot.slane %v3490, 4
      %v3493 = vshll.u32 %v3121, 16
      %v3495 = vrot.slane %v3493, 5
      %v3496 = vsel %vm267, %v3491, %v3495
      %v3497 = vshrl.u32 %v3121, 16
      %v3499 = vrot.slane %v3497, 4
      %v3500 = vor.u32 %v3499, %v3495
      %v3501 = vrot.slane %v3500, 4
      %v3503 = vshll.u32 %v3122, 16
      %v3505 = vrot.slane %v3503, 5
      %v3506 = vsel %vm267, %v3501, %v3505
      %s3507 = scalar_lea.vmem %s1, 28
      %v3508 = vld [vmem:[%s3507] sm:$0xf]
      %v3509 = vunpack.c.l.b16 %v3136
      %v3510 = vunpack.c.l.b16 %v3146
      %v3511 = vunpack.c.l.b16 %v3160
      %v3512 = vunpack.c.l.b16 %v3170
      %v3513 = vunpack.c.l.b16 %v3184
      %v3514 = vunpack.c.l.b16 %v3194
      %v3515 = vunpack.c.l.b16 %v3208
      %v3516 = vunpack.c.l.b16 %v3218
      %v3517 = vunpack.c.l.b16 %v3232
      %v3518 = vunpack.c.l.b16 %v3242
      %v3519 = vunpack.c.l.b16 %v3256
      %v3520 = vunpack.c.l.b16 %v3266
      %v3521 = vunpack.c.l.b16 %v3280
      %v3522 = vunpack.c.l.b16 %v3290
      %v3523 = vunpack.c.l.b16 %v3304
      %v3524 = vunpack.c.l.b16 %v3314
      %v3525 = vunpack.c.l.b16 %v3328
      %v3526 = vunpack.c.l.b16 %v3338
      %v3527 = vunpack.c.l.b16 %v3352
      %v3528 = vunpack.c.l.b16 %v3362
      %v3529 = vunpack.c.l.b16 %v3376
      %v3530 = vunpack.c.l.b16 %v3386
      %v3531 = vunpack.c.l.b16 %v3400
      %v3532 = vunpack.c.l.b16 %v3410
      %v3533 = vunpack.c.l.b16 %v3424
      %v3534 = vunpack.c.l.b16 %v3434
      %v3535 = vunpack.c.l.b16 %v3448
      %v3536 = vunpack.c.l.b16 %v3458
      %v3537 = vunpack.c.l.b16 %v3472
      %v3538 = vunpack.c.l.b16 %v3482
      %v3539 = vunpack.c.l.b16 %v3496
      %v3540 = vunpack.c.l.b16 %v3506
      %v3541 = vpack.c.b16 %v3510, %v3509
      %v3542 = vpack.c.b16 %v3512, %v3511
      %v3543 = vpack.c.b16 %v3514, %v3513
      %v3544 = vpack.c.b16 %v3516, %v3515
      %v3545 = vpack.c.b16 %v3518, %v3517
      %v3546 = vpack.c.b16 %v3520, %v3519
      %v3547 = vpack.c.b16 %v3522, %v3521
      %v3548 = vpack.c.b16 %v3524, %v3523
      %v3549 = vpack.c.b16 %v3526, %v3525
      %v3550 = vpack.c.b16 %v3528, %v3527
      %v3551 = vpack.c.b16 %v3530, %v3529
      %v3552 = vpack.c.b16 %v3532, %v3531
      %v3553 = vpack.c.b16 %v3534, %v3533
      %v3554 = vpack.c.b16 %v3536, %v3535
      %v3555 = vpack.c.b16 %v3538, %v3537
      %v3556 = vpack.c.b16 %v3540, %v3539
      %v3558 = vsel %vm702, %v3541, 0
      %v3561 = vsel %vm702, %v3542, 0
      %v3564 = vsel %vm702, %v3543, 0
      %v3567 = vsel %vm702, %v3544, 0
      %v3570 = vsel %vm702, %v3545, 0
      %v3573 = vsel %vm702, %v3546, 0
      %v3576 = vsel %vm702, %v3547, 0
      %v3579 = vsel %vm702, %v3548, 0
      %v3582 = vsel %vm702, %v3549, 0
      %v3585 = vsel %vm702, %v3550, 0
      %v3588 = vsel %vm702, %v3551, 0
      %v3591 = vsel %vm702, %v3552, 0
      %v3594 = vsel %vm702, %v3553, 0
      %v3597 = vsel %vm702, %v3554, 0
      %v3600 = vsel %vm702, %v3555, 0
      %v3603 = vsel %vm702, %v3556, 0
      %v3606 = vsel %vm751, %v3508, 0
      %3608 = vmatpush.bf16.msra.mxu0 0
      %3609 = vmatpush.bf16.msra.mxu0 0
      %3610 = vmatpush.bf16.msra.mxu0 0
      %3611 = vmatpush.bf16.msra.mxu0 0
      %3612 = vmatpush.bf16.msra.mxu0 0
      %3613 = vmatpush.bf16.msra.mxu0 0
      %3614 = vmatpush.bf16.msra.mxu0 0
      %3615 = vmatpush.bf16.msra.mxu0 %v3606
      %3616 = vmatmul.bf16.gmra.mxu0 %v3558
      %v3617 = vpop.f32.mrf.mxu0
      %v3618 = vadd.f32 0.0, %v3617
      %v3619 = vpop.f32.mrf.mxu0
      %v3620 = vadd.f32 0.0, %v3619
      %3621 = vmatmul.bf16.gmra.mxu0 %v3561
      %v3622 = vpop.f32.mrf.mxu0
      %v3623 = vadd.f32 0.0, %v3622
      %v3624 = vpop.f32.mrf.mxu0
      %v3625 = vadd.f32 0.0, %v3624
      %3626 = vmatmul.bf16.gmra.mxu0 %v3564
      %v3627 = vpop.f32.mrf.mxu0
      %v3628 = vadd.f32 0.0, %v3627
      %v3629 = vpop.f32.mrf.mxu0
      %v3630 = vadd.f32 0.0, %v3629
      %3631 = vmatmul.bf16.gmra.mxu0 %v3567
      %v3632 = vpop.f32.mrf.mxu0
      %v3633 = vadd.f32 0.0, %v3632
      %v3634 = vpop.f32.mrf.mxu0
      %v3635 = vadd.f32 0.0, %v3634
      %3636 = vmatmul.bf16.gmra.mxu0 %v3570
      %v3637 = vpop.f32.mrf.mxu0
      %v3638 = vadd.f32 0.0, %v3637
      %v3639 = vpop.f32.mrf.mxu0
      %v3640 = vadd.f32 0.0, %v3639
      %3641 = vmatmul.bf16.gmra.mxu0 %v3573
      %v3642 = vpop.f32.mrf.mxu0
      %v3643 = vadd.f32 0.0, %v3642
      %v3644 = vpop.f32.mrf.mxu0
      %v3645 = vadd.f32 0.0, %v3644
      %3646 = vmatmul.bf16.gmra.mxu0 %v3576
      %v3647 = vpop.f32.mrf.mxu0
      %v3648 = vadd.f32 0.0, %v3647
      %v3649 = vpop.f32.mrf.mxu0
      %v3650 = vadd.f32 0.0, %v3649
      %3651 = vmatmul.bf16.gmra.mxu0 %v3579
      %v3652 = vpop.f32.mrf.mxu0
      %v3653 = vadd.f32 0.0, %v3652
      %v3654 = vpop.f32.mrf.mxu0
      %v3655 = vadd.f32 0.0, %v3654
      %3656 = vmatmul.bf16.gmra.mxu0 %v3582
      %v3657 = vpop.f32.mrf.mxu0
      %v3658 = vadd.f32 0.0, %v3657
      %v3659 = vpop.f32.mrf.mxu0
      %v3660 = vadd.f32 0.0, %v3659
      %3661 = vmatmul.bf16.gmra.mxu0 %v3585
      %v3662 = vpop.f32.mrf.mxu0
      %v3663 = vadd.f32 0.0, %v3662
      %v3664 = vpop.f32.mrf.mxu0
      %v3665 = vadd.f32 0.0, %v3664
      %3666 = vmatmul.bf16.gmra.mxu0 %v3588
      %v3667 = vpop.f32.mrf.mxu0
      %v3668 = vadd.f32 0.0, %v3667
      %v3669 = vpop.f32.mrf.mxu0
      %v3670 = vadd.f32 0.0, %v3669
      %3671 = vmatmul.bf16.gmra.mxu0 %v3591
      %v3672 = vpop.f32.mrf.mxu0
      %v3673 = vadd.f32 0.0, %v3672
      %v3674 = vpop.f32.mrf.mxu0
      %v3675 = vadd.f32 0.0, %v3674
      %3676 = vmatmul.bf16.gmra.mxu0 %v3594
      %v3677 = vpop.f32.mrf.mxu0
      %v3678 = vadd.f32 0.0, %v3677
      %v3679 = vpop.f32.mrf.mxu0
      %v3680 = vadd.f32 0.0, %v3679
      %3681 = vmatmul.bf16.gmra.mxu0 %v3597
      %v3682 = vpop.f32.mrf.mxu0
      %v3683 = vadd.f32 0.0, %v3682
      %v3684 = vpop.f32.mrf.mxu0
      %v3685 = vadd.f32 0.0, %v3684
      %3686 = vmatmul.bf16.gmra.mxu0 %v3600
      %v3687 = vpop.f32.mrf.mxu0
      %v3688 = vadd.f32 0.0, %v3687
      %v3689 = vpop.f32.mrf.mxu0
      %v3690 = vadd.f32 0.0, %v3689
      %3691 = vmatmul.bf16.gmra.mxu0 %v3603
      %v3692 = vpop.f32.mrf.mxu0
      %v3693 = vadd.f32 0.0, %v3692
      %v3694 = vpop.f32.mrf.mxu0
      %v3695 = vadd.f32 0.0, %v3694
      %3696 = vdwg.mxu0
      %v3697 = vadd.f32 %v3043, %v3618
      %v3698 = vadd.f32 %v3044, %v3620
      %v3699 = vadd.f32 %v3045, %v3623
      %v3700 = vadd.f32 %v3046, %v3625
      %v3701 = vadd.f32 %v3047, %v3628
      %v3702 = vadd.f32 %v3048, %v3630
      %v3703 = vadd.f32 %v3049, %v3633
      %v3704 = vadd.f32 %v3050, %v3635
      %v3705 = vadd.f32 %v3051, %v3638
      %v3706 = vadd.f32 %v3052, %v3640
      %v3707 = vadd.f32 %v3053, %v3643
      %v3708 = vadd.f32 %v3054, %v3645
      %v3709 = vadd.f32 %v3055, %v3648
      %v3710 = vadd.f32 %v3056, %v3650
      %v3711 = vadd.f32 %v3057, %v3653
      %v3712 = vadd.f32 %v3058, %v3655
      %v3713 = vadd.f32 %v3059, %v3658
      %v3714 = vadd.f32 %v3060, %v3660
      %v3715 = vadd.f32 %v3061, %v3663
      %v3716 = vadd.f32 %v3062, %v3665
      %v3717 = vadd.f32 %v3063, %v3668
      %v3718 = vadd.f32 %v3064, %v3670
      %v3719 = vadd.f32 %v3065, %v3673
      %v3720 = vadd.f32 %v3066, %v3675
      %v3721 = vadd.f32 %v3067, %v3678
      %v3722 = vadd.f32 %v3068, %v3680
      %v3723 = vadd.f32 %v3069, %v3683
      %v3724 = vadd.f32 %v3070, %v3685
      %v3725 = vadd.f32 %v3071, %v3688
      %v3726 = vadd.f32 %v3072, %v3690
      %v3727 = vadd.f32 %v3073, %v3693
      %v3728 = vadd.f32 %v3074, %v3695
      %v3729 = vld [vmem:[%s2788] sm:$0xe]
      %v3730 = vld [vmem:[%s2788 + $0xc] sm:$0xe]
      %v3731 = vld [vmem:[%s2788 + $0x18] sm:$0xe]
      %v3732 = vld [vmem:[%s2788 + $0x24] sm:$0xe]
      %v3733 = vld [vmem:[%s2788 + $0x30] sm:$0xe]
      %v3734 = vld [vmem:[%s2788 + $0x3c] sm:$0xe]
      %v3735 = vld [vmem:[%s2788 + $0x48] sm:$0xe]
      %v3736 = vld [vmem:[%s2788 + $0x54] sm:$0xe]
      %v3737 = vld [vmem:[%s2788 + $0x60] sm:$0xe]
      %v3738 = vld [vmem:[%s2788 + $0x6c] sm:$0xe]
      %v3739 = vld [vmem:[%s2788 + $0x78] sm:$0xe]
      %v3740 = vld [vmem:[%s2788 + $0x84] sm:$0xe]
      %v3741 = vld [vmem:[%s2788 + $0x90] sm:$0xe]
      %v3742 = vld [vmem:[%s2788 + $0x9c] sm:$0xe]
      %v3743 = vld [vmem:[%s2788 + $0xa8] sm:$0xe]
      %v3744 = vld [vmem:[%s2788 + $0xb4] sm:$0xe]
      %v3793 = vrot.slane %v3729, 5
      %v3794 = vrot.slane %v3793, 4
      %v3795 = vrot.slane %v3076, 5
      %v3796 = vsel %vm1114, %v3794, %v3795
      %v3797 = vrot.slane %v3795, 4
      %v3798 = vrot.slane %v3077, 5
      %v3799 = vsel %vm1114, %v3797, %v3798
      %v3800 = vrot.slane %v3730, 5
      %v3801 = vrot.slane %v3800, 4
      %v3802 = vrot.slane %v3079, 5
      %v3803 = vsel %vm1114, %v3801, %v3802
      %v3804 = vrot.slane %v3802, 4
      %v3805 = vrot.slane %v3080, 5
      %v3806 = vsel %vm1114, %v3804, %v3805
      %v3807 = vrot.slane %v3731, 5
      %v3808 = vrot.slane %v3807, 4
      %v3809 = vrot.slane %v3082, 5
      %v3810 = vsel %vm1114, %v3808, %v3809
      %v3811 = vrot.slane %v3809, 4
      %v3812 = vrot.slane %v3083, 5
      %v3813 = vsel %vm1114, %v3811, %v3812
      %v3814 = vrot.slane %v3732, 5
      %v3815 = vrot.slane %v3814, 4
      %v3816 = vrot.slane %v3085, 5
      %v3817 = vsel %vm1114, %v3815, %v3816
      %v3818 = vrot.slane %v3816, 4
      %v3819 = vrot.slane %v3086, 5
      %v3820 = vsel %vm1114, %v3818, %v3819
      %v3821 = vrot.slane %v3733, 5
      %v3822 = vrot.slane %v3821, 4
      %v3823 = vrot.slane %v3088, 5
      %v3824 = vsel %vm1114, %v3822, %v3823
      %v3825 = vrot.slane %v3823, 4
      %v3826 = vrot.slane %v3089, 5
      %v3827 = vsel %vm1114, %v3825, %v3826
      %v3828 = vrot.slane %v3734, 5
      %v3829 = vrot.slane %v3828, 4
      %v3830 = vrot.slane %v3091, 5
      %v3831 = vsel %vm1114, %v3829, %v3830
      %v3832 = vrot.slane %v3830, 4
      %v3833 = vrot.slane %v3092, 5
      %v3834 = vsel %vm1114, %v3832, %v3833
      %v3835 = vrot.slane %v3735, 5
      %v3836 = vrot.slane %v3835, 4
      %v3837 = vrot.slane %v3094, 5
      %v3838 = vsel %vm1114, %v3836, %v3837
      %v3839 = vrot.slane %v3837, 4
      %v3840 = vrot.slane %v3095, 5
      %v3841 = vsel %vm1114, %v3839, %v3840
      %v3842 = vrot.slane %v3736, 5
      %v3843 = vrot.slane %v3842, 4
      %v3844 = vrot.slane %v3097, 5
      %v3845 = vsel %vm1114, %v3843, %v3844
      %v3846 = vrot.slane %v3844, 4
      %v3847 = vrot.slane %v3098, 5
      %v3848 = vsel %vm1114, %v3846, %v3847
      %v3849 = vrot.slane %v3737, 5
      %v3850 = vrot.slane %v3849, 4
      %v3851 = vrot.slane %v3100, 5
      %v3852 = vsel %vm1114, %v3850, %v3851
      %v3853 = vrot.slane %v3851, 4
      %v3854 = vrot.slane %v3101, 5
      %v3855 = vsel %vm1114, %v3853, %v3854
      %v3856 = vrot.slane %v3738, 5
      %v3857 = vrot.slane %v3856, 4
      %v3858 = vrot.slane %v3103, 5
      %v3859 = vsel %vm1114, %v3857, %v3858
      %v3860 = vrot.slane %v3858, 4
      %v3861 = vrot.slane %v3104, 5
      %v3862 = vsel %vm1114, %v3860, %v3861
      %v3863 = vrot.slane %v3739, 5
      %v3864 = vrot.slane %v3863, 4
      %v3865 = vrot.slane %v3106, 5
      %v3866 = vsel %vm1114, %v3864, %v3865
      %v3867 = vrot.slane %v3865, 4
      %v3868 = vrot.slane %v3107, 5
      %v3869 = vsel %vm1114, %v3867, %v3868
      %v3870 = vrot.slane %v3740, 5
      %v3871 = vrot.slane %v3870, 4
      %v3872 = vrot.slane %v3109, 5
      %v3873 = vsel %vm1114, %v3871, %v3872
      %v3874 = vrot.slane %v3872, 4
      %v3875 = vrot.slane %v3110, 5
      %v3876 = vsel %vm1114, %v3874, %v3875
      %v3877 = vrot.slane %v3741, 5
      %v3878 = vrot.slane %v3877, 4
      %v3879 = vrot.slane %v3112, 5
      %v3880 = vsel %vm1114, %v3878, %v3879
      %v3881 = vrot.slane %v3879, 4
      %v3882 = vrot.slane %v3113, 5
      %v3883 = vsel %vm1114, %v3881, %v3882
      %v3884 = vrot.slane %v3742, 5
      %v3885 = vrot.slane %v3884, 4
      %v3886 = vrot.slane %v3115, 5
      %v3887 = vsel %vm1114, %v3885, %v3886
      %v3888 = vrot.slane %v3886, 4
      %v3889 = vrot.slane %v3116, 5
      %v3890 = vsel %vm1114, %v3888, %v3889
      %v3891 = vrot.slane %v3743, 5
      %v3892 = vrot.slane %v3891, 4
      %v3893 = vrot.slane %v3118, 5
      %v3894 = vsel %vm1114, %v3892, %v3893
      %v3895 = vrot.slane %v3893, 4
      %v3896 = vrot.slane %v3119, 5
      %v3897 = vsel %vm1114, %v3895, %v3896
      %v3898 = vrot.slane %v3744, 5
      %v3899 = vrot.slane %v3898, 4
      %v3900 = vrot.slane %v3121, 5
      %v3901 = vsel %vm1114, %v3899, %v3900
      %v3902 = vrot.slane %v3900, 4
      %v3903 = vrot.slane %v3122, 5
      %v3904 = vsel %vm1114, %v3902, %v3903
      %s3905 = scalar_lea.vmem %s1, 32
      %v3906 = vld [vmem:[%s3905] sm:$0xf]
      %v3907 = vunpack.c.l.b16 %v3796
      %v3908 = vunpack.c.l.b16 %v3799
      %v3909 = vunpack.c.l.b16 %v3803
      %v3910 = vunpack.c.l.b16 %v3806
      %v3911 = vunpack.c.l.b16 %v3810
      %v3912 = vunpack.c.l.b16 %v3813
      %v3913 = vunpack.c.l.b16 %v3817
      %v3914 = vunpack.c.l.b16 %v3820
      %v3915 = vunpack.c.l.b16 %v3824
      %v3916 = vunpack.c.l.b16 %v3827
      %v3917 = vunpack.c.l.b16 %v3831
      %v3918 = vunpack.c.l.b16 %v3834
      %v3919 = vunpack.c.l.b16 %v3838
      %v3920 = vunpack.c.l.b16 %v3841
      %v3921 = vunpack.c.l.b16 %v3845
      %v3922 = vunpack.c.l.b16 %v3848
      %v3923 = vunpack.c.l.b16 %v3852
      %v3924 = vunpack.c.l.b16 %v3855
      %v3925 = vunpack.c.l.b16 %v3859
      %v3926 = vunpack.c.l.b16 %v3862
      %v3927 = vunpack.c.l.b16 %v3866
      %v3928 = vunpack.c.l.b16 %v3869
      %v3929 = vunpack.c.l.b16 %v3873
      %v3930 = vunpack.c.l.b16 %v3876
      %v3931 = vunpack.c.l.b16 %v3880
      %v3932 = vunpack.c.l.b16 %v3883
      %v3933 = vunpack.c.l.b16 %v3887
      %v3934 = vunpack.c.l.b16 %v3890
      %v3935 = vunpack.c.l.b16 %v3894
      %v3936 = vunpack.c.l.b16 %v3897
      %v3937 = vunpack.c.l.b16 %v3901
      %v3938 = vunpack.c.l.b16 %v3904
      %v3939 = vpack.c.b16 %v3908, %v3907
      %v3940 = vpack.c.b16 %v3910, %v3909
      %v3941 = vpack.c.b16 %v3912, %v3911
      %v3942 = vpack.c.b16 %v3914, %v3913
      %v3943 = vpack.c.b16 %v3916, %v3915
      %v3944 = vpack.c.b16 %v3918, %v3917
      %v3945 = vpack.c.b16 %v3920, %v3919
      %v3946 = vpack.c.b16 %v3922, %v3921
      %v3947 = vpack.c.b16 %v3924, %v3923
      %v3948 = vpack.c.b16 %v3926, %v3925
      %v3949 = vpack.c.b16 %v3928, %v3927
      %v3950 = vpack.c.b16 %v3930, %v3929
      %v3951 = vpack.c.b16 %v3932, %v3931
      %v3952 = vpack.c.b16 %v3934, %v3933
      %v3953 = vpack.c.b16 %v3936, %v3935
      %v3954 = vpack.c.b16 %v3938, %v3937
      %v3956 = vsel %vm702, %v3939, 0
      %v3959 = vsel %vm702, %v3940, 0
      %v3962 = vsel %vm702, %v3941, 0
      %v3965 = vsel %vm702, %v3942, 0
      %v3968 = vsel %vm702, %v3943, 0
      %v3971 = vsel %vm702, %v3944, 0
      %v3974 = vsel %vm702, %v3945, 0
      %v3977 = vsel %vm702, %v3946, 0
      %v3980 = vsel %vm702, %v3947, 0
      %v3983 = vsel %vm702, %v3948, 0
      %v3986 = vsel %vm702, %v3949, 0
      %v3989 = vsel %vm702, %v3950, 0
      %v3992 = vsel %vm702, %v3951, 0
      %v3995 = vsel %vm702, %v3952, 0
      %v3998 = vsel %vm702, %v3953, 0
      %v4001 = vsel %vm702, %v3954, 0
      %v4004 = vsel %vm751, %v3906, 0
      %4006 = vmatpush.bf16.msra.mxu0 0
      %4007 = vmatpush.bf16.msra.mxu0 0
      %4008 = vmatpush.bf16.msra.mxu0 0
      %4009 = vmatpush.bf16.msra.mxu0 0
      %4010 = vmatpush.bf16.msra.mxu0 0
      %4011 = vmatpush.bf16.msra.mxu0 0
      %4012 = vmatpush.bf16.msra.mxu0 0
      %4013 = vmatpush.bf16.msra.mxu0 %v4004
      %4014 = vmatmul.bf16.gmra.mxu0 %v3956
      %v4015 = vpop.f32.mrf.mxu0
      %v4016 = vadd.f32 0.0, %v4015
      %v4017 = vpop.f32.mrf.mxu0
      %v4018 = vadd.f32 0.0, %v4017
      %4019 = vmatmul.bf16.gmra.mxu0 %v3959
      %v4020 = vpop.f32.mrf.mxu0
      %v4021 = vadd.f32 0.0, %v4020
      %v4022 = vpop.f32.mrf.mxu0
      %v4023 = vadd.f32 0.0, %v4022
      %4024 = vmatmul.bf16.gmra.mxu0 %v3962
      %v4025 = vpop.f32.mrf.mxu0
      %v4026 = vadd.f32 0.0, %v4025
      %v4027 = vpop.f32.mrf.mxu0
      %v4028 = vadd.f32 0.0, %v4027
      %4029 = vmatmul.bf16.gmra.mxu0 %v3965
      %v4030 = vpop.f32.mrf.mxu0
      %v4031 = vadd.f32 0.0, %v4030
      %v4032 = vpop.f32.mrf.mxu0
      %v4033 = vadd.f32 0.0, %v4032
      %4034 = vmatmul.bf16.gmra.mxu0 %v3968
      %v4035 = vpop.f32.mrf.mxu0
      %v4036 = vadd.f32 0.0, %v4035
      %v4037 = vpop.f32.mrf.mxu0
      %v4038 = vadd.f32 0.0, %v4037
      %4039 = vmatmul.bf16.gmra.mxu0 %v3971
      %v4040 = vpop.f32.mrf.mxu0
      %v4041 = vadd.f32 0.0, %v4040
      %v4042 = vpop.f32.mrf.mxu0
      %v4043 = vadd.f32 0.0, %v4042
      %4044 = vmatmul.bf16.gmra.mxu0 %v3974
      %v4045 = vpop.f32.mrf.mxu0
      %v4046 = vadd.f32 0.0, %v4045
      %v4047 = vpop.f32.mrf.mxu0
      %v4048 = vadd.f32 0.0, %v4047
      %4049 = vmatmul.bf16.gmra.mxu0 %v3977
      %v4050 = vpop.f32.mrf.mxu0
      %v4051 = vadd.f32 0.0, %v4050
      %v4052 = vpop.f32.mrf.mxu0
      %v4053 = vadd.f32 0.0, %v4052
      %4054 = vmatmul.bf16.gmra.mxu0 %v3980
      %v4055 = vpop.f32.mrf.mxu0
      %v4056 = vadd.f32 0.0, %v4055
      %v4057 = vpop.f32.mrf.mxu0
      %v4058 = vadd.f32 0.0, %v4057
      %4059 = vmatmul.bf16.gmra.mxu0 %v3983
      %v4060 = vpop.f32.mrf.mxu0
      %v4061 = vadd.f32 0.0, %v4060
      %v4062 = vpop.f32.mrf.mxu0
      %v4063 = vadd.f32 0.0, %v4062
      %4064 = vmatmul.bf16.gmra.mxu0 %v3986
      %v4065 = vpop.f32.mrf.mxu0
      %v4066 = vadd.f32 0.0, %v4065
      %v4067 = vpop.f32.mrf.mxu0
      %v4068 = vadd.f32 0.0, %v4067
      %4069 = vmatmul.bf16.gmra.mxu0 %v3989
      %v4070 = vpop.f32.mrf.mxu0
      %v4071 = vadd.f32 0.0, %v4070
      %v4072 = vpop.f32.mrf.mxu0
      %v4073 = vadd.f32 0.0, %v4072
      %4074 = vmatmul.bf16.gmra.mxu0 %v3992
      %v4075 = vpop.f32.mrf.mxu0
      %v4076 = vadd.f32 0.0, %v4075
      %v4077 = vpop.f32.mrf.mxu0
      %v4078 = vadd.f32 0.0, %v4077
      %4079 = vmatmul.bf16.gmra.mxu0 %v3995
      %v4080 = vpop.f32.mrf.mxu0
      %v4081 = vadd.f32 0.0, %v4080
      %v4082 = vpop.f32.mrf.mxu0
      %v4083 = vadd.f32 0.0, %v4082
      %4084 = vmatmul.bf16.gmra.mxu0 %v3998
      %v4085 = vpop.f32.mrf.mxu0
      %v4086 = vadd.f32 0.0, %v4085
      %v4087 = vpop.f32.mrf.mxu0
      %v4088 = vadd.f32 0.0, %v4087
      %4089 = vmatmul.bf16.gmra.mxu0 %v4001
      %v4090 = vpop.f32.mrf.mxu0
      %v4091 = vadd.f32 0.0, %v4090
      %v4092 = vpop.f32.mrf.mxu0
      %v4093 = vadd.f32 0.0, %v4092
      %4094 = vdwg.mxu0
      %v4095 = vadd.f32 %v3697, %v4016
      %v4096 = vadd.f32 %v3698, %v4018
      %v4097 = vadd.f32 %v3699, %v4021
      %v4098 = vadd.f32 %v3700, %v4023
      %v4099 = vadd.f32 %v3701, %v4026
      %v4100 = vadd.f32 %v3702, %v4028
      %v4101 = vadd.f32 %v3703, %v4031
      %v4102 = vadd.f32 %v3704, %v4033
      %v4103 = vadd.f32 %v3705, %v4036
      %v4104 = vadd.f32 %v3706, %v4038
      %v4105 = vadd.f32 %v3707, %v4041
      %v4106 = vadd.f32 %v3708, %v4043
      %v4107 = vadd.f32 %v3709, %v4046
      %v4108 = vadd.f32 %v3710, %v4048
      %v4109 = vadd.f32 %v3711, %v4051
      %v4110 = vadd.f32 %v3712, %v4053
      %v4111 = vadd.f32 %v3713, %v4056
      %v4112 = vadd.f32 %v3714, %v4058
      %v4113 = vadd.f32 %v3715, %v4061
      %v4114 = vadd.f32 %v3716, %v4063
      %v4115 = vadd.f32 %v3717, %v4066
      %v4116 = vadd.f32 %v3718, %v4068
      %v4117 = vadd.f32 %v3719, %v4071
      %v4118 = vadd.f32 %v3720, %v4073
      %v4119 = vadd.f32 %v3721, %v4076
      %v4120 = vadd.f32 %v3722, %v4078
      %v4121 = vadd.f32 %v3723, %v4081
      %v4122 = vadd.f32 %v3724, %v4083
      %v4123 = vadd.f32 %v3725, %v4086
      %v4124 = vadd.f32 %v3726, %v4088
      %v4125 = vadd.f32 %v3727, %v4091
      %v4126 = vadd.f32 %v3728, %v4093
      %v4127 = vpack.c.bf16 %v4095, %v4095
      %v4128 = vpack.c.bf16 %v4096, %v4096
      %v4129 = vpack.c.bf16 %v4097, %v4097
      %v4130 = vpack.c.bf16 %v4098, %v4098
      %v4131 = vpack.c.bf16 %v4099, %v4099
      %v4132 = vpack.c.bf16 %v4100, %v4100
      %v4133 = vpack.c.bf16 %v4101, %v4101
      %v4134 = vpack.c.bf16 %v4102, %v4102
      %v4135 = vpack.c.bf16 %v4103, %v4103
      %v4136 = vpack.c.bf16 %v4104, %v4104
      %v4137 = vpack.c.bf16 %v4105, %v4105
      %v4138 = vpack.c.bf16 %v4106, %v4106
      %v4139 = vpack.c.bf16 %v4107, %v4107
      %v4140 = vpack.c.bf16 %v4108, %v4108
      %v4141 = vpack.c.bf16 %v4109, %v4109
      %v4142 = vpack.c.bf16 %v4110, %v4110
      %v4143 = vpack.c.bf16 %v4111, %v4111
      %v4144 = vpack.c.bf16 %v4112, %v4112
      %v4145 = vpack.c.bf16 %v4113, %v4113
      %v4146 = vpack.c.bf16 %v4114, %v4114
      %v4147 = vpack.c.bf16 %v4115, %v4115
      %v4148 = vpack.c.bf16 %v4116, %v4116
      %v4149 = vpack.c.bf16 %v4117, %v4117
      %v4150 = vpack.c.bf16 %v4118, %v4118
      %v4151 = vpack.c.bf16 %v4119, %v4119
      %v4152 = vpack.c.bf16 %v4120, %v4120
      %v4153 = vpack.c.bf16 %v4121, %v4121
      %v4154 = vpack.c.bf16 %v4122, %v4122
      %v4155 = vpack.c.bf16 %v4123, %v4123
      %v4156 = vpack.c.bf16 %v4124, %v4124
      %v4157 = vpack.c.bf16 %v4125, %v4125
      %v4158 = vpack.c.bf16 %v4126, %v4126
      %4159 = vst [vmem:[%s208] sm:$0xf] %v4127
      %4160 = vst [vmem:[%s208 + $0x4] sm:$0xf] %v4128
      %4161 = vst [vmem:[%s208 + $0x8] sm:$0xf] %v4129
      %4162 = vst [vmem:[%s208 + $0xc] sm:$0xf] %v4130
      %4163 = vst [vmem:[%s208 + $0x10] sm:$0xf] %v4131
      %4164 = vst [vmem:[%s208 + $0x14] sm:$0xf] %v4132
      %4165 = vst [vmem:[%s208 + $0x18] sm:$0xf] %v4133
      %4166 = vst [vmem:[%s208 + $0x1c] sm:$0xf] %v4134
      %4167 = vst [vmem:[%s208 + $0x20] sm:$0xf] %v4135
      %4168 = vst [vmem:[%s208 + $0x24] sm:$0xf] %v4136
      %4169 = vst [vmem:[%s208 + $0x28] sm:$0xf] %v4137
      %4170 = vst [vmem:[%s208 + $0x2c] sm:$0xf] %v4138
      %4171 = vst [vmem:[%s208 + $0x30] sm:$0xf] %v4139
      %4172 = vst [vmem:[%s208 + $0x34] sm:$0xf] %v4140
      %4173 = vst [vmem:[%s208 + $0x38] sm:$0xf] %v4141
      %4174 = vst [vmem:[%s208 + $0x3c] sm:$0xf] %v4142
      %4175 = vst [vmem:[%s208 + $0x40] sm:$0xf] %v4143
      %4176 = vst [vmem:[%s208 + $0x44] sm:$0xf] %v4144
      %4177 = vst [vmem:[%s208 + $0x48] sm:$0xf] %v4145
      %4178 = vst [vmem:[%s208 + $0x4c] sm:$0xf] %v4146
      %4179 = vst [vmem:[%s208 + $0x50] sm:$0xf] %v4147
      %4180 = vst [vmem:[%s208 + $0x54] sm:$0xf] %v4148
      %4181 = vst [vmem:[%s208 + $0x58] sm:$0xf] %v4149
      %4182 = vst [vmem:[%s208 + $0x5c] sm:$0xf] %v4150
      %4183 = vst [vmem:[%s208 + $0x60] sm:$0xf] %v4151
      %4184 = vst [vmem:[%s208 + $0x64] sm:$0xf] %v4152
      %4185 = vst [vmem:[%s208 + $0x68] sm:$0xf] %v4153
      %4186 = vst [vmem:[%s208 + $0x6c] sm:$0xf] %v4154
      %4187 = vst [vmem:[%s208 + $0x70] sm:$0xf] %v4155
      %4188 = vst [vmem:[%s208 + $0x74] sm:$0xf] %v4156
      %4189 = vst [vmem:[%s208 + $0x78] sm:$0xf] %v4157
      %4190 = vst [vmem:[%s208 + $0x7c] sm:$0xf] %v4158
      %v4191 = vadd.f32 %v4095, %v4096
      %v4192 = vadd.f32 %v4191, %v4097
      %v4193 = vadd.f32 %v4192, %v4098
      %v4194 = vadd.f32 %v4193, %v4099
      %v4195 = vadd.f32 %v4194, %v4100
      %v4196 = vadd.f32 %v4195, %v4101
      %v4197 = vadd.f32 %v4196, %v4102
      %v4198 = vadd.f32 %v4197, %v4103
      %v4199 = vadd.f32 %v4198, %v4104
      %v4200 = vadd.f32 %v4199, %v4105
      %v4201 = vadd.f32 %v4200, %v4106
      %v4202 = vadd.f32 %v4201, %v4107
      %v4203 = vadd.f32 %v4202, %v4108
      %v4204 = vadd.f32 %v4203, %v4109
      %v4205 = vadd.f32 %v4204, %v4110
      %v4206 = vadd.f32 %v4205, %v4111
      %v4207 = vadd.f32 %v4206, %v4112
      %v4208 = vadd.f32 %v4207, %v4113
      %v4209 = vadd.f32 %v4208, %v4114
      %v4210 = vadd.f32 %v4209, %v4115
      %v4211 = vadd.f32 %v4210, %v4116
      %v4212 = vadd.f32 %v4211, %v4117
      %v4213 = vadd.f32 %v4212, %v4118
      %v4214 = vadd.f32 %v4213, %v4119
      %v4215 = vadd.f32 %v4214, %v4120
      %v4216 = vadd.f32 %v4215, %v4121
      %v4217 = vadd.f32 %v4216, %v4122
      %v4218 = vadd.f32 %v4217, %v4123
      %v4219 = vadd.f32 %v4218, %v4124
      %v4220 = vadd.f32 %v4219, %v4125
      %v4221 = vadd.f32 %v4220, %v4126
      %v4222 = vrot.slane %v4221, 4
      %v4223 = vadd.f32 %v4221, %v4222
      %v4224 = vrot.slane %v4223, 2
      %v4225 = vadd.f32 %v4223, %v4224
      %v4226 = vrot.slane %v4225, 1
      %v4227 = vadd.f32 %v4225, %v4226
      %4228 = vst [vmem:[%s211] sm:$0x1] %v4227
      %v4229 = vmul.f32 %v4095, %v4095
      %v4230 = vmul.f32 %v4096, %v4096
      %v4231 = vmul.f32 %v4097, %v4097
      %v4232 = vmul.f32 %v4098, %v4098
      %v4233 = vmul.f32 %v4099, %v4099
      %v4234 = vmul.f32 %v4100, %v4100
      %v4235 = vmul.f32 %v4101, %v4101
      %v4236 = vmul.f32 %v4102, %v4102
      %v4237 = vmul.f32 %v4103, %v4103
      %v4238 = vmul.f32 %v4104, %v4104
      %v4239 = vmul.f32 %v4105, %v4105
      %v4240 = vmul.f32 %v4106, %v4106
      %v4241 = vmul.f32 %v4107, %v4107
      %v4242 = vmul.f32 %v4108, %v4108
      %v4243 = vmul.f32 %v4109, %v4109
      %v4244 = vmul.f32 %v4110, %v4110
      %v4245 = vmul.f32 %v4111, %v4111
      %v4246 = vmul.f32 %v4112, %v4112
      %v4247 = vmul.f32 %v4113, %v4113
      %v4248 = vmul.f32 %v4114, %v4114
      %v4249 = vmul.f32 %v4115, %v4115
      %v4250 = vmul.f32 %v4116, %v4116
      %v4251 = vmul.f32 %v4117, %v4117
      %v4252 = vmul.f32 %v4118, %v4118
      %v4253 = vmul.f32 %v4119, %v4119
      %v4254 = vmul.f32 %v4120, %v4120
      %v4255 = vmul.f32 %v4121, %v4121
      %v4256 = vmul.f32 %v4122, %v4122
      %v4257 = vmul.f32 %v4123, %v4123
      %v4258 = vmul.f32 %v4124, %v4124
      %v4259 = vmul.f32 %v4125, %v4125
      %v4260 = vmul.f32 %v4126, %v4126
      %v4261 = vadd.f32 %v4229, %v4230
      %v4262 = vadd.f32 %v4261, %v4231
      %v4263 = vadd.f32 %v4262, %v4232
      %v4264 = vadd.f32 %v4263, %v4233
      %v4265 = vadd.f32 %v4264, %v4234
      %v4266 = vadd.f32 %v4265, %v4235
      %v4267 = vadd.f32 %v4266, %v4236
      %v4268 = vadd.f32 %v4267, %v4237
      %v4269 = vadd.f32 %v4268, %v4238
      %v4270 = vadd.f32 %v4269, %v4239
      %v4271 = vadd.f32 %v4270, %v4240
      %v4272 = vadd.f32 %v4271, %v4241
      %v4273 = vadd.f32 %v4272, %v4242
      %v4274 = vadd.f32 %v4273, %v4243
      %v4275 = vadd.f32 %v4274, %v4244
      %v4276 = vadd.f32 %v4275, %v4245
      %v4277 = vadd.f32 %v4276, %v4246
      %v4278 = vadd.f32 %v4277, %v4247
      %v4279 = vadd.f32 %v4278, %v4248
      %v4280 = vadd.f32 %v4279, %v4249
      %v4281 = vadd.f32 %v4280, %v4250
      %v4282 = vadd.f32 %v4281, %v4251
      %v4283 = vadd.f32 %v4282, %v4252
      %v4284 = vadd.f32 %v4283, %v4253
      %v4285 = vadd.f32 %v4284, %v4254
      %v4286 = vadd.f32 %v4285, %v4255
      %v4287 = vadd.f32 %v4286, %v4256
      %v4288 = vadd.f32 %v4287, %v4257
      %v4289 = vadd.f32 %v4288, %v4258
      %v4290 = vadd.f32 %v4289, %v4259
      %v4291 = vadd.f32 %v4290, %v4260
      %v4292 = vrot.slane %v4291, 4
      %v4293 = vadd.f32 %v4291, %v4292
      %v4294 = vrot.slane %v4293, 2
      %v4295 = vadd.f32 %v4293, %v4294
      %v4296 = vrot.slane %v4295, 1
      %v4297 = vadd.f32 %v4295, %v4296
      %4298 = vst [vmem:[%s214] sm:$0x1] %v4297
      %p4299 = scmp.lt.s32.totalorder %s16, 1
      %s4300 = scalar_select %p4299, %s16, 1
      %s4301 = smul.addr %s4300, 32
      %s4302 = smul.addr %s4301, 4
      %s4303 = scalar_lea.vmem %s2, %s4302
      %p4304 = scmp.lt.s32.totalorder %s16, 1
      %s4305 = scalar_select %p4304, %s16, 1
      %s4306 = scalar_lea.vmem %s3, %s4305
      %p4307 = scmp.lt.s32.totalorder %s16, 1
      %s4308 = scalar_select %p4307, %s16, 1
      %s4309 = scalar_lea.vmem %s4, %s4308
      // Predicated region
      $region29: #{basic_block_meta_forward.3} parent=27 // pred_check
        %p4310 = pneg %p81
      $region30: #{basic_block_meta_forward.3} parent=27 // pred_check_branch
        %4312 = sbr.rel (%p4310) target = $region32
      $region31: #{basic_block_meta_forward.3} parent=27 // pred_region
        _
      $region32: #{basic_block_meta_forward.3} parent=27 // pred_fallthru
        _
      // Predicated region
      $region33: #{basic_block_meta_forward.3} parent=27 // pred_check
        %p4313 = pneg %p107
      $region34: #{basic_block_meta_forward.3} parent=27 // pred_check_branch
        %4315 = sbr.rel (%p4313) target = $region36
      $region35: #{basic_block_meta_forward.3} parent=27 // pred_region
        _
      $region36: #{basic_block_meta_forward.3} parent=27 // pred_fallthru
        _
      // Predicated region
      $region37: #{basic_block_meta_forward.3} parent=27 // pred_check
        %p4316 = pneg %p133
      $region38: #{basic_block_meta_forward.3} parent=27 // pred_check_branch
        %4318 = sbr.rel (%p4316) target = $region40
      $region39: #{basic_block_meta_forward.3} parent=27 // pred_region
        _
      $region40: #{basic_block_meta_forward.3} parent=27 // pred_fallthru
        _
    $region28: #{basic_block_meta_forward.3} parent=5 // pred_fallthru
      _
    %p4319 = scmp.le.s32.totalorder 2, %s11
    // Predicated region
    $region41: #{basic_block_meta_forward.3} parent=5 // pred_check
      %p4320 = pneg %p4319
    $region42: #{basic_block_meta_forward.3} parent=5 // pred_check_branch
      %4322 = sbr.rel (%p4320) target = $region44
    $region43: #{basic_block_meta_forward.3} parent=5 // pred_region
      %s4323 = ssub.s32 %s11, 2
      // Predicated region
      $region45: #{basic_block_meta_forward.3} parent=43 // pred_check
        %p4324 = pneg %p87
      $region46: #{basic_block_meta_forward.3} parent=43 // pred_check_branch
        %4326 = sbr.rel (%p4324) target = $region48
      $region47: #{basic_block_meta_forward.3} parent=43 // pred_region
        %p4327 = scmp.lt.s32.totalorder %s17, 1
        %s4328 = scalar_select %p4327, %s17, 1
        %s4329 = smul.addr %s4328, 32
        %s4330 = smul.addr %s4329, 4
        %s4331 = scalar_lea.vmem %s2, %s4330
      $region48: #{basic_block_meta_forward.3} parent=43 // pred_fallthru
        _
      // Predicated region
      $region49: #{basic_block_meta_forward.3} parent=43 // pred_check
        %p4332 = pneg %p113
      $region50: #{basic_block_meta_forward.3} parent=43 // pred_check_branch
        %4334 = sbr.rel (%p4332) target = $region52
      $region51: #{basic_block_meta_forward.3} parent=43 // pred_region
        %p4335 = scmp.lt.s32.totalorder %s17, 1
        %s4336 = scalar_select %p4335, %s17, 1
        %s4337 = scalar_lea.vmem %s3, %s4336
      $region52: #{basic_block_meta_forward.3} parent=43 // pred_fallthru
        _
      // Predicated region
      $region53: #{basic_block_meta_forward.3} parent=43 // pred_check
        %p4338 = pneg %p139
      $region54: #{basic_block_meta_forward.3} parent=43 // pred_check_branch
        %4340 = sbr.rel (%p4338) target = $region56
      $region55: #{basic_block_meta_forward.3} parent=43 // pred_region
        %p4341 = scmp.lt.s32.totalorder %s17, 1
        %s4342 = scalar_select %p4341, %s17, 1
        %s4343 = scalar_lea.vmem %s4, %s4342
      $region56: #{basic_block_meta_forward.3} parent=43 // pred_fallthru
        _
    $region44: #{basic_block_meta_forward.3} parent=5 // pred_fallthru
      _
  $region6: #{basic_block_meta_forward.3} parent=0 // loop_footer
    %s15 = sadd.s32 1, %s11
  $region7: #{basic_block_meta_forward.3} parent=0 // loop_footer_branch
    %10 = sbr.rel target = $region3
  $region8: #{basic_block_meta_forward.3} parent=0 // loop_exit
    _

</llo_original>
